<compile_context>
chip_gen: v6e
topology: v6e:2x2x1
jax: 0.10.0
libtpu: 0.0.40
codegen_flags: <defaults>
</compile_context>

<pallas_src>
import functools

import jax
import jax.numpy as jnp
from jax.experimental import pallas as pl
from jax.experimental.pallas import tpu as pltpu


N_BRANCHES = 4   # follow / left / right / straight
N_ACTIONS = 3    # steer / throttle / brake
HIDDEN = 32
OUT_LANES = 128  # lane-dense packed output width
NEG = -1e9       # "mask" value folded into biases (ReLU zeroes these rows)


# ----------------------------------------------------------------------------
# Fused Pallas kernel
# ----------------------------------------------------------------------------
def _cilrs_fused_kernel(x_ref, w1_ref, b1m_ref, w2_ref, b2m_ref,
                        wfc_ref, bfc_ref, w1b_ref, b1b_ref,
                        m128_ref, oh_ref, w2b_ref, bb2_ref,
                        out_ref, y1_ref, z_ref,
                        *, wp, tot, g, n_img, inv_pool):
    f32 = jnp.float32
    bf16 = jnp.bfloat16
    shifts = [di * wp + dj for di in range(3) for dj in range(3)]

    # ---- conv1 (3x3 / stride 1 / pad 1): ONE matmul on an in-VMEM im2col operand.
    a1 = jnp.concatenate([x_ref[s:s + tot, :] for s in shifts], axis=1)   # (TOT, 9*Cin) bf16
    y1 = jnp.dot(a1, w1_ref[...], preferred_element_type=f32)            # (TOT, C1) f32
    # b1m = conv1 bias at interior rows, -1e9 at padded-frame border rows, so the
    # ReLU zeroes the border (this doubles as conv2's zero padding). No mask mul.
    y1 = jnp.maximum(y1 + b1m_ref[...], 0.0)
    # stage conv1 output ONCE as bf16; zero guard tail read by dense conv2 taps.
    y1_ref[...] = jnp.zeros(y1_ref.shape, y1_ref.dtype)
    y1_ref[0:tot, :] = y1.astype(bf16)

    # ---- conv2 (3x3 / stride 2 / pad 1): dense-at-stride-1, ONE matmul; raw
    #      result stays in the VMEM scratch (no big live SSA value).
    a2 = jnp.concatenate([y1_ref[s:s + tot, :] for s in shifts], axis=1)  # (TOT, 9*C1) bf16
    z_ref[...] = jnp.dot(a2, w2_ref[...], preferred_element_type=f32)     # (TOT, C2) f32

    # ---- stride-2 selection + bias + ReLU + global average pool as an f32
    #      in-kernel reduction. b2m = conv2 bias at the Ho2*Wo2 stride-2 rows of
    #      each image's window, -1e9 elsewhere (ReLU zeroes non-selected rows).
    win = b2m_ref.shape[0]
    b2m = b2m_ref[...]
    pooled = jnp.concatenate(
        [jnp.sum(jnp.maximum(z_ref[b * g:b * g + win, :] + b2m, 0.0),
                 axis=0, keepdims=True)
         for b in range(n_img)], axis=0) * inv_pool                       # (B, C2) f32

    # ---- perception FC + ReLU
    h = jnp.maximum(
        jnp.dot(pooled.astype(bf16), wfc_ref[...], preferred_element_type=f32)
        + bfc_ref[...], 0.0)                                              # (B, HID)

    # ---- all 4 branch hidden layers + the speed head fused into ONE lane-dense matmul
    z1 = (jnp.dot(h.astype(bf16), w1b_ref[...], preferred_element_type=f32)
          + b1b_ref[...])                                                 # (B, NB*HID + 1)
    nbh = m128_ref.shape[1]                                               # NB*HID = 128
    hb = jnp.maximum(z1[:, :nbh], 0.0)                                    # branch hiddens
    spd = z1[:, nbh:nbh + 1]                                              # speed (no ReLU)

    # ---- branch output layer: one-hot mask, then ONE matmul over stacked weights;
    #      the branch bias is selected with a tiny exact f32 dot.
    hb_sel = (hb * m128_ref[...]).astype(bf16)
    act = (jnp.dot(hb_sel, w2b_ref[...], preferred_element_type=f32)
           + jnp.dot(oh_ref[...], bb2_ref[...], preferred_element_type=f32))  # (B, NA)

    # ---- single lane-dense packed output store: [steer, throttle, brake, speed, 0..0]
    pad = jnp.zeros((act.shape[0], out_ref.shape[1] - act.shape[1] - 1), f32)
    out_ref[...] = jnp.concatenate([act, spd, pad], axis=1)


def _full_spec(shape):
    n = len(shape)
    return pl.BlockSpec(shape, lambda i, _n=n: (0,) * _n)


# ----------------------------------------------------------------------------
# Parameters
# ----------------------------------------------------------------------------
def init_params(key, cin=3, c1=8, c2=16, hid=HIDDEN,
                nb=N_BRANCHES, na=N_ACTIONS):
    ks = jax.random.split(key, 8)
    w = lambda k, s: 0.1 * jax.random.normal(k, s, jnp.float32)
    return dict(
        w_conv1=w(ks[0], (3, 3, cin, c1)), b_conv1=jnp.zeros((c1,), jnp.float32),
        w_conv2=w(ks[1], (3, 3, c1, c2)),  b_conv2=jnp.zeros((c2,), jnp.float32),
        w_fc=w(ks[2], (c2, hid)),          b_fc=jnp.zeros((1, hid), jnp.float32),
        w_spd=w(ks[3], (hid, 1)),          b_spd=jnp.zeros((1, 1), jnp.float32),
        w_b1=w(ks[4], (nb, hid, hid)),     b_b1=jnp.zeros((nb, hid), jnp.float32),
        w_b2=w(ks[5], (nb, hid, na)),      b_b2=jnp.zeros((nb, na), jnp.float32),
    )


# ----------------------------------------------------------------------------
# CILRS forward (wrapper: layout plumbing only, all compute in the kernel)
# ----------------------------------------------------------------------------
def cilrs_forward(params, img_nchw, command):
    """img_nchw: (B, C, H, W) float32, command: (B,) int32 in [0, N_BRANCHES).
    Returns (actions (B, 3), pred_speed (B, 1))."""
    x = jnp.transpose(img_nchw, (0, 2, 3, 1)).astype(jnp.float32)   # NCHW -> NHWC
    B, H, W, Cin = x.shape
    assert H % 2 == 0 and W % 2 == 0, "stride-2/pool fold assumes even H, W"
    Hp, Wp = H + 2, W + 2
    G = Hp * Wp
    TOT = B * G
    OFF = Wp + 1                              # largest backward reach of the 3x3 window
    EXT = ((TOT + 2 * OFF + 7) // 8) * 8      # extended row count (zero guard rows)
    Ho2 = (H + 2 - 3) // 2 + 1
    Wo2 = (W + 2 - 3) // 2 + 1
    WIN = (2 * (Ho2 - 1) + 1) * Wp            # per-image window covering all selected rows
    assert WIN <= G

    C1 = params["w_conv1"].shape[-1]
    C2 = params["w_conv2"].shape[-1]
    bf16 = jnp.bfloat16

    # zero-pad spatially (conv pad=1), flatten to a (rows, channels) slab, add
    # guard rows, cast to bf16 once (halves the input DMA + sliced-load bytes).
    xp = jnp.pad(x, ((0, 0), (1, 1), (1, 1), (0, 0)))
    x2d = xp.reshape(TOT, Cin)
    x_ext = jnp.pad(x2d, ((OFF, EXT - TOT - OFF), (0, 0))).astype(bf16)   # (EXT, Cin)

    # conv1 bias with the border-row zero mask folded in (-1e9 -> ReLU -> 0).
    t = jnp.arange(TOT)
    r = t % G
    gh, gw = r // Wp, r % Wp
    interior = (gh >= 1) & (gh <= H) & (gw >= 1) & (gw <= W)
    b1m = jnp.where(interior[:, None], params["b_conv1"][None, :], NEG)   # (TOT, C1) f32

    # conv2 bias with the stride-2 selection mask folded in (per-image window).
    rw = jnp.arange(WIN)
    gh2, gw2 = rw // Wp, rw % Wp
    sel2 = ((gh2 % 2 == 0) & (gw2 % 2 == 0)
            & (gh2 <= 2 * (Ho2 - 1)) & (gw2 <= 2 * (Wo2 - 1)))
    b2m = jnp.where(sel2[:, None], params["b_conv2"][None, :], NEG)       # (WIN, C2) f32

    # command conditioning
    oh = jax.nn.one_hot(command, N_BRANCHES, dtype=jnp.float32)           # (B, NB)
    mask128 = jnp.repeat(oh, HIDDEN, axis=1)                              # (B, NB*HID)

    # reshaped / stacked weights (bf16 MXU operands, f32 biases)
    w1r = params["w_conv1"].reshape(9 * Cin, C1).astype(bf16)             # (27, C1)
    w2r = params["w_conv2"].reshape(9 * C1, C2).astype(bf16)              # (9*C1, C2)
    wfc = params["w_fc"].astype(bf16)
    bfc = params["b_fc"].astype(jnp.float32)
    w1b = jnp.concatenate(
        [jnp.transpose(params["w_b1"], (1, 0, 2)).reshape(HIDDEN, N_BRANCHES * HIDDEN),
         params["w_spd"]], axis=1).astype(bf16)                           # (HID, NB*HID+1)
    b1b = jnp.concatenate(
        [params["b_b1"].reshape(1, N_BRANCHES * HIDDEN), params["b_spd"]],
        axis=1).astype(jnp.float32)                                       # (1, NB*HID+1)
    w2b = params["w_b2"].reshape(N_BRANCHES * HIDDEN, N_ACTIONS).astype(bf16)
    bb2 = params["b_b2"].astype(jnp.float32)                              # (NB, NA)

    args = (x_ext, w1r, b1m, w2r, b2m, wfc, bfc, w1b, b1b, mask128, oh, w2b, bb2)

    kernel = functools.partial(_cilrs_fused_kernel, wp=Wp, tot=TOT, g=G,
                               n_img=B, inv_pool=1.0 / (Ho2 * Wo2))
    out = pl.pallas_call(
        kernel,
        out_shape=jax.ShapeDtypeStruct((B, OUT_LANES), jnp.float32),
        grid=(1,),
        in_specs=[_full_spec(a.shape) for a in args],
        out_specs=_full_spec((B, OUT_LANES)),
        scratch_shapes=[pltpu.VMEM((EXT, C1), jnp.bfloat16),   # staged conv1 output (+ guard)
                        pltpu.VMEM((TOT, C2), jnp.float32)],   # raw dense conv2 result
        compiler_params=pltpu.CompilerParams(
            dimension_semantics=("arbitrary",)),
    )(*args)

    actions = out[:, :N_ACTIONS]
    pred_speed = out[:, N_ACTIONS:N_ACTIONS + 1]
    return actions, pred_speed


# ----------------------------------------------------------------------------
# Pure-JAX reference (canonical CILRS semantics, f32)
# ----------------------------------------------------------------------------
def _conv2d_relu_ref(x_nhwc, w, b, *, stride, pad):
    kh, kw, cin, cout = w.shape
    xp = jnp.pad(x_nhwc, ((0, 0), (pad, pad), (pad, pad), (0, 0)))
    B, Hp, Wp, _ = xp.shape
    Ho = (Hp - kh) // stride + 1
    Wo = (Wp - kw) // stride + 1
    cols = []
    for i in range(kh):
        for j in range(kw):
            cols.append(xp[:, i:i + (Ho - 1) * stride + 1:stride,
                           j:j + (Wo - 1) * stride + 1:stride, :])
    patches = jnp.concatenate(cols, axis=-1)
    y = patches.reshape(B * Ho * Wo, kh * kw * cin) @ w.reshape(kh * kw * cin, cout)
    y = jnp.maximum(y + b.reshape(1, cout), 0.0)
    return y.reshape(B, Ho, Wo, cout)


def cilrs_reference(params, img_nchw, command):
    x = jnp.transpose(img_nchw, (0, 2, 3, 1)).astype(jnp.float32)
    x = _conv2d_relu_ref(x, params["w_conv1"], params["b_conv1"], stride=1, pad=1)
    x = _conv2d_relu_ref(x, params["w_conv2"], params["b_conv2"], stride=2, pad=1)
    B = x.shape[0]
    pooled = jnp.mean(x.reshape(B, -1, x.shape[-1]), axis=1)
    h = jnp.maximum(pooled @ params["w_fc"] + params["b_fc"], 0.0)
    spd = h @ params["w_spd"] + params["b_spd"]
    oh = jax.nn.one_hot(command, N_BRANCHES, dtype=jnp.float32)
    act = jnp.zeros((B, N_ACTIONS), jnp.float32)
    for n in range(N_BRANCHES):
        hb = jnp.maximum(h @ params["w_b1"][n] + params["b_b1"][n:n + 1], 0.0)
        ab = hb @ params["w_b2"][n] + params["b_b2"][n:n + 1]
        act = act + ab * oh[:, n:n + 1]
    return act, spd


if __name__ == "__main__":
    key = jax.random.PRNGKey(0)
    k_img, k_params = jax.random.split(key)

    B, Cin, H, W = 2, 3, 16, 16
    img = jax.random.normal(k_img, (B, Cin, H, W), jnp.float32)   # NCHW input
    command = jnp.array([0, 2], dtype=jnp.int32)

    params = init_params(k_params, cin=Cin)

    fwd = jax.jit(cilrs_forward)
    actions, pred_speed = fwd(params, img, command)
    jax.block_until_ready((actions, pred_speed))

    assert actions.shape == (B, N_ACTIONS)
    assert pred_speed.shape == (B, 1)

    # correctness vs. pure-JAX f32 reference (loose tol: bf16 MXU operands)
    ref_act, ref_spd = cilrs_reference(params, img, command)
    assert jnp.allclose(actions, ref_act, atol=2e-2, rtol=2e-1)
    assert jnp.allclose(pred_speed, ref_spd, atol=2e-2, rtol=2e-1)

    print("KERNEL_OK")
</pallas_src>

<mosaic_0001>
module attributes {stable_mosaic.version = 11 : i64} {
  func.func @_cilrs_fused_kernel(%arg0: i32, %arg1: memref<688x3xbf16, #tpu.memory_space<vmem>>, %arg2: memref<27x8xbf16, #tpu.memory_space<vmem>>, %arg3: memref<648x8xf32, #tpu.memory_space<vmem>>, %arg4: memref<72x16xbf16, #tpu.memory_space<vmem>>, %arg5: memref<270x16xf32, #tpu.memory_space<vmem>>, %arg6: memref<16x32xbf16, #tpu.memory_space<vmem>>, %arg7: memref<1x32xf32, #tpu.memory_space<vmem>>, %arg8: memref<32x129xbf16, #tpu.memory_space<vmem>>, %arg9: memref<1x129xf32, #tpu.memory_space<vmem>>, %arg10: memref<2x128xf32, #tpu.memory_space<vmem>>, %arg11: memref<2x4xf32, #tpu.memory_space<vmem>>, %arg12: memref<128x3xbf16, #tpu.memory_space<vmem>>, %arg13: memref<4x3xf32, #tpu.memory_space<vmem>>, %arg14: memref<2x128xf32, #tpu.memory_space<vmem>>, %arg15: memref<688x8xbf16, #tpu.memory_space<vmem>>, %arg16: memref<648x16xf32, #tpu.memory_space<vmem>>) attributes {dimension_semantics = [#tpu.dimension_semantics<arbitrary>], iteration_bounds = array<i64: 1>, scalar_prefetch = 0 : i64, scratch_operands = 2 : i64, tpu.core_type = #tpu.core_type<tc>, window_params = [{pipeline_mode = #tpu.pipeline_mode<synchronous>, transform_indices = @transform_0, window_bounds = array<i64: 688, 3>}, {pipeline_mode = #tpu.pipeline_mode<synchronous>, transform_indices = @transform_1, window_bounds = array<i64: 27, 8>}, {pipeline_mode = #tpu.pipeline_mode<synchronous>, transform_indices = @transform_2, window_bounds = array<i64: 648, 8>}, {pipeline_mode = #tpu.pipeline_mode<synchronous>, transform_indices = @transform_3, window_bounds = array<i64: 72, 16>}, {pipeline_mode = #tpu.pipeline_mode<synchronous>, transform_indices = @transform_4, window_bounds = array<i64: 270, 16>}, {pipeline_mode = #tpu.pipeline_mode<synchronous>, transform_indices = @transform_5, window_bounds = array<i64: 16, 32>}, {pipeline_mode = #tpu.pipeline_mode<synchronous>, transform_indices = @transform_6, window_bounds = array<i64: 1, 32>}, {pipeline_mode = #tpu.pipeline_mode<synchronous>, transform_indices = @transform_7, window_bounds = array<i64: 32, 129>}, {pipeline_mode = #tpu.pipeline_mode<synchronous>, transform_indices = @transform_8, window_bounds = array<i64: 1, 129>}, {pipeline_mode = #tpu.pipeline_mode<synchronous>, transform_indices = @transform_9, window_bounds = array<i64: 2, 128>}, {pipeline_mode = #tpu.pipeline_mode<synchronous>, transform_indices = @transform_10, window_bounds = array<i64: 2, 4>}, {pipeline_mode = #tpu.pipeline_mode<synchronous>, transform_indices = @transform_11, window_bounds = array<i64: 128, 3>}, {pipeline_mode = #tpu.pipeline_mode<synchronous>, transform_indices = @transform_12, window_bounds = array<i64: 4, 3>}, {pipeline_mode = #tpu.pipeline_mode<synchronous>, transform_indices = @transform_13, window_bounds = array<i64: 2, 128>}]} {
    %c0 = arith.constant 0 : index
    %c0_0 = arith.constant 0 : index
    %0 = vector.load %arg1[%c0, %c0_0] : memref<688x3xbf16, #tpu.memory_space<vmem>>, vector<648x3xbf16>
    %c1 = arith.constant 1 : index
    %c0_1 = arith.constant 0 : index
    %1 = vector.load %arg1[%c1, %c0_1] : memref<688x3xbf16, #tpu.memory_space<vmem>>, vector<648x3xbf16>
    %c2 = arith.constant 2 : index
    %c0_2 = arith.constant 0 : index
    %2 = vector.load %arg1[%c2, %c0_2] : memref<688x3xbf16, #tpu.memory_space<vmem>>, vector<648x3xbf16>
    %c18 = arith.constant 18 : index
    %c0_3 = arith.constant 0 : index
    %3 = vector.load %arg1[%c18, %c0_3] : memref<688x3xbf16, #tpu.memory_space<vmem>>, vector<648x3xbf16>
    %c19 = arith.constant 19 : index
    %c0_4 = arith.constant 0 : index
    %4 = vector.load %arg1[%c19, %c0_4] : memref<688x3xbf16, #tpu.memory_space<vmem>>, vector<648x3xbf16>
    %c20 = arith.constant 20 : index
    %c0_5 = arith.constant 0 : index
    %5 = vector.load %arg1[%c20, %c0_5] : memref<688x3xbf16, #tpu.memory_space<vmem>>, vector<648x3xbf16>
    %c36 = arith.constant 36 : index
    %c0_6 = arith.constant 0 : index
    %6 = vector.load %arg1[%c36, %c0_6] : memref<688x3xbf16, #tpu.memory_space<vmem>>, vector<648x3xbf16>
    %c37 = arith.constant 37 : index
    %c0_7 = arith.constant 0 : index
    %7 = vector.load %arg1[%c37, %c0_7] : memref<688x3xbf16, #tpu.memory_space<vmem>>, vector<648x3xbf16>
    %c38 = arith.constant 38 : index
    %c0_8 = arith.constant 0 : index
    %8 = vector.load %arg1[%c38, %c0_8] : memref<688x3xbf16, #tpu.memory_space<vmem>>, vector<648x3xbf16>
    %9 = tpu.concatenate %0, %1, %2, %3, %4, %5, %6, %7, %8 in 1 : vector<648x3xbf16>, vector<648x3xbf16>, vector<648x3xbf16>, vector<648x3xbf16>, vector<648x3xbf16>, vector<648x3xbf16>, vector<648x3xbf16>, vector<648x3xbf16>, vector<648x3xbf16> -> vector<648x27xbf16>
    %c0_9 = arith.constant 0 : index
    %c0_10 = arith.constant 0 : index
    %10 = vector.load %arg2[%c0_9, %c0_10] : memref<27x8xbf16, #tpu.memory_space<vmem>>, vector<27x8xbf16>
    %cst = arith.constant dense<0.000000e+00> : vector<648x8xf32>
    %11 = tpu.matmul %9, %10, %cst {dimension_numbers = #tpu.dot_dimension_numbers<[1], [0], [0], [1], [0, 0, 1, 1], [], []>} : vector<648x27xbf16>, vector<27x8xbf16>, vector<648x8xf32> -> vector<648x8xf32>
    %c0_11 = arith.constant 0 : index
    %c0_12 = arith.constant 0 : index
    %12 = vector.load %arg3[%c0_11, %c0_12] : memref<648x8xf32, #tpu.memory_space<vmem>>, vector<648x8xf32>
    %13 = arith.addf %11, %12 : vector<648x8xf32>
    %cst_13 = arith.constant 0.000000e+00 : f32
    %14 = vector.broadcast %cst_13 : f32 to vector<648x8xf32>
    %15 = arith.maximumf %13, %14 : vector<648x8xf32>
    %cst_14 = arith.constant 0.000000e+00 : bf16
    %16 = vector.broadcast %cst_14 : bf16 to vector<688x8xbf16>
    %c0_15 = arith.constant 0 : index
    %c0_16 = arith.constant 0 : index
    %17 = vector.load %arg15[%c0_15, %c0_16] : memref<688x8xbf16, #tpu.memory_space<vmem>>, vector<688x8xbf16>
    tpu.vector_store %arg15[%c0_15, %c0_16], %16 {strides = array<i32>} : memref<688x8xbf16, #tpu.memory_space<vmem>>, vector<688x8xbf16>,
    %18 = arith.truncf %15 : vector<648x8xf32> to vector<648x8xbf16>
    %c0_17 = arith.constant 0 : index
    %c0_18 = arith.constant 0 : index
    %19 = vector.load %arg15[%c0_17, %c0_18] : memref<688x8xbf16, #tpu.memory_space<vmem>>, vector<648x8xbf16>
    tpu.vector_store %arg15[%c0_17, %c0_18], %18 {strides = array<i32>} : memref<688x8xbf16, #tpu.memory_space<vmem>>, vector<648x8xbf16>,
    %c0_19 = arith.constant 0 : index
    %c0_20 = arith.constant 0 : index
    %20 = vector.load %arg15[%c0_19, %c0_20] : memref<688x8xbf16, #tpu.memory_space<vmem>>, vector<648x8xbf16>
    %c1_21 = arith.constant 1 : index
    %c0_22 = arith.constant 0 : index
    %21 = vector.load %arg15[%c1_21, %c0_22] : memref<688x8xbf16, #tpu.memory_space<vmem>>, vector<648x8xbf16>
    %c2_23 = arith.constant 2 : index
    %c0_24 = arith.constant 0 : index
    %22 = vector.load %arg15[%c2_23, %c0_24] : memref<688x8xbf16, #tpu.memory_space<vmem>>, vector<648x8xbf16>
    %c18_25 = arith.constant 18 : index
    %c0_26 = arith.constant 0 : index
    %23 = vector.load %arg15[%c18_25, %c0_26] : memref<688x8xbf16, #tpu.memory_space<vmem>>, vector<648x8xbf16>
    %c19_27 = arith.constant 19 : index
    %c0_28 = arith.constant 0 : index
    %24 = vector.load %arg15[%c19_27, %c0_28] : memref<688x8xbf16, #tpu.memory_space<vmem>>, vector<648x8xbf16>
    %c20_29 = arith.constant 20 : index
    %c0_30 = arith.constant 0 : index
    %25 = vector.load %arg15[%c20_29, %c0_30] : memref<688x8xbf16, #tpu.memory_space<vmem>>, vector<648x8xbf16>
    %c36_31 = arith.constant 36 : index
    %c0_32 = arith.constant 0 : index
    %26 = vector.load %arg15[%c36_31, %c0_32] : memref<688x8xbf16, #tpu.memory_space<vmem>>, vector<648x8xbf16>
    %c37_33 = arith.constant 37 : index
    %c0_34 = arith.constant 0 : index
    %27 = vector.load %arg15[%c37_33, %c0_34] : memref<688x8xbf16, #tpu.memory_space<vmem>>, vector<648x8xbf16>
    %c38_35 = arith.constant 38 : index
    %c0_36 = arith.constant 0 : index
    %28 = vector.load %arg15[%c38_35, %c0_36] : memref<688x8xbf16, #tpu.memory_space<vmem>>, vector<648x8xbf16>
    %29 = tpu.concatenate %20, %21, %22, %23, %24, %25, %26, %27, %28 in 1 : vector<648x8xbf16>, vector<648x8xbf16>, vector<648x8xbf16>, vector<648x8xbf16>, vector<648x8xbf16>, vector<648x8xbf16>, vector<648x8xbf16>, vector<648x8xbf16>, vector<648x8xbf16> -> vector<648x72xbf16>
    %c0_37 = arith.constant 0 : index
    %c0_38 = arith.constant 0 : index
    %30 = vector.load %arg4[%c0_37, %c0_38] : memref<72x16xbf16, #tpu.memory_space<vmem>>, vector<72x16xbf16>
    %cst_39 = arith.constant dense<0.000000e+00> : vector<648x16xf32>
    %31 = tpu.matmul %29, %30, %cst_39 {dimension_numbers = #tpu.dot_dimension_numbers<[1], [0], [0], [1], [0, 0, 1, 1], [], []>} : vector<648x72xbf16>, vector<72x16xbf16>, vector<648x16xf32> -> vector<648x16xf32>
    %c0_40 = arith.constant 0 : index
    %c0_41 = arith.constant 0 : index
    %32 = vector.load %arg16[%c0_40, %c0_41] : memref<648x16xf32, #tpu.memory_space<vmem>>, vector<648x16xf32>
    tpu.vector_store %arg16[%c0_40, %c0_41], %31 {strides = array<i32>} : memref<648x16xf32, #tpu.memory_space<vmem>>, vector<648x16xf32>,
    %c0_42 = arith.constant 0 : index
    %c0_43 = arith.constant 0 : index
    %33 = vector.load %arg5[%c0_42, %c0_43] : memref<270x16xf32, #tpu.memory_space<vmem>>, vector<270x16xf32>
    %c0_44 = arith.constant 0 : index
    %c0_45 = arith.constant 0 : index
    %34 = vector.load %arg16[%c0_44, %c0_45] : memref<648x16xf32, #tpu.memory_space<vmem>>, vector<270x16xf32>
    %35 = arith.addf %34, %33 : vector<270x16xf32>
    %cst_46 = arith.constant 0.000000e+00 : f32
    %36 = vector.broadcast %cst_46 : f32 to vector<270x16xf32>
    %37 = arith.maximumf %35, %36 : vector<270x16xf32>
    %cst_47 = arith.constant dense<0.000000e+00> : vector<16xf32>
    %38 = vector.multi_reduction <add>, %37, %cst_47 [0] : vector<270x16xf32> to vector<16xf32>
    %39 = vector.shape_cast %38 : vector<16xf32> to vector<1x16xf32>
    %c324 = arith.constant 324 : index
    %c0_48 = arith.constant 0 : index
    %40 = vector.load %arg16[%c324, %c0_48] : memref<648x16xf32, #tpu.memory_space<vmem>>, vector<270x16xf32>
    %41 = arith.addf %40, %33 : vector<270x16xf32>
    %cst_49 = arith.constant 0.000000e+00 : f32
    %42 = vector.broadcast %cst_49 : f32 to vector<270x16xf32>
    %43 = arith.maximumf %41, %42 : vector<270x16xf32>
    %cst_50 = arith.constant dense<0.000000e+00> : vector<16xf32>
    %44 = vector.multi_reduction <add>, %43, %cst_50 [0] : vector<270x16xf32> to vector<16xf32>
    %45 = vector.shape_cast %44 : vector<16xf32> to vector<1x16xf32>
    %46 = tpu.concatenate %39, %45 in 0 : vector<1x16xf32>, vector<1x16xf32> -> vector<2x16xf32>
    %cst_51 = arith.constant 1.562500e-02 : f32
    %47 = vector.broadcast %cst_51 : f32 to vector<2x16xf32>
    %48 = arith.mulf %46, %47 : vector<2x16xf32>
    %49 = arith.truncf %48 : vector<2x16xf32> to vector<2x16xbf16>
    %c0_52 = arith.constant 0 : index
    %c0_53 = arith.constant 0 : index
    %50 = vector.load %arg6[%c0_52, %c0_53] : memref<16x32xbf16, #tpu.memory_space<vmem>>, vector<16x32xbf16>
    %cst_54 = arith.constant dense<0.000000e+00> : vector<2x32xf32>
    %51 = tpu.matmul %49, %50, %cst_54 {dimension_numbers = #tpu.dot_dimension_numbers<[1], [0], [0], [1], [0, 0, 1, 1], [], []>} : vector<2x16xbf16>, vector<16x32xbf16>, vector<2x32xf32> -> vector<2x32xf32>
    %c0_55 = arith.constant 0 : index
    %c0_56 = arith.constant 0 : index
    %52 = vector.load %arg7[%c0_55, %c0_56] : memref<1x32xf32, #tpu.memory_space<vmem>>, vector<1x32xf32>
    %53 = vector.broadcast %52 : vector<1x32xf32> to vector<2x32xf32>
    %54 = arith.addf %51, %53 : vector<2x32xf32>
    %cst_57 = arith.constant 0.000000e+00 : f32
    %55 = vector.broadcast %cst_57 : f32 to vector<2x32xf32>
    %56 = arith.maximumf %54, %55 : vector<2x32xf32>
    %57 = arith.truncf %56 : vector<2x32xf32> to vector<2x32xbf16>
    %c0_58 = arith.constant 0 : index
    %c0_59 = arith.constant 0 : index
    %58 = vector.load %arg8[%c0_58, %c0_59] : memref<32x129xbf16, #tpu.memory_space<vmem>>, vector<32x129xbf16>
    %cst_60 = arith.constant dense<0.000000e+00> : vector<2x129xf32>
    %59 = tpu.matmul %57, %58, %cst_60 {dimension_numbers = #tpu.dot_dimension_numbers<[1], [0], [0], [1], [0, 0, 1, 1], [], []>} : vector<2x32xbf16>, vector<32x129xbf16>, vector<2x129xf32> -> vector<2x129xf32>
    %c0_61 = arith.constant 0 : index
    %c0_62 = arith.constant 0 : index
    %60 = vector.load %arg9[%c0_61, %c0_62] : memref<1x129xf32, #tpu.memory_space<vmem>>, vector<1x129xf32>
    %61 = vector.broadcast %60 : vector<1x129xf32> to vector<2x129xf32>
    %62 = arith.addf %59, %61 : vector<2x129xf32>
    %63 = vector.extract_strided_slice %62 {offsets = [0, 0], sizes = [2, 128], strides = [1, 1]} : vector<2x129xf32> to vector<2x128xf32>
    %cst_63 = arith.constant 0.000000e+00 : f32
    %64 = vector.broadcast %cst_63 : f32 to vector<2x128xf32>
    %65 = arith.maximumf %63, %64 : vector<2x128xf32>
    %66 = vector.extract_strided_slice %62 {offsets = [0, 128], sizes = [2, 1], strides = [1, 1]} : vector<2x129xf32> to vector<2x1xf32>
    %c0_64 = arith.constant 0 : index
    %c0_65 = arith.constant 0 : index
    %67 = vector.load %arg10[%c0_64, %c0_65] : memref<2x128xf32, #tpu.memory_space<vmem>>, vector<2x128xf32>
    %68 = arith.mulf %65, %67 : vector<2x128xf32>
    %69 = arith.truncf %68 : vector<2x128xf32> to vector<2x128xbf16>
    %c0_66 = arith.constant 0 : index
    %c0_67 = arith.constant 0 : index
    %70 = vector.load %arg12[%c0_66, %c0_67] : memref<128x3xbf16, #tpu.memory_space<vmem>>, vector<128x3xbf16>
    %cst_68 = arith.constant dense<0.000000e+00> : vector<2x3xf32>
    %71 = tpu.matmul %69, %70, %cst_68 {dimension_numbers = #tpu.dot_dimension_numbers<[1], [0], [0], [1], [0, 0, 1, 1], [], []>} : vector<2x128xbf16>, vector<128x3xbf16>, vector<2x3xf32> -> vector<2x3xf32>
    %c0_69 = arith.constant 0 : index
    %c0_70 = arith.constant 0 : index
    %72 = vector.load %arg11[%c0_69, %c0_70] : memref<2x4xf32, #tpu.memory_space<vmem>>, vector<2x4xf32>
    %c0_71 = arith.constant 0 : index
    %c0_72 = arith.constant 0 : index
    %73 = vector.load %arg13[%c0_71, %c0_72] : memref<4x3xf32, #tpu.memory_space<vmem>>, vector<4x3xf32>
    %cst_73 = arith.constant dense<0.000000e+00> : vector<2x3xf32>
    %74 = tpu.matmul %72, %73, %cst_73 {dimension_numbers = #tpu.dot_dimension_numbers<[1], [0], [0], [1], [0, 0, 1, 1], [], []>} : vector<2x4xf32>, vector<4x3xf32>, vector<2x3xf32> -> vector<2x3xf32>
    %75 = arith.addf %71, %74 : vector<2x3xf32>
    %cst_74 = arith.constant 0.000000e+00 : f32
    %76 = vector.broadcast %cst_74 : f32 to vector<2x124xf32>
    %77 = tpu.concatenate %75, %66, %76 in 1 : vector<2x3xf32>, vector<2x1xf32>, vector<2x124xf32> -> vector<2x128xf32>
    %c0_75 = arith.constant 0 : index
    %c0_76 = arith.constant 0 : index
    %78 = vector.load %arg14[%c0_75, %c0_76] : memref<2x128xf32, #tpu.memory_space<vmem>>, vector<2x128xf32>
    tpu.vector_store %arg14[%c0_75, %c0_76], %77 {strides = array<i32>} : memref<2x128xf32, #tpu.memory_space<vmem>>, vector<2x128xf32>,
    return
  }
  func.func @transform_0(%arg0: i32) -> (i32, i32) {
    %c0_i32 = arith.constant 0 : i32
    %c0_i32_0 = arith.constant 0 : i32
    %c0_i32_1 = arith.constant 0 : i32
    return %c0_i32, %c0_i32_0 : i32, i32
  }
  func.func @transform_1(%arg0: i32) -> (i32, i32) {
    %c0_i32 = arith.constant 0 : i32
    %c0_i32_0 = arith.constant 0 : i32
    %c0_i32_1 = arith.constant 0 : i32
    return %c0_i32, %c0_i32_0 : i32, i32
  }
  func.func @transform_2(%arg0: i32) -> (i32, i32) {
    %c0_i32 = arith.constant 0 : i32
    %c0_i32_0 = arith.constant 0 : i32
    %c0_i32_1 = arith.constant 0 : i32
    return %c0_i32, %c0_i32_0 : i32, i32
  }
  func.func @transform_3(%arg0: i32) -> (i32, i32) {
    %c0_i32 = arith.constant 0 : i32
    %c0_i32_0 = arith.constant 0 : i32
    %c0_i32_1 = arith.constant 0 : i32
    return %c0_i32, %c0_i32_0 : i32, i32
  }
  func.func @transform_4(%arg0: i32) -> (i32, i32) {
    %c0_i32 = arith.constant 0 : i32
    %c0_i32_0 = arith.constant 0 : i32
    %c0_i32_1 = arith.constant 0 : i32
    return %c0_i32, %c0_i32_0 : i32, i32
  }
  func.func @transform_5(%arg0: i32) -> (i32, i32) {
    %c0_i32 = arith.constant 0 : i32
    %c0_i32_0 = arith.constant 0 : i32
    %c0_i32_1 = arith.constant 0 : i32
    return %c0_i32, %c0_i32_0 : i32, i32
  }
  func.func @transform_6(%arg0: i32) -> (i32, i32) {
    %c0_i32 = arith.constant 0 : i32
    %c0_i32_0 = arith.constant 0 : i32
    %c0_i32_1 = arith.constant 0 : i32
    return %c0_i32, %c0_i32_0 : i32, i32
  }
  func.func @transform_7(%arg0: i32) -> (i32, i32) {
    %c0_i32 = arith.constant 0 : i32
    %c0_i32_0 = arith.constant 0 : i32
    %c0_i32_1 = arith.constant 0 : i32
    return %c0_i32, %c0_i32_0 : i32, i32
  }
  func.func @transform_8(%arg0: i32) -> (i32, i32) {
    %c0_i32 = arith.constant 0 : i32
    %c0_i32_0 = arith.constant 0 : i32
    %c0_i32_1 = arith.constant 0 : i32
    return %c0_i32, %c0_i32_0 : i32, i32
  }
  func.func @transform_9(%arg0: i32) -> (i32, i32) {
    %c0_i32 = arith.constant 0 : i32
    %c0_i32_0 = arith.constant 0 : i32
    %c0_i32_1 = arith.constant 0 : i32
    return %c0_i32, %c0_i32_0 : i32, i32
  }
  func.func @transform_10(%arg0: i32) -> (i32, i32) {
    %c0_i32 = arith.constant 0 : i32
    %c0_i32_0 = arith.constant 0 : i32
    %c0_i32_1 = arith.constant 0 : i32
    return %c0_i32, %c0_i32_0 : i32, i32
  }
  func.func @transform_11(%arg0: i32) -> (i32, i32) {
    %c0_i32 = arith.constant 0 : i32
    %c0_i32_0 = arith.constant 0 : i32
    %c0_i32_1 = arith.constant 0 : i32
    return %c0_i32, %c0_i32_0 : i32, i32
  }
  func.func @transform_12(%arg0: i32) -> (i32, i32) {
    %c0_i32 = arith.constant 0 : i32
    %c0_i32_0 = arith.constant 0 : i32
    %c0_i32_1 = arith.constant 0 : i32
    return %c0_i32, %c0_i32_0 : i32, i32
  }
  func.func @transform_13(%arg0: i32) -> (i32, i32) {
    %c0_i32 = arith.constant 0 : i32
    %c0_i32_0 = arith.constant 0 : i32
    %c0_i32_1 = arith.constant 0 : i32
    return %c0_i32, %c0_i32_0 : i32, i32
  }
}

</mosaic_0001>

<llo_original>
// kernel: cilrs_forward.1
$region0: #{cilrs_forward.1}
  #allocation0 [shape = 'u32[]', space=smem, size = 0x4, offset = 0x4, fixed_abs, tag = 'smem constant byte address 0x4 - core index']
  #allocation1 [shape = 'u32[144,128]{1,0:T(1,128)}', space=vmem, size = 0x12000, scoped, tag = 'internal scratch']
  #allocation2 [shape = 'bf16[688,8]{1,0:T(8,128)(2,1)}', space=vmem, size = 0x2b000, scoped, tag = 'scratch operand']
  #allocation3 [shape = 'f32[648,16]{1,0:T(8,128)}', space=vmem, size = 0x51000, scoped, tag = 'scratch operand']
  %s0 = inlined_call_operand.vmem [shape: bf16[688,3], index: 0, kind: input, shape index: {}]
  %s1 = inlined_call_operand.vmem [shape: bf16[27,8], index: 1, kind: input, shape index: {}]
  %s2 = inlined_call_operand.vmem [shape: f32[648,8], index: 2, kind: input, shape index: {}]
  %s3 = inlined_call_operand.vmem [shape: bf16[72,16], index: 3, kind: input, shape index: {}]
  %s4 = inlined_call_operand.vmem [shape: f32[270,16], index: 4, kind: input, shape index: {}]
  %s5 = inlined_call_operand.vmem [shape: bf16[16,32], index: 5, kind: input, shape index: {}]
  %s6 = inlined_call_operand.vmem [shape: f32[1,32], index: 6, kind: input, shape index: {}]
  %s7 = inlined_call_operand.vmem [shape: bf16[32,129], index: 7, kind: input, shape index: {}]
  %s8 = inlined_call_operand.vmem [shape: f32[1,129], index: 8, kind: input, shape index: {}]
  %s9 = inlined_call_operand.vmem [shape: f32[2,128], index: 9, kind: input, shape index: {}]
  %s10 = inlined_call_operand.vmem [shape: f32[2,4], index: 10, kind: input, shape index: {}]
  %s11 = inlined_call_operand.vmem [shape: bf16[128,3], index: 11, kind: input, shape index: {}]
  %s12 = inlined_call_operand.vmem [shape: f32[4,3], index: 12, kind: input, shape index: {}]
  %s13 = inlined_call_operand.vmem [shape: f32[2,128], index: 13, kind: output, shape index: {}]
  %s14 = sld [smem:[#allocation0]]
  $region62: #{cilrs_forward.1} parent=0
    _
  %s16 = ssub.s32 1, %s14
  %s17 = scalar_select 0, %s16, %s14
  // Predicated region
  $region2: #{cilrs_forward.1} parent=0 // pred_check
    _
  $region3: #{cilrs_forward.1} parent=0 // pred_check_branch
    %19 = sbr.rel (0) target = $region5
  $region4: #{cilrs_forward.1} parent=0 // pred_region
    _
  $region5: #{cilrs_forward.1} parent=0 // pred_fallthru
    _
  // Predicated region
  $region6: #{cilrs_forward.1} parent=0 // pred_check
    _
  $region7: #{cilrs_forward.1} parent=0 // pred_check_branch
    %21 = sbr.rel (0) target = $region9
  $region8: #{cilrs_forward.1} parent=0 // pred_region
    _
  $region9: #{cilrs_forward.1} parent=0 // pred_fallthru
    _
  // Predicated region
  $region10: #{cilrs_forward.1} parent=0 // pred_check
    _
  $region11: #{cilrs_forward.1} parent=0 // pred_check_branch
    %23 = sbr.rel (0) target = $region13
  $region12: #{cilrs_forward.1} parent=0 // pred_region
    _
  $region13: #{cilrs_forward.1} parent=0 // pred_fallthru
    _
  // Predicated region
  $region14: #{cilrs_forward.1} parent=0 // pred_check
    _
  $region15: #{cilrs_forward.1} parent=0 // pred_check_branch
    %25 = sbr.rel (0) target = $region17
  $region16: #{cilrs_forward.1} parent=0 // pred_region
    _
  $region17: #{cilrs_forward.1} parent=0 // pred_fallthru
    _
  // Predicated region
  $region18: #{cilrs_forward.1} parent=0 // pred_check
    _
  $region19: #{cilrs_forward.1} parent=0 // pred_check_branch
    %27 = sbr.rel (0) target = $region21
  $region20: #{cilrs_forward.1} parent=0 // pred_region
    _
  $region21: #{cilrs_forward.1} parent=0 // pred_fallthru
    _
  // Predicated region
  $region22: #{cilrs_forward.1} parent=0 // pred_check
    _
  $region23: #{cilrs_forward.1} parent=0 // pred_check_branch
    %29 = sbr.rel (0) target = $region25
  $region24: #{cilrs_forward.1} parent=0 // pred_region
    _
  $region25: #{cilrs_forward.1} parent=0 // pred_fallthru
    _
  // Predicated region
  $region26: #{cilrs_forward.1} parent=0 // pred_check
    _
  $region27: #{cilrs_forward.1} parent=0 // pred_check_branch
    %31 = sbr.rel (0) target = $region29
  $region28: #{cilrs_forward.1} parent=0 // pred_region
    _
  $region29: #{cilrs_forward.1} parent=0 // pred_fallthru
    _
  // Predicated region
  $region30: #{cilrs_forward.1} parent=0 // pred_check
    _
  $region31: #{cilrs_forward.1} parent=0 // pred_check_branch
    %33 = sbr.rel (0) target = $region33
  $region32: #{cilrs_forward.1} parent=0 // pred_region
    _
  $region33: #{cilrs_forward.1} parent=0 // pred_fallthru
    _
  // Predicated region
  $region34: #{cilrs_forward.1} parent=0 // pred_check
    _
  $region35: #{cilrs_forward.1} parent=0 // pred_check_branch
    %35 = sbr.rel (0) target = $region37
  $region36: #{cilrs_forward.1} parent=0 // pred_region
    _
  $region37: #{cilrs_forward.1} parent=0 // pred_fallthru
    _
  // Predicated region
  $region38: #{cilrs_forward.1} parent=0 // pred_check
    _
  $region39: #{cilrs_forward.1} parent=0 // pred_check_branch
    %37 = sbr.rel (0) target = $region41
  $region40: #{cilrs_forward.1} parent=0 // pred_region
    _
  $region41: #{cilrs_forward.1} parent=0 // pred_fallthru
    _
  // Predicated region
  $region42: #{cilrs_forward.1} parent=0 // pred_check
    _
  $region43: #{cilrs_forward.1} parent=0 // pred_check_branch
    %39 = sbr.rel (0) target = $region45
  $region44: #{cilrs_forward.1} parent=0 // pred_region
    _
  $region45: #{cilrs_forward.1} parent=0 // pred_fallthru
    _
  // Predicated region
  $region46: #{cilrs_forward.1} parent=0 // pred_check
    _
  $region47: #{cilrs_forward.1} parent=0 // pred_check_branch
    %41 = sbr.rel (0) target = $region49
  $region48: #{cilrs_forward.1} parent=0 // pred_region
    _
  $region49: #{cilrs_forward.1} parent=0 // pred_fallthru
    _
  // Predicated region
  $region50: #{cilrs_forward.1} parent=0 // pred_check
    _
  $region51: #{cilrs_forward.1} parent=0 // pred_check_branch
    %43 = sbr.rel (0) target = $region53
  $region52: #{cilrs_forward.1} parent=0 // pred_region
    _
  $region53: #{cilrs_forward.1} parent=0 // pred_fallthru
    _
  %v45 = vld [vmem:[%s0] sm:$0xf]
  %v46 = vld [vmem:[%s0 + $0x4] sm:$0xf]
  %v47 = vld [vmem:[%s0 + $0x8] sm:$0xf]
  %v48 = vld [vmem:[%s0 + $0xc] sm:$0xf]
  %v49 = vld [vmem:[%s0 + $0x10] sm:$0xf]
  %v50 = vld [vmem:[%s0 + $0x14] sm:$0xf]
  %v51 = vld [vmem:[%s0 + $0x18] sm:$0xf]
  %v52 = vld [vmem:[%s0 + $0x1c] sm:$0xf]
  %v53 = vld [vmem:[%s0 + $0x20] sm:$0xf]
  %v54 = vld [vmem:[%s0 + $0x24] sm:$0xf]
  %v55 = vld [vmem:[%s0 + $0x28] sm:$0xf]
  %v56 = vld [vmem:[%s0 + $0x2c] sm:$0xf]
  %v57 = vld [vmem:[%s0 + $0x30] sm:$0xf]
  %v58 = vld [vmem:[%s0 + $0x34] sm:$0xf]
  %v59 = vld [vmem:[%s0 + $0x38] sm:$0xf]
  %v60 = vld [vmem:[%s0 + $0x3c] sm:$0xf]
  %v61 = vld [vmem:[%s0 + $0x40] sm:$0xf]
  %v62 = vld [vmem:[%s0 + $0x44] sm:$0xf]
  %v63 = vld [vmem:[%s0 + $0x48] sm:$0xf]
  %v64 = vld [vmem:[%s0 + $0x4c] sm:$0xf]
  %v65 = vld [vmem:[%s0 + $0x50] sm:$0xf]
  %v66 = vld [vmem:[%s0 + $0x54] sm:$0xf]
  %v67 = vld [vmem:[%s0 + $0x58] sm:$0xf]
  %v68 = vld [vmem:[%s0 + $0x5c] sm:$0xf]
  %v69 = vld [vmem:[%s0 + $0x60] sm:$0xf]
  %v70 = vld [vmem:[%s0 + $0x64] sm:$0xf]
  %v71 = vld [vmem:[%s0 + $0x68] sm:$0xf]
  %v72 = vld [vmem:[%s0 + $0x6c] sm:$0xf]
  %v73 = vld [vmem:[%s0 + $0x70] sm:$0xf]
  %v74 = vld [vmem:[%s0 + $0x74] sm:$0xf]
  %v75 = vld [vmem:[%s0 + $0x78] sm:$0xf]
  %v76 = vld [vmem:[%s0 + $0x7c] sm:$0xf]
  %v77 = vld [vmem:[%s0 + $0x80] sm:$0xf]
  %v78 = vld [vmem:[%s0 + $0x84] sm:$0xf]
  %v79 = vld [vmem:[%s0 + $0x88] sm:$0xf]
  %v80 = vld [vmem:[%s0 + $0x8c] sm:$0xf]
  %v81 = vld [vmem:[%s0 + $0x90] sm:$0xf]
  %v82 = vld [vmem:[%s0 + $0x94] sm:$0xf]
  %v83 = vld [vmem:[%s0 + $0x98] sm:$0xf]
  %v84 = vld [vmem:[%s0 + $0x9c] sm:$0xf]
  %v85 = vld [vmem:[%s0 + $0xa0] sm:$0xf]
  %v86 = vld [vmem:[%s0 + $0xa4] sm:$0xf]
  %v87 = vld [vmem:[%s0 + $0xa8] sm:$0xf]
  %v88 = vld [vmem:[%s0 + $0xac] sm:$0xf]
  %v89 = vld [vmem:[%s0 + $0xb0] sm:$0xf]
  %v90 = vld [vmem:[%s0 + $0xb4] sm:$0xf]
  %v91 = vld [vmem:[%s0 + $0xb8] sm:$0xf]
  %v92 = vld [vmem:[%s0 + $0xbc] sm:$0xf]
  %v93 = vld [vmem:[%s0 + $0xc0] sm:$0xf]
  %v94 = vld [vmem:[%s0 + $0xc4] sm:$0xf]
  %v95 = vld [vmem:[%s0 + $0xc8] sm:$0xf]
  %v96 = vld [vmem:[%s0 + $0xcc] sm:$0xf]
  %v97 = vld [vmem:[%s0 + $0xd0] sm:$0xf]
  %v98 = vld [vmem:[%s0 + $0xd4] sm:$0xf]
  %v99 = vld [vmem:[%s0 + $0xd8] sm:$0xf]
  %v100 = vld [vmem:[%s0 + $0xdc] sm:$0xf]
  %v101 = vld [vmem:[%s0 + $0xe0] sm:$0xf]
  %v102 = vld [vmem:[%s0 + $0xe4] sm:$0xf]
  %v103 = vld [vmem:[%s0 + $0xe8] sm:$0xf]
  %v104 = vld [vmem:[%s0 + $0xec] sm:$0xf]
  %v105 = vld [vmem:[%s0 + $0xf0] sm:$0xf]
  %v106 = vld [vmem:[%s0 + $0xf4] sm:$0xf]
  %v107 = vld [vmem:[%s0 + $0xf8] sm:$0xf]
  %v108 = vld [vmem:[%s0 + $0xfc] sm:$0xf]
  %v109 = vld [vmem:[%s0 + $0x100] sm:$0xf]
  %v110 = vld [vmem:[%s0 + $0x104] sm:$0xf]
  %v111 = vld [vmem:[%s0 + $0x108] sm:$0xf]
  %v112 = vld [vmem:[%s0 + $0x10c] sm:$0xf]
  %v113 = vld [vmem:[%s0 + $0x110] sm:$0xf]
  %v114 = vld [vmem:[%s0 + $0x114] sm:$0xf]
  %v115 = vld [vmem:[%s0 + $0x118] sm:$0xf]
  %v116 = vld [vmem:[%s0 + $0x11c] sm:$0xf]
  %v117 = vld [vmem:[%s0 + $0x120] sm:$0xf]
  %v118 = vld [vmem:[%s0 + $0x124] sm:$0xf]
  %v119 = vld [vmem:[%s0 + $0x128] sm:$0xf]
  %v120 = vld [vmem:[%s0 + $0x12c] sm:$0xf]
  %v121 = vld [vmem:[%s0 + $0x130] sm:$0xf]
  %v122 = vld [vmem:[%s0 + $0x134] sm:$0xf]
  %v123 = vld [vmem:[%s0 + $0x138] sm:$0xf]
  %v124 = vld [vmem:[%s0 + $0x13c] sm:$0xf]
  %v125 = vld [vmem:[%s0 + $0x140] sm:$0xf]
  %v126 = vld [vmem:[%s0 + $0x144] sm:$0x1]
  %v127 = vld [vmem:[%s0] sm:$0xe]
  %v128 = vld [vmem:[%s0 + $0x8] sm:$0xe]
  %v129 = vld [vmem:[%s0 + $0x144] sm:$0xf]
  %v130 = vld [vmem:[%s0 + $0x148] sm:$0xf]
  %v131 = vld [vmem:[%s0 + $0x14c] sm:$0x1]
  %v132 = vld [vmem:[%s0 + $0x14c] sm:$0x3]
  %v133 = vld [vmem:[%s0 + $0x8] sm:$0xc]
  %v134 = vld [vmem:[%s0 + $0x10] sm:$0xc]
  %v135 = vld [vmem:[%s0 + $0x14c] sm:$0xf]
  %v136 = vld [vmem:[%s0 + $0x150] sm:$0xf]
  %v137 = vld [vmem:[%s0 + $0x154] sm:$0x3]
  %v138 = vld [vmem:[%s0 + $0x154] sm:$0x7]
  %v139 = vld [vmem:[%s0 + $0x10] sm:$0x8]
  %v221 = vunpack.c.l.b16 %v45
  %v222 = vunpack.c.l.b16 %v46
  %v223 = vunpack.c.l.b16 %v47
  %v224 = vunpack.c.l.b16 %v48
  %v225 = vunpack.c.l.b16 %v49
  %v226 = vunpack.c.l.b16 %v50
  %v227 = vunpack.c.l.b16 %v51
  %v228 = vunpack.c.l.b16 %v52
  %v229 = vunpack.c.l.b16 %v53
  %v230 = vunpack.c.l.b16 %v54
  %v231 = vunpack.c.l.b16 %v55
  %v232 = vunpack.c.l.b16 %v56
  %v233 = vunpack.c.l.b16 %v57
  %v234 = vunpack.c.l.b16 %v58
  %v235 = vunpack.c.l.b16 %v59
  %v236 = vunpack.c.l.b16 %v60
  %v237 = vunpack.c.l.b16 %v61
  %v238 = vunpack.c.l.b16 %v62
  %v239 = vunpack.c.l.b16 %v63
  %v240 = vunpack.c.l.b16 %v64
  %v241 = vunpack.c.l.b16 %v65
  %v242 = vunpack.c.l.b16 %v66
  %v243 = vunpack.c.l.b16 %v67
  %v244 = vunpack.c.l.b16 %v68
  %v245 = vunpack.c.l.b16 %v69
  %v246 = vunpack.c.l.b16 %v70
  %v247 = vunpack.c.l.b16 %v71
  %v248 = vunpack.c.l.b16 %v72
  %v249 = vunpack.c.l.b16 %v73
  %v250 = vunpack.c.l.b16 %v74
  %v251 = vunpack.c.l.b16 %v75
  %v252 = vunpack.c.l.b16 %v76
  %v253 = vunpack.c.l.b16 %v77
  %v254 = vunpack.c.l.b16 %v78
  %v255 = vunpack.c.l.b16 %v79
  %v256 = vunpack.c.l.b16 %v80
  %v257 = vunpack.c.l.b16 %v81
  %v258 = vunpack.c.l.b16 %v82
  %v259 = vunpack.c.l.b16 %v83
  %v260 = vunpack.c.l.b16 %v84
  %v261 = vunpack.c.l.b16 %v85
  %v262 = vunpack.c.l.b16 %v86
  %v263 = vunpack.c.l.b16 %v87
  %v264 = vunpack.c.l.b16 %v88
  %v265 = vunpack.c.l.b16 %v89
  %v266 = vunpack.c.l.b16 %v90
  %v267 = vunpack.c.l.b16 %v91
  %v268 = vunpack.c.l.b16 %v92
  %v269 = vunpack.c.l.b16 %v93
  %v270 = vunpack.c.l.b16 %v94
  %v271 = vunpack.c.l.b16 %v95
  %v272 = vunpack.c.l.b16 %v96
  %v273 = vunpack.c.l.b16 %v97
  %v274 = vunpack.c.l.b16 %v98
  %v275 = vunpack.c.l.b16 %v99
  %v276 = vunpack.c.l.b16 %v100
  %v277 = vunpack.c.l.b16 %v101
  %v278 = vunpack.c.l.b16 %v102
  %v279 = vunpack.c.l.b16 %v103
  %v280 = vunpack.c.l.b16 %v104
  %v281 = vunpack.c.l.b16 %v105
  %v282 = vunpack.c.l.b16 %v106
  %v283 = vunpack.c.l.b16 %v107
  %v284 = vunpack.c.l.b16 %v108
  %v285 = vunpack.c.l.b16 %v109
  %v286 = vunpack.c.l.b16 %v110
  %v287 = vunpack.c.l.b16 %v111
  %v288 = vunpack.c.l.b16 %v112
  %v289 = vunpack.c.l.b16 %v113
  %v290 = vunpack.c.l.b16 %v114
  %v291 = vunpack.c.l.b16 %v115
  %v292 = vunpack.c.l.b16 %v116
  %v293 = vunpack.c.l.b16 %v117
  %v294 = vunpack.c.l.b16 %v118
  %v295 = vunpack.c.l.b16 %v119
  %v296 = vunpack.c.l.b16 %v120
  %v297 = vunpack.c.l.b16 %v121
  %v298 = vunpack.c.l.b16 %v122
  %v299 = vunpack.c.l.b16 %v123
  %v300 = vunpack.c.l.b16 %v124
  %v301 = vunpack.c.l.b16 %v125
  %v302 = vpack.c.b16 %v222, %v221
  %v303 = vpack.c.b16 %v224, %v223
  %v304 = vpack.c.b16 %v226, %v225
  %v305 = vpack.c.b16 %v228, %v227
  %v306 = vpack.c.b16 %v230, %v229
  %v307 = vpack.c.b16 %v232, %v231
  %v308 = vpack.c.b16 %v234, %v233
  %v309 = vpack.c.b16 %v236, %v235
  %v310 = vpack.c.b16 %v238, %v237
  %v311 = vpack.c.b16 %v240, %v239
  %v312 = vpack.c.b16 %v242, %v241
  %v313 = vpack.c.b16 %v244, %v243
  %v314 = vpack.c.b16 %v246, %v245
  %v315 = vpack.c.b16 %v248, %v247
  %v316 = vpack.c.b16 %v250, %v249
  %v317 = vpack.c.b16 %v252, %v251
  %v318 = vpack.c.b16 %v254, %v253
  %v319 = vpack.c.b16 %v256, %v255
  %v320 = vpack.c.b16 %v258, %v257
  %v321 = vpack.c.b16 %v260, %v259
  %v322 = vpack.c.b16 %v262, %v261
  %v323 = vpack.c.b16 %v264, %v263
  %v324 = vpack.c.b16 %v266, %v265
  %v325 = vpack.c.b16 %v268, %v267
  %v326 = vpack.c.b16 %v270, %v269
  %v327 = vpack.c.b16 %v272, %v271
  %v328 = vpack.c.b16 %v274, %v273
  %v329 = vpack.c.b16 %v276, %v275
  %v330 = vpack.c.b16 %v278, %v277
  %v331 = vpack.c.b16 %v280, %v279
  %v332 = vpack.c.b16 %v282, %v281
  %v333 = vpack.c.b16 %v284, %v283
  %v334 = vpack.c.b16 %v286, %v285
  %v335 = vpack.c.b16 %v288, %v287
  %v336 = vpack.c.b16 %v290, %v289
  %v337 = vpack.c.b16 %v292, %v291
  %v338 = vpack.c.b16 %v294, %v293
  %v339 = vpack.c.b16 %v296, %v295
  %v340 = vpack.c.b16 %v298, %v297
  %v341 = vpack.c.b16 %v300, %v299
  %v342 = vpack.c.b16 %v301, %v301
  %v344 = vunpack.c.l.b16 %v126
  %v345 = vpack.c.b16 %v344, %v301
  %vm346 = vsmask.f32 7424
  %v348 = vshrl.u32 %v302, 16
  %v350 = vshll.u32 %v302, 16
  %v352 = vrot.slane %v350, 1
  %v353 = vor.u32 %v348, %v352
  %v355 = vshll.u32 %v303, 16
  %v357 = vrot.slane %v355, 1
  %v358 = vsel %vm346, %v353, %v357
  %v359 = vshrl.u32 %v303, 16
  %v361 = vor.u32 %v359, %v357
  %v363 = vshll.u32 %v304, 16
  %v365 = vrot.slane %v363, 1
  %v366 = vsel %vm346, %v361, %v365
  %v367 = vshrl.u32 %v304, 16
  %v369 = vor.u32 %v367, %v365
  %v371 = vshll.u32 %v305, 16
  %v373 = vrot.slane %v371, 1
  %v374 = vsel %vm346, %v369, %v373
  %v375 = vshrl.u32 %v305, 16
  %v377 = vor.u32 %v375, %v373
  %v379 = vshll.u32 %v306, 16
  %v381 = vrot.slane %v379, 1
  %v382 = vsel %vm346, %v377, %v381
  %v383 = vshrl.u32 %v306, 16
  %v385 = vor.u32 %v383, %v381
  %v387 = vshll.u32 %v307, 16
  %v389 = vrot.slane %v387, 1
  %v390 = vsel %vm346, %v385, %v389
  %v391 = vshrl.u32 %v307, 16
  %v393 = vor.u32 %v391, %v389
  %v395 = vshll.u32 %v308, 16
  %v397 = vrot.slane %v395, 1
  %v398 = vsel %vm346, %v393, %v397
  %v399 = vshrl.u32 %v308, 16
  %v401 = vor.u32 %v399, %v397
  %v403 = vshll.u32 %v309, 16
  %v405 = vrot.slane %v403, 1
  %v406 = vsel %vm346, %v401, %v405
  %v407 = vshrl.u32 %v309, 16
  %v409 = vor.u32 %v407, %v405
  %v411 = vshll.u32 %v310, 16
  %v413 = vrot.slane %v411, 1
  %v414 = vsel %vm346, %v409, %v413
  %v415 = vshrl.u32 %v310, 16
  %v417 = vor.u32 %v415, %v413
  %v419 = vshll.u32 %v311, 16
  %v421 = vrot.slane %v419, 1
  %v422 = vsel %vm346, %v417, %v421
  %v423 = vshrl.u32 %v311, 16
  %v425 = vor.u32 %v423, %v421
  %v427 = vshll.u32 %v312, 16
  %v429 = vrot.slane %v427, 1
  %v430 = vsel %vm346, %v425, %v429
  %v431 = vshrl.u32 %v312, 16
  %v433 = vor.u32 %v431, %v429
  %v435 = vshll.u32 %v313, 16
  %v437 = vrot.slane %v435, 1
  %v438 = vsel %vm346, %v433, %v437
  %v439 = vshrl.u32 %v313, 16
  %v441 = vor.u32 %v439, %v437
  %v443 = vshll.u32 %v314, 16
  %v445 = vrot.slane %v443, 1
  %v446 = vsel %vm346, %v441, %v445
  %v447 = vshrl.u32 %v314, 16
  %v449 = vor.u32 %v447, %v445
  %v451 = vshll.u32 %v315, 16
  %v453 = vrot.slane %v451, 1
  %v454 = vsel %vm346, %v449, %v453
  %v455 = vshrl.u32 %v315, 16
  %v457 = vor.u32 %v455, %v453
  %v459 = vshll.u32 %v316, 16
  %v461 = vrot.slane %v459, 1
  %v462 = vsel %vm346, %v457, %v461
  %v463 = vshrl.u32 %v316, 16
  %v465 = vor.u32 %v463, %v461
  %v467 = vshll.u32 %v317, 16
  %v469 = vrot.slane %v467, 1
  %v470 = vsel %vm346, %v465, %v469
  %v471 = vshrl.u32 %v317, 16
  %v473 = vor.u32 %v471, %v469
  %v475 = vshll.u32 %v318, 16
  %v477 = vrot.slane %v475, 1
  %v478 = vsel %vm346, %v473, %v477
  %v479 = vshrl.u32 %v318, 16
  %v481 = vor.u32 %v479, %v477
  %v483 = vshll.u32 %v319, 16
  %v485 = vrot.slane %v483, 1
  %v486 = vsel %vm346, %v481, %v485
  %v487 = vshrl.u32 %v319, 16
  %v489 = vor.u32 %v487, %v485
  %v491 = vshll.u32 %v320, 16
  %v493 = vrot.slane %v491, 1
  %v494 = vsel %vm346, %v489, %v493
  %v495 = vshrl.u32 %v320, 16
  %v497 = vor.u32 %v495, %v493
  %v499 = vshll.u32 %v321, 16
  %v501 = vrot.slane %v499, 1
  %v502 = vsel %vm346, %v497, %v501
  %v503 = vshrl.u32 %v321, 16
  %v505 = vor.u32 %v503, %v501
  %v507 = vshll.u32 %v322, 16
  %v509 = vrot.slane %v507, 1
  %v510 = vsel %vm346, %v505, %v509
  %v511 = vshrl.u32 %v322, 16
  %v513 = vor.u32 %v511, %v509
  %v515 = vshll.u32 %v323, 16
  %v517 = vrot.slane %v515, 1
  %v518 = vsel %vm346, %v513, %v517
  %v519 = vshrl.u32 %v323, 16
  %v521 = vor.u32 %v519, %v517
  %v523 = vshll.u32 %v324, 16
  %v525 = vrot.slane %v523, 1
  %v526 = vsel %vm346, %v521, %v525
  %v527 = vshrl.u32 %v324, 16
  %v529 = vor.u32 %v527, %v525
  %v531 = vshll.u32 %v325, 16
  %v533 = vrot.slane %v531, 1
  %v534 = vsel %vm346, %v529, %v533
  %v535 = vshrl.u32 %v325, 16
  %v537 = vor.u32 %v535, %v533
  %v539 = vshll.u32 %v326, 16
  %v541 = vrot.slane %v539, 1
  %v542 = vsel %vm346, %v537, %v541
  %v543 = vshrl.u32 %v326, 16
  %v545 = vor.u32 %v543, %v541
  %v547 = vshll.u32 %v327, 16
  %v549 = vrot.slane %v547, 1
  %v550 = vsel %vm346, %v545, %v549
  %v551 = vshrl.u32 %v327, 16
  %v553 = vor.u32 %v551, %v549
  %v555 = vshll.u32 %v328, 16
  %v557 = vrot.slane %v555, 1
  %v558 = vsel %vm346, %v553, %v557
  %v559 = vshrl.u32 %v328, 16
  %v561 = vor.u32 %v559, %v557
  %v563 = vshll.u32 %v329, 16
  %v565 = vrot.slane %v563, 1
  %v566 = vsel %vm346, %v561, %v565
  %v567 = vshrl.u32 %v329, 16
  %v569 = vor.u32 %v567, %v565
  %v571 = vshll.u32 %v330, 16
  %v573 = vrot.slane %v571, 1
  %v574 = vsel %vm346, %v569, %v573
  %v575 = vshrl.u32 %v330, 16
  %v577 = vor.u32 %v575, %v573
  %v579 = vshll.u32 %v331, 16
  %v581 = vrot.slane %v579, 1
  %v582 = vsel %vm346, %v577, %v581
  %v583 = vshrl.u32 %v331, 16
  %v585 = vor.u32 %v583, %v581
  %v587 = vshll.u32 %v332, 16
  %v589 = vrot.slane %v587, 1
  %v590 = vsel %vm346, %v585, %v589
  %v591 = vshrl.u32 %v332, 16
  %v593 = vor.u32 %v591, %v589
  %v595 = vshll.u32 %v333, 16
  %v597 = vrot.slane %v595, 1
  %v598 = vsel %vm346, %v593, %v597
  %v599 = vshrl.u32 %v333, 16
  %v601 = vor.u32 %v599, %v597
  %v603 = vshll.u32 %v334, 16
  %v605 = vrot.slane %v603, 1
  %v606 = vsel %vm346, %v601, %v605
  %v607 = vshrl.u32 %v334, 16
  %v609 = vor.u32 %v607, %v605
  %v611 = vshll.u32 %v335, 16
  %v613 = vrot.slane %v611, 1
  %v614 = vsel %vm346, %v609, %v613
  %v615 = vshrl.u32 %v335, 16
  %v617 = vor.u32 %v615, %v613
  %v619 = vshll.u32 %v336, 16
  %v621 = vrot.slane %v619, 1
  %v622 = vsel %vm346, %v617, %v621
  %v623 = vshrl.u32 %v336, 16
  %v625 = vor.u32 %v623, %v621
  %v627 = vshll.u32 %v337, 16
  %v629 = vrot.slane %v627, 1
  %v630 = vsel %vm346, %v625, %v629
  %v631 = vshrl.u32 %v337, 16
  %v633 = vor.u32 %v631, %v629
  %v635 = vshll.u32 %v338, 16
  %v637 = vrot.slane %v635, 1
  %v638 = vsel %vm346, %v633, %v637
  %v639 = vshrl.u32 %v338, 16
  %v641 = vor.u32 %v639, %v637
  %v643 = vshll.u32 %v339, 16
  %v645 = vrot.slane %v643, 1
  %v646 = vsel %vm346, %v641, %v645
  %v647 = vshrl.u32 %v339, 16
  %v649 = vor.u32 %v647, %v645
  %v651 = vshll.u32 %v340, 16
  %v653 = vrot.slane %v651, 1
  %v654 = vsel %vm346, %v649, %v653
  %v655 = vshrl.u32 %v340, 16
  %v657 = vor.u32 %v655, %v653
  %v659 = vshll.u32 %v341, 16
  %v661 = vrot.slane %v659, 1
  %v662 = vsel %vm346, %v657, %v661
  %v663 = vshrl.u32 %v341, 16
  %v665 = vor.u32 %v663, %v661
  %v667 = vshll.u32 %v345, 16
  %v669 = vrot.slane %v667, 1
  %v670 = vsel %vm346, %v665, %v669
  %v671 = vshrl.u32 %v345, 16
  %v673 = vor.u32 %v671, %v669
  %674 = vrot.lane.b32.xlu0 %v358, 3
  %v675 = vpop.permute.xlu0 %674
  %676 = vrot.lane.b32.xlu0 %v366, 3
  %v677 = vpop.permute.xlu0 %676
  %678 = vrot.lane.b32.xlu0 %v374, 3
  %v679 = vpop.permute.xlu0 %678
  %680 = vrot.lane.b32.xlu0 %v382, 3
  %v681 = vpop.permute.xlu0 %680
  %682 = vrot.lane.b32.xlu0 %v390, 3
  %v683 = vpop.permute.xlu0 %682
  %684 = vrot.lane.b32.xlu0 %v398, 3
  %v685 = vpop.permute.xlu0 %684
  %686 = vrot.lane.b32.xlu0 %v406, 3
  %v687 = vpop.permute.xlu0 %686
  %688 = vrot.lane.b32.xlu0 %v414, 3
  %v689 = vpop.permute.xlu0 %688
  %690 = vrot.lane.b32.xlu0 %v422, 3
  %v691 = vpop.permute.xlu0 %690
  %692 = vrot.lane.b32.xlu0 %v430, 3
  %v693 = vpop.permute.xlu0 %692
  %694 = vrot.lane.b32.xlu0 %v438, 3
  %v695 = vpop.permute.xlu0 %694
  %696 = vrot.lane.b32.xlu0 %v446, 3
  %v697 = vpop.permute.xlu0 %696
  %698 = vrot.lane.b32.xlu0 %v454, 3
  %v699 = vpop.permute.xlu0 %698
  %700 = vrot.lane.b32.xlu0 %v462, 3
  %v701 = vpop.permute.xlu0 %700
  %702 = vrot.lane.b32.xlu0 %v470, 3
  %v703 = vpop.permute.xlu0 %702
  %704 = vrot.lane.b32.xlu0 %v478, 3
  %v705 = vpop.permute.xlu0 %704
  %706 = vrot.lane.b32.xlu0 %v486, 3
  %v707 = vpop.permute.xlu0 %706
  %708 = vrot.lane.b32.xlu0 %v494, 3
  %v709 = vpop.permute.xlu0 %708
  %710 = vrot.lane.b32.xlu0 %v502, 3
  %v711 = vpop.permute.xlu0 %710
  %712 = vrot.lane.b32.xlu0 %v510, 3
  %v713 = vpop.permute.xlu0 %712
  %714 = vrot.lane.b32.xlu0 %v518, 3
  %v715 = vpop.permute.xlu0 %714
  %716 = vrot.lane.b32.xlu0 %v526, 3
  %v717 = vpop.permute.xlu0 %716
  %718 = vrot.lane.b32.xlu0 %v534, 3
  %v719 = vpop.permute.xlu0 %718
  %720 = vrot.lane.b32.xlu0 %v542, 3
  %v721 = vpop.permute.xlu0 %720
  %722 = vrot.lane.b32.xlu0 %v550, 3
  %v723 = vpop.permute.xlu0 %722
  %724 = vrot.lane.b32.xlu0 %v558, 3
  %v725 = vpop.permute.xlu0 %724
  %726 = vrot.lane.b32.xlu0 %v566, 3
  %v727 = vpop.permute.xlu0 %726
  %728 = vrot.lane.b32.xlu0 %v574, 3
  %v729 = vpop.permute.xlu0 %728
  %730 = vrot.lane.b32.xlu0 %v582, 3
  %v731 = vpop.permute.xlu0 %730
  %732 = vrot.lane.b32.xlu0 %v590, 3
  %v733 = vpop.permute.xlu0 %732
  %734 = vrot.lane.b32.xlu0 %v598, 3
  %v735 = vpop.permute.xlu0 %734
  %736 = vrot.lane.b32.xlu0 %v606, 3
  %v737 = vpop.permute.xlu0 %736
  %738 = vrot.lane.b32.xlu0 %v614, 3
  %v739 = vpop.permute.xlu0 %738
  %740 = vrot.lane.b32.xlu0 %v622, 3
  %v741 = vpop.permute.xlu0 %740
  %742 = vrot.lane.b32.xlu0 %v630, 3
  %v743 = vpop.permute.xlu0 %742
  %744 = vrot.lane.b32.xlu0 %v638, 3
  %v745 = vpop.permute.xlu0 %744
  %746 = vrot.lane.b32.xlu0 %v646, 3
  %v747 = vpop.permute.xlu0 %746
  %748 = vrot.lane.b32.xlu0 %v654, 3
  %v749 = vpop.permute.xlu0 %748
  %750 = vrot.lane.b32.xlu0 %v662, 3
  %v751 = vpop.permute.xlu0 %750
  %752 = vrot.lane.b32.xlu0 %v670, 3
  %v753 = vpop.permute.xlu0 %752
  %754 = vrot.lane.b32.xlu0 %v673, 3
  %v755 = vpop.permute.xlu0 %754
  %v757 = vunpack.c.l.b16 %v127
  %v758 = vpack.c.b16 %v222, %v757
  %vm759 = vcmask 1046528
  %v760 = vrot.slane %v758, 1
  %v761 = vrot.slane %v303, 1
  %v762 = vsel %vm759, %v760, %v761
  %v763 = vrot.slane %v304, 1
  %v764 = vsel %vm759, %v761, %v763
  %v765 = vrot.slane %v305, 1
  %v766 = vsel %vm759, %v763, %v765
  %v767 = vrot.slane %v306, 1
  %v768 = vsel %vm759, %v765, %v767
  %v769 = vrot.slane %v307, 1
  %v770 = vsel %vm759, %v767, %v769
  %v771 = vrot.slane %v308, 1
  %v772 = vsel %vm759, %v769, %v771
  %v773 = vrot.slane %v309, 1
  %v774 = vsel %vm759, %v771, %v773
  %v775 = vrot.slane %v310, 1
  %v776 = vsel %vm759, %v773, %v775
  %v777 = vrot.slane %v311, 1
  %v778 = vsel %vm759, %v775, %v777
  %v779 = vrot.slane %v312, 1
  %v780 = vsel %vm759, %v777, %v779
  %v781 = vrot.slane %v313, 1
  %v782 = vsel %vm759, %v779, %v781
  %v783 = vrot.slane %v314, 1
  %v784 = vsel %vm759, %v781, %v783
  %v785 = vrot.slane %v315, 1
  %v786 = vsel %vm759, %v783, %v785
  %v787 = vrot.slane %v316, 1
  %v788 = vsel %vm759, %v785, %v787
  %v789 = vrot.slane %v317, 1
  %v790 = vsel %vm759, %v787, %v789
  %v791 = vrot.slane %v318, 1
  %v792 = vsel %vm759, %v789, %v791
  %v793 = vrot.slane %v319, 1
  %v794 = vsel %vm759, %v791, %v793
  %v795 = vrot.slane %v320, 1
  %v796 = vsel %vm759, %v793, %v795
  %v797 = vrot.slane %v321, 1
  %v798 = vsel %vm759, %v795, %v797
  %v799 = vrot.slane %v322, 1
  %v800 = vsel %vm759, %v797, %v799
  %v801 = vrot.slane %v323, 1
  %v802 = vsel %vm759, %v799, %v801
  %v803 = vrot.slane %v324, 1
  %v804 = vsel %vm759, %v801, %v803
  %v805 = vrot.slane %v325, 1
  %v806 = vsel %vm759, %v803, %v805
  %v807 = vrot.slane %v326, 1
  %v808 = vsel %vm759, %v805, %v807
  %v809 = vrot.slane %v327, 1
  %v810 = vsel %vm759, %v807, %v809
  %v811 = vrot.slane %v328, 1
  %v812 = vsel %vm759, %v809, %v811
  %v813 = vrot.slane %v329, 1
  %v814 = vsel %vm759, %v811, %v813
  %v815 = vrot.slane %v330, 1
  %v816 = vsel %vm759, %v813, %v815
  %v817 = vrot.slane %v331, 1
  %v818 = vsel %vm759, %v815, %v817
  %v819 = vrot.slane %v332, 1
  %v820 = vsel %vm759, %v817, %v819
  %v821 = vrot.slane %v333, 1
  %v822 = vsel %vm759, %v819, %v821
  %v823 = vrot.slane %v334, 1
  %v824 = vsel %vm759, %v821, %v823
  %v825 = vrot.slane %v335, 1
  %v826 = vsel %vm759, %v823, %v825
  %v827 = vrot.slane %v336, 1
  %v828 = vsel %vm759, %v825, %v827
  %v829 = vrot.slane %v337, 1
  %v830 = vsel %vm759, %v827, %v829
  %v831 = vrot.slane %v338, 1
  %v832 = vsel %vm759, %v829, %v831
  %v833 = vrot.slane %v339, 1
  %v834 = vsel %vm759, %v831, %v833
  %v835 = vrot.slane %v340, 1
  %v836 = vsel %vm759, %v833, %v835
  %v837 = vrot.slane %v341, 1
  %v838 = vsel %vm759, %v835, %v837
  %v839 = vrot.slane %v345, 1
  %v840 = vsel %vm759, %v837, %v839
  %841 = vrot.lane.b32.xlu0 %v762, 6
  %v842 = vpop.permute.xlu0 %841
  %843 = vrot.lane.b32.xlu0 %v764, 6
  %v844 = vpop.permute.xlu0 %843
  %845 = vrot.lane.b32.xlu0 %v766, 6
  %v846 = vpop.permute.xlu0 %845
  %847 = vrot.lane.b32.xlu0 %v768, 6
  %v848 = vpop.permute.xlu0 %847
  %849 = vrot.lane.b32.xlu0 %v770, 6
  %v850 = vpop.permute.xlu0 %849
  %851 = vrot.lane.b32.xlu0 %v772, 6
  %v852 = vpop.permute.xlu0 %851
  %853 = vrot.lane.b32.xlu0 %v774, 6
  %v854 = vpop.permute.xlu0 %853
  %855 = vrot.lane.b32.xlu0 %v776, 6
  %v856 = vpop.permute.xlu0 %855
  %857 = vrot.lane.b32.xlu0 %v778, 6
  %v858 = vpop.permute.xlu0 %857
  %859 = vrot.lane.b32.xlu0 %v780, 6
  %v860 = vpop.permute.xlu0 %859
  %861 = vrot.lane.b32.xlu0 %v782, 6
  %v862 = vpop.permute.xlu0 %861
  %863 = vrot.lane.b32.xlu0 %v784, 6
  %v864 = vpop.permute.xlu0 %863
  %865 = vrot.lane.b32.xlu0 %v786, 6
  %v866 = vpop.permute.xlu0 %865
  %867 = vrot.lane.b32.xlu0 %v788, 6
  %v868 = vpop.permute.xlu0 %867
  %869 = vrot.lane.b32.xlu0 %v790, 6
  %v870 = vpop.permute.xlu0 %869
  %871 = vrot.lane.b32.xlu0 %v792, 6
  %v872 = vpop.permute.xlu0 %871
  %873 = vrot.lane.b32.xlu0 %v794, 6
  %v874 = vpop.permute.xlu0 %873
  %875 = vrot.lane.b32.xlu0 %v796, 6
  %v876 = vpop.permute.xlu0 %875
  %877 = vrot.lane.b32.xlu0 %v798, 6
  %v878 = vpop.permute.xlu0 %877
  %879 = vrot.lane.b32.xlu0 %v800, 6
  %v880 = vpop.permute.xlu0 %879
  %881 = vrot.lane.b32.xlu0 %v802, 6
  %v882 = vpop.permute.xlu0 %881
  %883 = vrot.lane.b32.xlu0 %v804, 6
  %v884 = vpop.permute.xlu0 %883
  %885 = vrot.lane.b32.xlu0 %v806, 6
  %v886 = vpop.permute.xlu0 %885
  %887 = vrot.lane.b32.xlu0 %v808, 6
  %v888 = vpop.permute.xlu0 %887
  %889 = vrot.lane.b32.xlu0 %v810, 6
  %v890 = vpop.permute.xlu0 %889
  %891 = vrot.lane.b32.xlu0 %v812, 6
  %v892 = vpop.permute.xlu0 %891
  %893 = vrot.lane.b32.xlu0 %v814, 6
  %v894 = vpop.permute.xlu0 %893
  %895 = vrot.lane.b32.xlu0 %v816, 6
  %v896 = vpop.permute.xlu0 %895
  %897 = vrot.lane.b32.xlu0 %v818, 6
  %v898 = vpop.permute.xlu0 %897
  %899 = vrot.lane.b32.xlu0 %v820, 6
  %v900 = vpop.permute.xlu0 %899
  %901 = vrot.lane.b32.xlu0 %v822, 6
  %v902 = vpop.permute.xlu0 %901
  %903 = vrot.lane.b32.xlu0 %v824, 6
  %v904 = vpop.permute.xlu0 %903
  %905 = vrot.lane.b32.xlu0 %v826, 6
  %v906 = vpop.permute.xlu0 %905
  %907 = vrot.lane.b32.xlu0 %v828, 6
  %v908 = vpop.permute.xlu0 %907
  %909 = vrot.lane.b32.xlu0 %v830, 6
  %v910 = vpop.permute.xlu0 %909
  %911 = vrot.lane.b32.xlu0 %v832, 6
  %v912 = vpop.permute.xlu0 %911
  %913 = vrot.lane.b32.xlu0 %v834, 6
  %v914 = vpop.permute.xlu0 %913
  %915 = vrot.lane.b32.xlu0 %v836, 6
  %v916 = vpop.permute.xlu0 %915
  %917 = vrot.lane.b32.xlu0 %v838, 6
  %v918 = vpop.permute.xlu0 %917
  %919 = vrot.lane.b32.xlu0 %v840, 6
  %v920 = vpop.permute.xlu0 %919
  %921 = vrot.lane.b32.xlu0 %v839, 6
  %v922 = vpop.permute.xlu0 %921
  %v927 = vunpack.c.l.b16 %v128
  %v928 = vunpack.c.l.b16 %v129
  %v929 = vunpack.c.l.b16 %v130
  %v930 = vunpack.c.l.b16 %v131
  %v931 = vpack.c.b16 %v224, %v927
  %v932 = vpack.c.b16 %v928, %v301
  %v933 = vpack.c.b16 %v930, %v929
  %v934 = vrot.slane %v931, 1
  %v935 = vsel %vm759, %v934, %v763
  %v936 = vrot.slane %v932, 1
  %v937 = vsel %vm759, %v837, %v936
  %v938 = vrot.slane %v933, 1
  %v939 = vsel %vm759, %v936, %v938
  %940 = vrot.lane.b32.xlu0 %v935, 9
  %v941 = vpop.permute.xlu0 %940
  %942 = vrot.lane.b32.xlu0 %v766, 9
  %v943 = vpop.permute.xlu0 %942
  %944 = vrot.lane.b32.xlu0 %v768, 9
  %v945 = vpop.permute.xlu0 %944
  %946 = vrot.lane.b32.xlu0 %v770, 9
  %v947 = vpop.permute.xlu0 %946
  %948 = vrot.lane.b32.xlu0 %v772, 9
  %v949 = vpop.permute.xlu0 %948
  %950 = vrot.lane.b32.xlu0 %v774, 9
  %v951 = vpop.permute.xlu0 %950
  %952 = vrot.lane.b32.xlu0 %v776, 9
  %v953 = vpop.permute.xlu0 %952
  %954 = vrot.lane.b32.xlu0 %v778, 9
  %v955 = vpop.permute.xlu0 %954
  %956 = vrot.lane.b32.xlu0 %v780, 9
  %v957 = vpop.permute.xlu0 %956
  %958 = vrot.lane.b32.xlu0 %v782, 9
  %v959 = vpop.permute.xlu0 %958
  %960 = vrot.lane.b32.xlu0 %v784, 9
  %v961 = vpop.permute.xlu0 %960
  %962 = vrot.lane.b32.xlu0 %v786, 9
  %v963 = vpop.permute.xlu0 %962
  %964 = vrot.lane.b32.xlu0 %v788, 9
  %v965 = vpop.permute.xlu0 %964
  %966 = vrot.lane.b32.xlu0 %v790, 9
  %v967 = vpop.permute.xlu0 %966
  %968 = vrot.lane.b32.xlu0 %v792, 9
  %v969 = vpop.permute.xlu0 %968
  %970 = vrot.lane.b32.xlu0 %v794, 9
  %v971 = vpop.permute.xlu0 %970
  %972 = vrot.lane.b32.xlu0 %v796, 9
  %v973 = vpop.permute.xlu0 %972
  %974 = vrot.lane.b32.xlu0 %v798, 9
  %v975 = vpop.permute.xlu0 %974
  %976 = vrot.lane.b32.xlu0 %v800, 9
  %v977 = vpop.permute.xlu0 %976
  %978 = vrot.lane.b32.xlu0 %v802, 9
  %v979 = vpop.permute.xlu0 %978
  %980 = vrot.lane.b32.xlu0 %v804, 9
  %v981 = vpop.permute.xlu0 %980
  %982 = vrot.lane.b32.xlu0 %v806, 9
  %v983 = vpop.permute.xlu0 %982
  %984 = vrot.lane.b32.xlu0 %v808, 9
  %v985 = vpop.permute.xlu0 %984
  %986 = vrot.lane.b32.xlu0 %v810, 9
  %v987 = vpop.permute.xlu0 %986
  %988 = vrot.lane.b32.xlu0 %v812, 9
  %v989 = vpop.permute.xlu0 %988
  %990 = vrot.lane.b32.xlu0 %v814, 9
  %v991 = vpop.permute.xlu0 %990
  %992 = vrot.lane.b32.xlu0 %v816, 9
  %v993 = vpop.permute.xlu0 %992
  %994 = vrot.lane.b32.xlu0 %v818, 9
  %v995 = vpop.permute.xlu0 %994
  %996 = vrot.lane.b32.xlu0 %v820, 9
  %v997 = vpop.permute.xlu0 %996
  %998 = vrot.lane.b32.xlu0 %v822, 9
  %v999 = vpop.permute.xlu0 %998
  %1000 = vrot.lane.b32.xlu0 %v824, 9
  %v1001 = vpop.permute.xlu0 %1000
  %1002 = vrot.lane.b32.xlu0 %v826, 9
  %v1003 = vpop.permute.xlu0 %1002
  %1004 = vrot.lane.b32.xlu0 %v828, 9
  %v1005 = vpop.permute.xlu0 %1004
  %1006 = vrot.lane.b32.xlu0 %v830, 9
  %v1007 = vpop.permute.xlu0 %1006
  %1008 = vrot.lane.b32.xlu0 %v832, 9
  %v1009 = vpop.permute.xlu0 %1008
  %1010 = vrot.lane.b32.xlu0 %v834, 9
  %v1011 = vpop.permute.xlu0 %1010
  %1012 = vrot.lane.b32.xlu0 %v836, 9
  %v1013 = vpop.permute.xlu0 %1012
  %1014 = vrot.lane.b32.xlu0 %v838, 9
  %v1015 = vpop.permute.xlu0 %1014
  %1016 = vrot.lane.b32.xlu0 %v937, 9
  %v1017 = vpop.permute.xlu0 %1016
  %1018 = vrot.lane.b32.xlu0 %v939, 9
  %v1019 = vpop.permute.xlu0 %1018
  %1020 = vrot.lane.b32.xlu0 %v938, 9
  %v1021 = vpop.permute.xlu0 %1020
  %v1023 = vunpack.c.l.b16 %v132
  %v1024 = vpack.c.b16 %v1023, %v929
  %vm1025 = vsmask.f32 6400
  %v1027 = vshrl.u32 %v931, 16
  %v1029 = vrot.slane %v1027, 1
  %v1030 = vshll.u32 %v931, 16
  %v1032 = vrot.slane %v1030, 2
  %v1033 = vor.u32 %v1029, %v1032
  %v1034 = vrot.slane %v367, 1
  %v1035 = vrot.slane %v363, 2
  %v1036 = vor.u32 %v1034, %v1035
  %v1037 = vsel %vm1025, %v1033, %v1036
  %v1038 = vrot.slane %v375, 1
  %v1039 = vrot.slane %v371, 2
  %v1040 = vor.u32 %v1038, %v1039
  %v1041 = vsel %vm1025, %v1036, %v1040
  %v1042 = vrot.slane %v383, 1
  %v1043 = vrot.slane %v379, 2
  %v1044 = vor.u32 %v1042, %v1043
  %v1045 = vsel %vm1025, %v1040, %v1044
  %v1046 = vrot.slane %v391, 1
  %v1047 = vrot.slane %v387, 2
  %v1048 = vor.u32 %v1046, %v1047
  %v1049 = vsel %vm1025, %v1044, %v1048
  %v1050 = vrot.slane %v399, 1
  %v1051 = vrot.slane %v395, 2
  %v1052 = vor.u32 %v1050, %v1051
  %v1053 = vsel %vm1025, %v1048, %v1052
  %v1054 = vrot.slane %v407, 1
  %v1055 = vrot.slane %v403, 2
  %v1056 = vor.u32 %v1054, %v1055
  %v1057 = vsel %vm1025, %v1052, %v1056
  %v1058 = vrot.slane %v415, 1
  %v1059 = vrot.slane %v411, 2
  %v1060 = vor.u32 %v1058, %v1059
  %v1061 = vsel %vm1025, %v1056, %v1060
  %v1062 = vrot.slane %v423, 1
  %v1063 = vrot.slane %v419, 2
  %v1064 = vor.u32 %v1062, %v1063
  %v1065 = vsel %vm1025, %v1060, %v1064
  %v1066 = vrot.slane %v431, 1
  %v1067 = vrot.slane %v427, 2
  %v1068 = vor.u32 %v1066, %v1067
  %v1069 = vsel %vm1025, %v1064, %v1068
  %v1070 = vrot.slane %v439, 1
  %v1071 = vrot.slane %v435, 2
  %v1072 = vor.u32 %v1070, %v1071
  %v1073 = vsel %vm1025, %v1068, %v1072
  %v1074 = vrot.slane %v447, 1
  %v1075 = vrot.slane %v443, 2
  %v1076 = vor.u32 %v1074, %v1075
  %v1077 = vsel %vm1025, %v1072, %v1076
  %v1078 = vrot.slane %v455, 1
  %v1079 = vrot.slane %v451, 2
  %v1080 = vor.u32 %v1078, %v1079
  %v1081 = vsel %vm1025, %v1076, %v1080
  %v1082 = vrot.slane %v463, 1
  %v1083 = vrot.slane %v459, 2
  %v1084 = vor.u32 %v1082, %v1083
  %v1085 = vsel %vm1025, %v1080, %v1084
  %v1086 = vrot.slane %v471, 1
  %v1087 = vrot.slane %v467, 2
  %v1088 = vor.u32 %v1086, %v1087
  %v1089 = vsel %vm1025, %v1084, %v1088
  %v1090 = vrot.slane %v479, 1
  %v1091 = vrot.slane %v475, 2
  %v1092 = vor.u32 %v1090, %v1091
  %v1093 = vsel %vm1025, %v1088, %v1092
  %v1094 = vrot.slane %v487, 1
  %v1095 = vrot.slane %v483, 2
  %v1096 = vor.u32 %v1094, %v1095
  %v1097 = vsel %vm1025, %v1092, %v1096
  %v1098 = vrot.slane %v495, 1
  %v1099 = vrot.slane %v491, 2
  %v1100 = vor.u32 %v1098, %v1099
  %v1101 = vsel %vm1025, %v1096, %v1100
  %v1102 = vrot.slane %v503, 1
  %v1103 = vrot.slane %v499, 2
  %v1104 = vor.u32 %v1102, %v1103
  %v1105 = vsel %vm1025, %v1100, %v1104
  %v1106 = vrot.slane %v511, 1
  %v1107 = vrot.slane %v507, 2
  %v1108 = vor.u32 %v1106, %v1107
  %v1109 = vsel %vm1025, %v1104, %v1108
  %v1110 = vrot.slane %v519, 1
  %v1111 = vrot.slane %v515, 2
  %v1112 = vor.u32 %v1110, %v1111
  %v1113 = vsel %vm1025, %v1108, %v1112
  %v1114 = vrot.slane %v527, 1
  %v1115 = vrot.slane %v523, 2
  %v1116 = vor.u32 %v1114, %v1115
  %v1117 = vsel %vm1025, %v1112, %v1116
  %v1118 = vrot.slane %v535, 1
  %v1119 = vrot.slane %v531, 2
  %v1120 = vor.u32 %v1118, %v1119
  %v1121 = vsel %vm1025, %v1116, %v1120
  %v1122 = vrot.slane %v543, 1
  %v1123 = vrot.slane %v539, 2
  %v1124 = vor.u32 %v1122, %v1123
  %v1125 = vsel %vm1025, %v1120, %v1124
  %v1126 = vrot.slane %v551, 1
  %v1127 = vrot.slane %v547, 2
  %v1128 = vor.u32 %v1126, %v1127
  %v1129 = vsel %vm1025, %v1124, %v1128
  %v1130 = vrot.slane %v559, 1
  %v1131 = vrot.slane %v555, 2
  %v1132 = vor.u32 %v1130, %v1131
  %v1133 = vsel %vm1025, %v1128, %v1132
  %v1134 = vrot.slane %v567, 1
  %v1135 = vrot.slane %v563, 2
  %v1136 = vor.u32 %v1134, %v1135
  %v1137 = vsel %vm1025, %v1132, %v1136
  %v1138 = vrot.slane %v575, 1
  %v1139 = vrot.slane %v571, 2
  %v1140 = vor.u32 %v1138, %v1139
  %v1141 = vsel %vm1025, %v1136, %v1140
  %v1142 = vrot.slane %v583, 1
  %v1143 = vrot.slane %v579, 2
  %v1144 = vor.u32 %v1142, %v1143
  %v1145 = vsel %vm1025, %v1140, %v1144
  %v1146 = vrot.slane %v591, 1
  %v1147 = vrot.slane %v587, 2
  %v1148 = vor.u32 %v1146, %v1147
  %v1149 = vsel %vm1025, %v1144, %v1148
  %v1150 = vrot.slane %v599, 1
  %v1151 = vrot.slane %v595, 2
  %v1152 = vor.u32 %v1150, %v1151
  %v1153 = vsel %vm1025, %v1148, %v1152
  %v1154 = vrot.slane %v607, 1
  %v1155 = vrot.slane %v603, 2
  %v1156 = vor.u32 %v1154, %v1155
  %v1157 = vsel %vm1025, %v1152, %v1156
  %v1158 = vrot.slane %v615, 1
  %v1159 = vrot.slane %v611, 2
  %v1160 = vor.u32 %v1158, %v1159
  %v1161 = vsel %vm1025, %v1156, %v1160
  %v1162 = vrot.slane %v623, 1
  %v1163 = vrot.slane %v619, 2
  %v1164 = vor.u32 %v1162, %v1163
  %v1165 = vsel %vm1025, %v1160, %v1164
  %v1166 = vrot.slane %v631, 1
  %v1167 = vrot.slane %v627, 2
  %v1168 = vor.u32 %v1166, %v1167
  %v1169 = vsel %vm1025, %v1164, %v1168
  %v1170 = vrot.slane %v639, 1
  %v1171 = vrot.slane %v635, 2
  %v1172 = vor.u32 %v1170, %v1171
  %v1173 = vsel %vm1025, %v1168, %v1172
  %v1174 = vrot.slane %v647, 1
  %v1175 = vrot.slane %v643, 2
  %v1176 = vor.u32 %v1174, %v1175
  %v1177 = vsel %vm1025, %v1172, %v1176
  %v1178 = vrot.slane %v655, 1
  %v1179 = vrot.slane %v651, 2
  %v1180 = vor.u32 %v1178, %v1179
  %v1181 = vsel %vm1025, %v1176, %v1180
  %v1182 = vrot.slane %v663, 1
  %v1183 = vrot.slane %v659, 2
  %v1184 = vor.u32 %v1182, %v1183
  %v1185 = vsel %vm1025, %v1180, %v1184
  %v1187 = vshrl.u32 %v932, 16
  %v1189 = vrot.slane %v1187, 1
  %v1190 = vshll.u32 %v932, 16
  %v1192 = vrot.slane %v1190, 2
  %v1193 = vor.u32 %v1189, %v1192
  %v1194 = vsel %vm1025, %v1184, %v1193
  %v1196 = vshrl.u32 %v1024, 16
  %v1198 = vrot.slane %v1196, 1
  %v1199 = vshll.u32 %v1024, 16
  %v1201 = vrot.slane %v1199, 2
  %v1202 = vor.u32 %v1198, %v1201
  %v1203 = vsel %vm1025, %v1193, %v1202
  %1204 = vrot.lane.b32.xlu0 %v1037, 12
  %v1205 = vpop.permute.xlu0 %1204
  %1206 = vrot.lane.b32.xlu0 %v1041, 12
  %v1207 = vpop.permute.xlu0 %1206
  %1208 = vrot.lane.b32.xlu0 %v1045, 12
  %v1209 = vpop.permute.xlu0 %1208
  %1210 = vrot.lane.b32.xlu0 %v1049, 12
  %v1211 = vpop.permute.xlu0 %1210
  %1212 = vrot.lane.b32.xlu0 %v1053, 12
  %v1213 = vpop.permute.xlu0 %1212
  %1214 = vrot.lane.b32.xlu0 %v1057, 12
  %v1215 = vpop.permute.xlu0 %1214
  %1216 = vrot.lane.b32.xlu0 %v1061, 12
  %v1217 = vpop.permute.xlu0 %1216
  %1218 = vrot.lane.b32.xlu0 %v1065, 12
  %v1219 = vpop.permute.xlu0 %1218
  %1220 = vrot.lane.b32.xlu0 %v1069, 12
  %v1221 = vpop.permute.xlu0 %1220
  %1222 = vrot.lane.b32.xlu0 %v1073, 12
  %v1223 = vpop.permute.xlu0 %1222
  %1224 = vrot.lane.b32.xlu0 %v1077, 12
  %v1225 = vpop.permute.xlu0 %1224
  %1226 = vrot.lane.b32.xlu0 %v1081, 12
  %v1227 = vpop.permute.xlu0 %1226
  %1228 = vrot.lane.b32.xlu0 %v1085, 12
  %v1229 = vpop.permute.xlu0 %1228
  %1230 = vrot.lane.b32.xlu0 %v1089, 12
  %v1231 = vpop.permute.xlu0 %1230
  %1232 = vrot.lane.b32.xlu0 %v1093, 12
  %v1233 = vpop.permute.xlu0 %1232
  %1234 = vrot.lane.b32.xlu0 %v1097, 12
  %v1235 = vpop.permute.xlu0 %1234
  %1236 = vrot.lane.b32.xlu0 %v1101, 12
  %v1237 = vpop.permute.xlu0 %1236
  %1238 = vrot.lane.b32.xlu0 %v1105, 12
  %v1239 = vpop.permute.xlu0 %1238
  %1240 = vrot.lane.b32.xlu0 %v1109, 12
  %v1241 = vpop.permute.xlu0 %1240
  %1242 = vrot.lane.b32.xlu0 %v1113, 12
  %v1243 = vpop.permute.xlu0 %1242
  %1244 = vrot.lane.b32.xlu0 %v1117, 12
  %v1245 = vpop.permute.xlu0 %1244
  %1246 = vrot.lane.b32.xlu0 %v1121, 12
  %v1247 = vpop.permute.xlu0 %1246
  %1248 = vrot.lane.b32.xlu0 %v1125, 12
  %v1249 = vpop.permute.xlu0 %1248
  %1250 = vrot.lane.b32.xlu0 %v1129, 12
  %v1251 = vpop.permute.xlu0 %1250
  %1252 = vrot.lane.b32.xlu0 %v1133, 12
  %v1253 = vpop.permute.xlu0 %1252
  %1254 = vrot.lane.b32.xlu0 %v1137, 12
  %v1255 = vpop.permute.xlu0 %1254
  %1256 = vrot.lane.b32.xlu0 %v1141, 12
  %v1257 = vpop.permute.xlu0 %1256
  %1258 = vrot.lane.b32.xlu0 %v1145, 12
  %v1259 = vpop.permute.xlu0 %1258
  %1260 = vrot.lane.b32.xlu0 %v1149, 12
  %v1261 = vpop.permute.xlu0 %1260
  %1262 = vrot.lane.b32.xlu0 %v1153, 12
  %v1263 = vpop.permute.xlu0 %1262
  %1264 = vrot.lane.b32.xlu0 %v1157, 12
  %v1265 = vpop.permute.xlu0 %1264
  %1266 = vrot.lane.b32.xlu0 %v1161, 12
  %v1267 = vpop.permute.xlu0 %1266
  %1268 = vrot.lane.b32.xlu0 %v1165, 12
  %v1269 = vpop.permute.xlu0 %1268
  %1270 = vrot.lane.b32.xlu0 %v1169, 12
  %v1271 = vpop.permute.xlu0 %1270
  %1272 = vrot.lane.b32.xlu0 %v1173, 12
  %v1273 = vpop.permute.xlu0 %1272
  %1274 = vrot.lane.b32.xlu0 %v1177, 12
  %v1275 = vpop.permute.xlu0 %1274
  %1276 = vrot.lane.b32.xlu0 %v1181, 12
  %v1277 = vpop.permute.xlu0 %1276
  %1278 = vrot.lane.b32.xlu0 %v1185, 12
  %v1279 = vpop.permute.xlu0 %1278
  %1280 = vrot.lane.b32.xlu0 %v1194, 12
  %v1281 = vpop.permute.xlu0 %1280
  %1282 = vrot.lane.b32.xlu0 %v1203, 12
  %v1283 = vpop.permute.xlu0 %1282
  %1284 = vrot.lane.b32.xlu0 %v1202, 12
  %v1285 = vpop.permute.xlu0 %1284
  %v1287 = vunpack.c.l.b16 %v133
  %v1288 = vpack.c.b16 %v224, %v1287
  %vm1289 = vcmask 1045504
  %v1290 = vrot.slane %v1288, 2
  %v1291 = vrot.slane %v304, 2
  %v1292 = vsel %vm1289, %v1290, %v1291
  %v1293 = vrot.slane %v305, 2
  %v1294 = vsel %vm1289, %v1291, %v1293
  %v1295 = vrot.slane %v306, 2
  %v1296 = vsel %vm1289, %v1293, %v1295
  %v1297 = vrot.slane %v307, 2
  %v1298 = vsel %vm1289, %v1295, %v1297
  %v1299 = vrot.slane %v308, 2
  %v1300 = vsel %vm1289, %v1297, %v1299
  %v1301 = vrot.slane %v309, 2
  %v1302 = vsel %vm1289, %v1299, %v1301
  %v1303 = vrot.slane %v310, 2
  %v1304 = vsel %vm1289, %v1301, %v1303
  %v1305 = vrot.slane %v311, 2
  %v1306 = vsel %vm1289, %v1303, %v1305
  %v1307 = vrot.slane %v312, 2
  %v1308 = vsel %vm1289, %v1305, %v1307
  %v1309 = vrot.slane %v313, 2
  %v1310 = vsel %vm1289, %v1307, %v1309
  %v1311 = vrot.slane %v314, 2
  %v1312 = vsel %vm1289, %v1309, %v1311
  %v1313 = vrot.slane %v315, 2
  %v1314 = vsel %vm1289, %v1311, %v1313
  %v1315 = vrot.slane %v316, 2
  %v1316 = vsel %vm1289, %v1313, %v1315
  %v1317 = vrot.slane %v317, 2
  %v1318 = vsel %vm1289, %v1315, %v1317
  %v1319 = vrot.slane %v318, 2
  %v1320 = vsel %vm1289, %v1317, %v1319
  %v1321 = vrot.slane %v319, 2
  %v1322 = vsel %vm1289, %v1319, %v1321
  %v1323 = vrot.slane %v320, 2
  %v1324 = vsel %vm1289, %v1321, %v1323
  %v1325 = vrot.slane %v321, 2
  %v1326 = vsel %vm1289, %v1323, %v1325
  %v1327 = vrot.slane %v322, 2
  %v1328 = vsel %vm1289, %v1325, %v1327
  %v1329 = vrot.slane %v323, 2
  %v1330 = vsel %vm1289, %v1327, %v1329
  %v1331 = vrot.slane %v324, 2
  %v1332 = vsel %vm1289, %v1329, %v1331
  %v1333 = vrot.slane %v325, 2
  %v1334 = vsel %vm1289, %v1331, %v1333
  %v1335 = vrot.slane %v326, 2
  %v1336 = vsel %vm1289, %v1333, %v1335
  %v1337 = vrot.slane %v327, 2
  %v1338 = vsel %vm1289, %v1335, %v1337
  %v1339 = vrot.slane %v328, 2
  %v1340 = vsel %vm1289, %v1337, %v1339
  %v1341 = vrot.slane %v329, 2
  %v1342 = vsel %vm1289, %v1339, %v1341
  %v1343 = vrot.slane %v330, 2
  %v1344 = vsel %vm1289, %v1341, %v1343
  %v1345 = vrot.slane %v331, 2
  %v1346 = vsel %vm1289, %v1343, %v1345
  %v1347 = vrot.slane %v332, 2
  %v1348 = vsel %vm1289, %v1345, %v1347
  %v1349 = vrot.slane %v333, 2
  %v1350 = vsel %vm1289, %v1347, %v1349
  %v1351 = vrot.slane %v334, 2
  %v1352 = vsel %vm1289, %v1349, %v1351
  %v1353 = vrot.slane %v335, 2
  %v1354 = vsel %vm1289, %v1351, %v1353
  %v1355 = vrot.slane %v336, 2
  %v1356 = vsel %vm1289, %v1353, %v1355
  %v1357 = vrot.slane %v337, 2
  %v1358 = vsel %vm1289, %v1355, %v1357
  %v1359 = vrot.slane %v338, 2
  %v1360 = vsel %vm1289, %v1357, %v1359
  %v1361 = vrot.slane %v339, 2
  %v1362 = vsel %vm1289, %v1359, %v1361
  %v1363 = vrot.slane %v340, 2
  %v1364 = vsel %vm1289, %v1361, %v1363
  %v1365 = vrot.slane %v341, 2
  %v1366 = vsel %vm1289, %v1363, %v1365
  %v1367 = vrot.slane %v932, 2
  %v1368 = vsel %vm1289, %v1365, %v1367
  %v1369 = vrot.slane %v1024, 2
  %v1370 = vsel %vm1289, %v1367, %v1369
  %1371 = vrot.lane.b32.xlu0 %v1292, 15
  %v1372 = vpop.permute.xlu0 %1371
  %1373 = vrot.lane.b32.xlu0 %v1294, 15
  %v1374 = vpop.permute.xlu0 %1373
  %1375 = vrot.lane.b32.xlu0 %v1296, 15
  %v1376 = vpop.permute.xlu0 %1375
  %1377 = vrot.lane.b32.xlu0 %v1298, 15
  %v1378 = vpop.permute.xlu0 %1377
  %1379 = vrot.lane.b32.xlu0 %v1300, 15
  %v1380 = vpop.permute.xlu0 %1379
  %1381 = vrot.lane.b32.xlu0 %v1302, 15
  %v1382 = vpop.permute.xlu0 %1381
  %1383 = vrot.lane.b32.xlu0 %v1304, 15
  %v1384 = vpop.permute.xlu0 %1383
  %1385 = vrot.lane.b32.xlu0 %v1306, 15
  %v1386 = vpop.permute.xlu0 %1385
  %1387 = vrot.lane.b32.xlu0 %v1308, 15
  %v1388 = vpop.permute.xlu0 %1387
  %1389 = vrot.lane.b32.xlu0 %v1310, 15
  %v1390 = vpop.permute.xlu0 %1389
  %1391 = vrot.lane.b32.xlu0 %v1312, 15
  %v1392 = vpop.permute.xlu0 %1391
  %1393 = vrot.lane.b32.xlu0 %v1314, 15
  %v1394 = vpop.permute.xlu0 %1393
  %1395 = vrot.lane.b32.xlu0 %v1316, 15
  %v1396 = vpop.permute.xlu0 %1395
  %1397 = vrot.lane.b32.xlu0 %v1318, 15
  %v1398 = vpop.permute.xlu0 %1397
  %1399 = vrot.lane.b32.xlu0 %v1320, 15
  %v1400 = vpop.permute.xlu0 %1399
  %1401 = vrot.lane.b32.xlu0 %v1322, 15
  %v1402 = vpop.permute.xlu0 %1401
  %1403 = vrot.lane.b32.xlu0 %v1324, 15
  %v1404 = vpop.permute.xlu0 %1403
  %1405 = vrot.lane.b32.xlu0 %v1326, 15
  %v1406 = vpop.permute.xlu0 %1405
  %1407 = vrot.lane.b32.xlu0 %v1328, 15
  %v1408 = vpop.permute.xlu0 %1407
  %1409 = vrot.lane.b32.xlu0 %v1330, 15
  %v1410 = vpop.permute.xlu0 %1409
  %1411 = vrot.lane.b32.xlu0 %v1332, 15
  %v1412 = vpop.permute.xlu0 %1411
  %1413 = vrot.lane.b32.xlu0 %v1334, 15
  %v1414 = vpop.permute.xlu0 %1413
  %1415 = vrot.lane.b32.xlu0 %v1336, 15
  %v1416 = vpop.permute.xlu0 %1415
  %1417 = vrot.lane.b32.xlu0 %v1338, 15
  %v1418 = vpop.permute.xlu0 %1417
  %1419 = vrot.lane.b32.xlu0 %v1340, 15
  %v1420 = vpop.permute.xlu0 %1419
  %1421 = vrot.lane.b32.xlu0 %v1342, 15
  %v1422 = vpop.permute.xlu0 %1421
  %1423 = vrot.lane.b32.xlu0 %v1344, 15
  %v1424 = vpop.permute.xlu0 %1423
  %1425 = vrot.lane.b32.xlu0 %v1346, 15
  %v1426 = vpop.permute.xlu0 %1425
  %1427 = vrot.lane.b32.xlu0 %v1348, 15
  %v1428 = vpop.permute.xlu0 %1427
  %1429 = vrot.lane.b32.xlu0 %v1350, 15
  %v1430 = vpop.permute.xlu0 %1429
  %1431 = vrot.lane.b32.xlu0 %v1352, 15
  %v1432 = vpop.permute.xlu0 %1431
  %1433 = vrot.lane.b32.xlu0 %v1354, 15
  %v1434 = vpop.permute.xlu0 %1433
  %1435 = vrot.lane.b32.xlu0 %v1356, 15
  %v1436 = vpop.permute.xlu0 %1435
  %1437 = vrot.lane.b32.xlu0 %v1358, 15
  %v1438 = vpop.permute.xlu0 %1437
  %1439 = vrot.lane.b32.xlu0 %v1360, 15
  %v1440 = vpop.permute.xlu0 %1439
  %1441 = vrot.lane.b32.xlu0 %v1362, 15
  %v1442 = vpop.permute.xlu0 %1441
  %1443 = vrot.lane.b32.xlu0 %v1364, 15
  %v1444 = vpop.permute.xlu0 %1443
  %1445 = vrot.lane.b32.xlu0 %v1366, 15
  %v1446 = vpop.permute.xlu0 %1445
  %1447 = vrot.lane.b32.xlu0 %v1368, 15
  %v1448 = vpop.permute.xlu0 %1447
  %1449 = vrot.lane.b32.xlu0 %v1370, 15
  %v1450 = vpop.permute.xlu0 %1449
  %1451 = vrot.lane.b32.xlu0 %v1369, 15
  %v1452 = vpop.permute.xlu0 %1451
  %v1457 = vunpack.c.l.b16 %v134
  %v1458 = vunpack.c.l.b16 %v135
  %v1459 = vunpack.c.l.b16 %v136
  %v1460 = vunpack.c.l.b16 %v137
  %v1461 = vpack.c.b16 %v226, %v1457
  %v1462 = vpack.c.b16 %v1458, %v929
  %v1463 = vpack.c.b16 %v1460, %v1459
  %v1464 = vrot.slane %v1461, 2
  %v1465 = vsel %vm1289, %v1464, %v1293
  %v1466 = vrot.slane %v1462, 2
  %v1467 = vsel %vm1289, %v1367, %v1466
  %v1468 = vrot.slane %v1463, 2
  %v1469 = vsel %vm1289, %v1466, %v1468
  %1470 = vrot.lane.b32.xlu0 %v1465, 18
  %v1471 = vpop.permute.xlu0 %1470
  %1472 = vrot.lane.b32.xlu0 %v1296, 18
  %v1473 = vpop.permute.xlu0 %1472
  %1474 = vrot.lane.b32.xlu0 %v1298, 18
  %v1475 = vpop.permute.xlu0 %1474
  %1476 = vrot.lane.b32.xlu0 %v1300, 18
  %v1477 = vpop.permute.xlu0 %1476
  %1478 = vrot.lane.b32.xlu0 %v1302, 18
  %v1479 = vpop.permute.xlu0 %1478
  %1480 = vrot.lane.b32.xlu0 %v1304, 18
  %v1481 = vpop.permute.xlu0 %1480
  %1482 = vrot.lane.b32.xlu0 %v1306, 18
  %v1483 = vpop.permute.xlu0 %1482
  %1484 = vrot.lane.b32.xlu0 %v1308, 18
  %v1485 = vpop.permute.xlu0 %1484
  %1486 = vrot.lane.b32.xlu0 %v1310, 18
  %v1487 = vpop.permute.xlu0 %1486
  %1488 = vrot.lane.b32.xlu0 %v1312, 18
  %v1489 = vpop.permute.xlu0 %1488
  %1490 = vrot.lane.b32.xlu0 %v1314, 18
  %v1491 = vpop.permute.xlu0 %1490
  %1492 = vrot.lane.b32.xlu0 %v1316, 18
  %v1493 = vpop.permute.xlu0 %1492
  %1494 = vrot.lane.b32.xlu0 %v1318, 18
  %v1495 = vpop.permute.xlu0 %1494
  %1496 = vrot.lane.b32.xlu0 %v1320, 18
  %v1497 = vpop.permute.xlu0 %1496
  %1498 = vrot.lane.b32.xlu0 %v1322, 18
  %v1499 = vpop.permute.xlu0 %1498
  %1500 = vrot.lane.b32.xlu0 %v1324, 18
  %v1501 = vpop.permute.xlu0 %1500
  %1502 = vrot.lane.b32.xlu0 %v1326, 18
  %v1503 = vpop.permute.xlu0 %1502
  %1504 = vrot.lane.b32.xlu0 %v1328, 18
  %v1505 = vpop.permute.xlu0 %1504
  %1506 = vrot.lane.b32.xlu0 %v1330, 18
  %v1507 = vpop.permute.xlu0 %1506
  %1508 = vrot.lane.b32.xlu0 %v1332, 18
  %v1509 = vpop.permute.xlu0 %1508
  %1510 = vrot.lane.b32.xlu0 %v1334, 18
  %v1511 = vpop.permute.xlu0 %1510
  %1512 = vrot.lane.b32.xlu0 %v1336, 18
  %v1513 = vpop.permute.xlu0 %1512
  %1514 = vrot.lane.b32.xlu0 %v1338, 18
  %v1515 = vpop.permute.xlu0 %1514
  %1516 = vrot.lane.b32.xlu0 %v1340, 18
  %v1517 = vpop.permute.xlu0 %1516
  %1518 = vrot.lane.b32.xlu0 %v1342, 18
  %v1519 = vpop.permute.xlu0 %1518
  %1520 = vrot.lane.b32.xlu0 %v1344, 18
  %v1521 = vpop.permute.xlu0 %1520
  %1522 = vrot.lane.b32.xlu0 %v1346, 18
  %v1523 = vpop.permute.xlu0 %1522
  %1524 = vrot.lane.b32.xlu0 %v1348, 18
  %v1525 = vpop.permute.xlu0 %1524
  %1526 = vrot.lane.b32.xlu0 %v1350, 18
  %v1527 = vpop.permute.xlu0 %1526
  %1528 = vrot.lane.b32.xlu0 %v1352, 18
  %v1529 = vpop.permute.xlu0 %1528
  %1530 = vrot.lane.b32.xlu0 %v1354, 18
  %v1531 = vpop.permute.xlu0 %1530
  %1532 = vrot.lane.b32.xlu0 %v1356, 18
  %v1533 = vpop.permute.xlu0 %1532
  %1534 = vrot.lane.b32.xlu0 %v1358, 18
  %v1535 = vpop.permute.xlu0 %1534
  %1536 = vrot.lane.b32.xlu0 %v1360, 18
  %v1537 = vpop.permute.xlu0 %1536
  %1538 = vrot.lane.b32.xlu0 %v1362, 18
  %v1539 = vpop.permute.xlu0 %1538
  %1540 = vrot.lane.b32.xlu0 %v1364, 18
  %v1541 = vpop.permute.xlu0 %1540
  %1542 = vrot.lane.b32.xlu0 %v1366, 18
  %v1543 = vpop.permute.xlu0 %1542
  %1544 = vrot.lane.b32.xlu0 %v1368, 18
  %v1545 = vpop.permute.xlu0 %1544
  %1546 = vrot.lane.b32.xlu0 %v1467, 18
  %v1547 = vpop.permute.xlu0 %1546
  %1548 = vrot.lane.b32.xlu0 %v1469, 18
  %v1549 = vpop.permute.xlu0 %1548
  %1550 = vrot.lane.b32.xlu0 %v1468, 18
  %v1551 = vpop.permute.xlu0 %1550
  %v1553 = vunpack.c.l.b16 %v138
  %v1554 = vpack.c.b16 %v1553, %v1459
  %vm1555 = vsmask.f32 5376
  %v1557 = vshrl.u32 %v1461, 16
  %v1559 = vrot.slane %v1557, 2
  %v1560 = vshll.u32 %v1461, 16
  %v1562 = vrot.slane %v1560, 3
  %v1563 = vor.u32 %v1559, %v1562
  %v1564 = vrot.slane %v375, 2
  %v1565 = vrot.slane %v371, 3
  %v1566 = vor.u32 %v1564, %v1565
  %v1567 = vsel %vm1555, %v1563, %v1566
  %v1568 = vrot.slane %v383, 2
  %v1569 = vrot.slane %v379, 3
  %v1570 = vor.u32 %v1568, %v1569
  %v1571 = vsel %vm1555, %v1566, %v1570
  %v1572 = vrot.slane %v391, 2
  %v1573 = vrot.slane %v387, 3
  %v1574 = vor.u32 %v1572, %v1573
  %v1575 = vsel %vm1555, %v1570, %v1574
  %v1576 = vrot.slane %v399, 2
  %v1577 = vrot.slane %v395, 3
  %v1578 = vor.u32 %v1576, %v1577
  %v1579 = vsel %vm1555, %v1574, %v1578
  %v1580 = vrot.slane %v407, 2
  %v1581 = vrot.slane %v403, 3
  %v1582 = vor.u32 %v1580, %v1581
  %v1583 = vsel %vm1555, %v1578, %v1582
  %v1584 = vrot.slane %v415, 2
  %v1585 = vrot.slane %v411, 3
  %v1586 = vor.u32 %v1584, %v1585
  %v1587 = vsel %vm1555, %v1582, %v1586
  %v1588 = vrot.slane %v423, 2
  %v1589 = vrot.slane %v419, 3
  %v1590 = vor.u32 %v1588, %v1589
  %v1591 = vsel %vm1555, %v1586, %v1590
  %v1592 = vrot.slane %v431, 2
  %v1593 = vrot.slane %v427, 3
  %v1594 = vor.u32 %v1592, %v1593
  %v1595 = vsel %vm1555, %v1590, %v1594
  %v1596 = vrot.slane %v439, 2
  %v1597 = vrot.slane %v435, 3
  %v1598 = vor.u32 %v1596, %v1597
  %v1599 = vsel %vm1555, %v1594, %v1598
  %v1600 = vrot.slane %v447, 2
  %v1601 = vrot.slane %v443, 3
  %v1602 = vor.u32 %v1600, %v1601
  %v1603 = vsel %vm1555, %v1598, %v1602
  %v1604 = vrot.slane %v455, 2
  %v1605 = vrot.slane %v451, 3
  %v1606 = vor.u32 %v1604, %v1605
  %v1607 = vsel %vm1555, %v1602, %v1606
  %v1608 = vrot.slane %v463, 2
  %v1609 = vrot.slane %v459, 3
  %v1610 = vor.u32 %v1608, %v1609
  %v1611 = vsel %vm1555, %v1606, %v1610
  %v1612 = vrot.slane %v471, 2
  %v1613 = vrot.slane %v467, 3
  %v1614 = vor.u32 %v1612, %v1613
  %v1615 = vsel %vm1555, %v1610, %v1614
  %v1616 = vrot.slane %v479, 2
  %v1617 = vrot.slane %v475, 3
  %v1618 = vor.u32 %v1616, %v1617
  %v1619 = vsel %vm1555, %v1614, %v1618
  %v1620 = vrot.slane %v487, 2
  %v1621 = vrot.slane %v483, 3
  %v1622 = vor.u32 %v1620, %v1621
  %v1623 = vsel %vm1555, %v1618, %v1622
  %v1624 = vrot.slane %v495, 2
  %v1625 = vrot.slane %v491, 3
  %v1626 = vor.u32 %v1624, %v1625
  %v1627 = vsel %vm1555, %v1622, %v1626
  %v1628 = vrot.slane %v503, 2
  %v1629 = vrot.slane %v499, 3
  %v1630 = vor.u32 %v1628, %v1629
  %v1631 = vsel %vm1555, %v1626, %v1630
  %v1632 = vrot.slane %v511, 2
  %v1633 = vrot.slane %v507, 3
  %v1634 = vor.u32 %v1632, %v1633
  %v1635 = vsel %vm1555, %v1630, %v1634
  %v1636 = vrot.slane %v519, 2
  %v1637 = vrot.slane %v515, 3
  %v1638 = vor.u32 %v1636, %v1637
  %v1639 = vsel %vm1555, %v1634, %v1638
  %v1640 = vrot.slane %v527, 2
  %v1641 = vrot.slane %v523, 3
  %v1642 = vor.u32 %v1640, %v1641
  %v1643 = vsel %vm1555, %v1638, %v1642
  %v1644 = vrot.slane %v535, 2
  %v1645 = vrot.slane %v531, 3
  %v1646 = vor.u32 %v1644, %v1645
  %v1647 = vsel %vm1555, %v1642, %v1646
  %v1648 = vrot.slane %v543, 2
  %v1649 = vrot.slane %v539, 3
  %v1650 = vor.u32 %v1648, %v1649
  %v1651 = vsel %vm1555, %v1646, %v1650
  %v1652 = vrot.slane %v551, 2
  %v1653 = vrot.slane %v547, 3
  %v1654 = vor.u32 %v1652, %v1653
  %v1655 = vsel %vm1555, %v1650, %v1654
  %v1656 = vrot.slane %v559, 2
  %v1657 = vrot.slane %v555, 3
  %v1658 = vor.u32 %v1656, %v1657
  %v1659 = vsel %vm1555, %v1654, %v1658
  %v1660 = vrot.slane %v567, 2
  %v1661 = vrot.slane %v563, 3
  %v1662 = vor.u32 %v1660, %v1661
  %v1663 = vsel %vm1555, %v1658, %v1662
  %v1664 = vrot.slane %v575, 2
  %v1665 = vrot.slane %v571, 3
  %v1666 = vor.u32 %v1664, %v1665
  %v1667 = vsel %vm1555, %v1662, %v1666
  %v1668 = vrot.slane %v583, 2
  %v1669 = vrot.slane %v579, 3
  %v1670 = vor.u32 %v1668, %v1669
  %v1671 = vsel %vm1555, %v1666, %v1670
  %v1672 = vrot.slane %v591, 2
  %v1673 = vrot.slane %v587, 3
  %v1674 = vor.u32 %v1672, %v1673
  %v1675 = vsel %vm1555, %v1670, %v1674
  %v1676 = vrot.slane %v599, 2
  %v1677 = vrot.slane %v595, 3
  %v1678 = vor.u32 %v1676, %v1677
  %v1679 = vsel %vm1555, %v1674, %v1678
  %v1680 = vrot.slane %v607, 2
  %v1681 = vrot.slane %v603, 3
  %v1682 = vor.u32 %v1680, %v1681
  %v1683 = vsel %vm1555, %v1678, %v1682
  %v1684 = vrot.slane %v615, 2
  %v1685 = vrot.slane %v611, 3
  %v1686 = vor.u32 %v1684, %v1685
  %v1687 = vsel %vm1555, %v1682, %v1686
  %v1688 = vrot.slane %v623, 2
  %v1689 = vrot.slane %v619, 3
  %v1690 = vor.u32 %v1688, %v1689
  %v1691 = vsel %vm1555, %v1686, %v1690
  %v1692 = vrot.slane %v631, 2
  %v1693 = vrot.slane %v627, 3
  %v1694 = vor.u32 %v1692, %v1693
  %v1695 = vsel %vm1555, %v1690, %v1694
  %v1696 = vrot.slane %v639, 2
  %v1697 = vrot.slane %v635, 3
  %v1698 = vor.u32 %v1696, %v1697
  %v1699 = vsel %vm1555, %v1694, %v1698
  %v1700 = vrot.slane %v647, 2
  %v1701 = vrot.slane %v643, 3
  %v1702 = vor.u32 %v1700, %v1701
  %v1703 = vsel %vm1555, %v1698, %v1702
  %v1704 = vrot.slane %v655, 2
  %v1705 = vrot.slane %v651, 3
  %v1706 = vor.u32 %v1704, %v1705
  %v1707 = vsel %vm1555, %v1702, %v1706
  %v1708 = vrot.slane %v663, 2
  %v1709 = vrot.slane %v659, 3
  %v1710 = vor.u32 %v1708, %v1709
  %v1711 = vsel %vm1555, %v1706, %v1710
  %v1712 = vrot.slane %v1187, 2
  %v1713 = vrot.slane %v1190, 3
  %v1714 = vor.u32 %v1712, %v1713
  %v1715 = vsel %vm1555, %v1710, %v1714
  %v1717 = vshrl.u32 %v1462, 16
  %v1719 = vrot.slane %v1717, 2
  %v1720 = vshll.u32 %v1462, 16
  %v1722 = vrot.slane %v1720, 3
  %v1723 = vor.u32 %v1719, %v1722
  %v1724 = vsel %vm1555, %v1714, %v1723
  %v1726 = vshrl.u32 %v1554, 16
  %v1728 = vrot.slane %v1726, 2
  %v1729 = vshll.u32 %v1554, 16
  %v1731 = vrot.slane %v1729, 3
  %v1732 = vor.u32 %v1728, %v1731
  %v1733 = vsel %vm1555, %v1723, %v1732
  %1734 = vrot.lane.b32.xlu0 %v1567, 21
  %v1735 = vpop.permute.xlu0 %1734
  %1736 = vrot.lane.b32.xlu0 %v1571, 21
  %v1737 = vpop.permute.xlu0 %1736
  %1738 = vrot.lane.b32.xlu0 %v1575, 21
  %v1739 = vpop.permute.xlu0 %1738
  %1740 = vrot.lane.b32.xlu0 %v1579, 21
  %v1741 = vpop.permute.xlu0 %1740
  %1742 = vrot.lane.b32.xlu0 %v1583, 21
  %v1743 = vpop.permute.xlu0 %1742
  %1744 = vrot.lane.b32.xlu0 %v1587, 21
  %v1745 = vpop.permute.xlu0 %1744
  %1746 = vrot.lane.b32.xlu0 %v1591, 21
  %v1747 = vpop.permute.xlu0 %1746
  %1748 = vrot.lane.b32.xlu0 %v1595, 21
  %v1749 = vpop.permute.xlu0 %1748
  %1750 = vrot.lane.b32.xlu0 %v1599, 21
  %v1751 = vpop.permute.xlu0 %1750
  %1752 = vrot.lane.b32.xlu0 %v1603, 21
  %v1753 = vpop.permute.xlu0 %1752
  %1754 = vrot.lane.b32.xlu0 %v1607, 21
  %v1755 = vpop.permute.xlu0 %1754
  %1756 = vrot.lane.b32.xlu0 %v1611, 21
  %v1757 = vpop.permute.xlu0 %1756
  %1758 = vrot.lane.b32.xlu0 %v1615, 21
  %v1759 = vpop.permute.xlu0 %1758
  %1760 = vrot.lane.b32.xlu0 %v1619, 21
  %v1761 = vpop.permute.xlu0 %1760
  %1762 = vrot.lane.b32.xlu0 %v1623, 21
  %v1763 = vpop.permute.xlu0 %1762
  %1764 = vrot.lane.b32.xlu0 %v1627, 21
  %v1765 = vpop.permute.xlu0 %1764
  %1766 = vrot.lane.b32.xlu0 %v1631, 21
  %v1767 = vpop.permute.xlu0 %1766
  %1768 = vrot.lane.b32.xlu0 %v1635, 21
  %v1769 = vpop.permute.xlu0 %1768
  %1770 = vrot.lane.b32.xlu0 %v1639, 21
  %v1771 = vpop.permute.xlu0 %1770
  %1772 = vrot.lane.b32.xlu0 %v1643, 21
  %v1773 = vpop.permute.xlu0 %1772
  %1774 = vrot.lane.b32.xlu0 %v1647, 21
  %v1775 = vpop.permute.xlu0 %1774
  %1776 = vrot.lane.b32.xlu0 %v1651, 21
  %v1777 = vpop.permute.xlu0 %1776
  %1778 = vrot.lane.b32.xlu0 %v1655, 21
  %v1779 = vpop.permute.xlu0 %1778
  %1780 = vrot.lane.b32.xlu0 %v1659, 21
  %v1781 = vpop.permute.xlu0 %1780
  %1782 = vrot.lane.b32.xlu0 %v1663, 21
  %v1783 = vpop.permute.xlu0 %1782
  %1784 = vrot.lane.b32.xlu0 %v1667, 21
  %v1785 = vpop.permute.xlu0 %1784
  %1786 = vrot.lane.b32.xlu0 %v1671, 21
  %v1787 = vpop.permute.xlu0 %1786
  %1788 = vrot.lane.b32.xlu0 %v1675, 21
  %v1789 = vpop.permute.xlu0 %1788
  %1790 = vrot.lane.b32.xlu0 %v1679, 21
  %v1791 = vpop.permute.xlu0 %1790
  %1792 = vrot.lane.b32.xlu0 %v1683, 21
  %v1793 = vpop.permute.xlu0 %1792
  %1794 = vrot.lane.b32.xlu0 %v1687, 21
  %v1795 = vpop.permute.xlu0 %1794
  %1796 = vrot.lane.b32.xlu0 %v1691, 21
  %v1797 = vpop.permute.xlu0 %1796
  %1798 = vrot.lane.b32.xlu0 %v1695, 21
  %v1799 = vpop.permute.xlu0 %1798
  %1800 = vrot.lane.b32.xlu0 %v1699, 21
  %v1801 = vpop.permute.xlu0 %1800
  %1802 = vrot.lane.b32.xlu0 %v1703, 21
  %v1803 = vpop.permute.xlu0 %1802
  %1804 = vrot.lane.b32.xlu0 %v1707, 21
  %v1805 = vpop.permute.xlu0 %1804
  %1806 = vrot.lane.b32.xlu0 %v1711, 21
  %v1807 = vpop.permute.xlu0 %1806
  %1808 = vrot.lane.b32.xlu0 %v1715, 21
  %v1809 = vpop.permute.xlu0 %1808
  %1810 = vrot.lane.b32.xlu0 %v1724, 21
  %v1811 = vpop.permute.xlu0 %1810
  %1812 = vrot.lane.b32.xlu0 %v1733, 21
  %v1813 = vpop.permute.xlu0 %1812
  %1814 = vrot.lane.b32.xlu0 %v1732, 21
  %v1815 = vpop.permute.xlu0 %1814
  %v1817 = vunpack.c.l.b16 %v139
  %v1818 = vpack.c.b16 %v226, %v1817
  %vm1819 = vcmask 1044480
  %v1820 = vrot.slane %v1818, 3
  %v1821 = vrot.slane %v305, 3
  %v1822 = vsel %vm1819, %v1820, %v1821
  %v1823 = vrot.slane %v306, 3
  %v1824 = vsel %vm1819, %v1821, %v1823
  %v1825 = vrot.slane %v307, 3
  %v1826 = vsel %vm1819, %v1823, %v1825
  %v1827 = vrot.slane %v308, 3
  %v1828 = vsel %vm1819, %v1825, %v1827
  %v1829 = vrot.slane %v309, 3
  %v1830 = vsel %vm1819, %v1827, %v1829
  %v1831 = vrot.slane %v310, 3
  %v1832 = vsel %vm1819, %v1829, %v1831
  %v1833 = vrot.slane %v311, 3
  %v1834 = vsel %vm1819, %v1831, %v1833
  %v1835 = vrot.slane %v312, 3
  %v1836 = vsel %vm1819, %v1833, %v1835
  %v1837 = vrot.slane %v313, 3
  %v1838 = vsel %vm1819, %v1835, %v1837
  %v1839 = vrot.slane %v314, 3
  %v1840 = vsel %vm1819, %v1837, %v1839
  %v1841 = vrot.slane %v315, 3
  %v1842 = vsel %vm1819, %v1839, %v1841
  %v1843 = vrot.slane %v316, 3
  %v1844 = vsel %vm1819, %v1841, %v1843
  %v1845 = vrot.slane %v317, 3
  %v1846 = vsel %vm1819, %v1843, %v1845
  %v1847 = vrot.slane %v318, 3
  %v1848 = vsel %vm1819, %v1845, %v1847
  %v1849 = vrot.slane %v319, 3
  %v1850 = vsel %vm1819, %v1847, %v1849
  %v1851 = vrot.slane %v320, 3
  %v1852 = vsel %vm1819, %v1849, %v1851
  %v1853 = vrot.slane %v321, 3
  %v1854 = vsel %vm1819, %v1851, %v1853
  %v1855 = vrot.slane %v322, 3
  %v1856 = vsel %vm1819, %v1853, %v1855
  %v1857 = vrot.slane %v323, 3
  %v1858 = vsel %vm1819, %v1855, %v1857
  %v1859 = vrot.slane %v324, 3
  %v1860 = vsel %vm1819, %v1857, %v1859
  %v1861 = vrot.slane %v325, 3
  %v1862 = vsel %vm1819, %v1859, %v1861
  %v1863 = vrot.slane %v326, 3
  %v1864 = vsel %vm1819, %v1861, %v1863
  %v1865 = vrot.slane %v327, 3
  %v1866 = vsel %vm1819, %v1863, %v1865
  %v1867 = vrot.slane %v328, 3
  %v1868 = vsel %vm1819, %v1865, %v1867
  %v1869 = vrot.slane %v329, 3
  %v1870 = vsel %vm1819, %v1867, %v1869
  %v1871 = vrot.slane %v330, 3
  %v1872 = vsel %vm1819, %v1869, %v1871
  %v1873 = vrot.slane %v331, 3
  %v1874 = vsel %vm1819, %v1871, %v1873
  %v1875 = vrot.slane %v332, 3
  %v1876 = vsel %vm1819, %v1873, %v1875
  %v1877 = vrot.slane %v333, 3
  %v1878 = vsel %vm1819, %v1875, %v1877
  %v1879 = vrot.slane %v334, 3
  %v1880 = vsel %vm1819, %v1877, %v1879
  %v1881 = vrot.slane %v335, 3
  %v1882 = vsel %vm1819, %v1879, %v1881
  %v1883 = vrot.slane %v336, 3
  %v1884 = vsel %vm1819, %v1881, %v1883
  %v1885 = vrot.slane %v337, 3
  %v1886 = vsel %vm1819, %v1883, %v1885
  %v1887 = vrot.slane %v338, 3
  %v1888 = vsel %vm1819, %v1885, %v1887
  %v1889 = vrot.slane %v339, 3
  %v1890 = vsel %vm1819, %v1887, %v1889
  %v1891 = vrot.slane %v340, 3
  %v1892 = vsel %vm1819, %v1889, %v1891
  %v1893 = vrot.slane %v341, 3
  %v1894 = vsel %vm1819, %v1891, %v1893
  %v1895 = vrot.slane %v932, 3
  %v1896 = vsel %vm1819, %v1893, %v1895
  %v1897 = vrot.slane %v1462, 3
  %v1898 = vsel %vm1819, %v1895, %v1897
  %v1899 = vrot.slane %v1554, 3
  %v1900 = vsel %vm1819, %v1897, %v1899
  %1901 = vrot.lane.b32.xlu0 %v1822, 24
  %v1902 = vpop.permute.xlu0 %1901
  %1903 = vrot.lane.b32.xlu0 %v1824, 24
  %v1904 = vpop.permute.xlu0 %1903
  %1905 = vrot.lane.b32.xlu0 %v1826, 24
  %v1906 = vpop.permute.xlu0 %1905
  %1907 = vrot.lane.b32.xlu0 %v1828, 24
  %v1908 = vpop.permute.xlu0 %1907
  %1909 = vrot.lane.b32.xlu0 %v1830, 24
  %v1910 = vpop.permute.xlu0 %1909
  %1911 = vrot.lane.b32.xlu0 %v1832, 24
  %v1912 = vpop.permute.xlu0 %1911
  %1913 = vrot.lane.b32.xlu0 %v1834, 24
  %v1914 = vpop.permute.xlu0 %1913
  %1915 = vrot.lane.b32.xlu0 %v1836, 24
  %v1916 = vpop.permute.xlu0 %1915
  %1917 = vrot.lane.b32.xlu0 %v1838, 24
  %v1918 = vpop.permute.xlu0 %1917
  %1919 = vrot.lane.b32.xlu0 %v1840, 24
  %v1920 = vpop.permute.xlu0 %1919
  %1921 = vrot.lane.b32.xlu0 %v1842, 24
  %v1922 = vpop.permute.xlu0 %1921
  %1923 = vrot.lane.b32.xlu0 %v1844, 24
  %v1924 = vpop.permute.xlu0 %1923
  %1925 = vrot.lane.b32.xlu0 %v1846, 24
  %v1926 = vpop.permute.xlu0 %1925
  %1927 = vrot.lane.b32.xlu0 %v1848, 24
  %v1928 = vpop.permute.xlu0 %1927
  %1929 = vrot.lane.b32.xlu0 %v1850, 24
  %v1930 = vpop.permute.xlu0 %1929
  %1931 = vrot.lane.b32.xlu0 %v1852, 24
  %v1932 = vpop.permute.xlu0 %1931
  %1933 = vrot.lane.b32.xlu0 %v1854, 24
  %v1934 = vpop.permute.xlu0 %1933
  %1935 = vrot.lane.b32.xlu0 %v1856, 24
  %v1936 = vpop.permute.xlu0 %1935
  %1937 = vrot.lane.b32.xlu0 %v1858, 24
  %v1938 = vpop.permute.xlu0 %1937
  %1939 = vrot.lane.b32.xlu0 %v1860, 24
  %v1940 = vpop.permute.xlu0 %1939
  %1941 = vrot.lane.b32.xlu0 %v1862, 24
  %v1942 = vpop.permute.xlu0 %1941
  %1943 = vrot.lane.b32.xlu0 %v1864, 24
  %v1944 = vpop.permute.xlu0 %1943
  %1945 = vrot.lane.b32.xlu0 %v1866, 24
  %v1946 = vpop.permute.xlu0 %1945
  %1947 = vrot.lane.b32.xlu0 %v1868, 24
  %v1948 = vpop.permute.xlu0 %1947
  %1949 = vrot.lane.b32.xlu0 %v1870, 24
  %v1950 = vpop.permute.xlu0 %1949
  %1951 = vrot.lane.b32.xlu0 %v1872, 24
  %v1952 = vpop.permute.xlu0 %1951
  %1953 = vrot.lane.b32.xlu0 %v1874, 24
  %v1954 = vpop.permute.xlu0 %1953
  %1955 = vrot.lane.b32.xlu0 %v1876, 24
  %v1956 = vpop.permute.xlu0 %1955
  %1957 = vrot.lane.b32.xlu0 %v1878, 24
  %v1958 = vpop.permute.xlu0 %1957
  %1959 = vrot.lane.b32.xlu0 %v1880, 24
  %v1960 = vpop.permute.xlu0 %1959
  %1961 = vrot.lane.b32.xlu0 %v1882, 24
  %v1962 = vpop.permute.xlu0 %1961
  %1963 = vrot.lane.b32.xlu0 %v1884, 24
  %v1964 = vpop.permute.xlu0 %1963
  %1965 = vrot.lane.b32.xlu0 %v1886, 24
  %v1966 = vpop.permute.xlu0 %1965
  %1967 = vrot.lane.b32.xlu0 %v1888, 24
  %v1968 = vpop.permute.xlu0 %1967
  %1969 = vrot.lane.b32.xlu0 %v1890, 24
  %v1970 = vpop.permute.xlu0 %1969
  %1971 = vrot.lane.b32.xlu0 %v1892, 24
  %v1972 = vpop.permute.xlu0 %1971
  %1973 = vrot.lane.b32.xlu0 %v1894, 24
  %v1974 = vpop.permute.xlu0 %1973
  %1975 = vrot.lane.b32.xlu0 %v1896, 24
  %v1976 = vpop.permute.xlu0 %1975
  %1977 = vrot.lane.b32.xlu0 %v1898, 24
  %v1978 = vpop.permute.xlu0 %1977
  %1979 = vrot.lane.b32.xlu0 %v1900, 24
  %v1980 = vpop.permute.xlu0 %1979
  %1981 = vrot.lane.b32.xlu0 %v1899, 24
  %v1982 = vpop.permute.xlu0 %1981
  %vm1983 = vcmask 23552
  %v1985 = vsel %vm1983, %v302, %v675
  %v1987 = vsel %vm1983, %v303, %v677
  %v1989 = vsel %vm1983, %v304, %v679
  %v1991 = vsel %vm1983, %v305, %v681
  %v1993 = vsel %vm1983, %v306, %v683
  %v1995 = vsel %vm1983, %v307, %v685
  %v1997 = vsel %vm1983, %v308, %v687
  %v1999 = vsel %vm1983, %v309, %v689
  %v2001 = vsel %vm1983, %v310, %v691
  %v2003 = vsel %vm1983, %v311, %v693
  %v2005 = vsel %vm1983, %v312, %v695
  %v2007 = vsel %vm1983, %v313, %v697
  %v2009 = vsel %vm1983, %v314, %v699
  %v2011 = vsel %vm1983, %v315, %v701
  %v2013 = vsel %vm1983, %v316, %v703
  %v2015 = vsel %vm1983, %v317, %v705
  %v2017 = vsel %vm1983, %v318, %v707
  %v2019 = vsel %vm1983, %v319, %v709
  %v2021 = vsel %vm1983, %v320, %v711
  %v2023 = vsel %vm1983, %v321, %v713
  %v2025 = vsel %vm1983, %v322, %v715
  %v2027 = vsel %vm1983, %v323, %v717
  %v2029 = vsel %vm1983, %v324, %v719
  %v2031 = vsel %vm1983, %v325, %v721
  %v2033 = vsel %vm1983, %v326, %v723
  %v2035 = vsel %vm1983, %v327, %v725
  %v2037 = vsel %vm1983, %v328, %v727
  %v2039 = vsel %vm1983, %v329, %v729
  %v2041 = vsel %vm1983, %v330, %v731
  %v2043 = vsel %vm1983, %v331, %v733
  %v2045 = vsel %vm1983, %v332, %v735
  %v2047 = vsel %vm1983, %v333, %v737
  %v2049 = vsel %vm1983, %v334, %v739
  %v2051 = vsel %vm1983, %v335, %v741
  %v2053 = vsel %vm1983, %v336, %v743
  %v2055 = vsel %vm1983, %v337, %v745
  %v2057 = vsel %vm1983, %v338, %v747
  %v2059 = vsel %vm1983, %v339, %v749
  %v2061 = vsel %vm1983, %v340, %v751
  %v2063 = vsel %vm1983, %v341, %v753
  %v2066 = vsel %vm1983, %v342, %v755
  %vm2067 = vcmask 48128
  %v2069 = vsel %vm2067, %v1985, %v842
  %v2071 = vsel %vm2067, %v1987, %v844
  %v2073 = vsel %vm2067, %v1989, %v846
  %v2075 = vsel %vm2067, %v1991, %v848
  %v2077 = vsel %vm2067, %v1993, %v850
  %v2079 = vsel %vm2067, %v1995, %v852
  %v2081 = vsel %vm2067, %v1997, %v854
  %v2083 = vsel %vm2067, %v1999, %v856
  %v2085 = vsel %vm2067, %v2001, %v858
  %v2087 = vsel %vm2067, %v2003, %v860
  %v2089 = vsel %vm2067, %v2005, %v862
  %v2091 = vsel %vm2067, %v2007, %v864
  %v2093 = vsel %vm2067, %v2009, %v866
  %v2095 = vsel %vm2067, %v2011, %v868
  %v2097 = vsel %vm2067, %v2013, %v870
  %v2099 = vsel %vm2067, %v2015, %v872
  %v2101 = vsel %vm2067, %v2017, %v874
  %v2103 = vsel %vm2067, %v2019, %v876
  %v2105 = vsel %vm2067, %v2021, %v878
  %v2107 = vsel %vm2067, %v2023, %v880
  %v2109 = vsel %vm2067, %v2025, %v882
  %v2111 = vsel %vm2067, %v2027, %v884
  %v2113 = vsel %vm2067, %v2029, %v886
  %v2115 = vsel %vm2067, %v2031, %v888
  %v2117 = vsel %vm2067, %v2033, %v890
  %v2119 = vsel %vm2067, %v2035, %v892
  %v2121 = vsel %vm2067, %v2037, %v894
  %v2123 = vsel %vm2067, %v2039, %v896
  %v2125 = vsel %vm2067, %v2041, %v898
  %v2127 = vsel %vm2067, %v2043, %v900
  %v2129 = vsel %vm2067, %v2045, %v902
  %v2131 = vsel %vm2067, %v2047, %v904
  %v2133 = vsel %vm2067, %v2049, %v906
  %v2135 = vsel %vm2067, %v2051, %v908
  %v2137 = vsel %vm2067, %v2053, %v910
  %v2139 = vsel %vm2067, %v2055, %v912
  %v2141 = vsel %vm2067, %v2057, %v914
  %v2143 = vsel %vm2067, %v2059, %v916
  %v2145 = vsel %vm2067, %v2061, %v918
  %v2147 = vsel %vm2067, %v2063, %v920
  %v2149 = vsel %vm2067, %v2066, %v922
  %vm2150 = vcmask 72704
  %v2152 = vsel %vm2150, %v2069, %v941
  %v2154 = vsel %vm2150, %v2071, %v943
  %v2156 = vsel %vm2150, %v2073, %v945
  %v2158 = vsel %vm2150, %v2075, %v947
  %v2160 = vsel %vm2150, %v2077, %v949
  %v2162 = vsel %vm2150, %v2079, %v951
  %v2164 = vsel %vm2150, %v2081, %v953
  %v2166 = vsel %vm2150, %v2083, %v955
  %v2168 = vsel %vm2150, %v2085, %v957
  %v2170 = vsel %vm2150, %v2087, %v959
  %v2172 = vsel %vm2150, %v2089, %v961
  %v2174 = vsel %vm2150, %v2091, %v963
  %v2176 = vsel %vm2150, %v2093, %v965
  %v2178 = vsel %vm2150, %v2095, %v967
  %v2180 = vsel %vm2150, %v2097, %v969
  %v2182 = vsel %vm2150, %v2099, %v971
  %v2184 = vsel %vm2150, %v2101, %v973
  %v2186 = vsel %vm2150, %v2103, %v975
  %v2188 = vsel %vm2150, %v2105, %v977
  %v2190 = vsel %vm2150, %v2107, %v979
  %v2192 = vsel %vm2150, %v2109, %v981
  %v2194 = vsel %vm2150, %v2111, %v983
  %v2196 = vsel %vm2150, %v2113, %v985
  %v2198 = vsel %vm2150, %v2115, %v987
  %v2200 = vsel %vm2150, %v2117, %v989
  %v2202 = vsel %vm2150, %v2119, %v991
  %v2204 = vsel %vm2150, %v2121, %v993
  %v2206 = vsel %vm2150, %v2123, %v995
  %v2208 = vsel %vm2150, %v2125, %v997
  %v2210 = vsel %vm2150, %v2127, %v999
  %v2212 = vsel %vm2150, %v2129, %v1001
  %v2214 = vsel %vm2150, %v2131, %v1003
  %v2216 = vsel %vm2150, %v2133, %v1005
  %v2218 = vsel %vm2150, %v2135, %v1007
  %v2220 = vsel %vm2150, %v2137, %v1009
  %v2222 = vsel %vm2150, %v2139, %v1011
  %v2224 = vsel %vm2150, %v2141, %v1013
  %v2226 = vsel %vm2150, %v2143, %v1015
  %v2228 = vsel %vm2150, %v2145, %v1017
  %v2230 = vsel %vm2150, %v2147, %v1019
  %v2232 = vsel %vm2150, %v2149, %v1021
  %vm2233 = vcmask 97280
  %v2235 = vsel %vm2233, %v2152, %v1205
  %v2237 = vsel %vm2233, %v2154, %v1207
  %v2239 = vsel %vm2233, %v2156, %v1209
  %v2241 = vsel %vm2233, %v2158, %v1211
  %v2243 = vsel %vm2233, %v2160, %v1213
  %v2245 = vsel %vm2233, %v2162, %v1215
  %v2247 = vsel %vm2233, %v2164, %v1217
  %v2249 = vsel %vm2233, %v2166, %v1219
  %v2251 = vsel %vm2233, %v2168, %v1221
  %v2253 = vsel %vm2233, %v2170, %v1223
  %v2255 = vsel %vm2233, %v2172, %v1225
  %v2257 = vsel %vm2233, %v2174, %v1227
  %v2259 = vsel %vm2233, %v2176, %v1229
  %v2261 = vsel %vm2233, %v2178, %v1231
  %v2263 = vsel %vm2233, %v2180, %v1233
  %v2265 = vsel %vm2233, %v2182, %v1235
  %v2267 = vsel %vm2233, %v2184, %v1237
  %v2269 = vsel %vm2233, %v2186, %v1239
  %v2271 = vsel %vm2233, %v2188, %v1241
  %v2273 = vsel %vm2233, %v2190, %v1243
  %v2275 = vsel %vm2233, %v2192, %v1245
  %v2277 = vsel %vm2233, %v2194, %v1247
  %v2279 = vsel %vm2233, %v2196, %v1249
  %v2281 = vsel %vm2233, %v2198, %v1251
  %v2283 = vsel %vm2233, %v2200, %v1253
  %v2285 = vsel %vm2233, %v2202, %v1255
  %v2287 = vsel %vm2233, %v2204, %v1257
  %v2289 = vsel %vm2233, %v2206, %v1259
  %v2291 = vsel %vm2233, %v2208, %v1261
  %v2293 = vsel %vm2233, %v2210, %v1263
  %v2295 = vsel %vm2233, %v2212, %v1265
  %v2297 = vsel %vm2233, %v2214, %v1267
  %v2299 = vsel %vm2233, %v2216, %v1269
  %v2301 = vsel %vm2233, %v2218, %v1271
  %v2303 = vsel %vm2233, %v2220, %v1273
  %v2305 = vsel %vm2233, %v2222, %v1275
  %v2307 = vsel %vm2233, %v2224, %v1277
  %v2309 = vsel %vm2233, %v2226, %v1279
  %v2311 = vsel %vm2233, %v2228, %v1281
  %v2313 = vsel %vm2233, %v2230, %v1283
  %v2315 = vsel %vm2233, %v2232, %v1285
  %vm2316 = vcmask 121856
  %v2318 = vsel %vm2316, %v2235, %v1372
  %v2320 = vsel %vm2316, %v2237, %v1374
  %v2322 = vsel %vm2316, %v2239, %v1376
  %v2324 = vsel %vm2316, %v2241, %v1378
  %v2326 = vsel %vm2316, %v2243, %v1380
  %v2328 = vsel %vm2316, %v2245, %v1382
  %v2330 = vsel %vm2316, %v2247, %v1384
  %v2332 = vsel %vm2316, %v2249, %v1386
  %v2334 = vsel %vm2316, %v2251, %v1388
  %v2336 = vsel %vm2316, %v2253, %v1390
  %v2338 = vsel %vm2316, %v2255, %v1392
  %v2340 = vsel %vm2316, %v2257, %v1394
  %v2342 = vsel %vm2316, %v2259, %v1396
  %v2344 = vsel %vm2316, %v2261, %v1398
  %v2346 = vsel %vm2316, %v2263, %v1400
  %v2348 = vsel %vm2316, %v2265, %v1402
  %v2350 = vsel %vm2316, %v2267, %v1404
  %v2352 = vsel %vm2316, %v2269, %v1406
  %v2354 = vsel %vm2316, %v2271, %v1408
  %v2356 = vsel %vm2316, %v2273, %v1410
  %v2358 = vsel %vm2316, %v2275, %v1412
  %v2360 = vsel %vm2316, %v2277, %v1414
  %v2362 = vsel %vm2316, %v2279, %v1416
  %v2364 = vsel %vm2316, %v2281, %v1418
  %v2366 = vsel %vm2316, %v2283, %v1420
  %v2368 = vsel %vm2316, %v2285, %v1422
  %v2370 = vsel %vm2316, %v2287, %v1424
  %v2372 = vsel %vm2316, %v2289, %v1426
  %v2374 = vsel %vm2316, %v2291, %v1428
  %v2376 = vsel %vm2316, %v2293, %v1430
  %v2378 = vsel %vm2316, %v2295, %v1432
  %v2380 = vsel %vm2316, %v2297, %v1434
  %v2382 = vsel %vm2316, %v2299, %v1436
  %v2384 = vsel %vm2316, %v2301, %v1438
  %v2386 = vsel %vm2316, %v2303, %v1440
  %v2388 = vsel %vm2316, %v2305, %v1442
  %v2390 = vsel %vm2316, %v2307, %v1444
  %v2392 = vsel %vm2316, %v2309, %v1446
  %v2394 = vsel %vm2316, %v2311, %v1448
  %v2396 = vsel %vm2316, %v2313, %v1450
  %v2398 = vsel %vm2316, %v2315, %v1452
  %vm2399 = vcmask 146432
  %v2401 = vsel %vm2399, %v2318, %v1471
  %v2403 = vsel %vm2399, %v2320, %v1473
  %v2405 = vsel %vm2399, %v2322, %v1475
  %v2407 = vsel %vm2399, %v2324, %v1477
  %v2409 = vsel %vm2399, %v2326, %v1479
  %v2411 = vsel %vm2399, %v2328, %v1481
  %v2413 = vsel %vm2399, %v2330, %v1483
  %v2415 = vsel %vm2399, %v2332, %v1485
  %v2417 = vsel %vm2399, %v2334, %v1487
  %v2419 = vsel %vm2399, %v2336, %v1489
  %v2421 = vsel %vm2399, %v2338, %v1491
  %v2423 = vsel %vm2399, %v2340, %v1493
  %v2425 = vsel %vm2399, %v2342, %v1495
  %v2427 = vsel %vm2399, %v2344, %v1497
  %v2429 = vsel %vm2399, %v2346, %v1499
  %v2431 = vsel %vm2399, %v2348, %v1501
  %v2433 = vsel %vm2399, %v2350, %v1503
  %v2435 = vsel %vm2399, %v2352, %v1505
  %v2437 = vsel %vm2399, %v2354, %v1507
  %v2439 = vsel %vm2399, %v2356, %v1509
  %v2441 = vsel %vm2399, %v2358, %v1511
  %v2443 = vsel %vm2399, %v2360, %v1513
  %v2445 = vsel %vm2399, %v2362, %v1515
  %v2447 = vsel %vm2399, %v2364, %v1517
  %v2449 = vsel %vm2399, %v2366, %v1519
  %v2451 = vsel %vm2399, %v2368, %v1521
  %v2453 = vsel %vm2399, %v2370, %v1523
  %v2455 = vsel %vm2399, %v2372, %v1525
  %v2457 = vsel %vm2399, %v2374, %v1527
  %v2459 = vsel %vm2399, %v2376, %v1529
  %v2461 = vsel %vm2399, %v2378, %v1531
  %v2463 = vsel %vm2399, %v2380, %v1533
  %v2465 = vsel %vm2399, %v2382, %v1535
  %v2467 = vsel %vm2399, %v2384, %v1537
  %v2469 = vsel %vm2399, %v2386, %v1539
  %v2471 = vsel %vm2399, %v2388, %v1541
  %v2473 = vsel %vm2399, %v2390, %v1543
  %v2475 = vsel %vm2399, %v2392, %v1545
  %v2477 = vsel %vm2399, %v2394, %v1547
  %v2479 = vsel %vm2399, %v2396, %v1549
  %v2481 = vsel %vm2399, %v2398, %v1551
  %vm2482 = vcmask 171008
  %v2484 = vsel %vm2482, %v2401, %v1735
  %v2486 = vsel %vm2482, %v2403, %v1737
  %v2488 = vsel %vm2482, %v2405, %v1739
  %v2490 = vsel %vm2482, %v2407, %v1741
  %v2492 = vsel %vm2482, %v2409, %v1743
  %v2494 = vsel %vm2482, %v2411, %v1745
  %v2496 = vsel %vm2482, %v2413, %v1747
  %v2498 = vsel %vm2482, %v2415, %v1749
  %v2500 = vsel %vm2482, %v2417, %v1751
  %v2502 = vsel %vm2482, %v2419, %v1753
  %v2504 = vsel %vm2482, %v2421, %v1755
  %v2506 = vsel %vm2482, %v2423, %v1757
  %v2508 = vsel %vm2482, %v2425, %v1759
  %v2510 = vsel %vm2482, %v2427, %v1761
  %v2512 = vsel %vm2482, %v2429, %v1763
  %v2514 = vsel %vm2482, %v2431, %v1765
  %v2516 = vsel %vm2482, %v2433, %v1767
  %v2518 = vsel %vm2482, %v2435, %v1769
  %v2520 = vsel %vm2482, %v2437, %v1771
  %v2522 = vsel %vm2482, %v2439, %v1773
  %v2524 = vsel %vm2482, %v2441, %v1775
  %v2526 = vsel %vm2482, %v2443, %v1777
  %v2528 = vsel %vm2482, %v2445, %v1779
  %v2530 = vsel %vm2482, %v2447, %v1781
  %v2532 = vsel %vm2482, %v2449, %v1783
  %v2534 = vsel %vm2482, %v2451, %v1785
  %v2536 = vsel %vm2482, %v2453, %v1787
  %v2538 = vsel %vm2482, %v2455, %v1789
  %v2540 = vsel %vm2482, %v2457, %v1791
  %v2542 = vsel %vm2482, %v2459, %v1793
  %v2544 = vsel %vm2482, %v2461, %v1795
  %v2546 = vsel %vm2482, %v2463, %v1797
  %v2548 = vsel %vm2482, %v2465, %v1799
  %v2550 = vsel %vm2482, %v2467, %v1801
  %v2552 = vsel %vm2482, %v2469, %v1803
  %v2554 = vsel %vm2482, %v2471, %v1805
  %v2556 = vsel %vm2482, %v2473, %v1807
  %v2558 = vsel %vm2482, %v2475, %v1809
  %v2560 = vsel %vm2482, %v2477, %v1811
  %v2562 = vsel %vm2482, %v2479, %v1813
  %v2564 = vsel %vm2482, %v2481, %v1815
  %vm2565 = vcmask 195584
  %v2567 = vsel %vm2565, %v2484, %v1902
  %v2569 = vsel %vm2565, %v2486, %v1904
  %v2571 = vsel %vm2565, %v2488, %v1906
  %v2573 = vsel %vm2565, %v2490, %v1908
  %v2575 = vsel %vm2565, %v2492, %v1910
  %v2577 = vsel %vm2565, %v2494, %v1912
  %v2579 = vsel %vm2565, %v2496, %v1914
  %v2581 = vsel %vm2565, %v2498, %v1916
  %v2583 = vsel %vm2565, %v2500, %v1918
  %v2585 = vsel %vm2565, %v2502, %v1920
  %v2587 = vsel %vm2565, %v2504, %v1922
  %v2589 = vsel %vm2565, %v2506, %v1924
  %v2591 = vsel %vm2565, %v2508, %v1926
  %v2593 = vsel %vm2565, %v2510, %v1928
  %v2595 = vsel %vm2565, %v2512, %v1930
  %v2597 = vsel %vm2565, %v2514, %v1932
  %v2599 = vsel %vm2565, %v2516, %v1934
  %v2601 = vsel %vm2565, %v2518, %v1936
  %v2603 = vsel %vm2565, %v2520, %v1938
  %v2605 = vsel %vm2565, %v2522, %v1940
  %v2607 = vsel %vm2565, %v2524, %v1942
  %v2609 = vsel %vm2565, %v2526, %v1944
  %v2611 = vsel %vm2565, %v2528, %v1946
  %v2613 = vsel %vm2565, %v2530, %v1948
  %v2615 = vsel %vm2565, %v2532, %v1950
  %v2617 = vsel %vm2565, %v2534, %v1952
  %v2619 = vsel %vm2565, %v2536, %v1954
  %v2621 = vsel %vm2565, %v2538, %v1956
  %v2623 = vsel %vm2565, %v2540, %v1958
  %v2625 = vsel %vm2565, %v2542, %v1960
  %v2627 = vsel %vm2565, %v2544, %v1962
  %v2629 = vsel %vm2565, %v2546, %v1964
  %v2631 = vsel %vm2565, %v2548, %v1966
  %v2633 = vsel %vm2565, %v2550, %v1968
  %v2635 = vsel %vm2565, %v2552, %v1970
  %v2637 = vsel %vm2565, %v2554, %v1972
  %v2639 = vsel %vm2565, %v2556, %v1974
  %v2641 = vsel %vm2565, %v2558, %v1976
  %v2643 = vsel %vm2565, %v2560, %v1978
  %v2645 = vsel %vm2565, %v2562, %v1980
  %v2647 = vsel %vm2565, %v2564, %v1982
  %v2648 = vld [vmem:[%s1] sm:$0xf]
  %v2649 = vld [vmem:[%s1 + $0x4] sm:$0xf]
  %v2650 = vld [vmem:[%s1 + $0x8] sm:$0xf]
  %v2651 = vld [vmem:[%s1 + $0xc] sm:$0x3]
  %v2652 = vld [vmem:[%s2] sm:$0xff]
  %v2653 = vld [vmem:[%s2 + $0x8] sm:$0xff]
  %v2654 = vld [vmem:[%s2 + $0x10] sm:$0xff]
  %v2655 = vld [vmem:[%s2 + $0x18] sm:$0xff]
  %v2656 = vld [vmem:[%s2 + $0x20] sm:$0xff]
  %v2657 = vld [vmem:[%s2 + $0x28] sm:$0xff]
  %v2658 = vld [vmem:[%s2 + $0x30] sm:$0xff]
  %v2659 = vld [vmem:[%s2 + $0x38] sm:$0xff]
  %v2660 = vld [vmem:[%s2 + $0x40] sm:$0xff]
  %v2661 = vld [vmem:[%s2 + $0x48] sm:$0xff]
  %v2662 = vld [vmem:[%s2 + $0x50] sm:$0xff]
  %v2663 = vld [vmem:[%s2 + $0x58] sm:$0xff]
  %v2664 = vld [vmem:[%s2 + $0x60] sm:$0xff]
  %v2665 = vld [vmem:[%s2 + $0x68] sm:$0xff]
  %v2666 = vld [vmem:[%s2 + $0x70] sm:$0xff]
  %v2667 = vld [vmem:[%s2 + $0x78] sm:$0xff]
  %v2668 = vld [vmem:[%s2 + $0x80] sm:$0xff]
  %v2669 = vld [vmem:[%s2 + $0x88] sm:$0xff]
  %v2670 = vld [vmem:[%s2 + $0x90] sm:$0xff]
  %v2671 = vld [vmem:[%s2 + $0x98] sm:$0xff]
  %v2672 = vld [vmem:[%s2 + $0xa0] sm:$0xff]
  %v2673 = vld [vmem:[%s2 + $0xa8] sm:$0xff]
  %v2674 = vld [vmem:[%s2 + $0xb0] sm:$0xff]
  %v2675 = vld [vmem:[%s2 + $0xb8] sm:$0xff]
  %v2676 = vld [vmem:[%s2 + $0xc0] sm:$0xff]
  %v2677 = vld [vmem:[%s2 + $0xc8] sm:$0xff]
  %v2678 = vld [vmem:[%s2 + $0xd0] sm:$0xff]
  %v2679 = vld [vmem:[%s2 + $0xd8] sm:$0xff]
  %v2680 = vld [vmem:[%s2 + $0xe0] sm:$0xff]
  %v2681 = vld [vmem:[%s2 + $0xe8] sm:$0xff]
  %v2682 = vld [vmem:[%s2 + $0xf0] sm:$0xff]
  %v2683 = vld [vmem:[%s2 + $0xf8] sm:$0xff]
  %v2684 = vld [vmem:[%s2 + $0x100] sm:$0xff]
  %v2685 = vld [vmem:[%s2 + $0x108] sm:$0xff]
  %v2686 = vld [vmem:[%s2 + $0x110] sm:$0xff]
  %v2687 = vld [vmem:[%s2 + $0x118] sm:$0xff]
  %v2688 = vld [vmem:[%s2 + $0x120] sm:$0xff]
  %v2689 = vld [vmem:[%s2 + $0x128] sm:$0xff]
  %v2690 = vld [vmem:[%s2 + $0x130] sm:$0xff]
  %v2691 = vld [vmem:[%s2 + $0x138] sm:$0xff]
  %v2692 = vld [vmem:[%s2 + $0x140] sm:$0xff]
  %v2693 = vld [vmem:[%s2 + $0x148] sm:$0xff]
  %v2694 = vld [vmem:[%s2 + $0x150] sm:$0xff]
  %v2695 = vld [vmem:[%s2 + $0x158] sm:$0xff]
  %v2696 = vld [vmem:[%s2 + $0x160] sm:$0xff]
  %v2697 = vld [vmem:[%s2 + $0x168] sm:$0xff]
  %v2698 = vld [vmem:[%s2 + $0x170] sm:$0xff]
  %v2699 = vld [vmem:[%s2 + $0x178] sm:$0xff]
  %v2700 = vld [vmem:[%s2 + $0x180] sm:$0xff]
  %v2701 = vld [vmem:[%s2 + $0x188] sm:$0xff]
  %v2702 = vld [vmem:[%s2 + $0x190] sm:$0xff]
  %v2703 = vld [vmem:[%s2 + $0x198] sm:$0xff]
  %v2704 = vld [vmem:[%s2 + $0x1a0] sm:$0xff]
  %v2705 = vld [vmem:[%s2 + $0x1a8] sm:$0xff]
  %v2706 = vld [vmem:[%s2 + $0x1b0] sm:$0xff]
  %v2707 = vld [vmem:[%s2 + $0x1b8] sm:$0xff]
  %v2708 = vld [vmem:[%s2 + $0x1c0] sm:$0xff]
  %v2709 = vld [vmem:[%s2 + $0x1c8] sm:$0xff]
  %v2710 = vld [vmem:[%s2 + $0x1d0] sm:$0xff]
  %v2711 = vld [vmem:[%s2 + $0x1d8] sm:$0xff]
  %v2712 = vld [vmem:[%s2 + $0x1e0] sm:$0xff]
  %v2713 = vld [vmem:[%s2 + $0x1e8] sm:$0xff]
  %v2714 = vld [vmem:[%s2 + $0x1f0] sm:$0xff]
  %v2715 = vld [vmem:[%s2 + $0x1f8] sm:$0xff]
  %v2716 = vld [vmem:[%s2 + $0x200] sm:$0xff]
  %v2717 = vld [vmem:[%s2 + $0x208] sm:$0xff]
  %v2718 = vld [vmem:[%s2 + $0x210] sm:$0xff]
  %v2719 = vld [vmem:[%s2 + $0x218] sm:$0xff]
  %v2720 = vld [vmem:[%s2 + $0x220] sm:$0xff]
  %v2721 = vld [vmem:[%s2 + $0x228] sm:$0xff]
  %v2722 = vld [vmem:[%s2 + $0x230] sm:$0xff]
  %v2723 = vld [vmem:[%s2 + $0x238] sm:$0xff]
  %v2724 = vld [vmem:[%s2 + $0x240] sm:$0xff]
  %v2725 = vld [vmem:[%s2 + $0x248] sm:$0xff]
  %v2726 = vld [vmem:[%s2 + $0x250] sm:$0xff]
  %v2727 = vld [vmem:[%s2 + $0x258] sm:$0xff]
  %v2728 = vld [vmem:[%s2 + $0x260] sm:$0xff]
  %v2729 = vld [vmem:[%s2 + $0x268] sm:$0xff]
  %v2730 = vld [vmem:[%s2 + $0x270] sm:$0xff]
  %v2731 = vld [vmem:[%s2 + $0x278] sm:$0xff]
  %v2732 = vld [vmem:[%s2 + $0x280] sm:$0xff]
  %v2737 = vunpack.c.l.b16 %v2648
  %v2738 = vunpack.c.l.b16 %v2649
  %v2739 = vunpack.c.l.b16 %v2650
  %v2740 = vunpack.c.l.b16 %v2651
  %v2741 = vpack.c.b16 %v2738, %v2737
  %v2742 = vpack.c.b16 %v2740, %v2739
  %vm2744 = vcmask 220160
  %v2745 = vsel %vm2744, %v2567, 0
  %v2747 = vsel %vm2744, %v2569, 0
  %v2749 = vsel %vm2744, %v2571, 0
  %v2751 = vsel %vm2744, %v2573, 0
  %v2753 = vsel %vm2744, %v2575, 0
  %v2755 = vsel %vm2744, %v2577, 0
  %v2757 = vsel %vm2744, %v2579, 0
  %v2759 = vsel %vm2744, %v2581, 0
  %v2761 = vsel %vm2744, %v2583, 0
  %v2763 = vsel %vm2744, %v2585, 0
  %v2765 = vsel %vm2744, %v2587, 0
  %v2767 = vsel %vm2744, %v2589, 0
  %v2769 = vsel %vm2744, %v2591, 0
  %v2771 = vsel %vm2744, %v2593, 0
  %v2773 = vsel %vm2744, %v2595, 0
  %v2775 = vsel %vm2744, %v2597, 0
  %v2777 = vsel %vm2744, %v2599, 0
  %v2779 = vsel %vm2744, %v2601, 0
  %v2781 = vsel %vm2744, %v2603, 0
  %v2783 = vsel %vm2744, %v2605, 0
  %v2785 = vsel %vm2744, %v2607, 0
  %v2787 = vsel %vm2744, %v2609, 0
  %v2789 = vsel %vm2744, %v2611, 0
  %v2791 = vsel %vm2744, %v2613, 0
  %v2793 = vsel %vm2744, %v2615, 0
  %v2795 = vsel %vm2744, %v2617, 0
  %v2797 = vsel %vm2744, %v2619, 0
  %v2799 = vsel %vm2744, %v2621, 0
  %v2801 = vsel %vm2744, %v2623, 0
  %v2803 = vsel %vm2744, %v2625, 0
  %v2805 = vsel %vm2744, %v2627, 0
  %v2807 = vsel %vm2744, %v2629, 0
  %v2809 = vsel %vm2744, %v2631, 0
  %v2811 = vsel %vm2744, %v2633, 0
  %v2813 = vsel %vm2744, %v2635, 0
  %v2815 = vsel %vm2744, %v2637, 0
  %v2817 = vsel %vm2744, %v2639, 0
  %v2819 = vsel %vm2744, %v2641, 0
  %v2821 = vsel %vm2744, %v2643, 0
  %v2823 = vsel %vm2744, %v2645, 0
  %v2825 = vsel %vm2744, %v2647, 0
  %vm2827 = vcmask 1044480
  %vm2828 = vcmask 1045504
  %v2829 = vsel %vm2827, 4294967295, 65535
  %v2830 = vsel %vm2828, %v2829, 0
  %v2832 = vand.u32 %v2742, %v2830
  %2834 = vmatprep.subr.bf16.mxu0 0
  %2835 = vmatpush1.bf16.msra.mxu0 0
  %2836 = vmatprep.subr.bf16.mxu0 0
  %2837 = vmatpush1.bf16.msra.mxu0 0
  %2838 = vmatprep.subr.bf16.mxu0 0
  %2839 = vmatpush1.bf16.msra.mxu0 0
  %2840 = vmatprep.subr.bf16.mxu0 0
  %2841 = vmatpush1.bf16.msra.mxu0 0
  %2842 = vmatprep.subr.bf16.mxu0 0
  %2843 = vmatpush1.bf16.msra.mxu0 0
  %2844 = vmatprep.subr.bf16.mxu0 0
  %2845 = vmatpush1.bf16.msra.mxu0 0
  %2846 = vmatprep.subr.bf16.mxu0 0
  %2847 = vmatpush1.bf16.msra.mxu0 %v2832
  %2848 = vmatprep.subr.bf16.mxu0 0
  %2849 = vmatpush1.bf16.msra.mxu0 %v2741
  %2850 = vmatprep.subr.bf16.mxu0 0
  %2851 = vmatpush2.bf16.msra.mxu0 0
  %2852 = vmatprep.subr.bf16.mxu0 0
  %2853 = vmatpush2.bf16.msra.mxu0 0
  %2854 = vmatprep.subr.bf16.mxu0 0
  %2855 = vmatpush2.bf16.msra.mxu0 0
  %2856 = vmatprep.subr.bf16.mxu0 0
  %2857 = vmatpush2.bf16.msra.mxu0 0
  %2858 = vmatprep.subr.bf16.mxu0 0
  %2859 = vmatpush2.bf16.msra.mxu0 0
  %2860 = vmatprep.subr.bf16.mxu0 0
  %2861 = vmatpush2.bf16.msra.mxu0 0
  %2862 = vmatprep.subr.bf16.mxu0 0
  %2863 = vmatpush2.bf16.msra.mxu0 0
  %2864 = vmatprep.subr.bf16.mxu0 0
  %2865 = vmatpush2.bf16.msra.mxu0 0
  %2866 = vmatprep.mubr.bf16.mxu0 0
  %2867 = vmatmul.mubr.bf16.gmra.mxu0 %v2745
  %v2868 = vpop.f32.mrf.mxu0
  %v2869 = vadd.f32 %v2652, %v2868
  %v2870 = vpop.f32.mrf.mxu0
  %v2871 = vpop.f32.mrf.mxu0
  %v2872 = vadd.f32 %v2653, %v2871
  %v2873 = vpop.f32.mrf.mxu0
  %2874 = vmatprep.mubr.bf16.mxu0 0
  %2875 = vmatmul.mubr.bf16.gmra.mxu0 %v2747
  %v2876 = vpop.f32.mrf.mxu0
  %v2877 = vadd.f32 %v2654, %v2876
  %v2878 = vpop.f32.mrf.mxu0
  %v2879 = vpop.f32.mrf.mxu0
  %v2880 = vadd.f32 %v2655, %v2879
  %v2881 = vpop.f32.mrf.mxu0
  %2882 = vmatprep.mubr.bf16.mxu0 0
  %2883 = vmatmul.mubr.bf16.gmra.mxu0 %v2749
  %v2884 = vpop.f32.mrf.mxu0
  %v2885 = vadd.f32 %v2656, %v2884
  %v2886 = vpop.f32.mrf.mxu0
  %v2887 = vpop.f32.mrf.mxu0
  %v2888 = vadd.f32 %v2657, %v2887
  %v2889 = vpop.f32.mrf.mxu0
  %2890 = vmatprep.mubr.bf16.mxu0 0
  %2891 = vmatmul.mubr.bf16.gmra.mxu0 %v2751
  %v2892 = vpop.f32.mrf.mxu0
  %v2893 = vadd.f32 %v2658, %v2892
  %v2894 = vpop.f32.mrf.mxu0
  %v2895 = vpop.f32.mrf.mxu0
  %v2896 = vadd.f32 %v2659, %v2895
  %v2897 = vpop.f32.mrf.mxu0
  %2898 = vmatprep.mubr.bf16.mxu0 0
  %2899 = vmatmul.mubr.bf16.gmra.mxu0 %v2753
  %v2900 = vpop.f32.mrf.mxu0
  %v2901 = vadd.f32 %v2660, %v2900
  %v2902 = vpop.f32.mrf.mxu0
  %v2903 = vpop.f32.mrf.mxu0
  %v2904 = vadd.f32 %v2661, %v2903
  %v2905 = vpop.f32.mrf.mxu0
  %2906 = vmatprep.mubr.bf16.mxu0 0
  %2907 = vmatmul.mubr.bf16.gmra.mxu0 %v2755
  %v2908 = vpop.f32.mrf.mxu0
  %v2909 = vadd.f32 %v2662, %v2908
  %v2910 = vpop.f32.mrf.mxu0
  %v2911 = vpop.f32.mrf.mxu0
  %v2912 = vadd.f32 %v2663, %v2911
  %v2913 = vpop.f32.mrf.mxu0
  %2914 = vmatprep.mubr.bf16.mxu0 0
  %2915 = vmatmul.mubr.bf16.gmra.mxu0 %v2757
  %v2916 = vpop.f32.mrf.mxu0
  %v2917 = vadd.f32 %v2664, %v2916
  %v2918 = vpop.f32.mrf.mxu0
  %v2919 = vpop.f32.mrf.mxu0
  %v2920 = vadd.f32 %v2665, %v2919
  %v2921 = vpop.f32.mrf.mxu0
  %2922 = vmatprep.mubr.bf16.mxu0 0
  %2923 = vmatmul.mubr.bf16.gmra.mxu0 %v2759
  %v2924 = vpop.f32.mrf.mxu0
  %v2925 = vadd.f32 %v2666, %v2924
  %v2926 = vpop.f32.mrf.mxu0
  %v2927 = vpop.f32.mrf.mxu0
  %v2928 = vadd.f32 %v2667, %v2927
  %v2929 = vpop.f32.mrf.mxu0
  %2930 = vmatprep.mubr.bf16.mxu0 0
  %2931 = vmatmul.mubr.bf16.gmra.mxu0 %v2761
  %v2932 = vpop.f32.mrf.mxu0
  %v2933 = vadd.f32 %v2668, %v2932
  %v2934 = vpop.f32.mrf.mxu0
  %v2935 = vpop.f32.mrf.mxu0
  %v2936 = vadd.f32 %v2669, %v2935
  %v2937 = vpop.f32.mrf.mxu0
  %2938 = vmatprep.mubr.bf16.mxu0 0
  %2939 = vmatmul.mubr.bf16.gmra.mxu0 %v2763
  %v2940 = vpop.f32.mrf.mxu0
  %v2941 = vadd.f32 %v2670, %v2940
  %v2942 = vpop.f32.mrf.mxu0
  %v2943 = vpop.f32.mrf.mxu0
  %v2944 = vadd.f32 %v2671, %v2943
  %v2945 = vpop.f32.mrf.mxu0
  %2946 = vmatprep.mubr.bf16.mxu0 0
  %2947 = vmatmul.mubr.bf16.gmra.mxu0 %v2765
  %v2948 = vpop.f32.mrf.mxu0
  %v2949 = vadd.f32 %v2672, %v2948
  %v2950 = vpop.f32.mrf.mxu0
  %v2951 = vpop.f32.mrf.mxu0
  %v2952 = vadd.f32 %v2673, %v2951
  %v2953 = vpop.f32.mrf.mxu0
  %2954 = vmatprep.mubr.bf16.mxu0 0
  %2955 = vmatmul.mubr.bf16.gmra.mxu0 %v2767
  %v2956 = vpop.f32.mrf.mxu0
  %v2957 = vadd.f32 %v2674, %v2956
  %v2958 = vpop.f32.mrf.mxu0
  %v2959 = vpop.f32.mrf.mxu0
  %v2960 = vadd.f32 %v2675, %v2959
  %v2961 = vpop.f32.mrf.mxu0
  %2962 = vmatprep.mubr.bf16.mxu0 0
  %2963 = vmatmul.mubr.bf16.gmra.mxu0 %v2769
  %v2964 = vpop.f32.mrf.mxu0
  %v2965 = vadd.f32 %v2676, %v2964
  %v2966 = vpop.f32.mrf.mxu0
  %v2967 = vpop.f32.mrf.mxu0
  %v2968 = vadd.f32 %v2677, %v2967
  %v2969 = vpop.f32.mrf.mxu0
  %2970 = vmatprep.mubr.bf16.mxu0 0
  %2971 = vmatmul.mubr.bf16.gmra.mxu0 %v2771
  %v2972 = vpop.f32.mrf.mxu0
  %v2973 = vadd.f32 %v2678, %v2972
  %v2974 = vpop.f32.mrf.mxu0
  %v2975 = vpop.f32.mrf.mxu0
  %v2976 = vadd.f32 %v2679, %v2975
  %v2977 = vpop.f32.mrf.mxu0
  %2978 = vmatprep.mubr.bf16.mxu0 0
  %2979 = vmatmul.mubr.bf16.gmra.mxu0 %v2773
  %v2980 = vpop.f32.mrf.mxu0
  %v2981 = vadd.f32 %v2680, %v2980
  %v2982 = vpop.f32.mrf.mxu0
  %v2983 = vpop.f32.mrf.mxu0
  %v2984 = vadd.f32 %v2681, %v2983
  %v2985 = vpop.f32.mrf.mxu0
  %2986 = vmatprep.mubr.bf16.mxu0 0
  %2987 = vmatmul.mubr.bf16.gmra.mxu0 %v2775
  %v2988 = vpop.f32.mrf.mxu0
  %v2989 = vadd.f32 %v2682, %v2988
  %v2990 = vpop.f32.mrf.mxu0
  %v2991 = vpop.f32.mrf.mxu0
  %v2992 = vadd.f32 %v2683, %v2991
  %v2993 = vpop.f32.mrf.mxu0
  %2994 = vmatprep.mubr.bf16.mxu0 0
  %2995 = vmatmul.mubr.bf16.gmra.mxu0 %v2777
  %v2996 = vpop.f32.mrf.mxu0
  %v2997 = vadd.f32 %v2684, %v2996
  %v2998 = vpop.f32.mrf.mxu0
  %v2999 = vpop.f32.mrf.mxu0
  %v3000 = vadd.f32 %v2685, %v2999
  %v3001 = vpop.f32.mrf.mxu0
  %3002 = vmatprep.mubr.bf16.mxu0 0
  %3003 = vmatmul.mubr.bf16.gmra.mxu0 %v2779
  %v3004 = vpop.f32.mrf.mxu0
  %v3005 = vadd.f32 %v2686, %v3004
  %v3006 = vpop.f32.mrf.mxu0
  %v3007 = vpop.f32.mrf.mxu0
  %v3008 = vadd.f32 %v2687, %v3007
  %v3009 = vpop.f32.mrf.mxu0
  %3010 = vmatprep.mubr.bf16.mxu0 0
  %3011 = vmatmul.mubr.bf16.gmra.mxu0 %v2781
  %v3012 = vpop.f32.mrf.mxu0
  %v3013 = vadd.f32 %v2688, %v3012
  %v3014 = vpop.f32.mrf.mxu0
  %v3015 = vpop.f32.mrf.mxu0
  %v3016 = vadd.f32 %v2689, %v3015
  %v3017 = vpop.f32.mrf.mxu0
  %3018 = vmatprep.mubr.bf16.mxu0 0
  %3019 = vmatmul.mubr.bf16.gmra.mxu0 %v2783
  %v3020 = vpop.f32.mrf.mxu0
  %v3021 = vadd.f32 %v2690, %v3020
  %v3022 = vpop.f32.mrf.mxu0
  %v3023 = vpop.f32.mrf.mxu0
  %v3024 = vadd.f32 %v2691, %v3023
  %v3025 = vpop.f32.mrf.mxu0
  %3026 = vmatprep.mubr.bf16.mxu0 0
  %3027 = vmatmul.mubr.bf16.gmra.mxu0 %v2785
  %v3028 = vpop.f32.mrf.mxu0
  %v3029 = vadd.f32 %v2692, %v3028
  %v3030 = vpop.f32.mrf.mxu0
  %v3031 = vpop.f32.mrf.mxu0
  %v3032 = vadd.f32 %v2693, %v3031
  %v3033 = vpop.f32.mrf.mxu0
  %3034 = vmatprep.mubr.bf16.mxu0 0
  %3035 = vmatmul.mubr.bf16.gmra.mxu0 %v2787
  %v3036 = vpop.f32.mrf.mxu0
  %v3037 = vadd.f32 %v2694, %v3036
  %v3038 = vpop.f32.mrf.mxu0
  %v3039 = vpop.f32.mrf.mxu0
  %v3040 = vadd.f32 %v2695, %v3039
  %v3041 = vpop.f32.mrf.mxu0
  %3042 = vmatprep.mubr.bf16.mxu0 0
  %3043 = vmatmul.mubr.bf16.gmra.mxu0 %v2789
  %v3044 = vpop.f32.mrf.mxu0
  %v3045 = vadd.f32 %v2696, %v3044
  %v3046 = vpop.f32.mrf.mxu0
  %v3047 = vpop.f32.mrf.mxu0
  %v3048 = vadd.f32 %v2697, %v3047
  %v3049 = vpop.f32.mrf.mxu0
  %3050 = vmatprep.mubr.bf16.mxu0 0
  %3051 = vmatmul.mubr.bf16.gmra.mxu0 %v2791
  %v3052 = vpop.f32.mrf.mxu0
  %v3053 = vadd.f32 %v2698, %v3052
  %v3054 = vpop.f32.mrf.mxu0
  %v3055 = vpop.f32.mrf.mxu0
  %v3056 = vadd.f32 %v2699, %v3055
  %v3057 = vpop.f32.mrf.mxu0
  %3058 = vmatprep.mubr.bf16.mxu0 0
  %3059 = vmatmul.mubr.bf16.gmra.mxu0 %v2793
  %v3060 = vpop.f32.mrf.mxu0
  %v3061 = vadd.f32 %v2700, %v3060
  %v3062 = vpop.f32.mrf.mxu0
  %v3063 = vpop.f32.mrf.mxu0
  %v3064 = vadd.f32 %v2701, %v3063
  %v3065 = vpop.f32.mrf.mxu0
  %3066 = vmatprep.mubr.bf16.mxu0 0
  %3067 = vmatmul.mubr.bf16.gmra.mxu0 %v2795
  %v3068 = vpop.f32.mrf.mxu0
  %v3069 = vadd.f32 %v2702, %v3068
  %v3070 = vpop.f32.mrf.mxu0
  %v3071 = vpop.f32.mrf.mxu0
  %v3072 = vadd.f32 %v2703, %v3071
  %v3073 = vpop.f32.mrf.mxu0
  %3074 = vmatprep.mubr.bf16.mxu0 0
  %3075 = vmatmul.mubr.bf16.gmra.mxu0 %v2797
  %v3076 = vpop.f32.mrf.mxu0
  %v3077 = vadd.f32 %v2704, %v3076
  %v3078 = vpop.f32.mrf.mxu0
  %v3079 = vpop.f32.mrf.mxu0
  %v3080 = vadd.f32 %v2705, %v3079
  %v3081 = vpop.f32.mrf.mxu0
  %3082 = vmatprep.mubr.bf16.mxu0 0
  %3083 = vmatmul.mubr.bf16.gmra.mxu0 %v2799
  %v3084 = vpop.f32.mrf.mxu0
  %v3085 = vadd.f32 %v2706, %v3084
  %v3086 = vpop.f32.mrf.mxu0
  %v3087 = vpop.f32.mrf.mxu0
  %v3088 = vadd.f32 %v2707, %v3087
  %v3089 = vpop.f32.mrf.mxu0
  %3090 = vmatprep.mubr.bf16.mxu0 0
  %3091 = vmatmul.mubr.bf16.gmra.mxu0 %v2801
  %v3092 = vpop.f32.mrf.mxu0
  %v3093 = vadd.f32 %v2708, %v3092
  %v3094 = vpop.f32.mrf.mxu0
  %v3095 = vpop.f32.mrf.mxu0
  %v3096 = vadd.f32 %v2709, %v3095
  %v3097 = vpop.f32.mrf.mxu0
  %3098 = vmatprep.mubr.bf16.mxu0 0
  %3099 = vmatmul.mubr.bf16.gmra.mxu0 %v2803
  %v3100 = vpop.f32.mrf.mxu0
  %v3101 = vadd.f32 %v2710, %v3100
  %v3102 = vpop.f32.mrf.mxu0
  %v3103 = vpop.f32.mrf.mxu0
  %v3104 = vadd.f32 %v2711, %v3103
  %v3105 = vpop.f32.mrf.mxu0
  %3106 = vmatprep.mubr.bf16.mxu0 0
  %3107 = vmatmul.mubr.bf16.gmra.mxu0 %v2805
  %v3108 = vpop.f32.mrf.mxu0
  %v3109 = vadd.f32 %v2712, %v3108
  %v3110 = vpop.f32.mrf.mxu0
  %v3111 = vpop.f32.mrf.mxu0
  %v3112 = vadd.f32 %v2713, %v3111
  %v3113 = vpop.f32.mrf.mxu0
  %3114 = vmatprep.mubr.bf16.mxu0 0
  %3115 = vmatmul.mubr.bf16.gmra.mxu0 %v2807
  %v3116 = vpop.f32.mrf.mxu0
  %v3117 = vadd.f32 %v2714, %v3116
  %v3118 = vpop.f32.mrf.mxu0
  %v3119 = vpop.f32.mrf.mxu0
  %v3120 = vadd.f32 %v2715, %v3119
  %v3121 = vpop.f32.mrf.mxu0
  %3122 = vmatprep.mubr.bf16.mxu0 0
  %3123 = vmatmul.mubr.bf16.gmra.mxu0 %v2809
  %v3124 = vpop.f32.mrf.mxu0
  %v3125 = vadd.f32 %v2716, %v3124
  %v3126 = vpop.f32.mrf.mxu0
  %v3127 = vpop.f32.mrf.mxu0
  %v3128 = vadd.f32 %v2717, %v3127
  %v3129 = vpop.f32.mrf.mxu0
  %3130 = vmatprep.mubr.bf16.mxu0 0
  %3131 = vmatmul.mubr.bf16.gmra.mxu0 %v2811
  %v3132 = vpop.f32.mrf.mxu0
  %v3133 = vadd.f32 %v2718, %v3132
  %v3134 = vpop.f32.mrf.mxu0
  %v3135 = vpop.f32.mrf.mxu0
  %v3136 = vadd.f32 %v2719, %v3135
  %v3137 = vpop.f32.mrf.mxu0
  %3138 = vmatprep.mubr.bf16.mxu0 0
  %3139 = vmatmul.mubr.bf16.gmra.mxu0 %v2813
  %v3140 = vpop.f32.mrf.mxu0
  %v3141 = vadd.f32 %v2720, %v3140
  %v3142 = vpop.f32.mrf.mxu0
  %v3143 = vpop.f32.mrf.mxu0
  %v3144 = vadd.f32 %v2721, %v3143
  %v3145 = vpop.f32.mrf.mxu0
  %3146 = vmatprep.mubr.bf16.mxu0 0
  %3147 = vmatmul.mubr.bf16.gmra.mxu0 %v2815
  %v3148 = vpop.f32.mrf.mxu0
  %v3149 = vadd.f32 %v2722, %v3148
  %v3150 = vpop.f32.mrf.mxu0
  %v3151 = vpop.f32.mrf.mxu0
  %v3152 = vadd.f32 %v2723, %v3151
  %v3153 = vpop.f32.mrf.mxu0
  %3154 = vmatprep.mubr.bf16.mxu0 0
  %3155 = vmatmul.mubr.bf16.gmra.mxu0 %v2817
  %v3156 = vpop.f32.mrf.mxu0
  %v3157 = vadd.f32 %v2724, %v3156
  %v3158 = vpop.f32.mrf.mxu0
  %v3159 = vpop.f32.mrf.mxu0
  %v3160 = vadd.f32 %v2725, %v3159
  %v3161 = vpop.f32.mrf.mxu0
  %3162 = vmatprep.mubr.bf16.mxu0 0
  %3163 = vmatmul.mubr.bf16.gmra.mxu0 %v2819
  %v3164 = vpop.f32.mrf.mxu0
  %v3165 = vadd.f32 %v2726, %v3164
  %v3166 = vpop.f32.mrf.mxu0
  %v3167 = vpop.f32.mrf.mxu0
  %v3168 = vadd.f32 %v2727, %v3167
  %v3169 = vpop.f32.mrf.mxu0
  %3170 = vmatprep.mubr.bf16.mxu0 0
  %3171 = vmatmul.mubr.bf16.gmra.mxu0 %v2821
  %v3172 = vpop.f32.mrf.mxu0
  %v3173 = vadd.f32 %v2728, %v3172
  %v3174 = vpop.f32.mrf.mxu0
  %v3175 = vpop.f32.mrf.mxu0
  %v3176 = vadd.f32 %v2729, %v3175
  %v3177 = vpop.f32.mrf.mxu0
  %3178 = vmatprep.mubr.bf16.mxu0 0
  %3179 = vmatmul.mubr.bf16.gmra.mxu0 %v2823
  %v3180 = vpop.f32.mrf.mxu0
  %v3181 = vadd.f32 %v2730, %v3180
  %v3182 = vpop.f32.mrf.mxu0
  %v3183 = vpop.f32.mrf.mxu0
  %v3184 = vadd.f32 %v2731, %v3183
  %v3185 = vpop.f32.mrf.mxu0
  %3186 = vmatprep.mubr.bf16.mxu0 0
  %3187 = vmatmul.mubr.bf16.gmra.mxu0 %v2825
  %v3188 = vpop.f32.mrf.mxu0
  %v3189 = vadd.f32 %v2732, %v3188
  %v3190 = vpop.f32.mrf.mxu0
  %v3191 = vpop.f32.mrf.mxu0
  %v3192 = vpop.f32.mrf.mxu0
  %3193 = vdwg.mxu0
  %v3194 = vmax.f32 %v2869, 0.0
  %v3195 = vmax.f32 %v2872, 0.0
  %v3196 = vmax.f32 %v2877, 0.0
  %v3197 = vmax.f32 %v2880, 0.0
  %v3198 = vmax.f32 %v2885, 0.0
  %v3199 = vmax.f32 %v2888, 0.0
  %v3200 = vmax.f32 %v2893, 0.0
  %v3201 = vmax.f32 %v2896, 0.0
  %v3202 = vmax.f32 %v2901, 0.0
  %v3203 = vmax.f32 %v2904, 0.0
  %v3204 = vmax.f32 %v2909, 0.0
  %v3205 = vmax.f32 %v2912, 0.0
  %v3206 = vmax.f32 %v2917, 0.0
  %v3207 = vmax.f32 %v2920, 0.0
  %v3208 = vmax.f32 %v2925, 0.0
  %v3209 = vmax.f32 %v2928, 0.0
  %v3210 = vmax.f32 %v2933, 0.0
  %v3211 = vmax.f32 %v2936, 0.0
  %v3212 = vmax.f32 %v2941, 0.0
  %v3213 = vmax.f32 %v2944, 0.0
  %v3214 = vmax.f32 %v2949, 0.0
  %v3215 = vmax.f32 %v2952, 0.0
  %v3216 = vmax.f32 %v2957, 0.0
  %v3217 = vmax.f32 %v2960, 0.0
  %v3218 = vmax.f32 %v2965, 0.0
  %v3219 = vmax.f32 %v2968, 0.0
  %v3220 = vmax.f32 %v2973, 0.0
  %v3221 = vmax.f32 %v2976, 0.0
  %v3222 = vmax.f32 %v2981, 0.0
  %v3223 = vmax.f32 %v2984, 0.0
  %v3224 = vmax.f32 %v2989, 0.0
  %v3225 = vmax.f32 %v2992, 0.0
  %v3226 = vmax.f32 %v2997, 0.0
  %v3227 = vmax.f32 %v3000, 0.0
  %v3228 = vmax.f32 %v3005, 0.0
  %v3229 = vmax.f32 %v3008, 0.0
  %v3230 = vmax.f32 %v3013, 0.0
  %v3231 = vmax.f32 %v3016, 0.0
  %v3232 = vmax.f32 %v3021, 0.0
  %v3233 = vmax.f32 %v3024, 0.0
  %v3234 = vmax.f32 %v3029, 0.0
  %v3235 = vmax.f32 %v3032, 0.0
  %v3236 = vmax.f32 %v3037, 0.0
  %v3237 = vmax.f32 %v3040, 0.0
  %v3238 = vmax.f32 %v3045, 0.0
  %v3239 = vmax.f32 %v3048, 0.0
  %v3240 = vmax.f32 %v3053, 0.0
  %v3241 = vmax.f32 %v3056, 0.0
  %v3242 = vmax.f32 %v3061, 0.0
  %v3243 = vmax.f32 %v3064, 0.0
  %v3244 = vmax.f32 %v3069, 0.0
  %v3245 = vmax.f32 %v3072, 0.0
  %v3246 = vmax.f32 %v3077, 0.0
  %v3247 = vmax.f32 %v3080, 0.0
  %v3248 = vmax.f32 %v3085, 0.0
  %v3249 = vmax.f32 %v3088, 0.0
  %v3250 = vmax.f32 %v3093, 0.0
  %v3251 = vmax.f32 %v3096, 0.0
  %v3252 = vmax.f32 %v3101, 0.0
  %v3253 = vmax.f32 %v3104, 0.0
  %v3254 = vmax.f32 %v3109, 0.0
  %v3255 = vmax.f32 %v3112, 0.0
  %v3256 = vmax.f32 %v3117, 0.0
  %v3257 = vmax.f32 %v3120, 0.0
  %v3258 = vmax.f32 %v3125, 0.0
  %v3259 = vmax.f32 %v3128, 0.0
  %v3260 = vmax.f32 %v3133, 0.0
  %v3261 = vmax.f32 %v3136, 0.0
  %v3262 = vmax.f32 %v3141, 0.0
  %v3263 = vmax.f32 %v3144, 0.0
  %v3264 = vmax.f32 %v3149, 0.0
  %v3265 = vmax.f32 %v3152, 0.0
  %v3266 = vmax.f32 %v3157, 0.0
  %v3267 = vmax.f32 %v3160, 0.0
  %v3268 = vmax.f32 %v3165, 0.0
  %v3269 = vmax.f32 %v3168, 0.0
  %v3270 = vmax.f32 %v3173, 0.0
  %v3271 = vmax.f32 %v3176, 0.0
  %v3272 = vmax.f32 %v3181, 0.0
  %v3273 = vmax.f32 %v3184, 0.0
  %v3274 = vmax.f32 %v3189, 0.0
  %vm3275 = vcmask 60416
  %3276 = vst.msk [vmem:[#allocation2] sm:$0xf] %vm3275, 0
  %3277 = vst.msk [vmem:[#allocation2 + $0x4] sm:$0xf] %vm3275, 0
  %3278 = vst.msk [vmem:[#allocation2 + $0x8] sm:$0xf] %vm3275, 0
  %3279 = vst.msk [vmem:[#allocation2 + $0xc] sm:$0xf] %vm3275, 0
  %3280 = vst.msk [vmem:[#allocation2 + $0x10] sm:$0xf] %vm3275, 0
  %3281 = vst.msk [vmem:[#allocation2 + $0x14] sm:$0xf] %vm3275, 0
  %3282 = vst.msk [vmem:[#allocation2 + $0x18] sm:$0xf] %vm3275, 0
  %3283 = vst.msk [vmem:[#allocation2 + $0x1c] sm:$0xf] %vm3275, 0
  %3284 = vst.msk [vmem:[#allocation2 + $0x20] sm:$0xf] %vm3275, 0
  %3285 = vst.msk [vmem:[#allocation2 + $0x24] sm:$0xf] %vm3275, 0
  %3286 = vst.msk [vmem:[#allocation2 + $0x28] sm:$0xf] %vm3275, 0
  %3287 = vst.msk [vmem:[#allocation2 + $0x2c] sm:$0xf] %vm3275, 0
  %3288 = vst.msk [vmem:[#allocation2 + $0x30] sm:$0xf] %vm3275, 0
  %3289 = vst.msk [vmem:[#allocation2 + $0x34] sm:$0xf] %vm3275, 0
  %3290 = vst.msk [vmem:[#allocation2 + $0x38] sm:$0xf] %vm3275, 0
  %3291 = vst.msk [vmem:[#allocation2 + $0x3c] sm:$0xf] %vm3275, 0
  %3292 = vst.msk [vmem:[#allocation2 + $0x40] sm:$0xf] %vm3275, 0
  %3293 = vst.msk [vmem:[#allocation2 + $0x44] sm:$0xf] %vm3275, 0
  %3294 = vst.msk [vmem:[#allocation2 + $0x48] sm:$0xf] %vm3275, 0
  %3295 = vst.msk [vmem:[#allocation2 + $0x4c] sm:$0xf] %vm3275, 0
  %3296 = vst.msk [vmem:[#allocation2 + $0x50] sm:$0xf] %vm3275, 0
  %3297 = vst.msk [vmem:[#allocation2 + $0x54] sm:$0xf] %vm3275, 0
  %3298 = vst.msk [vmem:[#allocation2 + $0x58] sm:$0xf] %vm3275, 0
  %3299 = vst.msk [vmem:[#allocation2 + $0x5c] sm:$0xf] %vm3275, 0
  %3300 = vst.msk [vmem:[#allocation2 + $0x60] sm:$0xf] %vm3275, 0
  %3301 = vst.msk [vmem:[#allocation2 + $0x64] sm:$0xf] %vm3275, 0
  %3302 = vst.msk [vmem:[#allocation2 + $0x68] sm:$0xf] %vm3275, 0
  %3303 = vst.msk [vmem:[#allocation2 + $0x6c] sm:$0xf] %vm3275, 0
  %3304 = vst.msk [vmem:[#allocation2 + $0x70] sm:$0xf] %vm3275, 0
  %3305 = vst.msk [vmem:[#allocation2 + $0x74] sm:$0xf] %vm3275, 0
  %3306 = vst.msk [vmem:[#allocation2 + $0x78] sm:$0xf] %vm3275, 0
  %3307 = vst.msk [vmem:[#allocation2 + $0x7c] sm:$0xf] %vm3275, 0
  %3308 = vst.msk [vmem:[#allocation2 + $0x80] sm:$0xf] %vm3275, 0
  %3309 = vst.msk [vmem:[#allocation2 + $0x84] sm:$0xf] %vm3275, 0
  %3310 = vst.msk [vmem:[#allocation2 + $0x88] sm:$0xf] %vm3275, 0
  %3311 = vst.msk [vmem:[#allocation2 + $0x8c] sm:$0xf] %vm3275, 0
  %3312 = vst.msk [vmem:[#allocation2 + $0x90] sm:$0xf] %vm3275, 0
  %3313 = vst.msk [vmem:[#allocation2 + $0x94] sm:$0xf] %vm3275, 0
  %3314 = vst.msk [vmem:[#allocation2 + $0x98] sm:$0xf] %vm3275, 0
  %3315 = vst.msk [vmem:[#allocation2 + $0x9c] sm:$0xf] %vm3275, 0
  %3316 = vst.msk [vmem:[#allocation2 + $0xa0] sm:$0xf] %vm3275, 0
  %3317 = vst.msk [vmem:[#allocation2 + $0xa4] sm:$0xf] %vm3275, 0
  %3318 = vst.msk [vmem:[#allocation2 + $0xa8] sm:$0xf] %vm3275, 0
  %3319 = vst.msk [vmem:[#allocation2 + $0xac] sm:$0xf] %vm3275, 0
  %3320 = vst.msk [vmem:[#allocation2 + $0xb0] sm:$0xf] %vm3275, 0
  %3321 = vst.msk [vmem:[#allocation2 + $0xb4] sm:$0xf] %vm3275, 0
  %3322 = vst.msk [vmem:[#allocation2 + $0xb8] sm:$0xf] %vm3275, 0
  %3323 = vst.msk [vmem:[#allocation2 + $0xbc] sm:$0xf] %vm3275, 0
  %3324 = vst.msk [vmem:[#allocation2 + $0xc0] sm:$0xf] %vm3275, 0
  %3325 = vst.msk [vmem:[#allocation2 + $0xc4] sm:$0xf] %vm3275, 0
  %3326 = vst.msk [vmem:[#allocation2 + $0xc8] sm:$0xf] %vm3275, 0
  %3327 = vst.msk [vmem:[#allocation2 + $0xcc] sm:$0xf] %vm3275, 0
  %3328 = vst.msk [vmem:[#allocation2 + $0xd0] sm:$0xf] %vm3275, 0
  %3329 = vst.msk [vmem:[#allocation2 + $0xd4] sm:$0xf] %vm3275, 0
  %3330 = vst.msk [vmem:[#allocation2 + $0xd8] sm:$0xf] %vm3275, 0
  %3331 = vst.msk [vmem:[#allocation2 + $0xdc] sm:$0xf] %vm3275, 0
  %3332 = vst.msk [vmem:[#allocation2 + $0xe0] sm:$0xf] %vm3275, 0
  %3333 = vst.msk [vmem:[#allocation2 + $0xe4] sm:$0xf] %vm3275, 0
  %3334 = vst.msk [vmem:[#allocation2 + $0xe8] sm:$0xf] %vm3275, 0
  %3335 = vst.msk [vmem:[#allocation2 + $0xec] sm:$0xf] %vm3275, 0
  %3336 = vst.msk [vmem:[#allocation2 + $0xf0] sm:$0xf] %vm3275, 0
  %3337 = vst.msk [vmem:[#allocation2 + $0xf4] sm:$0xf] %vm3275, 0
  %3338 = vst.msk [vmem:[#allocation2 + $0xf8] sm:$0xf] %vm3275, 0
  %3339 = vst.msk [vmem:[#allocation2 + $0xfc] sm:$0xf] %vm3275, 0
  %3340 = vst.msk [vmem:[#allocation2 + $0x100] sm:$0xf] %vm3275, 0
  %3341 = vst.msk [vmem:[#allocation2 + $0x104] sm:$0xf] %vm3275, 0
  %3342 = vst.msk [vmem:[#allocation2 + $0x108] sm:$0xf] %vm3275, 0
  %3343 = vst.msk [vmem:[#allocation2 + $0x10c] sm:$0xf] %vm3275, 0
  %3344 = vst.msk [vmem:[#allocation2 + $0x110] sm:$0xf] %vm3275, 0
  %3345 = vst.msk [vmem:[#allocation2 + $0x114] sm:$0xf] %vm3275, 0
  %3346 = vst.msk [vmem:[#allocation2 + $0x118] sm:$0xf] %vm3275, 0
  %3347 = vst.msk [vmem:[#allocation2 + $0x11c] sm:$0xf] %vm3275, 0
  %3348 = vst.msk [vmem:[#allocation2 + $0x120] sm:$0xf] %vm3275, 0
  %3349 = vst.msk [vmem:[#allocation2 + $0x124] sm:$0xf] %vm3275, 0
  %3350 = vst.msk [vmem:[#allocation2 + $0x128] sm:$0xf] %vm3275, 0
  %3351 = vst.msk [vmem:[#allocation2 + $0x12c] sm:$0xf] %vm3275, 0
  %3352 = vst.msk [vmem:[#allocation2 + $0x130] sm:$0xf] %vm3275, 0
  %3353 = vst.msk [vmem:[#allocation2 + $0x134] sm:$0xf] %vm3275, 0
  %3354 = vst.msk [vmem:[#allocation2 + $0x138] sm:$0xf] %vm3275, 0
  %3355 = vst.msk [vmem:[#allocation2 + $0x13c] sm:$0xf] %vm3275, 0
  %3356 = vst.msk [vmem:[#allocation2 + $0x140] sm:$0xf] %vm3275, 0
  %3357 = vst.msk [vmem:[#allocation2 + $0x144] sm:$0xf] %vm3275, 0
  %3358 = vst.msk [vmem:[#allocation2 + $0x148] sm:$0xf] %vm3275, 0
  %3359 = vst.msk [vmem:[#allocation2 + $0x14c] sm:$0xf] %vm3275, 0
  %3360 = vst.msk [vmem:[#allocation2 + $0x150] sm:$0xf] %vm3275, 0
  %3361 = vst.msk [vmem:[#allocation2 + $0x154] sm:$0xf] %vm3275, 0
  %v3362 = vpack.c.bf16 %v3195, %v3194
  %v3363 = vpack.c.bf16 %v3197, %v3196
  %v3364 = vpack.c.bf16 %v3199, %v3198
  %v3365 = vpack.c.bf16 %v3201, %v3200
  %v3366 = vpack.c.bf16 %v3203, %v3202
  %v3367 = vpack.c.bf16 %v3205, %v3204
  %v3368 = vpack.c.bf16 %v3207, %v3206
  %v3369 = vpack.c.bf16 %v3209, %v3208
  %v3370 = vpack.c.bf16 %v3211, %v3210
  %v3371 = vpack.c.bf16 %v3213, %v3212
  %v3372 = vpack.c.bf16 %v3215, %v3214
  %v3373 = vpack.c.bf16 %v3217, %v3216
  %v3374 = vpack.c.bf16 %v3219, %v3218
  %v3375 = vpack.c.bf16 %v3221, %v3220
  %v3376 = vpack.c.bf16 %v3223, %v3222
  %v3377 = vpack.c.bf16 %v3225, %v3224
  %v3378 = vpack.c.bf16 %v3227, %v3226
  %v3379 = vpack.c.bf16 %v3229, %v3228
  %v3380 = vpack.c.bf16 %v3231, %v3230
  %v3381 = vpack.c.bf16 %v3233, %v3232
  %v3382 = vpack.c.bf16 %v3235, %v3234
  %v3383 = vpack.c.bf16 %v3237, %v3236
  %v3384 = vpack.c.bf16 %v3239, %v3238
  %v3385 = vpack.c.bf16 %v3241, %v3240
  %v3386 = vpack.c.bf16 %v3243, %v3242
  %v3387 = vpack.c.bf16 %v3245, %v3244
  %v3388 = vpack.c.bf16 %v3247, %v3246
  %v3389 = vpack.c.bf16 %v3249, %v3248
  %v3390 = vpack.c.bf16 %v3251, %v3250
  %v3391 = vpack.c.bf16 %v3253, %v3252
  %v3392 = vpack.c.bf16 %v3255, %v3254
  %v3393 = vpack.c.bf16 %v3257, %v3256
  %v3394 = vpack.c.bf16 %v3259, %v3258
  %v3395 = vpack.c.bf16 %v3261, %v3260
  %v3396 = vpack.c.bf16 %v3263, %v3262
  %v3397 = vpack.c.bf16 %v3265, %v3264
  %v3398 = vpack.c.bf16 %v3267, %v3266
  %v3399 = vpack.c.bf16 %v3269, %v3268
  %v3400 = vpack.c.bf16 %v3271, %v3270
  %v3401 = vpack.c.bf16 %v3273, %v3272
  %v3402 = vpack.c.bf16 %v3274, %v3274
  %v3444 = vunpack.c.l.b16 %v3362
  %v3445 = vunpack.c.h.b16 %v3362
  %v3446 = vunpack.c.l.b16 %v3363
  %v3447 = vunpack.c.h.b16 %v3363
  %v3448 = vunpack.c.l.b16 %v3364
  %v3449 = vunpack.c.h.b16 %v3364
  %v3450 = vunpack.c.l.b16 %v3365
  %v3451 = vunpack.c.h.b16 %v3365
  %v3452 = vunpack.c.l.b16 %v3366
  %v3453 = vunpack.c.h.b16 %v3366
  %v3454 = vunpack.c.l.b16 %v3367
  %v3455 = vunpack.c.h.b16 %v3367
  %v3456 = vunpack.c.l.b16 %v3368
  %v3457 = vunpack.c.h.b16 %v3368
  %v3458 = vunpack.c.l.b16 %v3369
  %v3459 = vunpack.c.h.b16 %v3369
  %v3460 = vunpack.c.l.b16 %v3370
  %v3461 = vunpack.c.h.b16 %v3370
  %v3462 = vunpack.c.l.b16 %v3371
  %v3463 = vunpack.c.h.b16 %v3371
  %v3464 = vunpack.c.l.b16 %v3372
  %v3465 = vunpack.c.h.b16 %v3372
  %v3466 = vunpack.c.l.b16 %v3373
  %v3467 = vunpack.c.h.b16 %v3373
  %v3468 = vunpack.c.l.b16 %v3374
  %v3469 = vunpack.c.h.b16 %v3374
  %v3470 = vunpack.c.l.b16 %v3375
  %v3471 = vunpack.c.h.b16 %v3375
  %v3472 = vunpack.c.l.b16 %v3376
  %v3473 = vunpack.c.h.b16 %v3376
  %v3474 = vunpack.c.l.b16 %v3377
  %v3475 = vunpack.c.h.b16 %v3377
  %v3476 = vunpack.c.l.b16 %v3378
  %v3477 = vunpack.c.h.b16 %v3378
  %v3478 = vunpack.c.l.b16 %v3379
  %v3479 = vunpack.c.h.b16 %v3379
  %v3480 = vunpack.c.l.b16 %v3380
  %v3481 = vunpack.c.h.b16 %v3380
  %v3482 = vunpack.c.l.b16 %v3381
  %v3483 = vunpack.c.h.b16 %v3381
  %v3484 = vunpack.c.l.b16 %v3382
  %v3485 = vunpack.c.h.b16 %v3382
  %v3486 = vunpack.c.l.b16 %v3383
  %v3487 = vunpack.c.h.b16 %v3383
  %v3488 = vunpack.c.l.b16 %v3384
  %v3489 = vunpack.c.h.b16 %v3384
  %v3490 = vunpack.c.l.b16 %v3385
  %v3491 = vunpack.c.h.b16 %v3385
  %v3492 = vunpack.c.l.b16 %v3386
  %v3493 = vunpack.c.h.b16 %v3386
  %v3494 = vunpack.c.l.b16 %v3387
  %v3495 = vunpack.c.h.b16 %v3387
  %v3496 = vunpack.c.l.b16 %v3388
  %v3497 = vunpack.c.h.b16 %v3388
  %v3498 = vunpack.c.l.b16 %v3389
  %v3499 = vunpack.c.h.b16 %v3389
  %v3500 = vunpack.c.l.b16 %v3390
  %v3501 = vunpack.c.h.b16 %v3390
  %v3502 = vunpack.c.l.b16 %v3391
  %v3503 = vunpack.c.h.b16 %v3391
  %v3504 = vunpack.c.l.b16 %v3392
  %v3505 = vunpack.c.h.b16 %v3392
  %v3506 = vunpack.c.l.b16 %v3393
  %v3507 = vunpack.c.h.b16 %v3393
  %v3508 = vunpack.c.l.b16 %v3394
  %v3509 = vunpack.c.h.b16 %v3394
  %v3510 = vunpack.c.l.b16 %v3395
  %v3511 = vunpack.c.h.b16 %v3395
  %v3512 = vunpack.c.l.b16 %v3396
  %v3513 = vunpack.c.h.b16 %v3396
  %v3514 = vunpack.c.l.b16 %v3397
  %v3515 = vunpack.c.h.b16 %v3397
  %v3516 = vunpack.c.l.b16 %v3398
  %v3517 = vunpack.c.h.b16 %v3398
  %v3518 = vunpack.c.l.b16 %v3399
  %v3519 = vunpack.c.h.b16 %v3399
  %v3520 = vunpack.c.l.b16 %v3400
  %v3521 = vunpack.c.h.b16 %v3400
  %v3522 = vunpack.c.l.b16 %v3401
  %v3523 = vunpack.c.h.b16 %v3401
  %v3524 = vunpack.c.l.b16 %v3402
  %v3525 = vpack.c.b16 %v3444, %v3444
  %v3526 = vpack.c.b16 %v3445, %v3445
  %v3527 = vpack.c.b16 %v3446, %v3446
  %v3528 = vpack.c.b16 %v3447, %v3447
  %v3529 = vpack.c.b16 %v3448, %v3448
  %v3530 = vpack.c.b16 %v3449, %v3449
  %v3531 = vpack.c.b16 %v3450, %v3450
  %v3532 = vpack.c.b16 %v3451, %v3451
  %v3533 = vpack.c.b16 %v3452, %v3452
  %v3534 = vpack.c.b16 %v3453, %v3453
  %v3535 = vpack.c.b16 %v3454, %v3454
  %v3536 = vpack.c.b16 %v3455, %v3455
  %v3537 = vpack.c.b16 %v3456, %v3456
  %v3538 = vpack.c.b16 %v3457, %v3457
  %v3539 = vpack.c.b16 %v3458, %v3458
  %v3540 = vpack.c.b16 %v3459, %v3459
  %v3541 = vpack.c.b16 %v3460, %v3460
  %v3542 = vpack.c.b16 %v3461, %v3461
  %v3543 = vpack.c.b16 %v3462, %v3462
  %v3544 = vpack.c.b16 %v3463, %v3463
  %v3545 = vpack.c.b16 %v3464, %v3464
  %v3546 = vpack.c.b16 %v3465, %v3465
  %v3547 = vpack.c.b16 %v3466, %v3466
  %v3548 = vpack.c.b16 %v3467, %v3467
  %v3549 = vpack.c.b16 %v3468, %v3468
  %v3550 = vpack.c.b16 %v3469, %v3469
  %v3551 = vpack.c.b16 %v3470, %v3470
  %v3552 = vpack.c.b16 %v3471, %v3471
  %v3553 = vpack.c.b16 %v3472, %v3472
  %v3554 = vpack.c.b16 %v3473, %v3473
  %v3555 = vpack.c.b16 %v3474, %v3474
  %v3556 = vpack.c.b16 %v3475, %v3475
  %v3557 = vpack.c.b16 %v3476, %v3476
  %v3558 = vpack.c.b16 %v3477, %v3477
  %v3559 = vpack.c.b16 %v3478, %v3478
  %v3560 = vpack.c.b16 %v3479, %v3479
  %v3561 = vpack.c.b16 %v3480, %v3480
  %v3562 = vpack.c.b16 %v3481, %v3481
  %v3563 = vpack.c.b16 %v3482, %v3482
  %v3564 = vpack.c.b16 %v3483, %v3483
  %v3565 = vpack.c.b16 %v3484, %v3484
  %v3566 = vpack.c.b16 %v3485, %v3485
  %v3567 = vpack.c.b16 %v3486, %v3486
  %v3568 = vpack.c.b16 %v3487, %v3487
  %v3569 = vpack.c.b16 %v3488, %v3488
  %v3570 = vpack.c.b16 %v3489, %v3489
  %v3571 = vpack.c.b16 %v3490, %v3490
  %v3572 = vpack.c.b16 %v3491, %v3491
  %v3573 = vpack.c.b16 %v3492, %v3492
  %v3574 = vpack.c.b16 %v3493, %v3493
  %v3575 = vpack.c.b16 %v3494, %v3494
  %v3576 = vpack.c.b16 %v3495, %v3495
  %v3577 = vpack.c.b16 %v3496, %v3496
  %v3578 = vpack.c.b16 %v3497, %v3497
  %v3579 = vpack.c.b16 %v3498, %v3498
  %v3580 = vpack.c.b16 %v3499, %v3499
  %v3581 = vpack.c.b16 %v3500, %v3500
  %v3582 = vpack.c.b16 %v3501, %v3501
  %v3583 = vpack.c.b16 %v3502, %v3502
  %v3584 = vpack.c.b16 %v3503, %v3503
  %v3585 = vpack.c.b16 %v3504, %v3504
  %v3586 = vpack.c.b16 %v3505, %v3505
  %v3587 = vpack.c.b16 %v3506, %v3506
  %v3588 = vpack.c.b16 %v3507, %v3507
  %v3589 = vpack.c.b16 %v3508, %v3508
  %v3590 = vpack.c.b16 %v3509, %v3509
  %v3591 = vpack.c.b16 %v3510, %v3510
  %v3592 = vpack.c.b16 %v3511, %v3511
  %v3593 = vpack.c.b16 %v3512, %v3512
  %v3594 = vpack.c.b16 %v3513, %v3513
  %v3595 = vpack.c.b16 %v3514, %v3514
  %v3596 = vpack.c.b16 %v3515, %v3515
  %v3597 = vpack.c.b16 %v3516, %v3516
  %v3598 = vpack.c.b16 %v3517, %v3517
  %v3599 = vpack.c.b16 %v3518, %v3518
  %v3600 = vpack.c.b16 %v3519, %v3519
  %v3601 = vpack.c.b16 %v3520, %v3520
  %v3602 = vpack.c.b16 %v3521, %v3521
  %v3603 = vpack.c.b16 %v3522, %v3522
  %v3604 = vpack.c.b16 %v3523, %v3523
  %v3605 = vpack.c.b16 %v3524, %v3524
  %3687 = vst.msk [vmem:[#allocation2] sm:$0xf] %vm3275, %v3525
  %3688 = vst.msk [vmem:[#allocation2 + $0x4] sm:$0xf] %vm3275, %v3526
  %3689 = vst.msk [vmem:[#allocation2 + $0x8] sm:$0xf] %vm3275, %v3527
  %3690 = vst.msk [vmem:[#allocation2 + $0xc] sm:$0xf] %vm3275, %v3528
  %3691 = vst.msk [vmem:[#allocation2 + $0x10] sm:$0xf] %vm3275, %v3529
  %3692 = vst.msk [vmem:[#allocation2 + $0x14] sm:$0xf] %vm3275, %v3530
  %3693 = vst.msk [vmem:[#allocation2 + $0x18] sm:$0xf] %vm3275, %v3531
  %3694 = vst.msk [vmem:[#allocation2 + $0x1c] sm:$0xf] %vm3275, %v3532
  %3695 = vst.msk [vmem:[#allocation2 + $0x20] sm:$0xf] %vm3275, %v3533
  %3696 = vst.msk [vmem:[#allocation2 + $0x24] sm:$0xf] %vm3275, %v3534
  %3697 = vst.msk [vmem:[#allocation2 + $0x28] sm:$0xf] %vm3275, %v3535
  %3698 = vst.msk [vmem:[#allocation2 + $0x2c] sm:$0xf] %vm3275, %v3536
  %3699 = vst.msk [vmem:[#allocation2 + $0x30] sm:$0xf] %vm3275, %v3537
  %3700 = vst.msk [vmem:[#allocation2 + $0x34] sm:$0xf] %vm3275, %v3538
  %3701 = vst.msk [vmem:[#allocation2 + $0x38] sm:$0xf] %vm3275, %v3539
  %3702 = vst.msk [vmem:[#allocation2 + $0x3c] sm:$0xf] %vm3275, %v3540
  %3703 = vst.msk [vmem:[#allocation2 + $0x40] sm:$0xf] %vm3275, %v3541
  %3704 = vst.msk [vmem:[#allocation2 + $0x44] sm:$0xf] %vm3275, %v3542
  %3705 = vst.msk [vmem:[#allocation2 + $0x48] sm:$0xf] %vm3275, %v3543
  %3706 = vst.msk [vmem:[#allocation2 + $0x4c] sm:$0xf] %vm3275, %v3544
  %3707 = vst.msk [vmem:[#allocation2 + $0x50] sm:$0xf] %vm3275, %v3545
  %3708 = vst.msk [vmem:[#allocation2 + $0x54] sm:$0xf] %vm3275, %v3546
  %3709 = vst.msk [vmem:[#allocation2 + $0x58] sm:$0xf] %vm3275, %v3547
  %3710 = vst.msk [vmem:[#allocation2 + $0x5c] sm:$0xf] %vm3275, %v3548
  %3711 = vst.msk [vmem:[#allocation2 + $0x60] sm:$0xf] %vm3275, %v3549
  %3712 = vst.msk [vmem:[#allocation2 + $0x64] sm:$0xf] %vm3275, %v3550
  %3713 = vst.msk [vmem:[#allocation2 + $0x68] sm:$0xf] %vm3275, %v3551
  %3714 = vst.msk [vmem:[#allocation2 + $0x6c] sm:$0xf] %vm3275, %v3552
  %3715 = vst.msk [vmem:[#allocation2 + $0x70] sm:$0xf] %vm3275, %v3553
  %3716 = vst.msk [vmem:[#allocation2 + $0x74] sm:$0xf] %vm3275, %v3554
  %3717 = vst.msk [vmem:[#allocation2 + $0x78] sm:$0xf] %vm3275, %v3555
  %3718 = vst.msk [vmem:[#allocation2 + $0x7c] sm:$0xf] %vm3275, %v3556
  %3719 = vst.msk [vmem:[#allocation2 + $0x80] sm:$0xf] %vm3275, %v3557
  %3720 = vst.msk [vmem:[#allocation2 + $0x84] sm:$0xf] %vm3275, %v3558
  %3721 = vst.msk [vmem:[#allocation2 + $0x88] sm:$0xf] %vm3275, %v3559
  %3722 = vst.msk [vmem:[#allocation2 + $0x8c] sm:$0xf] %vm3275, %v3560
  %3723 = vst.msk [vmem:[#allocation2 + $0x90] sm:$0xf] %vm3275, %v3561
  %3724 = vst.msk [vmem:[#allocation2 + $0x94] sm:$0xf] %vm3275, %v3562
  %3725 = vst.msk [vmem:[#allocation2 + $0x98] sm:$0xf] %vm3275, %v3563
  %3726 = vst.msk [vmem:[#allocation2 + $0x9c] sm:$0xf] %vm3275, %v3564
  %3727 = vst.msk [vmem:[#allocation2 + $0xa0] sm:$0xf] %vm3275, %v3565
  %3728 = vst.msk [vmem:[#allocation2 + $0xa4] sm:$0xf] %vm3275, %v3566
  %3729 = vst.msk [vmem:[#allocation2 + $0xa8] sm:$0xf] %vm3275, %v3567
  %3730 = vst.msk [vmem:[#allocation2 + $0xac] sm:$0xf] %vm3275, %v3568
  %3731 = vst.msk [vmem:[#allocation2 + $0xb0] sm:$0xf] %vm3275, %v3569
  %3732 = vst.msk [vmem:[#allocation2 + $0xb4] sm:$0xf] %vm3275, %v3570
  %3733 = vst.msk [vmem:[#allocation2 + $0xb8] sm:$0xf] %vm3275, %v3571
  %3734 = vst.msk [vmem:[#allocation2 + $0xbc] sm:$0xf] %vm3275, %v3572
  %3735 = vst.msk [vmem:[#allocation2 + $0xc0] sm:$0xf] %vm3275, %v3573
  %3736 = vst.msk [vmem:[#allocation2 + $0xc4] sm:$0xf] %vm3275, %v3574
  %3737 = vst.msk [vmem:[#allocation2 + $0xc8] sm:$0xf] %vm3275, %v3575
  %3738 = vst.msk [vmem:[#allocation2 + $0xcc] sm:$0xf] %vm3275, %v3576
  %3739 = vst.msk [vmem:[#allocation2 + $0xd0] sm:$0xf] %vm3275, %v3577
  %3740 = vst.msk [vmem:[#allocation2 + $0xd4] sm:$0xf] %vm3275, %v3578
  %3741 = vst.msk [vmem:[#allocation2 + $0xd8] sm:$0xf] %vm3275, %v3579
  %3742 = vst.msk [vmem:[#allocation2 + $0xdc] sm:$0xf] %vm3275, %v3580
  %3743 = vst.msk [vmem:[#allocation2 + $0xe0] sm:$0xf] %vm3275, %v3581
  %3744 = vst.msk [vmem:[#allocation2 + $0xe4] sm:$0xf] %vm3275, %v3582
  %3745 = vst.msk [vmem:[#allocation2 + $0xe8] sm:$0xf] %vm3275, %v3583
  %3746 = vst.msk [vmem:[#allocation2 + $0xec] sm:$0xf] %vm3275, %v3584
  %3747 = vst.msk [vmem:[#allocation2 + $0xf0] sm:$0xf] %vm3275, %v3585
  %3748 = vst.msk [vmem:[#allocation2 + $0xf4] sm:$0xf] %vm3275, %v3586
  %3749 = vst.msk [vmem:[#allocation2 + $0xf8] sm:$0xf] %vm3275, %v3587
  %3750 = vst.msk [vmem:[#allocation2 + $0xfc] sm:$0xf] %vm3275, %v3588
  %3751 = vst.msk [vmem:[#allocation2 + $0x100] sm:$0xf] %vm3275, %v3589
  %3752 = vst.msk [vmem:[#allocation2 + $0x104] sm:$0xf] %vm3275, %v3590
  %3753 = vst.msk [vmem:[#allocation2 + $0x108] sm:$0xf] %vm3275, %v3591
  %3754 = vst.msk [vmem:[#allocation2 + $0x10c] sm:$0xf] %vm3275, %v3592
  %3755 = vst.msk [vmem:[#allocation2 + $0x110] sm:$0xf] %vm3275, %v3593
  %3756 = vst.msk [vmem:[#allocation2 + $0x114] sm:$0xf] %vm3275, %v3594
  %3757 = vst.msk [vmem:[#allocation2 + $0x118] sm:$0xf] %vm3275, %v3595
  %3758 = vst.msk [vmem:[#allocation2 + $0x11c] sm:$0xf] %vm3275, %v3596
  %3759 = vst.msk [vmem:[#allocation2 + $0x120] sm:$0xf] %vm3275, %v3597
  %3760 = vst.msk [vmem:[#allocation2 + $0x124] sm:$0xf] %vm3275, %v3598
  %3761 = vst.msk [vmem:[#allocation2 + $0x128] sm:$0xf] %vm3275, %v3599
  %3762 = vst.msk [vmem:[#allocation2 + $0x12c] sm:$0xf] %vm3275, %v3600
  %3763 = vst.msk [vmem:[#allocation2 + $0x130] sm:$0xf] %vm3275, %v3601
  %3764 = vst.msk [vmem:[#allocation2 + $0x134] sm:$0xf] %vm3275, %v3602
  %3765 = vst.msk [vmem:[#allocation2 + $0x138] sm:$0xf] %vm3275, %v3603
  %3766 = vst.msk [vmem:[#allocation2 + $0x13c] sm:$0xf] %vm3275, %v3604
  %3767 = vst.msk [vmem:[#allocation2 + $0x140] sm:$0xf] %vm3275, %v3605
  %v3768 = vld [vmem:[#allocation2] sm:$0xf]
  %v3769 = vld [vmem:[#allocation2 + $0x4] sm:$0xf]
  %v3770 = vld [vmem:[#allocation2 + $0x8] sm:$0xf]
  %v3771 = vld [vmem:[#allocation2 + $0xc] sm:$0xf]
  %v3772 = vld [vmem:[#allocation2 + $0x10] sm:$0xf]
  %v3773 = vld [vmem:[#allocation2 + $0x14] sm:$0xf]
  %v3774 = vld [vmem:[#allocation2 + $0x18] sm:$0xf]
  %v3775 = vld [vmem:[#allocation2 + $0x1c] sm:$0xf]
  %v3776 = vld [vmem:[#allocation2 + $0x20] sm:$0xf]
  %v3777 = vld [vmem:[#allocation2 + $0x24] sm:$0xf]
  %v3778 = vld [vmem:[#allocation2 + $0x28] sm:$0xf]
  %v3779 = vld [vmem:[#allocation2 + $0x2c] sm:$0xf]
  %v3780 = vld [vmem:[#allocation2 + $0x30] sm:$0xf]
  %v3781 = vld [vmem:[#allocation2 + $0x34] sm:$0xf]
  %v3782 = vld [vmem:[#allocation2 + $0x38] sm:$0xf]
  %v3783 = vld [vmem:[#allocation2 + $0x3c] sm:$0xf]
  %v3784 = vld [vmem:[#allocation2 + $0x40] sm:$0xf]
  %v3785 = vld [vmem:[#allocation2 + $0x44] sm:$0xf]
  %v3786 = vld [vmem:[#allocation2 + $0x48] sm:$0xf]
  %v3787 = vld [vmem:[#allocation2 + $0x4c] sm:$0xf]
  %v3788 = vld [vmem:[#allocation2 + $0x50] sm:$0xf]
  %v3789 = vld [vmem:[#allocation2 + $0x54] sm:$0xf]
  %v3790 = vld [vmem:[#allocation2 + $0x58] sm:$0xf]
  %v3791 = vld [vmem:[#allocation2 + $0x5c] sm:$0xf]
  %v3792 = vld [vmem:[#allocation2 + $0x60] sm:$0xf]
  %v3793 = vld [vmem:[#allocation2 + $0x64] sm:$0xf]
  %v3794 = vld [vmem:[#allocation2 + $0x68] sm:$0xf]
  %v3795 = vld [vmem:[#allocation2 + $0x6c] sm:$0xf]
  %v3796 = vld [vmem:[#allocation2 + $0x70] sm:$0xf]
  %v3797 = vld [vmem:[#allocation2 + $0x74] sm:$0xf]
  %v3798 = vld [vmem:[#allocation2 + $0x78] sm:$0xf]
  %v3799 = vld [vmem:[#allocation2 + $0x7c] sm:$0xf]
  %v3800 = vld [vmem:[#allocation2 + $0x80] sm:$0xf]
  %v3801 = vld [vmem:[#allocation2 + $0x84] sm:$0xf]
  %v3802 = vld [vmem:[#allocation2 + $0x88] sm:$0xf]
  %v3803 = vld [vmem:[#allocation2 + $0x8c] sm:$0xf]
  %v3804 = vld [vmem:[#allocation2 + $0x90] sm:$0xf]
  %v3805 = vld [vmem:[#allocation2 + $0x94] sm:$0xf]
  %v3806 = vld [vmem:[#allocation2 + $0x98] sm:$0xf]
  %v3807 = vld [vmem:[#allocation2 + $0x9c] sm:$0xf]
  %v3808 = vld [vmem:[#allocation2 + $0xa0] sm:$0xf]
  %v3809 = vld [vmem:[#allocation2 + $0xa4] sm:$0xf]
  %v3810 = vld [vmem:[#allocation2 + $0xa8] sm:$0xf]
  %v3811 = vld [vmem:[#allocation2 + $0xac] sm:$0xf]
  %v3812 = vld [vmem:[#allocation2 + $0xb0] sm:$0xf]
  %v3813 = vld [vmem:[#allocation2 + $0xb4] sm:$0xf]
  %v3814 = vld [vmem:[#allocation2 + $0xb8] sm:$0xf]
  %v3815 = vld [vmem:[#allocation2 + $0xbc] sm:$0xf]
  %v3816 = vld [vmem:[#allocation2 + $0xc0] sm:$0xf]
  %v3817 = vld [vmem:[#allocation2 + $0xc4] sm:$0xf]
  %v3818 = vld [vmem:[#allocation2 + $0xc8] sm:$0xf]
  %v3819 = vld [vmem:[#allocation2 + $0xcc] sm:$0xf]
  %v3820 = vld [vmem:[#allocation2 + $0xd0] sm:$0xf]
  %v3821 = vld [vmem:[#allocation2 + $0xd4] sm:$0xf]
  %v3822 = vld [vmem:[#allocation2 + $0xd8] sm:$0xf]
  %v3823 = vld [vmem:[#allocation2 + $0xdc] sm:$0xf]
  %v3824 = vld [vmem:[#allocation2 + $0xe0] sm:$0xf]
  %v3825 = vld [vmem:[#allocation2 + $0xe4] sm:$0xf]
  %v3826 = vld [vmem:[#allocation2 + $0xe8] sm:$0xf]
  %v3827 = vld [vmem:[#allocation2 + $0xec] sm:$0xf]
  %v3828 = vld [vmem:[#allocation2 + $0xf0] sm:$0xf]
  %v3829 = vld [vmem:[#allocation2 + $0xf4] sm:$0xf]
  %v3830 = vld [vmem:[#allocation2 + $0xf8] sm:$0xf]
  %v3831 = vld [vmem:[#allocation2 + $0xfc] sm:$0xf]
  %v3832 = vld [vmem:[#allocation2 + $0x100] sm:$0xf]
  %v3833 = vld [vmem:[#allocation2 + $0x104] sm:$0xf]
  %v3834 = vld [vmem:[#allocation2 + $0x108] sm:$0xf]
  %v3835 = vld [vmem:[#allocation2 + $0x10c] sm:$0xf]
  %v3836 = vld [vmem:[#allocation2 + $0x110] sm:$0xf]
  %v3837 = vld [vmem:[#allocation2 + $0x114] sm:$0xf]
  %v3838 = vld [vmem:[#allocation2 + $0x118] sm:$0xf]
  %v3839 = vld [vmem:[#allocation2 + $0x11c] sm:$0xf]
  %v3840 = vld [vmem:[#allocation2 + $0x120] sm:$0xf]
  %v3841 = vld [vmem:[#allocation2 + $0x124] sm:$0xf]
  %v3842 = vld [vmem:[#allocation2 + $0x128] sm:$0xf]
  %v3843 = vld [vmem:[#allocation2 + $0x12c] sm:$0xf]
  %v3844 = vld [vmem:[#allocation2 + $0x130] sm:$0xf]
  %v3845 = vld [vmem:[#allocation2 + $0x134] sm:$0xf]
  %v3846 = vld [vmem:[#allocation2 + $0x138] sm:$0xf]
  %v3847 = vld [vmem:[#allocation2 + $0x13c] sm:$0xf]
  %v3848 = vld [vmem:[#allocation2 + $0x140] sm:$0xf]
  %v3849 = vld [vmem:[#allocation2 + $0x144] sm:$0x1]
  %v3850 = vld [vmem:[#allocation2] sm:$0xe]
  %v3851 = vld [vmem:[#allocation2 + $0x8] sm:$0xe]
  %v3852 = vld [vmem:[#allocation2 + $0x144] sm:$0xf]
  %v3853 = vld [vmem:[#allocation2 + $0x148] sm:$0xf]
  %v3854 = vld [vmem:[#allocation2 + $0x14c] sm:$0x1]
  %v3855 = vld [vmem:[#allocation2 + $0x14c] sm:$0x3]
  %v3856 = vld [vmem:[#allocation2 + $0x8] sm:$0xc]
  %v3857 = vld [vmem:[#allocation2 + $0x10] sm:$0xc]
  %v3858 = vld [vmem:[#allocation2 + $0x14c] sm:$0xf]
  %v3859 = vld [vmem:[#allocation2 + $0x150] sm:$0xf]
  %v3860 = vld [vmem:[#allocation2 + $0x154] sm:$0x3]
  %v3861 = vld [vmem:[#allocation2 + $0x154] sm:$0x7]
  %v3862 = vld [vmem:[#allocation2 + $0x10] sm:$0x8]
  %v3944 = vunpack.c.l.b16 %v3768
  %v3945 = vunpack.c.l.b16 %v3769
  %v3946 = vunpack.c.l.b16 %v3770
  %v3947 = vunpack.c.l.b16 %v3771
  %v3948 = vunpack.c.l.b16 %v3772
  %v3949 = vunpack.c.l.b16 %v3773
  %v3950 = vunpack.c.l.b16 %v3774
  %v3951 = vunpack.c.l.b16 %v3775
  %v3952 = vunpack.c.l.b16 %v3776
  %v3953 = vunpack.c.l.b16 %v3777
  %v3954 = vunpack.c.l.b16 %v3778
  %v3955 = vunpack.c.l.b16 %v3779
  %v3956 = vunpack.c.l.b16 %v3780
  %v3957 = vunpack.c.l.b16 %v3781
  %v3958 = vunpack.c.l.b16 %v3782
  %v3959 = vunpack.c.l.b16 %v3783
  %v3960 = vunpack.c.l.b16 %v3784
  %v3961 = vunpack.c.l.b16 %v3785
  %v3962 = vunpack.c.l.b16 %v3786
  %v3963 = vunpack.c.l.b16 %v3787
  %v3964 = vunpack.c.l.b16 %v3788
  %v3965 = vunpack.c.l.b16 %v3789
  %v3966 = vunpack.c.l.b16 %v3790
  %v3967 = vunpack.c.l.b16 %v3791
  %v3968 = vunpack.c.l.b16 %v3792
  %v3969 = vunpack.c.l.b16 %v3793
  %v3970 = vunpack.c.l.b16 %v3794
  %v3971 = vunpack.c.l.b16 %v3795
  %v3972 = vunpack.c.l.b16 %v3796
  %v3973 = vunpack.c.l.b16 %v3797
  %v3974 = vunpack.c.l.b16 %v3798
  %v3975 = vunpack.c.l.b16 %v3799
  %v3976 = vunpack.c.l.b16 %v3800
  %v3977 = vunpack.c.l.b16 %v3801
  %v3978 = vunpack.c.l.b16 %v3802
  %v3979 = vunpack.c.l.b16 %v3803
  %v3980 = vunpack.c.l.b16 %v3804
  %v3981 = vunpack.c.l.b16 %v3805
  %v3982 = vunpack.c.l.b16 %v3806
  %v3983 = vunpack.c.l.b16 %v3807
  %v3984 = vunpack.c.l.b16 %v3808
  %v3985 = vunpack.c.l.b16 %v3809
  %v3986 = vunpack.c.l.b16 %v3810
  %v3987 = vunpack.c.l.b16 %v3811
  %v3988 = vunpack.c.l.b16 %v3812
  %v3989 = vunpack.c.l.b16 %v3813
  %v3990 = vunpack.c.l.b16 %v3814
  %v3991 = vunpack.c.l.b16 %v3815
  %v3992 = vunpack.c.l.b16 %v3816
  %v3993 = vunpack.c.l.b16 %v3817
  %v3994 = vunpack.c.l.b16 %v3818
  %v3995 = vunpack.c.l.b16 %v3819
  %v3996 = vunpack.c.l.b16 %v3820
  %v3997 = vunpack.c.l.b16 %v3821
  %v3998 = vunpack.c.l.b16 %v3822
  %v3999 = vunpack.c.l.b16 %v3823
  %v4000 = vunpack.c.l.b16 %v3824
  %v4001 = vunpack.c.l.b16 %v3825
  %v4002 = vunpack.c.l.b16 %v3826
  %v4003 = vunpack.c.l.b16 %v3827
  %v4004 = vunpack.c.l.b16 %v3828
  %v4005 = vunpack.c.l.b16 %v3829
  %v4006 = vunpack.c.l.b16 %v3830
  %v4007 = vunpack.c.l.b16 %v3831
  %v4008 = vunpack.c.l.b16 %v3832
  %v4009 = vunpack.c.l.b16 %v3833
  %v4010 = vunpack.c.l.b16 %v3834
  %v4011 = vunpack.c.l.b16 %v3835
  %v4012 = vunpack.c.l.b16 %v3836
  %v4013 = vunpack.c.l.b16 %v3837
  %v4014 = vunpack.c.l.b16 %v3838
  %v4015 = vunpack.c.l.b16 %v3839
  %v4016 = vunpack.c.l.b16 %v3840
  %v4017 = vunpack.c.l.b16 %v3841
  %v4018 = vunpack.c.l.b16 %v3842
  %v4019 = vunpack.c.l.b16 %v3843
  %v4020 = vunpack.c.l.b16 %v3844
  %v4021 = vunpack.c.l.b16 %v3845
  %v4022 = vunpack.c.l.b16 %v3846
  %v4023 = vunpack.c.l.b16 %v3847
  %v4024 = vunpack.c.l.b16 %v3848
  %v4025 = vpack.c.b16 %v3945, %v3944
  %v4026 = vpack.c.b16 %v3947, %v3946
  %v4027 = vpack.c.b16 %v3949, %v3948
  %v4028 = vpack.c.b16 %v3951, %v3950
  %v4029 = vpack.c.b16 %v3953, %v3952
  %v4030 = vpack.c.b16 %v3955, %v3954
  %v4031 = vpack.c.b16 %v3957, %v3956
  %v4032 = vpack.c.b16 %v3959, %v3958
  %v4033 = vpack.c.b16 %v3961, %v3960
  %v4034 = vpack.c.b16 %v3963, %v3962
  %v4035 = vpack.c.b16 %v3965, %v3964
  %v4036 = vpack.c.b16 %v3967, %v3966
  %v4037 = vpack.c.b16 %v3969, %v3968
  %v4038 = vpack.c.b16 %v3971, %v3970
  %v4039 = vpack.c.b16 %v3973, %v3972
  %v4040 = vpack.c.b16 %v3975, %v3974
  %v4041 = vpack.c.b16 %v3977, %v3976
  %v4042 = vpack.c.b16 %v3979, %v3978
  %v4043 = vpack.c.b16 %v3981, %v3980
  %v4044 = vpack.c.b16 %v3983, %v3982
  %v4045 = vpack.c.b16 %v3985, %v3984
  %v4046 = vpack.c.b16 %v3987, %v3986
  %v4047 = vpack.c.b16 %v3989, %v3988
  %v4048 = vpack.c.b16 %v3991, %v3990
  %v4049 = vpack.c.b16 %v3993, %v3992
  %v4050 = vpack.c.b16 %v3995, %v3994
  %v4051 = vpack.c.b16 %v3997, %v3996
  %v4052 = vpack.c.b16 %v3999, %v3998
  %v4053 = vpack.c.b16 %v4001, %v4000
  %v4054 = vpack.c.b16 %v4003, %v4002
  %v4055 = vpack.c.b16 %v4005, %v4004
  %v4056 = vpack.c.b16 %v4007, %v4006
  %v4057 = vpack.c.b16 %v4009, %v4008
  %v4058 = vpack.c.b16 %v4011, %v4010
  %v4059 = vpack.c.b16 %v4013, %v4012
  %v4060 = vpack.c.b16 %v4015, %v4014
  %v4061 = vpack.c.b16 %v4017, %v4016
  %v4062 = vpack.c.b16 %v4019, %v4018
  %v4063 = vpack.c.b16 %v4021, %v4020
  %v4064 = vpack.c.b16 %v4023, %v4022
  %v4065 = vpack.c.b16 %v4024, %v4024
  %v4067 = vunpack.c.l.b16 %v3849
  %v4068 = vpack.c.b16 %v4067, %v4024
  %v4070 = vshrl.u32 %v4025, 16
  %v4072 = vshll.u32 %v4025, 16
  %v4074 = vrot.slane %v4072, 1
  %v4075 = vor.u32 %v4070, %v4074
  %v4077 = vshll.u32 %v4026, 16
  %v4079 = vrot.slane %v4077, 1
  %v4080 = vsel %vm346, %v4075, %v4079
  %v4081 = vshrl.u32 %v4026, 16
  %v4083 = vor.u32 %v4081, %v4079
  %v4085 = vshll.u32 %v4027, 16
  %v4087 = vrot.slane %v4085, 1
  %v4088 = vsel %vm346, %v4083, %v4087
  %v4089 = vshrl.u32 %v4027, 16
  %v4091 = vor.u32 %v4089, %v4087
  %v4093 = vshll.u32 %v4028, 16
  %v4095 = vrot.slane %v4093, 1
  %v4096 = vsel %vm346, %v4091, %v4095
  %v4097 = vshrl.u32 %v4028, 16
  %v4099 = vor.u32 %v4097, %v4095
  %v4101 = vshll.u32 %v4029, 16
  %v4103 = vrot.slane %v4101, 1
  %v4104 = vsel %vm346, %v4099, %v4103
  %v4105 = vshrl.u32 %v4029, 16
  %v4107 = vor.u32 %v4105, %v4103
  %v4109 = vshll.u32 %v4030, 16
  %v4111 = vrot.slane %v4109, 1
  %v4112 = vsel %vm346, %v4107, %v4111
  %v4113 = vshrl.u32 %v4030, 16
  %v4115 = vor.u32 %v4113, %v4111
  %v4117 = vshll.u32 %v4031, 16
  %v4119 = vrot.slane %v4117, 1
  %v4120 = vsel %vm346, %v4115, %v4119
  %v4121 = vshrl.u32 %v4031, 16
  %v4123 = vor.u32 %v4121, %v4119
  %v4125 = vshll.u32 %v4032, 16
  %v4127 = vrot.slane %v4125, 1
  %v4128 = vsel %vm346, %v4123, %v4127
  %v4129 = vshrl.u32 %v4032, 16
  %v4131 = vor.u32 %v4129, %v4127
  %v4133 = vshll.u32 %v4033, 16
  %v4135 = vrot.slane %v4133, 1
  %v4136 = vsel %vm346, %v4131, %v4135
  %v4137 = vshrl.u32 %v4033, 16
  %v4139 = vor.u32 %v4137, %v4135
  %v4141 = vshll.u32 %v4034, 16
  %v4143 = vrot.slane %v4141, 1
  %v4144 = vsel %vm346, %v4139, %v4143
  %v4145 = vshrl.u32 %v4034, 16
  %v4147 = vor.u32 %v4145, %v4143
  %v4149 = vshll.u32 %v4035, 16
  %v4151 = vrot.slane %v4149, 1
  %v4152 = vsel %vm346, %v4147, %v4151
  %v4153 = vshrl.u32 %v4035, 16
  %v4155 = vor.u32 %v4153, %v4151
  %v4157 = vshll.u32 %v4036, 16
  %v4159 = vrot.slane %v4157, 1
  %v4160 = vsel %vm346, %v4155, %v4159
  %v4161 = vshrl.u32 %v4036, 16
  %v4163 = vor.u32 %v4161, %v4159
  %v4165 = vshll.u32 %v4037, 16
  %v4167 = vrot.slane %v4165, 1
  %v4168 = vsel %vm346, %v4163, %v4167
  %v4169 = vshrl.u32 %v4037, 16
  %v4171 = vor.u32 %v4169, %v4167
  %v4173 = vshll.u32 %v4038, 16
  %v4175 = vrot.slane %v4173, 1
  %v4176 = vsel %vm346, %v4171, %v4175
  %v4177 = vshrl.u32 %v4038, 16
  %v4179 = vor.u32 %v4177, %v4175
  %v4181 = vshll.u32 %v4039, 16
  %v4183 = vrot.slane %v4181, 1
  %v4184 = vsel %vm346, %v4179, %v4183
  %v4185 = vshrl.u32 %v4039, 16
  %v4187 = vor.u32 %v4185, %v4183
  %v4189 = vshll.u32 %v4040, 16
  %v4191 = vrot.slane %v4189, 1
  %v4192 = vsel %vm346, %v4187, %v4191
  %v4193 = vshrl.u32 %v4040, 16
  %v4195 = vor.u32 %v4193, %v4191
  %v4197 = vshll.u32 %v4041, 16
  %v4199 = vrot.slane %v4197, 1
  %v4200 = vsel %vm346, %v4195, %v4199
  %v4201 = vshrl.u32 %v4041, 16
  %v4203 = vor.u32 %v4201, %v4199
  %v4205 = vshll.u32 %v4042, 16
  %v4207 = vrot.slane %v4205, 1
  %v4208 = vsel %vm346, %v4203, %v4207
  %v4209 = vshrl.u32 %v4042, 16
  %v4211 = vor.u32 %v4209, %v4207
  %v4213 = vshll.u32 %v4043, 16
  %v4215 = vrot.slane %v4213, 1
  %v4216 = vsel %vm346, %v4211, %v4215
  %v4217 = vshrl.u32 %v4043, 16
  %v4219 = vor.u32 %v4217, %v4215
  %v4221 = vshll.u32 %v4044, 16
  %v4223 = vrot.slane %v4221, 1
  %v4224 = vsel %vm346, %v4219, %v4223
  %v4225 = vshrl.u32 %v4044, 16
  %v4227 = vor.u32 %v4225, %v4223
  %v4229 = vshll.u32 %v4045, 16
  %v4231 = vrot.slane %v4229, 1
  %v4232 = vsel %vm346, %v4227, %v4231
  %v4233 = vshrl.u32 %v4045, 16
  %v4235 = vor.u32 %v4233, %v4231
  %v4237 = vshll.u32 %v4046, 16
  %v4239 = vrot.slane %v4237, 1
  %v4240 = vsel %vm346, %v4235, %v4239
  %v4241 = vshrl.u32 %v4046, 16
  %v4243 = vor.u32 %v4241, %v4239
  %v4245 = vshll.u32 %v4047, 16
  %v4247 = vrot.slane %v4245, 1
  %v4248 = vsel %vm346, %v4243, %v4247
  %v4249 = vshrl.u32 %v4047, 16
  %v4251 = vor.u32 %v4249, %v4247
  %v4253 = vshll.u32 %v4048, 16
  %v4255 = vrot.slane %v4253, 1
  %v4256 = vsel %vm346, %v4251, %v4255
  %v4257 = vshrl.u32 %v4048, 16
  %v4259 = vor.u32 %v4257, %v4255
  %v4261 = vshll.u32 %v4049, 16
  %v4263 = vrot.slane %v4261, 1
  %v4264 = vsel %vm346, %v4259, %v4263
  %v4265 = vshrl.u32 %v4049, 16
  %v4267 = vor.u32 %v4265, %v4263
  %v4269 = vshll.u32 %v4050, 16
  %v4271 = vrot.slane %v4269, 1
  %v4272 = vsel %vm346, %v4267, %v4271
  %v4273 = vshrl.u32 %v4050, 16
  %v4275 = vor.u32 %v4273, %v4271
  %v4277 = vshll.u32 %v4051, 16
  %v4279 = vrot.slane %v4277, 1
  %v4280 = vsel %vm346, %v4275, %v4279
  %v4281 = vshrl.u32 %v4051, 16
  %v4283 = vor.u32 %v4281, %v4279
  %v4285 = vshll.u32 %v4052, 16
  %v4287 = vrot.slane %v4285, 1
  %v4288 = vsel %vm346, %v4283, %v4287
  %v4289 = vshrl.u32 %v4052, 16
  %v4291 = vor.u32 %v4289, %v4287
  %v4293 = vshll.u32 %v4053, 16
  %v4295 = vrot.slane %v4293, 1
  %v4296 = vsel %vm346, %v4291, %v4295
  %v4297 = vshrl.u32 %v4053, 16
  %v4299 = vor.u32 %v4297, %v4295
  %v4301 = vshll.u32 %v4054, 16
  %v4303 = vrot.slane %v4301, 1
  %v4304 = vsel %vm346, %v4299, %v4303
  %v4305 = vshrl.u32 %v4054, 16
  %v4307 = vor.u32 %v4305, %v4303
  %v4309 = vshll.u32 %v4055, 16
  %v4311 = vrot.slane %v4309, 1
  %v4312 = vsel %vm346, %v4307, %v4311
  %v4313 = vshrl.u32 %v4055, 16
  %v4315 = vor.u32 %v4313, %v4311
  %v4317 = vshll.u32 %v4056, 16
  %v4319 = vrot.slane %v4317, 1
  %v4320 = vsel %vm346, %v4315, %v4319
  %v4321 = vshrl.u32 %v4056, 16
  %v4323 = vor.u32 %v4321, %v4319
  %v4325 = vshll.u32 %v4057, 16
  %v4327 = vrot.slane %v4325, 1
  %v4328 = vsel %vm346, %v4323, %v4327
  %v4329 = vshrl.u32 %v4057, 16
  %v4331 = vor.u32 %v4329, %v4327
  %v4333 = vshll.u32 %v4058, 16
  %v4335 = vrot.slane %v4333, 1
  %v4336 = vsel %vm346, %v4331, %v4335
  %v4337 = vshrl.u32 %v4058, 16
  %v4339 = vor.u32 %v4337, %v4335
  %v4341 = vshll.u32 %v4059, 16
  %v4343 = vrot.slane %v4341, 1
  %v4344 = vsel %vm346, %v4339, %v4343
  %v4345 = vshrl.u32 %v4059, 16
  %v4347 = vor.u32 %v4345, %v4343
  %v4349 = vshll.u32 %v4060, 16
  %v4351 = vrot.slane %v4349, 1
  %v4352 = vsel %vm346, %v4347, %v4351
  %v4353 = vshrl.u32 %v4060, 16
  %v4355 = vor.u32 %v4353, %v4351
  %v4357 = vshll.u32 %v4061, 16
  %v4359 = vrot.slane %v4357, 1
  %v4360 = vsel %vm346, %v4355, %v4359
  %v4361 = vshrl.u32 %v4061, 16
  %v4363 = vor.u32 %v4361, %v4359
  %v4365 = vshll.u32 %v4062, 16
  %v4367 = vrot.slane %v4365, 1
  %v4368 = vsel %vm346, %v4363, %v4367
  %v4369 = vshrl.u32 %v4062, 16
  %v4371 = vor.u32 %v4369, %v4367
  %v4373 = vshll.u32 %v4063, 16
  %v4375 = vrot.slane %v4373, 1
  %v4376 = vsel %vm346, %v4371, %v4375
  %v4377 = vshrl.u32 %v4063, 16
  %v4379 = vor.u32 %v4377, %v4375
  %v4381 = vshll.u32 %v4064, 16
  %v4383 = vrot.slane %v4381, 1
  %v4384 = vsel %vm346, %v4379, %v4383
  %v4385 = vshrl.u32 %v4064, 16
  %v4387 = vor.u32 %v4385, %v4383
  %v4389 = vshll.u32 %v4068, 16
  %v4391 = vrot.slane %v4389, 1
  %v4392 = vsel %vm346, %v4387, %v4391
  %v4393 = vshrl.u32 %v4068, 16
  %v4395 = vor.u32 %v4393, %v4391
  %4396 = vrot.lane.b32.xlu0 %v4080, 8
  %v4397 = vpop.permute.xlu0 %4396
  %4398 = vrot.lane.b32.xlu0 %v4088, 8
  %v4399 = vpop.permute.xlu0 %4398
  %4400 = vrot.lane.b32.xlu0 %v4096, 8
  %v4401 = vpop.permute.xlu0 %4400
  %4402 = vrot.lane.b32.xlu0 %v4104, 8
  %v4403 = vpop.permute.xlu0 %4402
  %4404 = vrot.lane.b32.xlu0 %v4112, 8
  %v4405 = vpop.permute.xlu0 %4404
  %4406 = vrot.lane.b32.xlu0 %v4120, 8
  %v4407 = vpop.permute.xlu0 %4406
  %4408 = vrot.lane.b32.xlu0 %v4128, 8
  %v4409 = vpop.permute.xlu0 %4408
  %4410 = vrot.lane.b32.xlu0 %v4136, 8
  %v4411 = vpop.permute.xlu0 %4410
  %4412 = vrot.lane.b32.xlu0 %v4144, 8
  %v4413 = vpop.permute.xlu0 %4412
  %4414 = vrot.lane.b32.xlu0 %v4152, 8
  %v4415 = vpop.permute.xlu0 %4414
  %4416 = vrot.lane.b32.xlu0 %v4160, 8
  %v4417 = vpop.permute.xlu0 %4416
  %4418 = vrot.lane.b32.xlu0 %v4168, 8
  %v4419 = vpop.permute.xlu0 %4418
  %4420 = vrot.lane.b32.xlu0 %v4176, 8
  %v4421 = vpop.permute.xlu0 %4420
  %4422 = vrot.lane.b32.xlu0 %v4184, 8
  %v4423 = vpop.permute.xlu0 %4422
  %4424 = vrot.lane.b32.xlu0 %v4192, 8
  %v4425 = vpop.permute.xlu0 %4424
  %4426 = vrot.lane.b32.xlu0 %v4200, 8
  %v4427 = vpop.permute.xlu0 %4426
  %4428 = vrot.lane.b32.xlu0 %v4208, 8
  %v4429 = vpop.permute.xlu0 %4428
  %4430 = vrot.lane.b32.xlu0 %v4216, 8
  %v4431 = vpop.permute.xlu0 %4430
  %4432 = vrot.lane.b32.xlu0 %v4224, 8
  %v4433 = vpop.permute.xlu0 %4432
  %4434 = vrot.lane.b32.xlu0 %v4232, 8
  %v4435 = vpop.permute.xlu0 %4434
  %4436 = vrot.lane.b32.xlu0 %v4240, 8
  %v4437 = vpop.permute.xlu0 %4436
  %4438 = vrot.lane.b32.xlu0 %v4248, 8
  %v4439 = vpop.permute.xlu0 %4438
  %4440 = vrot.lane.b32.xlu0 %v4256, 8
  %v4441 = vpop.permute.xlu0 %4440
  %4442 = vrot.lane.b32.xlu0 %v4264, 8
  %v4443 = vpop.permute.xlu0 %4442
  %4444 = vrot.lane.b32.xlu0 %v4272, 8
  %v4445 = vpop.permute.xlu0 %4444
  %4446 = vrot.lane.b32.xlu0 %v4280, 8
  %v4447 = vpop.permute.xlu0 %4446
  %4448 = vrot.lane.b32.xlu0 %v4288, 8
  %v4449 = vpop.permute.xlu0 %4448
  %4450 = vrot.lane.b32.xlu0 %v4296, 8
  %v4451 = vpop.permute.xlu0 %4450
  %4452 = vrot.lane.b32.xlu0 %v4304, 8
  %v4453 = vpop.permute.xlu0 %4452
  %4454 = vrot.lane.b32.xlu0 %v4312, 8
  %v4455 = vpop.permute.xlu0 %4454
  %4456 = vrot.lane.b32.xlu0 %v4320, 8
  %v4457 = vpop.permute.xlu0 %4456
  %4458 = vrot.lane.b32.xlu0 %v4328, 8
  %v4459 = vpop.permute.xlu0 %4458
  %4460 = vrot.lane.b32.xlu0 %v4336, 8
  %v4461 = vpop.permute.xlu0 %4460
  %4462 = vrot.lane.b32.xlu0 %v4344, 8
  %v4463 = vpop.permute.xlu0 %4462
  %4464 = vrot.lane.b32.xlu0 %v4352, 8
  %v4465 = vpop.permute.xlu0 %4464
  %4466 = vrot.lane.b32.xlu0 %v4360, 8
  %v4467 = vpop.permute.xlu0 %4466
  %4468 = vrot.lane.b32.xlu0 %v4368, 8
  %v4469 = vpop.permute.xlu0 %4468
  %4470 = vrot.lane.b32.xlu0 %v4376, 8
  %v4471 = vpop.permute.xlu0 %4470
  %4472 = vrot.lane.b32.xlu0 %v4384, 8
  %v4473 = vpop.permute.xlu0 %4472
  %4474 = vrot.lane.b32.xlu0 %v4392, 8
  %v4475 = vpop.permute.xlu0 %4474
  %4476 = vrot.lane.b32.xlu0 %v4395, 8
  %v4477 = vpop.permute.xlu0 %4476
  %v4479 = vunpack.c.l.b16 %v3850
  %v4480 = vpack.c.b16 %v3945, %v4479
  %v4481 = vrot.slane %v4480, 1
  %v4482 = vrot.slane %v4026, 1
  %v4483 = vsel %vm759, %v4481, %v4482
  %v4484 = vrot.slane %v4027, 1
  %v4485 = vsel %vm759, %v4482, %v4484
  %v4486 = vrot.slane %v4028, 1
  %v4487 = vsel %vm759, %v4484, %v4486
  %v4488 = vrot.slane %v4029, 1
  %v4489 = vsel %vm759, %v4486, %v4488
  %v4490 = vrot.slane %v4030, 1
  %v4491 = vsel %vm759, %v4488, %v4490
  %v4492 = vrot.slane %v4031, 1
  %v4493 = vsel %vm759, %v4490, %v4492
  %v4494 = vrot.slane %v4032, 1
  %v4495 = vsel %vm759, %v4492, %v4494
  %v4496 = vrot.slane %v4033, 1
  %v4497 = vsel %vm759, %v4494, %v4496
  %v4498 = vrot.slane %v4034, 1
  %v4499 = vsel %vm759, %v4496, %v4498
  %v4500 = vrot.slane %v4035, 1
  %v4501 = vsel %vm759, %v4498, %v4500
  %v4502 = vrot.slane %v4036, 1
  %v4503 = vsel %vm759, %v4500, %v4502
  %v4504 = vrot.slane %v4037, 1
  %v4505 = vsel %vm759, %v4502, %v4504
  %v4506 = vrot.slane %v4038, 1
  %v4507 = vsel %vm759, %v4504, %v4506
  %v4508 = vrot.slane %v4039, 1
  %v4509 = vsel %vm759, %v4506, %v4508
  %v4510 = vrot.slane %v4040, 1
  %v4511 = vsel %vm759, %v4508, %v4510
  %v4512 = vrot.slane %v4041, 1
  %v4513 = vsel %vm759, %v4510, %v4512
  %v4514 = vrot.slane %v4042, 1
  %v4515 = vsel %vm759, %v4512, %v4514
  %v4516 = vrot.slane %v4043, 1
  %v4517 = vsel %vm759, %v4514, %v4516
  %v4518 = vrot.slane %v4044, 1
  %v4519 = vsel %vm759, %v4516, %v4518
  %v4520 = vrot.slane %v4045, 1
  %v4521 = vsel %vm759, %v4518, %v4520
  %v4522 = vrot.slane %v4046, 1
  %v4523 = vsel %vm759, %v4520, %v4522
  %v4524 = vrot.slane %v4047, 1
  %v4525 = vsel %vm759, %v4522, %v4524
  %v4526 = vrot.slane %v4048, 1
  %v4527 = vsel %vm759, %v4524, %v4526
  %v4528 = vrot.slane %v4049, 1
  %v4529 = vsel %vm759, %v4526, %v4528
  %v4530 = vrot.slane %v4050, 1
  %v4531 = vsel %vm759, %v4528, %v4530
  %v4532 = vrot.slane %v4051, 1
  %v4533 = vsel %vm759, %v4530, %v4532
  %v4534 = vrot.slane %v4052, 1
  %v4535 = vsel %vm759, %v4532, %v4534
  %v4536 = vrot.slane %v4053, 1
  %v4537 = vsel %vm759, %v4534, %v4536
  %v4538 = vrot.slane %v4054, 1
  %v4539 = vsel %vm759, %v4536, %v4538
  %v4540 = vrot.slane %v4055, 1
  %v4541 = vsel %vm759, %v4538, %v4540
  %v4542 = vrot.slane %v4056, 1
  %v4543 = vsel %vm759, %v4540, %v4542
  %v4544 = vrot.slane %v4057, 1
  %v4545 = vsel %vm759, %v4542, %v4544
  %v4546 = vrot.slane %v4058, 1
  %v4547 = vsel %vm759, %v4544, %v4546
  %v4548 = vrot.slane %v4059, 1
  %v4549 = vsel %vm759, %v4546, %v4548
  %v4550 = vrot.slane %v4060, 1
  %v4551 = vsel %vm759, %v4548, %v4550
  %v4552 = vrot.slane %v4061, 1
  %v4553 = vsel %vm759, %v4550, %v4552
  %v4554 = vrot.slane %v4062, 1
  %v4555 = vsel %vm759, %v4552, %v4554
  %v4556 = vrot.slane %v4063, 1
  %v4557 = vsel %vm759, %v4554, %v4556
  %v4558 = vrot.slane %v4064, 1
  %v4559 = vsel %vm759, %v4556, %v4558
  %v4560 = vrot.slane %v4068, 1
  %v4561 = vsel %vm759, %v4558, %v4560
  %4562 = vrot.lane.b32.xlu0 %v4483, 16
  %v4563 = vpop.permute.xlu0 %4562
  %4564 = vrot.lane.b32.xlu0 %v4485, 16
  %v4565 = vpop.permute.xlu0 %4564
  %4566 = vrot.lane.b32.xlu0 %v4487, 16
  %v4567 = vpop.permute.xlu0 %4566
  %4568 = vrot.lane.b32.xlu0 %v4489, 16
  %v4569 = vpop.permute.xlu0 %4568
  %4570 = vrot.lane.b32.xlu0 %v4491, 16
  %v4571 = vpop.permute.xlu0 %4570
  %4572 = vrot.lane.b32.xlu0 %v4493, 16
  %v4573 = vpop.permute.xlu0 %4572
  %4574 = vrot.lane.b32.xlu0 %v4495, 16
  %v4575 = vpop.permute.xlu0 %4574
  %4576 = vrot.lane.b32.xlu0 %v4497, 16
  %v4577 = vpop.permute.xlu0 %4576
  %4578 = vrot.lane.b32.xlu0 %v4499, 16
  %v4579 = vpop.permute.xlu0 %4578
  %4580 = vrot.lane.b32.xlu0 %v4501, 16
  %v4581 = vpop.permute.xlu0 %4580
  %4582 = vrot.lane.b32.xlu0 %v4503, 16
  %v4583 = vpop.permute.xlu0 %4582
  %4584 = vrot.lane.b32.xlu0 %v4505, 16
  %v4585 = vpop.permute.xlu0 %4584
  %4586 = vrot.lane.b32.xlu0 %v4507, 16
  %v4587 = vpop.permute.xlu0 %4586
  %4588 = vrot.lane.b32.xlu0 %v4509, 16
  %v4589 = vpop.permute.xlu0 %4588
  %4590 = vrot.lane.b32.xlu0 %v4511, 16
  %v4591 = vpop.permute.xlu0 %4590
  %4592 = vrot.lane.b32.xlu0 %v4513, 16
  %v4593 = vpop.permute.xlu0 %4592
  %4594 = vrot.lane.b32.xlu0 %v4515, 16
  %v4595 = vpop.permute.xlu0 %4594
  %4596 = vrot.lane.b32.xlu0 %v4517, 16
  %v4597 = vpop.permute.xlu0 %4596
  %4598 = vrot.lane.b32.xlu0 %v4519, 16
  %v4599 = vpop.permute.xlu0 %4598
  %4600 = vrot.lane.b32.xlu0 %v4521, 16
  %v4601 = vpop.permute.xlu0 %4600
  %4602 = vrot.lane.b32.xlu0 %v4523, 16
  %v4603 = vpop.permute.xlu0 %4602
  %4604 = vrot.lane.b32.xlu0 %v4525, 16
  %v4605 = vpop.permute.xlu0 %4604
  %4606 = vrot.lane.b32.xlu0 %v4527, 16
  %v4607 = vpop.permute.xlu0 %4606
  %4608 = vrot.lane.b32.xlu0 %v4529, 16
  %v4609 = vpop.permute.xlu0 %4608
  %4610 = vrot.lane.b32.xlu0 %v4531, 16
  %v4611 = vpop.permute.xlu0 %4610
  %4612 = vrot.lane.b32.xlu0 %v4533, 16
  %v4613 = vpop.permute.xlu0 %4612
  %4614 = vrot.lane.b32.xlu0 %v4535, 16
  %v4615 = vpop.permute.xlu0 %4614
  %4616 = vrot.lane.b32.xlu0 %v4537, 16
  %v4617 = vpop.permute.xlu0 %4616
  %4618 = vrot.lane.b32.xlu0 %v4539, 16
  %v4619 = vpop.permute.xlu0 %4618
  %4620 = vrot.lane.b32.xlu0 %v4541, 16
  %v4621 = vpop.permute.xlu0 %4620
  %4622 = vrot.lane.b32.xlu0 %v4543, 16
  %v4623 = vpop.permute.xlu0 %4622
  %4624 = vrot.lane.b32.xlu0 %v4545, 16
  %v4625 = vpop.permute.xlu0 %4624
  %4626 = vrot.lane.b32.xlu0 %v4547, 16
  %v4627 = vpop.permute.xlu0 %4626
  %4628 = vrot.lane.b32.xlu0 %v4549, 16
  %v4629 = vpop.permute.xlu0 %4628
  %4630 = vrot.lane.b32.xlu0 %v4551, 16
  %v4631 = vpop.permute.xlu0 %4630
  %4632 = vrot.lane.b32.xlu0 %v4553, 16
  %v4633 = vpop.permute.xlu0 %4632
  %4634 = vrot.lane.b32.xlu0 %v4555, 16
  %v4635 = vpop.permute.xlu0 %4634
  %4636 = vrot.lane.b32.xlu0 %v4557, 16
  %v4637 = vpop.permute.xlu0 %4636
  %4638 = vrot.lane.b32.xlu0 %v4559, 16
  %v4639 = vpop.permute.xlu0 %4638
  %4640 = vrot.lane.b32.xlu0 %v4561, 16
  %v4641 = vpop.permute.xlu0 %4640
  %4642 = vrot.lane.b32.xlu0 %v4560, 16
  %v4643 = vpop.permute.xlu0 %4642
  %v4648 = vunpack.c.l.b16 %v3851
  %v4649 = vunpack.c.l.b16 %v3852
  %v4650 = vunpack.c.l.b16 %v3853
  %v4651 = vunpack.c.l.b16 %v3854
  %v4652 = vpack.c.b16 %v3947, %v4648
  %v4653 = vpack.c.b16 %v4649, %v4024
  %v4654 = vpack.c.b16 %v4651, %v4650
  %v4655 = vrot.slane %v4652, 1
  %v4656 = vsel %vm759, %v4655, %v4484
  %v4657 = vrot.slane %v4653, 1
  %v4658 = vsel %vm759, %v4558, %v4657
  %v4659 = vrot.slane %v4654, 1
  %v4660 = vsel %vm759, %v4657, %v4659
  %4661 = vrot.lane.b32.xlu0 %v4656, 24
  %v4662 = vpop.permute.xlu0 %4661
  %4663 = vrot.lane.b32.xlu0 %v4487, 24
  %v4664 = vpop.permute.xlu0 %4663
  %4665 = vrot.lane.b32.xlu0 %v4489, 24
  %v4666 = vpop.permute.xlu0 %4665
  %4667 = vrot.lane.b32.xlu0 %v4491, 24
  %v4668 = vpop.permute.xlu0 %4667
  %4669 = vrot.lane.b32.xlu0 %v4493, 24
  %v4670 = vpop.permute.xlu0 %4669
  %4671 = vrot.lane.b32.xlu0 %v4495, 24
  %v4672 = vpop.permute.xlu0 %4671
  %4673 = vrot.lane.b32.xlu0 %v4497, 24
  %v4674 = vpop.permute.xlu0 %4673
  %4675 = vrot.lane.b32.xlu0 %v4499, 24
  %v4676 = vpop.permute.xlu0 %4675
  %4677 = vrot.lane.b32.xlu0 %v4501, 24
  %v4678 = vpop.permute.xlu0 %4677
  %4679 = vrot.lane.b32.xlu0 %v4503, 24
  %v4680 = vpop.permute.xlu0 %4679
  %4681 = vrot.lane.b32.xlu0 %v4505, 24
  %v4682 = vpop.permute.xlu0 %4681
  %4683 = vrot.lane.b32.xlu0 %v4507, 24
  %v4684 = vpop.permute.xlu0 %4683
  %4685 = vrot.lane.b32.xlu0 %v4509, 24
  %v4686 = vpop.permute.xlu0 %4685
  %4687 = vrot.lane.b32.xlu0 %v4511, 24
  %v4688 = vpop.permute.xlu0 %4687
  %4689 = vrot.lane.b32.xlu0 %v4513, 24
  %v4690 = vpop.permute.xlu0 %4689
  %4691 = vrot.lane.b32.xlu0 %v4515, 24
  %v4692 = vpop.permute.xlu0 %4691
  %4693 = vrot.lane.b32.xlu0 %v4517, 24
  %v4694 = vpop.permute.xlu0 %4693
  %4695 = vrot.lane.b32.xlu0 %v4519, 24
  %v4696 = vpop.permute.xlu0 %4695
  %4697 = vrot.lane.b32.xlu0 %v4521, 24
  %v4698 = vpop.permute.xlu0 %4697
  %4699 = vrot.lane.b32.xlu0 %v4523, 24
  %v4700 = vpop.permute.xlu0 %4699
  %4701 = vrot.lane.b32.xlu0 %v4525, 24
  %v4702 = vpop.permute.xlu0 %4701
  %4703 = vrot.lane.b32.xlu0 %v4527, 24
  %v4704 = vpop.permute.xlu0 %4703
  %4705 = vrot.lane.b32.xlu0 %v4529, 24
  %v4706 = vpop.permute.xlu0 %4705
  %4707 = vrot.lane.b32.xlu0 %v4531, 24
  %v4708 = vpop.permute.xlu0 %4707
  %4709 = vrot.lane.b32.xlu0 %v4533, 24
  %v4710 = vpop.permute.xlu0 %4709
  %4711 = vrot.lane.b32.xlu0 %v4535, 24
  %v4712 = vpop.permute.xlu0 %4711
  %4713 = vrot.lane.b32.xlu0 %v4537, 24
  %v4714 = vpop.permute.xlu0 %4713
  %4715 = vrot.lane.b32.xlu0 %v4539, 24
  %v4716 = vpop.permute.xlu0 %4715
  %4717 = vrot.lane.b32.xlu0 %v4541, 24
  %v4718 = vpop.permute.xlu0 %4717
  %4719 = vrot.lane.b32.xlu0 %v4543, 24
  %v4720 = vpop.permute.xlu0 %4719
  %4721 = vrot.lane.b32.xlu0 %v4545, 24
  %v4722 = vpop.permute.xlu0 %4721
  %4723 = vrot.lane.b32.xlu0 %v4547, 24
  %v4724 = vpop.permute.xlu0 %4723
  %4725 = vrot.lane.b32.xlu0 %v4549, 24
  %v4726 = vpop.permute.xlu0 %4725
  %4727 = vrot.lane.b32.xlu0 %v4551, 24
  %v4728 = vpop.permute.xlu0 %4727
  %4729 = vrot.lane.b32.xlu0 %v4553, 24
  %v4730 = vpop.permute.xlu0 %4729
  %4731 = vrot.lane.b32.xlu0 %v4555, 24
  %v4732 = vpop.permute.xlu0 %4731
  %4733 = vrot.lane.b32.xlu0 %v4557, 24
  %v4734 = vpop.permute.xlu0 %4733
  %4735 = vrot.lane.b32.xlu0 %v4559, 24
  %v4736 = vpop.permute.xlu0 %4735
  %4737 = vrot.lane.b32.xlu0 %v4658, 24
  %v4738 = vpop.permute.xlu0 %4737
  %4739 = vrot.lane.b32.xlu0 %v4660, 24
  %v4740 = vpop.permute.xlu0 %4739
  %4741 = vrot.lane.b32.xlu0 %v4659, 24
  %v4742 = vpop.permute.xlu0 %4741
  %v4744 = vunpack.c.l.b16 %v3855
  %v4745 = vpack.c.b16 %v4744, %v4650
  %v4747 = vshrl.u32 %v4652, 16
  %v4749 = vrot.slane %v4747, 1
  %v4750 = vshll.u32 %v4652, 16
  %v4752 = vrot.slane %v4750, 2
  %v4753 = vor.u32 %v4749, %v4752
  %v4754 = vrot.slane %v4089, 1
  %v4755 = vrot.slane %v4085, 2
  %v4756 = vor.u32 %v4754, %v4755
  %v4757 = vsel %vm1025, %v4753, %v4756
  %v4758 = vrot.slane %v4097, 1
  %v4759 = vrot.slane %v4093, 2
  %v4760 = vor.u32 %v4758, %v4759
  %v4761 = vsel %vm1025, %v4756, %v4760
  %v4762 = vrot.slane %v4105, 1
  %v4763 = vrot.slane %v4101, 2
  %v4764 = vor.u32 %v4762, %v4763
  %v4765 = vsel %vm1025, %v4760, %v4764
  %v4766 = vrot.slane %v4113, 1
  %v4767 = vrot.slane %v4109, 2
  %v4768 = vor.u32 %v4766, %v4767
  %v4769 = vsel %vm1025, %v4764, %v4768
  %v4770 = vrot.slane %v4121, 1
  %v4771 = vrot.slane %v4117, 2
  %v4772 = vor.u32 %v4770, %v4771
  %v4773 = vsel %vm1025, %v4768, %v4772
  %v4774 = vrot.slane %v4129, 1
  %v4775 = vrot.slane %v4125, 2
  %v4776 = vor.u32 %v4774, %v4775
  %v4777 = vsel %vm1025, %v4772, %v4776
  %v4778 = vrot.slane %v4137, 1
  %v4779 = vrot.slane %v4133, 2
  %v4780 = vor.u32 %v4778, %v4779
  %v4781 = vsel %vm1025, %v4776, %v4780
  %v4782 = vrot.slane %v4145, 1
  %v4783 = vrot.slane %v4141, 2
  %v4784 = vor.u32 %v4782, %v4783
  %v4785 = vsel %vm1025, %v4780, %v4784
  %v4786 = vrot.slane %v4153, 1
  %v4787 = vrot.slane %v4149, 2
  %v4788 = vor.u32 %v4786, %v4787
  %v4789 = vsel %vm1025, %v4784, %v4788
  %v4790 = vrot.slane %v4161, 1
  %v4791 = vrot.slane %v4157, 2
  %v4792 = vor.u32 %v4790, %v4791
  %v4793 = vsel %vm1025, %v4788, %v4792
  %v4794 = vrot.slane %v4169, 1
  %v4795 = vrot.slane %v4165, 2
  %v4796 = vor.u32 %v4794, %v4795
  %v4797 = vsel %vm1025, %v4792, %v4796
  %v4798 = vrot.slane %v4177, 1
  %v4799 = vrot.slane %v4173, 2
  %v4800 = vor.u32 %v4798, %v4799
  %v4801 = vsel %vm1025, %v4796, %v4800
  %v4802 = vrot.slane %v4185, 1
  %v4803 = vrot.slane %v4181, 2
  %v4804 = vor.u32 %v4802, %v4803
  %v4805 = vsel %vm1025, %v4800, %v4804
  %v4806 = vrot.slane %v4193, 1
  %v4807 = vrot.slane %v4189, 2
  %v4808 = vor.u32 %v4806, %v4807
  %v4809 = vsel %vm1025, %v4804, %v4808
  %v4810 = vrot.slane %v4201, 1
  %v4811 = vrot.slane %v4197, 2
  %v4812 = vor.u32 %v4810, %v4811
  %v4813 = vsel %vm1025, %v4808, %v4812
  %v4814 = vrot.slane %v4209, 1
  %v4815 = vrot.slane %v4205, 2
  %v4816 = vor.u32 %v4814, %v4815
  %v4817 = vsel %vm1025, %v4812, %v4816
  %v4818 = vrot.slane %v4217, 1
  %v4819 = vrot.slane %v4213, 2
  %v4820 = vor.u32 %v4818, %v4819
  %v4821 = vsel %vm1025, %v4816, %v4820
  %v4822 = vrot.slane %v4225, 1
  %v4823 = vrot.slane %v4221, 2
  %v4824 = vor.u32 %v4822, %v4823
  %v4825 = vsel %vm1025, %v4820, %v4824
  %v4826 = vrot.slane %v4233, 1
  %v4827 = vrot.slane %v4229, 2
  %v4828 = vor.u32 %v4826, %v4827
  %v4829 = vsel %vm1025, %v4824, %v4828
  %v4830 = vrot.slane %v4241, 1
  %v4831 = vrot.slane %v4237, 2
  %v4832 = vor.u32 %v4830, %v4831
  %v4833 = vsel %vm1025, %v4828, %v4832
  %v4834 = vrot.slane %v4249, 1
  %v4835 = vrot.slane %v4245, 2
  %v4836 = vor.u32 %v4834, %v4835
  %v4837 = vsel %vm1025, %v4832, %v4836
  %v4838 = vrot.slane %v4257, 1
  %v4839 = vrot.slane %v4253, 2
  %v4840 = vor.u32 %v4838, %v4839
  %v4841 = vsel %vm1025, %v4836, %v4840
  %v4842 = vrot.slane %v4265, 1
  %v4843 = vrot.slane %v4261, 2
  %v4844 = vor.u32 %v4842, %v4843
  %v4845 = vsel %vm1025, %v4840, %v4844
  %v4846 = vrot.slane %v4273, 1
  %v4847 = vrot.slane %v4269, 2
  %v4848 = vor.u32 %v4846, %v4847
  %v4849 = vsel %vm1025, %v4844, %v4848
  %v4850 = vrot.slane %v4281, 1
  %v4851 = vrot.slane %v4277, 2
  %v4852 = vor.u32 %v4850, %v4851
  %v4853 = vsel %vm1025, %v4848, %v4852
  %v4854 = vrot.slane %v4289, 1
  %v4855 = vrot.slane %v4285, 2
  %v4856 = vor.u32 %v4854, %v4855
  %v4857 = vsel %vm1025, %v4852, %v4856
  %v4858 = vrot.slane %v4297, 1
  %v4859 = vrot.slane %v4293, 2
  %v4860 = vor.u32 %v4858, %v4859
  %v4861 = vsel %vm1025, %v4856, %v4860
  %v4862 = vrot.slane %v4305, 1
  %v4863 = vrot.slane %v4301, 2
  %v4864 = vor.u32 %v4862, %v4863
  %v4865 = vsel %vm1025, %v4860, %v4864
  %v4866 = vrot.slane %v4313, 1
  %v4867 = vrot.slane %v4309, 2
  %v4868 = vor.u32 %v4866, %v4867
  %v4869 = vsel %vm1025, %v4864, %v4868
  %v4870 = vrot.slane %v4321, 1
  %v4871 = vrot.slane %v4317, 2
  %v4872 = vor.u32 %v4870, %v4871
  %v4873 = vsel %vm1025, %v4868, %v4872
  %v4874 = vrot.slane %v4329, 1
  %v4875 = vrot.slane %v4325, 2
  %v4876 = vor.u32 %v4874, %v4875
  %v4877 = vsel %vm1025, %v4872, %v4876
  %v4878 = vrot.slane %v4337, 1
  %v4879 = vrot.slane %v4333, 2
  %v4880 = vor.u32 %v4878, %v4879
  %v4881 = vsel %vm1025, %v4876, %v4880
  %v4882 = vrot.slane %v4345, 1
  %v4883 = vrot.slane %v4341, 2
  %v4884 = vor.u32 %v4882, %v4883
  %v4885 = vsel %vm1025, %v4880, %v4884
  %v4886 = vrot.slane %v4353, 1
  %v4887 = vrot.slane %v4349, 2
  %v4888 = vor.u32 %v4886, %v4887
  %v4889 = vsel %vm1025, %v4884, %v4888
  %v4890 = vrot.slane %v4361, 1
  %v4891 = vrot.slane %v4357, 2
  %v4892 = vor.u32 %v4890, %v4891
  %v4893 = vsel %vm1025, %v4888, %v4892
  %v4894 = vrot.slane %v4369, 1
  %v4895 = vrot.slane %v4365, 2
  %v4896 = vor.u32 %v4894, %v4895
  %v4897 = vsel %vm1025, %v4892, %v4896
  %v4898 = vrot.slane %v4377, 1
  %v4899 = vrot.slane %v4373, 2
  %v4900 = vor.u32 %v4898, %v4899
  %v4901 = vsel %vm1025, %v4896, %v4900
  %v4902 = vrot.slane %v4385, 1
  %v4903 = vrot.slane %v4381, 2
  %v4904 = vor.u32 %v4902, %v4903
  %v4905 = vsel %vm1025, %v4900, %v4904
  %v4907 = vshrl.u32 %v4653, 16
  %v4909 = vrot.slane %v4907, 1
  %v4910 = vshll.u32 %v4653, 16
  %v4912 = vrot.slane %v4910, 2
  %v4913 = vor.u32 %v4909, %v4912
  %v4914 = vsel %vm1025, %v4904, %v4913
  %v4916 = vshrl.u32 %v4745, 16
  %v4918 = vrot.slane %v4916, 1
  %v4919 = vshll.u32 %v4745, 16
  %v4921 = vrot.slane %v4919, 2
  %v4922 = vor.u32 %v4918, %v4921
  %v4923 = vsel %vm1025, %v4913, %v4922
  %4924 = vrot.lane.b32.xlu0 %v4757, 32
  %v4925 = vpop.permute.xlu0 %4924
  %4926 = vrot.lane.b32.xlu0 %v4761, 32
  %v4927 = vpop.permute.xlu0 %4926
  %4928 = vrot.lane.b32.xlu0 %v4765, 32
  %v4929 = vpop.permute.xlu0 %4928
  %4930 = vrot.lane.b32.xlu0 %v4769, 32
  %v4931 = vpop.permute.xlu0 %4930
  %4932 = vrot.lane.b32.xlu0 %v4773, 32
  %v4933 = vpop.permute.xlu0 %4932
  %4934 = vrot.lane.b32.xlu0 %v4777, 32
  %v4935 = vpop.permute.xlu0 %4934
  %4936 = vrot.lane.b32.xlu0 %v4781, 32
  %v4937 = vpop.permute.xlu0 %4936
  %4938 = vrot.lane.b32.xlu0 %v4785, 32
  %v4939 = vpop.permute.xlu0 %4938
  %4940 = vrot.lane.b32.xlu0 %v4789, 32
  %v4941 = vpop.permute.xlu0 %4940
  %4942 = vrot.lane.b32.xlu0 %v4793, 32
  %v4943 = vpop.permute.xlu0 %4942
  %4944 = vrot.lane.b32.xlu0 %v4797, 32
  %v4945 = vpop.permute.xlu0 %4944
  %4946 = vrot.lane.b32.xlu0 %v4801, 32
  %v4947 = vpop.permute.xlu0 %4946
  %4948 = vrot.lane.b32.xlu0 %v4805, 32
  %v4949 = vpop.permute.xlu0 %4948
  %4950 = vrot.lane.b32.xlu0 %v4809, 32
  %v4951 = vpop.permute.xlu0 %4950
  %4952 = vrot.lane.b32.xlu0 %v4813, 32
  %v4953 = vpop.permute.xlu0 %4952
  %4954 = vrot.lane.b32.xlu0 %v4817, 32
  %v4955 = vpop.permute.xlu0 %4954
  %4956 = vrot.lane.b32.xlu0 %v4821, 32
  %v4957 = vpop.permute.xlu0 %4956
  %4958 = vrot.lane.b32.xlu0 %v4825, 32
  %v4959 = vpop.permute.xlu0 %4958
  %4960 = vrot.lane.b32.xlu0 %v4829, 32
  %v4961 = vpop.permute.xlu0 %4960
  %4962 = vrot.lane.b32.xlu0 %v4833, 32
  %v4963 = vpop.permute.xlu0 %4962
  %4964 = vrot.lane.b32.xlu0 %v4837, 32
  %v4965 = vpop.permute.xlu0 %4964
  %4966 = vrot.lane.b32.xlu0 %v4841, 32
  %v4967 = vpop.permute.xlu0 %4966
  %4968 = vrot.lane.b32.xlu0 %v4845, 32
  %v4969 = vpop.permute.xlu0 %4968
  %4970 = vrot.lane.b32.xlu0 %v4849, 32
  %v4971 = vpop.permute.xlu0 %4970
  %4972 = vrot.lane.b32.xlu0 %v4853, 32
  %v4973 = vpop.permute.xlu0 %4972
  %4974 = vrot.lane.b32.xlu0 %v4857, 32
  %v4975 = vpop.permute.xlu0 %4974
  %4976 = vrot.lane.b32.xlu0 %v4861, 32
  %v4977 = vpop.permute.xlu0 %4976
  %4978 = vrot.lane.b32.xlu0 %v4865, 32
  %v4979 = vpop.permute.xlu0 %4978
  %4980 = vrot.lane.b32.xlu0 %v4869, 32
  %v4981 = vpop.permute.xlu0 %4980
  %4982 = vrot.lane.b32.xlu0 %v4873, 32
  %v4983 = vpop.permute.xlu0 %4982
  %4984 = vrot.lane.b32.xlu0 %v4877, 32
  %v4985 = vpop.permute.xlu0 %4984
  %4986 = vrot.lane.b32.xlu0 %v4881, 32
  %v4987 = vpop.permute.xlu0 %4986
  %4988 = vrot.lane.b32.xlu0 %v4885, 32
  %v4989 = vpop.permute.xlu0 %4988
  %4990 = vrot.lane.b32.xlu0 %v4889, 32
  %v4991 = vpop.permute.xlu0 %4990
  %4992 = vrot.lane.b32.xlu0 %v4893, 32
  %v4993 = vpop.permute.xlu0 %4992
  %4994 = vrot.lane.b32.xlu0 %v4897, 32
  %v4995 = vpop.permute.xlu0 %4994
  %4996 = vrot.lane.b32.xlu0 %v4901, 32
  %v4997 = vpop.permute.xlu0 %4996
  %4998 = vrot.lane.b32.xlu0 %v4905, 32
  %v4999 = vpop.permute.xlu0 %4998
  %5000 = vrot.lane.b32.xlu0 %v4914, 32
  %v5001 = vpop.permute.xlu0 %5000
  %5002 = vrot.lane.b32.xlu0 %v4923, 32
  %v5003 = vpop.permute.xlu0 %5002
  %5004 = vrot.lane.b32.xlu0 %v4922, 32
  %v5005 = vpop.permute.xlu0 %5004
  %v5007 = vunpack.c.l.b16 %v3856
  %v5008 = vpack.c.b16 %v3947, %v5007
  %v5009 = vrot.slane %v5008, 2
  %v5010 = vrot.slane %v4027, 2
  %v5011 = vsel %vm1289, %v5009, %v5010
  %v5012 = vrot.slane %v4028, 2
  %v5013 = vsel %vm1289, %v5010, %v5012
  %v5014 = vrot.slane %v4029, 2
  %v5015 = vsel %vm1289, %v5012, %v5014
  %v5016 = vrot.slane %v4030, 2
  %v5017 = vsel %vm1289, %v5014, %v5016
  %v5018 = vrot.slane %v4031, 2
  %v5019 = vsel %vm1289, %v5016, %v5018
  %v5020 = vrot.slane %v4032, 2
  %v5021 = vsel %vm1289, %v5018, %v5020
  %v5022 = vrot.slane %v4033, 2
  %v5023 = vsel %vm1289, %v5020, %v5022
  %v5024 = vrot.slane %v4034, 2
  %v5025 = vsel %vm1289, %v5022, %v5024
  %v5026 = vrot.slane %v4035, 2
  %v5027 = vsel %vm1289, %v5024, %v5026
  %v5028 = vrot.slane %v4036, 2
  %v5029 = vsel %vm1289, %v5026, %v5028
  %v5030 = vrot.slane %v4037, 2
  %v5031 = vsel %vm1289, %v5028, %v5030
  %v5032 = vrot.slane %v4038, 2
  %v5033 = vsel %vm1289, %v5030, %v5032
  %v5034 = vrot.slane %v4039, 2
  %v5035 = vsel %vm1289, %v5032, %v5034
  %v5036 = vrot.slane %v4040, 2
  %v5037 = vsel %vm1289, %v5034, %v5036
  %v5038 = vrot.slane %v4041, 2
  %v5039 = vsel %vm1289, %v5036, %v5038
  %v5040 = vrot.slane %v4042, 2
  %v5041 = vsel %vm1289, %v5038, %v5040
  %v5042 = vrot.slane %v4043, 2
  %v5043 = vsel %vm1289, %v5040, %v5042
  %v5044 = vrot.slane %v4044, 2
  %v5045 = vsel %vm1289, %v5042, %v5044
  %v5046 = vrot.slane %v4045, 2
  %v5047 = vsel %vm1289, %v5044, %v5046
  %v5048 = vrot.slane %v4046, 2
  %v5049 = vsel %vm1289, %v5046, %v5048
  %v5050 = vrot.slane %v4047, 2
  %v5051 = vsel %vm1289, %v5048, %v5050
  %v5052 = vrot.slane %v4048, 2
  %v5053 = vsel %vm1289, %v5050, %v5052
  %v5054 = vrot.slane %v4049, 2
  %v5055 = vsel %vm1289, %v5052, %v5054
  %v5056 = vrot.slane %v4050, 2
  %v5057 = vsel %vm1289, %v5054, %v5056
  %v5058 = vrot.slane %v4051, 2
  %v5059 = vsel %vm1289, %v5056, %v5058
  %v5060 = vrot.slane %v4052, 2
  %v5061 = vsel %vm1289, %v5058, %v5060
  %v5062 = vrot.slane %v4053, 2
  %v5063 = vsel %vm1289, %v5060, %v5062
  %v5064 = vrot.slane %v4054, 2
  %v5065 = vsel %vm1289, %v5062, %v5064
  %v5066 = vrot.slane %v4055, 2
  %v5067 = vsel %vm1289, %v5064, %v5066
  %v5068 = vrot.slane %v4056, 2
  %v5069 = vsel %vm1289, %v5066, %v5068
  %v5070 = vrot.slane %v4057, 2
  %v5071 = vsel %vm1289, %v5068, %v5070
  %v5072 = vrot.slane %v4058, 2
  %v5073 = vsel %vm1289, %v5070, %v5072
  %v5074 = vrot.slane %v4059, 2
  %v5075 = vsel %vm1289, %v5072, %v5074
  %v5076 = vrot.slane %v4060, 2
  %v5077 = vsel %vm1289, %v5074, %v5076
  %v5078 = vrot.slane %v4061, 2
  %v5079 = vsel %vm1289, %v5076, %v5078
  %v5080 = vrot.slane %v4062, 2
  %v5081 = vsel %vm1289, %v5078, %v5080
  %v5082 = vrot.slane %v4063, 2
  %v5083 = vsel %vm1289, %v5080, %v5082
  %v5084 = vrot.slane %v4064, 2
  %v5085 = vsel %vm1289, %v5082, %v5084
  %v5086 = vrot.slane %v4653, 2
  %v5087 = vsel %vm1289, %v5084, %v5086
  %v5088 = vrot.slane %v4745, 2
  %v5089 = vsel %vm1289, %v5086, %v5088
  %5090 = vrot.lane.b32.xlu0 %v5011, 40
  %v5091 = vpop.permute.xlu0 %5090
  %5092 = vrot.lane.b32.xlu0 %v5013, 40
  %v5093 = vpop.permute.xlu0 %5092
  %5094 = vrot.lane.b32.xlu0 %v5015, 40
  %v5095 = vpop.permute.xlu0 %5094
  %5096 = vrot.lane.b32.xlu0 %v5017, 40
  %v5097 = vpop.permute.xlu0 %5096
  %5098 = vrot.lane.b32.xlu0 %v5019, 40
  %v5099 = vpop.permute.xlu0 %5098
  %5100 = vrot.lane.b32.xlu0 %v5021, 40
  %v5101 = vpop.permute.xlu0 %5100
  %5102 = vrot.lane.b32.xlu0 %v5023, 40
  %v5103 = vpop.permute.xlu0 %5102
  %5104 = vrot.lane.b32.xlu0 %v5025, 40
  %v5105 = vpop.permute.xlu0 %5104
  %5106 = vrot.lane.b32.xlu0 %v5027, 40
  %v5107 = vpop.permute.xlu0 %5106
  %5108 = vrot.lane.b32.xlu0 %v5029, 40
  %v5109 = vpop.permute.xlu0 %5108
  %5110 = vrot.lane.b32.xlu0 %v5031, 40
  %v5111 = vpop.permute.xlu0 %5110
  %5112 = vrot.lane.b32.xlu0 %v5033, 40
  %v5113 = vpop.permute.xlu0 %5112
  %5114 = vrot.lane.b32.xlu0 %v5035, 40
  %v5115 = vpop.permute.xlu0 %5114
  %5116 = vrot.lane.b32.xlu0 %v5037, 40
  %v5117 = vpop.permute.xlu0 %5116
  %5118 = vrot.lane.b32.xlu0 %v5039, 40
  %v5119 = vpop.permute.xlu0 %5118
  %5120 = vrot.lane.b32.xlu0 %v5041, 40
  %v5121 = vpop.permute.xlu0 %5120
  %5122 = vrot.lane.b32.xlu0 %v5043, 40
  %v5123 = vpop.permute.xlu0 %5122
  %5124 = vrot.lane.b32.xlu0 %v5045, 40
  %v5125 = vpop.permute.xlu0 %5124
  %5126 = vrot.lane.b32.xlu0 %v5047, 40
  %v5127 = vpop.permute.xlu0 %5126
  %5128 = vrot.lane.b32.xlu0 %v5049, 40
  %v5129 = vpop.permute.xlu0 %5128
  %5130 = vrot.lane.b32.xlu0 %v5051, 40
  %v5131 = vpop.permute.xlu0 %5130
  %5132 = vrot.lane.b32.xlu0 %v5053, 40
  %v5133 = vpop.permute.xlu0 %5132
  %5134 = vrot.lane.b32.xlu0 %v5055, 40
  %v5135 = vpop.permute.xlu0 %5134
  %5136 = vrot.lane.b32.xlu0 %v5057, 40
  %v5137 = vpop.permute.xlu0 %5136
  %5138 = vrot.lane.b32.xlu0 %v5059, 40
  %v5139 = vpop.permute.xlu0 %5138
  %5140 = vrot.lane.b32.xlu0 %v5061, 40
  %v5141 = vpop.permute.xlu0 %5140
  %5142 = vrot.lane.b32.xlu0 %v5063, 40
  %v5143 = vpop.permute.xlu0 %5142
  %5144 = vrot.lane.b32.xlu0 %v5065, 40
  %v5145 = vpop.permute.xlu0 %5144
  %5146 = vrot.lane.b32.xlu0 %v5067, 40
  %v5147 = vpop.permute.xlu0 %5146
  %5148 = vrot.lane.b32.xlu0 %v5069, 40
  %v5149 = vpop.permute.xlu0 %5148
  %5150 = vrot.lane.b32.xlu0 %v5071, 40
  %v5151 = vpop.permute.xlu0 %5150
  %5152 = vrot.lane.b32.xlu0 %v5073, 40
  %v5153 = vpop.permute.xlu0 %5152
  %5154 = vrot.lane.b32.xlu0 %v5075, 40
  %v5155 = vpop.permute.xlu0 %5154
  %5156 = vrot.lane.b32.xlu0 %v5077, 40
  %v5157 = vpop.permute.xlu0 %5156
  %5158 = vrot.lane.b32.xlu0 %v5079, 40
  %v5159 = vpop.permute.xlu0 %5158
  %5160 = vrot.lane.b32.xlu0 %v5081, 40
  %v5161 = vpop.permute.xlu0 %5160
  %5162 = vrot.lane.b32.xlu0 %v5083, 40
  %v5163 = vpop.permute.xlu0 %5162
  %5164 = vrot.lane.b32.xlu0 %v5085, 40
  %v5165 = vpop.permute.xlu0 %5164
  %5166 = vrot.lane.b32.xlu0 %v5087, 40
  %v5167 = vpop.permute.xlu0 %5166
  %5168 = vrot.lane.b32.xlu0 %v5089, 40
  %v5169 = vpop.permute.xlu0 %5168
  %5170 = vrot.lane.b32.xlu0 %v5088, 40
  %v5171 = vpop.permute.xlu0 %5170
  %v5176 = vunpack.c.l.b16 %v3857
  %v5177 = vunpack.c.l.b16 %v3858
  %v5178 = vunpack.c.l.b16 %v3859
  %v5179 = vunpack.c.l.b16 %v3860
  %v5180 = vpack.c.b16 %v3949, %v5176
  %v5181 = vpack.c.b16 %v5177, %v4650
  %v5182 = vpack.c.b16 %v5179, %v5178
  %v5183 = vrot.slane %v5180, 2
  %v5184 = vsel %vm1289, %v5183, %v5012
  %v5185 = vrot.slane %v5181, 2
  %v5186 = vsel %vm1289, %v5086, %v5185
  %v5187 = vrot.slane %v5182, 2
  %v5188 = vsel %vm1289, %v5185, %v5187
  %5189 = vrot.lane.b32.xlu0 %v5184, 48
  %v5190 = vpop.permute.xlu0 %5189
  %5191 = vrot.lane.b32.xlu0 %v5015, 48
  %v5192 = vpop.permute.xlu0 %5191
  %5193 = vrot.lane.b32.xlu0 %v5017, 48
  %v5194 = vpop.permute.xlu0 %5193
  %5195 = vrot.lane.b32.xlu0 %v5019, 48
  %v5196 = vpop.permute.xlu0 %5195
  %5197 = vrot.lane.b32.xlu0 %v5021, 48
  %v5198 = vpop.permute.xlu0 %5197
  %5199 = vrot.lane.b32.xlu0 %v5023, 48
  %v5200 = vpop.permute.xlu0 %5199
  %5201 = vrot.lane.b32.xlu0 %v5025, 48
  %v5202 = vpop.permute.xlu0 %5201
  %5203 = vrot.lane.b32.xlu0 %v5027, 48
  %v5204 = vpop.permute.xlu0 %5203
  %5205 = vrot.lane.b32.xlu0 %v5029, 48
  %v5206 = vpop.permute.xlu0 %5205
  %5207 = vrot.lane.b32.xlu0 %v5031, 48
  %v5208 = vpop.permute.xlu0 %5207
  %5209 = vrot.lane.b32.xlu0 %v5033, 48
  %v5210 = vpop.permute.xlu0 %5209
  %5211 = vrot.lane.b32.xlu0 %v5035, 48
  %v5212 = vpop.permute.xlu0 %5211
  %5213 = vrot.lane.b32.xlu0 %v5037, 48
  %v5214 = vpop.permute.xlu0 %5213
  %5215 = vrot.lane.b32.xlu0 %v5039, 48
  %v5216 = vpop.permute.xlu0 %5215
  %5217 = vrot.lane.b32.xlu0 %v5041, 48
  %v5218 = vpop.permute.xlu0 %5217
  %5219 = vrot.lane.b32.xlu0 %v5043, 48
  %v5220 = vpop.permute.xlu0 %5219
  %5221 = vrot.lane.b32.xlu0 %v5045, 48
  %v5222 = vpop.permute.xlu0 %5221
  %5223 = vrot.lane.b32.xlu0 %v5047, 48
  %v5224 = vpop.permute.xlu0 %5223
  %5225 = vrot.lane.b32.xlu0 %v5049, 48
  %v5226 = vpop.permute.xlu0 %5225
  %5227 = vrot.lane.b32.xlu0 %v5051, 48
  %v5228 = vpop.permute.xlu0 %5227
  %5229 = vrot.lane.b32.xlu0 %v5053, 48
  %v5230 = vpop.permute.xlu0 %5229
  %5231 = vrot.lane.b32.xlu0 %v5055, 48
  %v5232 = vpop.permute.xlu0 %5231
  %5233 = vrot.lane.b32.xlu0 %v5057, 48
  %v5234 = vpop.permute.xlu0 %5233
  %5235 = vrot.lane.b32.xlu0 %v5059, 48
  %v5236 = vpop.permute.xlu0 %5235
  %5237 = vrot.lane.b32.xlu0 %v5061, 48
  %v5238 = vpop.permute.xlu0 %5237
  %5239 = vrot.lane.b32.xlu0 %v5063, 48
  %v5240 = vpop.permute.xlu0 %5239
  %5241 = vrot.lane.b32.xlu0 %v5065, 48
  %v5242 = vpop.permute.xlu0 %5241
  %5243 = vrot.lane.b32.xlu0 %v5067, 48
  %v5244 = vpop.permute.xlu0 %5243
  %5245 = vrot.lane.b32.xlu0 %v5069, 48
  %v5246 = vpop.permute.xlu0 %5245
  %5247 = vrot.lane.b32.xlu0 %v5071, 48
  %v5248 = vpop.permute.xlu0 %5247
  %5249 = vrot.lane.b32.xlu0 %v5073, 48
  %v5250 = vpop.permute.xlu0 %5249
  %5251 = vrot.lane.b32.xlu0 %v5075, 48
  %v5252 = vpop.permute.xlu0 %5251
  %5253 = vrot.lane.b32.xlu0 %v5077, 48
  %v5254 = vpop.permute.xlu0 %5253
  %5255 = vrot.lane.b32.xlu0 %v5079, 48
  %v5256 = vpop.permute.xlu0 %5255
  %5257 = vrot.lane.b32.xlu0 %v5081, 48
  %v5258 = vpop.permute.xlu0 %5257
  %5259 = vrot.lane.b32.xlu0 %v5083, 48
  %v5260 = vpop.permute.xlu0 %5259
  %5261 = vrot.lane.b32.xlu0 %v5085, 48
  %v5262 = vpop.permute.xlu0 %5261
  %5263 = vrot.lane.b32.xlu0 %v5087, 48
  %v5264 = vpop.permute.xlu0 %5263
  %5265 = vrot.lane.b32.xlu0 %v5186, 48
  %v5266 = vpop.permute.xlu0 %5265
  %5267 = vrot.lane.b32.xlu0 %v5188, 48
  %v5268 = vpop.permute.xlu0 %5267
  %5269 = vrot.lane.b32.xlu0 %v5187, 48
  %v5270 = vpop.permute.xlu0 %5269
  %v5272 = vunpack.c.l.b16 %v3861
  %v5273 = vpack.c.b16 %v5272, %v5178
  %v5275 = vshrl.u32 %v5180, 16
  %v5277 = vrot.slane %v5275, 2
  %v5278 = vshll.u32 %v5180, 16
  %v5280 = vrot.slane %v5278, 3
  %v5281 = vor.u32 %v5277, %v5280
  %v5282 = vrot.slane %v4097, 2
  %v5283 = vrot.slane %v4093, 3
  %v5284 = vor.u32 %v5282, %v5283
  %v5285 = vsel %vm1555, %v5281, %v5284
  %v5286 = vrot.slane %v4105, 2
  %v5287 = vrot.slane %v4101, 3
  %v5288 = vor.u32 %v5286, %v5287
  %v5289 = vsel %vm1555, %v5284, %v5288
  %v5290 = vrot.slane %v4113, 2
  %v5291 = vrot.slane %v4109, 3
  %v5292 = vor.u32 %v5290, %v5291
  %v5293 = vsel %vm1555, %v5288, %v5292
  %v5294 = vrot.slane %v4121, 2
  %v5295 = vrot.slane %v4117, 3
  %v5296 = vor.u32 %v5294, %v5295
  %v5297 = vsel %vm1555, %v5292, %v5296
  %v5298 = vrot.slane %v4129, 2
  %v5299 = vrot.slane %v4125, 3
  %v5300 = vor.u32 %v5298, %v5299
  %v5301 = vsel %vm1555, %v5296, %v5300
  %v5302 = vrot.slane %v4137, 2
  %v5303 = vrot.slane %v4133, 3
  %v5304 = vor.u32 %v5302, %v5303
  %v5305 = vsel %vm1555, %v5300, %v5304
  %v5306 = vrot.slane %v4145, 2
  %v5307 = vrot.slane %v4141, 3
  %v5308 = vor.u32 %v5306, %v5307
  %v5309 = vsel %vm1555, %v5304, %v5308
  %v5310 = vrot.slane %v4153, 2
  %v5311 = vrot.slane %v4149, 3
  %v5312 = vor.u32 %v5310, %v5311
  %v5313 = vsel %vm1555, %v5308, %v5312
  %v5314 = vrot.slane %v4161, 2
  %v5315 = vrot.slane %v4157, 3
  %v5316 = vor.u32 %v5314, %v5315
  %v5317 = vsel %vm1555, %v5312, %v5316
  %v5318 = vrot.slane %v4169, 2
  %v5319 = vrot.slane %v4165, 3
  %v5320 = vor.u32 %v5318, %v5319
  %v5321 = vsel %vm1555, %v5316, %v5320
  %v5322 = vrot.slane %v4177, 2
  %v5323 = vrot.slane %v4173, 3
  %v5324 = vor.u32 %v5322, %v5323
  %v5325 = vsel %vm1555, %v5320, %v5324
  %v5326 = vrot.slane %v4185, 2
  %v5327 = vrot.slane %v4181, 3
  %v5328 = vor.u32 %v5326, %v5327
  %v5329 = vsel %vm1555, %v5324, %v5328
  %v5330 = vrot.slane %v4193, 2
  %v5331 = vrot.slane %v4189, 3
  %v5332 = vor.u32 %v5330, %v5331
  %v5333 = vsel %vm1555, %v5328, %v5332
  %v5334 = vrot.slane %v4201, 2
  %v5335 = vrot.slane %v4197, 3
  %v5336 = vor.u32 %v5334, %v5335
  %v5337 = vsel %vm1555, %v5332, %v5336
  %v5338 = vrot.slane %v4209, 2
  %v5339 = vrot.slane %v4205, 3
  %v5340 = vor.u32 %v5338, %v5339
  %v5341 = vsel %vm1555, %v5336, %v5340
  %v5342 = vrot.slane %v4217, 2
  %v5343 = vrot.slane %v4213, 3
  %v5344 = vor.u32 %v5342, %v5343
  %v5345 = vsel %vm1555, %v5340, %v5344
  %v5346 = vrot.slane %v4225, 2
  %v5347 = vrot.slane %v4221, 3
  %v5348 = vor.u32 %v5346, %v5347
  %v5349 = vsel %vm1555, %v5344, %v5348
  %v5350 = vrot.slane %v4233, 2
  %v5351 = vrot.slane %v4229, 3
  %v5352 = vor.u32 %v5350, %v5351
  %v5353 = vsel %vm1555, %v5348, %v5352
  %v5354 = vrot.slane %v4241, 2
  %v5355 = vrot.slane %v4237, 3
  %v5356 = vor.u32 %v5354, %v5355
  %v5357 = vsel %vm1555, %v5352, %v5356
  %v5358 = vrot.slane %v4249, 2
  %v5359 = vrot.slane %v4245, 3
  %v5360 = vor.u32 %v5358, %v5359
  %v5361 = vsel %vm1555, %v5356, %v5360
  %v5362 = vrot.slane %v4257, 2
  %v5363 = vrot.slane %v4253, 3
  %v5364 = vor.u32 %v5362, %v5363
  %v5365 = vsel %vm1555, %v5360, %v5364
  %v5366 = vrot.slane %v4265, 2
  %v5367 = vrot.slane %v4261, 3
  %v5368 = vor.u32 %v5366, %v5367
  %v5369 = vsel %vm1555, %v5364, %v5368
  %v5370 = vrot.slane %v4273, 2
  %v5371 = vrot.slane %v4269, 3
  %v5372 = vor.u32 %v5370, %v5371
  %v5373 = vsel %vm1555, %v5368, %v5372
  %v5374 = vrot.slane %v4281, 2
  %v5375 = vrot.slane %v4277, 3
  %v5376 = vor.u32 %v5374, %v5375
  %v5377 = vsel %vm1555, %v5372, %v5376
  %v5378 = vrot.slane %v4289, 2
  %v5379 = vrot.slane %v4285, 3
  %v5380 = vor.u32 %v5378, %v5379
  %v5381 = vsel %vm1555, %v5376, %v5380
  %v5382 = vrot.slane %v4297, 2
  %v5383 = vrot.slane %v4293, 3
  %v5384 = vor.u32 %v5382, %v5383
  %v5385 = vsel %vm1555, %v5380, %v5384
  %v5386 = vrot.slane %v4305, 2
  %v5387 = vrot.slane %v4301, 3
  %v5388 = vor.u32 %v5386, %v5387
  %v5389 = vsel %vm1555, %v5384, %v5388
  %v5390 = vrot.slane %v4313, 2
  %v5391 = vrot.slane %v4309, 3
  %v5392 = vor.u32 %v5390, %v5391
  %v5393 = vsel %vm1555, %v5388, %v5392
  %v5394 = vrot.slane %v4321, 2
  %v5395 = vrot.slane %v4317, 3
  %v5396 = vor.u32 %v5394, %v5395
  %v5397 = vsel %vm1555, %v5392, %v5396
  %v5398 = vrot.slane %v4329, 2
  %v5399 = vrot.slane %v4325, 3
  %v5400 = vor.u32 %v5398, %v5399
  %v5401 = vsel %vm1555, %v5396, %v5400
  %v5402 = vrot.slane %v4337, 2
  %v5403 = vrot.slane %v4333, 3
  %v5404 = vor.u32 %v5402, %v5403
  %v5405 = vsel %vm1555, %v5400, %v5404
  %v5406 = vrot.slane %v4345, 2
  %v5407 = vrot.slane %v4341, 3
  %v5408 = vor.u32 %v5406, %v5407
  %v5409 = vsel %vm1555, %v5404, %v5408
  %v5410 = vrot.slane %v4353, 2
  %v5411 = vrot.slane %v4349, 3
  %v5412 = vor.u32 %v5410, %v5411
  %v5413 = vsel %vm1555, %v5408, %v5412
  %v5414 = vrot.slane %v4361, 2
  %v5415 = vrot.slane %v4357, 3
  %v5416 = vor.u32 %v5414, %v5415
  %v5417 = vsel %vm1555, %v5412, %v5416
  %v5418 = vrot.slane %v4369, 2
  %v5419 = vrot.slane %v4365, 3
  %v5420 = vor.u32 %v5418, %v5419
  %v5421 = vsel %vm1555, %v5416, %v5420
  %v5422 = vrot.slane %v4377, 2
  %v5423 = vrot.slane %v4373, 3
  %v5424 = vor.u32 %v5422, %v5423
  %v5425 = vsel %vm1555, %v5420, %v5424
  %v5426 = vrot.slane %v4385, 2
  %v5427 = vrot.slane %v4381, 3
  %v5428 = vor.u32 %v5426, %v5427
  %v5429 = vsel %vm1555, %v5424, %v5428
  %v5430 = vrot.slane %v4907, 2
  %v5431 = vrot.slane %v4910, 3
  %v5432 = vor.u32 %v5430, %v5431
  %v5433 = vsel %vm1555, %v5428, %v5432
  %v5435 = vshrl.u32 %v5181, 16
  %v5437 = vrot.slane %v5435, 2
  %v5438 = vshll.u32 %v5181, 16
  %v5440 = vrot.slane %v5438, 3
  %v5441 = vor.u32 %v5437, %v5440
  %v5442 = vsel %vm1555, %v5432, %v5441
  %v5444 = vshrl.u32 %v5273, 16
  %v5446 = vrot.slane %v5444, 2
  %v5447 = vshll.u32 %v5273, 16
  %v5449 = vrot.slane %v5447, 3
  %v5450 = vor.u32 %v5446, %v5449
  %v5451 = vsel %vm1555, %v5441, %v5450
  %5452 = vrot.lane.b32.xlu0 %v5285, 56
  %v5453 = vpop.permute.xlu0 %5452
  %5454 = vrot.lane.b32.xlu0 %v5289, 56
  %v5455 = vpop.permute.xlu0 %5454
  %5456 = vrot.lane.b32.xlu0 %v5293, 56
  %v5457 = vpop.permute.xlu0 %5456
  %5458 = vrot.lane.b32.xlu0 %v5297, 56
  %v5459 = vpop.permute.xlu0 %5458
  %5460 = vrot.lane.b32.xlu0 %v5301, 56
  %v5461 = vpop.permute.xlu0 %5460
  %5462 = vrot.lane.b32.xlu0 %v5305, 56
  %v5463 = vpop.permute.xlu0 %5462
  %5464 = vrot.lane.b32.xlu0 %v5309, 56
  %v5465 = vpop.permute.xlu0 %5464
  %5466 = vrot.lane.b32.xlu0 %v5313, 56
  %v5467 = vpop.permute.xlu0 %5466
  %5468 = vrot.lane.b32.xlu0 %v5317, 56
  %v5469 = vpop.permute.xlu0 %5468
  %5470 = vrot.lane.b32.xlu0 %v5321, 56
  %v5471 = vpop.permute.xlu0 %5470
  %5472 = vrot.lane.b32.xlu0 %v5325, 56
  %v5473 = vpop.permute.xlu0 %5472
  %5474 = vrot.lane.b32.xlu0 %v5329, 56
  %v5475 = vpop.permute.xlu0 %5474
  %5476 = vrot.lane.b32.xlu0 %v5333, 56
  %v5477 = vpop.permute.xlu0 %5476
  %5478 = vrot.lane.b32.xlu0 %v5337, 56
  %v5479 = vpop.permute.xlu0 %5478
  %5480 = vrot.lane.b32.xlu0 %v5341, 56
  %v5481 = vpop.permute.xlu0 %5480
  %5482 = vrot.lane.b32.xlu0 %v5345, 56
  %v5483 = vpop.permute.xlu0 %5482
  %5484 = vrot.lane.b32.xlu0 %v5349, 56
  %v5485 = vpop.permute.xlu0 %5484
  %5486 = vrot.lane.b32.xlu0 %v5353, 56
  %v5487 = vpop.permute.xlu0 %5486
  %5488 = vrot.lane.b32.xlu0 %v5357, 56
  %v5489 = vpop.permute.xlu0 %5488
  %5490 = vrot.lane.b32.xlu0 %v5361, 56
  %v5491 = vpop.permute.xlu0 %5490
  %5492 = vrot.lane.b32.xlu0 %v5365, 56
  %v5493 = vpop.permute.xlu0 %5492
  %5494 = vrot.lane.b32.xlu0 %v5369, 56
  %v5495 = vpop.permute.xlu0 %5494
  %5496 = vrot.lane.b32.xlu0 %v5373, 56
  %v5497 = vpop.permute.xlu0 %5496
  %5498 = vrot.lane.b32.xlu0 %v5377, 56
  %v5499 = vpop.permute.xlu0 %5498
  %5500 = vrot.lane.b32.xlu0 %v5381, 56
  %v5501 = vpop.permute.xlu0 %5500
  %5502 = vrot.lane.b32.xlu0 %v5385, 56
  %v5503 = vpop.permute.xlu0 %5502
  %5504 = vrot.lane.b32.xlu0 %v5389, 56
  %v5505 = vpop.permute.xlu0 %5504
  %5506 = vrot.lane.b32.xlu0 %v5393, 56
  %v5507 = vpop.permute.xlu0 %5506
  %5508 = vrot.lane.b32.xlu0 %v5397, 56
  %v5509 = vpop.permute.xlu0 %5508
  %5510 = vrot.lane.b32.xlu0 %v5401, 56
  %v5511 = vpop.permute.xlu0 %5510
  %5512 = vrot.lane.b32.xlu0 %v5405, 56
  %v5513 = vpop.permute.xlu0 %5512
  %5514 = vrot.lane.b32.xlu0 %v5409, 56
  %v5515 = vpop.permute.xlu0 %5514
  %5516 = vrot.lane.b32.xlu0 %v5413, 56
  %v5517 = vpop.permute.xlu0 %5516
  %5518 = vrot.lane.b32.xlu0 %v5417, 56
  %v5519 = vpop.permute.xlu0 %5518
  %5520 = vrot.lane.b32.xlu0 %v5421, 56
  %v5521 = vpop.permute.xlu0 %5520
  %5522 = vrot.lane.b32.xlu0 %v5425, 56
  %v5523 = vpop.permute.xlu0 %5522
  %5524 = vrot.lane.b32.xlu0 %v5429, 56
  %v5525 = vpop.permute.xlu0 %5524
  %5526 = vrot.lane.b32.xlu0 %v5433, 56
  %v5527 = vpop.permute.xlu0 %5526
  %5528 = vrot.lane.b32.xlu0 %v5442, 56
  %v5529 = vpop.permute.xlu0 %5528
  %5530 = vrot.lane.b32.xlu0 %v5451, 56
  %v5531 = vpop.permute.xlu0 %5530
  %5532 = vrot.lane.b32.xlu0 %v5450, 56
  %v5533 = vpop.permute.xlu0 %5532
  %v5535 = vunpack.c.l.b16 %v3862
  %v5536 = vpack.c.b16 %v3949, %v5535
  %v5537 = vrot.slane %v5536, 3
  %v5538 = vrot.slane %v4028, 3
  %v5539 = vsel %vm1819, %v5537, %v5538
  %v5540 = vrot.slane %v4029, 3
  %v5541 = vsel %vm1819, %v5538, %v5540
  %v5542 = vrot.slane %v4030, 3
  %v5543 = vsel %vm1819, %v5540, %v5542
  %v5544 = vrot.slane %v4031, 3
  %v5545 = vsel %vm1819, %v5542, %v5544
  %v5546 = vrot.slane %v4032, 3
  %v5547 = vsel %vm1819, %v5544, %v5546
  %v5548 = vrot.slane %v4033, 3
  %v5549 = vsel %vm1819, %v5546, %v5548
  %v5550 = vrot.slane %v4034, 3
  %v5551 = vsel %vm1819, %v5548, %v5550
  %v5552 = vrot.slane %v4035, 3
  %v5553 = vsel %vm1819, %v5550, %v5552
  %v5554 = vrot.slane %v4036, 3
  %v5555 = vsel %vm1819, %v5552, %v5554
  %v5556 = vrot.slane %v4037, 3
  %v5557 = vsel %vm1819, %v5554, %v5556
  %v5558 = vrot.slane %v4038, 3
  %v5559 = vsel %vm1819, %v5556, %v5558
  %v5560 = vrot.slane %v4039, 3
  %v5561 = vsel %vm1819, %v5558, %v5560
  %v5562 = vrot.slane %v4040, 3
  %v5563 = vsel %vm1819, %v5560, %v5562
  %v5564 = vrot.slane %v4041, 3
  %v5565 = vsel %vm1819, %v5562, %v5564
  %v5566 = vrot.slane %v4042, 3
  %v5567 = vsel %vm1819, %v5564, %v5566
  %v5568 = vrot.slane %v4043, 3
  %v5569 = vsel %vm1819, %v5566, %v5568
  %v5570 = vrot.slane %v4044, 3
  %v5571 = vsel %vm1819, %v5568, %v5570
  %v5572 = vrot.slane %v4045, 3
  %v5573 = vsel %vm1819, %v5570, %v5572
  %v5574 = vrot.slane %v4046, 3
  %v5575 = vsel %vm1819, %v5572, %v5574
  %v5576 = vrot.slane %v4047, 3
  %v5577 = vsel %vm1819, %v5574, %v5576
  %v5578 = vrot.slane %v4048, 3
  %v5579 = vsel %vm1819, %v5576, %v5578
  %v5580 = vrot.slane %v4049, 3
  %v5581 = vsel %vm1819, %v5578, %v5580
  %v5582 = vrot.slane %v4050, 3
  %v5583 = vsel %vm1819, %v5580, %v5582
  %v5584 = vrot.slane %v4051, 3
  %v5585 = vsel %vm1819, %v5582, %v5584
  %v5586 = vrot.slane %v4052, 3
  %v5587 = vsel %vm1819, %v5584, %v5586
  %v5588 = vrot.slane %v4053, 3
  %v5589 = vsel %vm1819, %v5586, %v5588
  %v5590 = vrot.slane %v4054, 3
  %v5591 = vsel %vm1819, %v5588, %v5590
  %v5592 = vrot.slane %v4055, 3
  %v5593 = vsel %vm1819, %v5590, %v5592
  %v5594 = vrot.slane %v4056, 3
  %v5595 = vsel %vm1819, %v5592, %v5594
  %v5596 = vrot.slane %v4057, 3
  %v5597 = vsel %vm1819, %v5594, %v5596
  %v5598 = vrot.slane %v4058, 3
  %v5599 = vsel %vm1819, %v5596, %v5598
  %v5600 = vrot.slane %v4059, 3
  %v5601 = vsel %vm1819, %v5598, %v5600
  %v5602 = vrot.slane %v4060, 3
  %v5603 = vsel %vm1819, %v5600, %v5602
  %v5604 = vrot.slane %v4061, 3
  %v5605 = vsel %vm1819, %v5602, %v5604
  %v5606 = vrot.slane %v4062, 3
  %v5607 = vsel %vm1819, %v5604, %v5606
  %v5608 = vrot.slane %v4063, 3
  %v5609 = vsel %vm1819, %v5606, %v5608
  %v5610 = vrot.slane %v4064, 3
  %v5611 = vsel %vm1819, %v5608, %v5610
  %v5612 = vrot.slane %v4653, 3
  %v5613 = vsel %vm1819, %v5610, %v5612
  %v5614 = vrot.slane %v5181, 3
  %v5615 = vsel %vm1819, %v5612, %v5614
  %v5616 = vrot.slane %v5273, 3
  %v5617 = vsel %vm1819, %v5614, %v5616
  %5618 = vrot.lane.b32.xlu0 %v5539, 64
  %v5619 = vpop.permute.xlu0 %5618
  %5620 = vrot.lane.b32.xlu0 %v5541, 64
  %v5621 = vpop.permute.xlu0 %5620
  %5622 = vrot.lane.b32.xlu0 %v5543, 64
  %v5623 = vpop.permute.xlu0 %5622
  %5624 = vrot.lane.b32.xlu0 %v5545, 64
  %v5625 = vpop.permute.xlu0 %5624
  %5626 = vrot.lane.b32.xlu0 %v5547, 64
  %v5627 = vpop.permute.xlu0 %5626
  %5628 = vrot.lane.b32.xlu0 %v5549, 64
  %v5629 = vpop.permute.xlu0 %5628
  %5630 = vrot.lane.b32.xlu0 %v5551, 64
  %v5631 = vpop.permute.xlu0 %5630
  %5632 = vrot.lane.b32.xlu0 %v5553, 64
  %v5633 = vpop.permute.xlu0 %5632
  %5634 = vrot.lane.b32.xlu0 %v5555, 64
  %v5635 = vpop.permute.xlu0 %5634
  %5636 = vrot.lane.b32.xlu0 %v5557, 64
  %v5637 = vpop.permute.xlu0 %5636
  %5638 = vrot.lane.b32.xlu0 %v5559, 64
  %v5639 = vpop.permute.xlu0 %5638
  %5640 = vrot.lane.b32.xlu0 %v5561, 64
  %v5641 = vpop.permute.xlu0 %5640
  %5642 = vrot.lane.b32.xlu0 %v5563, 64
  %v5643 = vpop.permute.xlu0 %5642
  %5644 = vrot.lane.b32.xlu0 %v5565, 64
  %v5645 = vpop.permute.xlu0 %5644
  %5646 = vrot.lane.b32.xlu0 %v5567, 64
  %v5647 = vpop.permute.xlu0 %5646
  %5648 = vrot.lane.b32.xlu0 %v5569, 64
  %v5649 = vpop.permute.xlu0 %5648
  %5650 = vrot.lane.b32.xlu0 %v5571, 64
  %v5651 = vpop.permute.xlu0 %5650
  %5652 = vrot.lane.b32.xlu0 %v5573, 64
  %v5653 = vpop.permute.xlu0 %5652
  %5654 = vrot.lane.b32.xlu0 %v5575, 64
  %v5655 = vpop.permute.xlu0 %5654
  %5656 = vrot.lane.b32.xlu0 %v5577, 64
  %v5657 = vpop.permute.xlu0 %5656
  %5658 = vrot.lane.b32.xlu0 %v5579, 64
  %v5659 = vpop.permute.xlu0 %5658
  %5660 = vrot.lane.b32.xlu0 %v5581, 64
  %v5661 = vpop.permute.xlu0 %5660
  %5662 = vrot.lane.b32.xlu0 %v5583, 64
  %v5663 = vpop.permute.xlu0 %5662
  %5664 = vrot.lane.b32.xlu0 %v5585, 64
  %v5665 = vpop.permute.xlu0 %5664
  %5666 = vrot.lane.b32.xlu0 %v5587, 64
  %v5667 = vpop.permute.xlu0 %5666
  %5668 = vrot.lane.b32.xlu0 %v5589, 64
  %v5669 = vpop.permute.xlu0 %5668
  %5670 = vrot.lane.b32.xlu0 %v5591, 64
  %v5671 = vpop.permute.xlu0 %5670
  %5672 = vrot.lane.b32.xlu0 %v5593, 64
  %v5673 = vpop.permute.xlu0 %5672
  %5674 = vrot.lane.b32.xlu0 %v5595, 64
  %v5675 = vpop.permute.xlu0 %5674
  %5676 = vrot.lane.b32.xlu0 %v5597, 64
  %v5677 = vpop.permute.xlu0 %5676
  %5678 = vrot.lane.b32.xlu0 %v5599, 64
  %v5679 = vpop.permute.xlu0 %5678
  %5680 = vrot.lane.b32.xlu0 %v5601, 64
  %v5681 = vpop.permute.xlu0 %5680
  %5682 = vrot.lane.b32.xlu0 %v5603, 64
  %v5683 = vpop.permute.xlu0 %5682
  %5684 = vrot.lane.b32.xlu0 %v5605, 64
  %v5685 = vpop.permute.xlu0 %5684
  %5686 = vrot.lane.b32.xlu0 %v5607, 64
  %v5687 = vpop.permute.xlu0 %5686
  %5688 = vrot.lane.b32.xlu0 %v5609, 64
  %v5689 = vpop.permute.xlu0 %5688
  %5690 = vrot.lane.b32.xlu0 %v5611, 64
  %v5691 = vpop.permute.xlu0 %5690
  %5692 = vrot.lane.b32.xlu0 %v5613, 64
  %v5693 = vpop.permute.xlu0 %5692
  %5694 = vrot.lane.b32.xlu0 %v5615, 64
  %v5695 = vpop.permute.xlu0 %5694
  %5696 = vrot.lane.b32.xlu0 %v5617, 64
  %v5697 = vpop.permute.xlu0 %5696
  %5698 = vrot.lane.b32.xlu0 %v5616, 64
  %v5699 = vpop.permute.xlu0 %5698
  %vm5700 = vcmask 64512
  %v5702 = vsel %vm5700, %v4025, %v4397
  %v5704 = vsel %vm5700, %v4026, %v4399
  %v5706 = vsel %vm5700, %v4027, %v4401
  %v5708 = vsel %vm5700, %v4028, %v4403
  %v5710 = vsel %vm5700, %v4029, %v4405
  %v5712 = vsel %vm5700, %v4030, %v4407
  %v5714 = vsel %vm5700, %v4031, %v4409
  %v5716 = vsel %vm5700, %v4032, %v4411
  %v5718 = vsel %vm5700, %v4033, %v4413
  %v5720 = vsel %vm5700, %v4034, %v4415
  %v5722 = vsel %vm5700, %v4035, %v4417
  %v5724 = vsel %vm5700, %v4036, %v4419
  %v5726 = vsel %vm5700, %v4037, %v4421
  %v5728 = vsel %vm5700, %v4038, %v4423
  %v5730 = vsel %vm5700, %v4039, %v4425
  %v5732 = vsel %vm5700, %v4040, %v4427
  %v5734 = vsel %vm5700, %v4041, %v4429
  %v5736 = vsel %vm5700, %v4042, %v4431
  %v5738 = vsel %vm5700, %v4043, %v4433
  %v5740 = vsel %vm5700, %v4044, %v4435
  %v5742 = vsel %vm5700, %v4045, %v4437
  %v5744 = vsel %vm5700, %v4046, %v4439
  %v5746 = vsel %vm5700, %v4047, %v4441
  %v5748 = vsel %vm5700, %v4048, %v4443
  %v5750 = vsel %vm5700, %v4049, %v4445
  %v5752 = vsel %vm5700, %v4050, %v4447
  %v5754 = vsel %vm5700, %v4051, %v4449
  %v5756 = vsel %vm5700, %v4052, %v4451
  %v5758 = vsel %vm5700, %v4053, %v4453
  %v5760 = vsel %vm5700, %v4054, %v4455
  %v5762 = vsel %vm5700, %v4055, %v4457
  %v5764 = vsel %vm5700, %v4056, %v4459
  %v5766 = vsel %vm5700, %v4057, %v4461
  %v5768 = vsel %vm5700, %v4058, %v4463
  %v5770 = vsel %vm5700, %v4059, %v4465
  %v5772 = vsel %vm5700, %v4060, %v4467
  %v5774 = vsel %vm5700, %v4061, %v4469
  %v5776 = vsel %vm5700, %v4062, %v4471
  %v5778 = vsel %vm5700, %v4063, %v4473
  %v5780 = vsel %vm5700, %v4064, %v4475
  %v5783 = vsel %vm5700, %v4065, %v4477
  %vm5784 = vcmask 130048
  %v5786 = vsel %vm5784, %v5702, %v4563
  %v5788 = vsel %vm5784, %v5704, %v4565
  %v5790 = vsel %vm5784, %v5706, %v4567
  %v5792 = vsel %vm5784, %v5708, %v4569
  %v5794 = vsel %vm5784, %v5710, %v4571
  %v5796 = vsel %vm5784, %v5712, %v4573
  %v5798 = vsel %vm5784, %v5714, %v4575
  %v5800 = vsel %vm5784, %v5716, %v4577
  %v5802 = vsel %vm5784, %v5718, %v4579
  %v5804 = vsel %vm5784, %v5720, %v4581
  %v5806 = vsel %vm5784, %v5722, %v4583
  %v5808 = vsel %vm5784, %v5724, %v4585
  %v5810 = vsel %vm5784, %v5726, %v4587
  %v5812 = vsel %vm5784, %v5728, %v4589
  %v5814 = vsel %vm5784, %v5730, %v4591
  %v5816 = vsel %vm5784, %v5732, %v4593
  %v5818 = vsel %vm5784, %v5734, %v4595
  %v5820 = vsel %vm5784, %v5736, %v4597
  %v5822 = vsel %vm5784, %v5738, %v4599
  %v5824 = vsel %vm5784, %v5740, %v4601
  %v5826 = vsel %vm5784, %v5742, %v4603
  %v5828 = vsel %vm5784, %v5744, %v4605
  %v5830 = vsel %vm5784, %v5746, %v4607
  %v5832 = vsel %vm5784, %v5748, %v4609
  %v5834 = vsel %vm5784, %v5750, %v4611
  %v5836 = vsel %vm5784, %v5752, %v4613
  %v5838 = vsel %vm5784, %v5754, %v4615
  %v5840 = vsel %vm5784, %v5756, %v4617
  %v5842 = vsel %vm5784, %v5758, %v4619
  %v5844 = vsel %vm5784, %v5760, %v4621
  %v5846 = vsel %vm5784, %v5762, %v4623
  %v5848 = vsel %vm5784, %v5764, %v4625
  %v5850 = vsel %vm5784, %v5766, %v4627
  %v5852 = vsel %vm5784, %v5768, %v4629
  %v5854 = vsel %vm5784, %v5770, %v4631
  %v5856 = vsel %vm5784, %v5772, %v4633
  %v5858 = vsel %vm5784, %v5774, %v4635
  %v5860 = vsel %vm5784, %v5776, %v4637
  %v5862 = vsel %vm5784, %v5778, %v4639
  %v5864 = vsel %vm5784, %v5780, %v4641
  %v5866 = vsel %vm5784, %v5783, %v4643
  %v5868 = vsel %vm2565, %v5786, %v4662
  %v5870 = vsel %vm2565, %v5788, %v4664
  %v5872 = vsel %vm2565, %v5790, %v4666
  %v5874 = vsel %vm2565, %v5792, %v4668
  %v5876 = vsel %vm2565, %v5794, %v4670
  %v5878 = vsel %vm2565, %v5796, %v4672
  %v5880 = vsel %vm2565, %v5798, %v4674
  %v5882 = vsel %vm2565, %v5800, %v4676
  %v5884 = vsel %vm2565, %v5802, %v4678
  %v5886 = vsel %vm2565, %v5804, %v4680
  %v5888 = vsel %vm2565, %v5806, %v4682
  %v5890 = vsel %vm2565, %v5808, %v4684
  %v5892 = vsel %vm2565, %v5810, %v4686
  %v5894 = vsel %vm2565, %v5812, %v4688
  %v5896 = vsel %vm2565, %v5814, %v4690
  %v5898 = vsel %vm2565, %v5816, %v4692
  %v5900 = vsel %vm2565, %v5818, %v4694
  %v5902 = vsel %vm2565, %v5820, %v4696
  %v5904 = vsel %vm2565, %v5822, %v4698
  %v5906 = vsel %vm2565, %v5824, %v4700
  %v5908 = vsel %vm2565, %v5826, %v4702
  %v5910 = vsel %vm2565, %v5828, %v4704
  %v5912 = vsel %vm2565, %v5830, %v4706
  %v5914 = vsel %vm2565, %v5832, %v4708
  %v5916 = vsel %vm2565, %v5834, %v4710
  %v5918 = vsel %vm2565, %v5836, %v4712
  %v5920 = vsel %vm2565, %v5838, %v4714
  %v5922 = vsel %vm2565, %v5840, %v4716
  %v5924 = vsel %vm2565, %v5842, %v4718
  %v5926 = vsel %vm2565, %v5844, %v4720
  %v5928 = vsel %vm2565, %v5846, %v4722
  %v5930 = vsel %vm2565, %v5848, %v4724
  %v5932 = vsel %vm2565, %v5850, %v4726
  %v5934 = vsel %vm2565, %v5852, %v4728
  %v5936 = vsel %vm2565, %v5854, %v4730
  %v5938 = vsel %vm2565, %v5856, %v4732
  %v5940 = vsel %vm2565, %v5858, %v4734
  %v5942 = vsel %vm2565, %v5860, %v4736
  %v5944 = vsel %vm2565, %v5862, %v4738
  %v5946 = vsel %vm2565, %v5864, %v4740
  %v5948 = vsel %vm2565, %v5866, %v4742
  %vm5949 = vcmask 261120
  %v5951 = vsel %vm5949, %v5868, %v4925
  %v5953 = vsel %vm5949, %v5870, %v4927
  %v5955 = vsel %vm5949, %v5872, %v4929
  %v5957 = vsel %vm5949, %v5874, %v4931
  %v5959 = vsel %vm5949, %v5876, %v4933
  %v5961 = vsel %vm5949, %v5878, %v4935
  %v5963 = vsel %vm5949, %v5880, %v4937
  %v5965 = vsel %vm5949, %v5882, %v4939
  %v5967 = vsel %vm5949, %v5884, %v4941
  %v5969 = vsel %vm5949, %v5886, %v4943
  %v5971 = vsel %vm5949, %v5888, %v4945
  %v5973 = vsel %vm5949, %v5890, %v4947
  %v5975 = vsel %vm5949, %v5892, %v4949
  %v5977 = vsel %vm5949, %v5894, %v4951
  %v5979 = vsel %vm5949, %v5896, %v4953
  %v5981 = vsel %vm5949, %v5898, %v4955
  %v5983 = vsel %vm5949, %v5900, %v4957
  %v5985 = vsel %vm5949, %v5902, %v4959
  %v5987 = vsel %vm5949, %v5904, %v4961
  %v5989 = vsel %vm5949, %v5906, %v4963
  %v5991 = vsel %vm5949, %v5908, %v4965
  %v5993 = vsel %vm5949, %v5910, %v4967
  %v5995 = vsel %vm5949, %v5912, %v4969
  %v5997 = vsel %vm5949, %v5914, %v4971
  %v5999 = vsel %vm5949, %v5916, %v4973
  %v6001 = vsel %vm5949, %v5918, %v4975
  %v6003 = vsel %vm5949, %v5920, %v4977
  %v6005 = vsel %vm5949, %v5922, %v4979
  %v6007 = vsel %vm5949, %v5924, %v4981
  %v6009 = vsel %vm5949, %v5926, %v4983
  %v6011 = vsel %vm5949, %v5928, %v4985
  %v6013 = vsel %vm5949, %v5930, %v4987
  %v6015 = vsel %vm5949, %v5932, %v4989
  %v6017 = vsel %vm5949, %v5934, %v4991
  %v6019 = vsel %vm5949, %v5936, %v4993
  %v6021 = vsel %vm5949, %v5938, %v4995
  %v6023 = vsel %vm5949, %v5940, %v4997
  %v6025 = vsel %vm5949, %v5942, %v4999
  %v6027 = vsel %vm5949, %v5944, %v5001
  %v6029 = vsel %vm5949, %v5946, %v5003
  %v6031 = vsel %vm5949, %v5948, %v5005
  %vm6032 = vcmask 326656
  %v6034 = vsel %vm6032, %v5951, %v5091
  %v6036 = vsel %vm6032, %v5953, %v5093
  %v6038 = vsel %vm6032, %v5955, %v5095
  %v6040 = vsel %vm6032, %v5957, %v5097
  %v6042 = vsel %vm6032, %v5959, %v5099
  %v6044 = vsel %vm6032, %v5961, %v5101
  %v6046 = vsel %vm6032, %v5963, %v5103
  %v6048 = vsel %vm6032, %v5965, %v5105
  %v6050 = vsel %vm6032, %v5967, %v5107
  %v6052 = vsel %vm6032, %v5969, %v5109
  %v6054 = vsel %vm6032, %v5971, %v5111
  %v6056 = vsel %vm6032, %v5973, %v5113
  %v6058 = vsel %vm6032, %v5975, %v5115
  %v6060 = vsel %vm6032, %v5977, %v5117
  %v6062 = vsel %vm6032, %v5979, %v5119
  %v6064 = vsel %vm6032, %v5981, %v5121
  %v6066 = vsel %vm6032, %v5983, %v5123
  %v6068 = vsel %vm6032, %v5985, %v5125
  %v6070 = vsel %vm6032, %v5987, %v5127
  %v6072 = vsel %vm6032, %v5989, %v5129
  %v6074 = vsel %vm6032, %v5991, %v5131
  %v6076 = vsel %vm6032, %v5993, %v5133
  %v6078 = vsel %vm6032, %v5995, %v5135
  %v6080 = vsel %vm6032, %v5997, %v5137
  %v6082 = vsel %vm6032, %v5999, %v5139
  %v6084 = vsel %vm6032, %v6001, %v5141
  %v6086 = vsel %vm6032, %v6003, %v5143
  %v6088 = vsel %vm6032, %v6005, %v5145
  %v6090 = vsel %vm6032, %v6007, %v5147
  %v6092 = vsel %vm6032, %v6009, %v5149
  %v6094 = vsel %vm6032, %v6011, %v5151
  %v6096 = vsel %vm6032, %v6013, %v5153
  %v6098 = vsel %vm6032, %v6015, %v5155
  %v6100 = vsel %vm6032, %v6017, %v5157
  %v6102 = vsel %vm6032, %v6019, %v5159
  %v6104 = vsel %vm6032, %v6021, %v5161
  %v6106 = vsel %vm6032, %v6023, %v5163
  %v6108 = vsel %vm6032, %v6025, %v5165
  %v6110 = vsel %vm6032, %v6027, %v5167
  %v6112 = vsel %vm6032, %v6029, %v5169
  %v6114 = vsel %vm6032, %v6031, %v5171
  %vm6115 = vcmask 392192
  %v6117 = vsel %vm6115, %v6034, %v5190
  %v6119 = vsel %vm6115, %v6036, %v5192
  %v6121 = vsel %vm6115, %v6038, %v5194
  %v6123 = vsel %vm6115, %v6040, %v5196
  %v6125 = vsel %vm6115, %v6042, %v5198
  %v6127 = vsel %vm6115, %v6044, %v5200
  %v6129 = vsel %vm6115, %v6046, %v5202
  %v6131 = vsel %vm6115, %v6048, %v5204
  %v6133 = vsel %vm6115, %v6050, %v5206
  %v6135 = vsel %vm6115, %v6052, %v5208
  %v6137 = vsel %vm6115, %v6054, %v5210
  %v6139 = vsel %vm6115, %v6056, %v5212
  %v6141 = vsel %vm6115, %v6058, %v5214
  %v6143 = vsel %vm6115, %v6060, %v5216
  %v6145 = vsel %vm6115, %v6062, %v5218
  %v6147 = vsel %vm6115, %v6064, %v5220
  %v6149 = vsel %vm6115, %v6066, %v5222
  %v6151 = vsel %vm6115, %v6068, %v5224
  %v6153 = vsel %vm6115, %v6070, %v5226
  %v6155 = vsel %vm6115, %v6072, %v5228
  %v6157 = vsel %vm6115, %v6074, %v5230
  %v6159 = vsel %vm6115, %v6076, %v5232
  %v6161 = vsel %vm6115, %v6078, %v5234
  %v6163 = vsel %vm6115, %v6080, %v5236
  %v6165 = vsel %vm6115, %v6082, %v5238
  %v6167 = vsel %vm6115, %v6084, %v5240
  %v6169 = vsel %vm6115, %v6086, %v5242
  %v6171 = vsel %vm6115, %v6088, %v5244
  %v6173 = vsel %vm6115, %v6090, %v5246
  %v6175 = vsel %vm6115, %v6092, %v5248
  %v6177 = vsel %vm6115, %v6094, %v5250
  %v6179 = vsel %vm6115, %v6096, %v5252
  %v6181 = vsel %vm6115, %v6098, %v5254
  %v6183 = vsel %vm6115, %v6100, %v5256
  %v6185 = vsel %vm6115, %v6102, %v5258
  %v6187 = vsel %vm6115, %v6104, %v5260
  %v6189 = vsel %vm6115, %v6106, %v5262
  %v6191 = vsel %vm6115, %v6108, %v5264
  %v6193 = vsel %vm6115, %v6110, %v5266
  %v6195 = vsel %vm6115, %v6112, %v5268
  %v6197 = vsel %vm6115, %v6114, %v5270
  %vm6198 = vcmask 457728
  %v6200 = vsel %vm6198, %v6117, %v5453
  %v6202 = vsel %vm6198, %v6119, %v5455
  %v6204 = vsel %vm6198, %v6121, %v5457
  %v6206 = vsel %vm6198, %v6123, %v5459
  %v6208 = vsel %vm6198, %v6125, %v5461
  %v6210 = vsel %vm6198, %v6127, %v5463
  %v6212 = vsel %vm6198, %v6129, %v5465
  %v6214 = vsel %vm6198, %v6131, %v5467
  %v6216 = vsel %vm6198, %v6133, %v5469
  %v6218 = vsel %vm6198, %v6135, %v5471
  %v6220 = vsel %vm6198, %v6137, %v5473
  %v6222 = vsel %vm6198, %v6139, %v5475
  %v6224 = vsel %vm6198, %v6141, %v5477
  %v6226 = vsel %vm6198, %v6143, %v5479
  %v6228 = vsel %vm6198, %v6145, %v5481
  %v6230 = vsel %vm6198, %v6147, %v5483
  %v6232 = vsel %vm6198, %v6149, %v5485
  %v6234 = vsel %vm6198, %v6151, %v5487
  %v6236 = vsel %vm6198, %v6153, %v5489
  %v6238 = vsel %vm6198, %v6155, %v5491
  %v6240 = vsel %vm6198, %v6157, %v5493
  %v6242 = vsel %vm6198, %v6159, %v5495
  %v6244 = vsel %vm6198, %v6161, %v5497
  %v6246 = vsel %vm6198, %v6163, %v5499
  %v6248 = vsel %vm6198, %v6165, %v5501
  %v6250 = vsel %vm6198, %v6167, %v5503
  %v6252 = vsel %vm6198, %v6169, %v5505
  %v6254 = vsel %vm6198, %v6171, %v5507
  %v6256 = vsel %vm6198, %v6173, %v5509
  %v6258 = vsel %vm6198, %v6175, %v5511
  %v6260 = vsel %vm6198, %v6177, %v5513
  %v6262 = vsel %vm6198, %v6179, %v5515
  %v6264 = vsel %vm6198, %v6181, %v5517
  %v6266 = vsel %vm6198, %v6183, %v5519
  %v6268 = vsel %vm6198, %v6185, %v5521
  %v6270 = vsel %vm6198, %v6187, %v5523
  %v6272 = vsel %vm6198, %v6189, %v5525
  %v6274 = vsel %vm6198, %v6191, %v5527
  %v6276 = vsel %vm6198, %v6193, %v5529
  %v6278 = vsel %vm6198, %v6195, %v5531
  %v6280 = vsel %vm6198, %v6197, %v5533
  %vm6281 = vcmask 523264
  %v6283 = vsel %vm6281, %v6200, %v5619
  %v6285 = vsel %vm6281, %v6202, %v5621
  %v6287 = vsel %vm6281, %v6204, %v5623
  %v6289 = vsel %vm6281, %v6206, %v5625
  %v6291 = vsel %vm6281, %v6208, %v5627
  %v6293 = vsel %vm6281, %v6210, %v5629
  %v6295 = vsel %vm6281, %v6212, %v5631
  %v6297 = vsel %vm6281, %v6214, %v5633
  %v6299 = vsel %vm6281, %v6216, %v5635
  %v6301 = vsel %vm6281, %v6218, %v5637
  %v6303 = vsel %vm6281, %v6220, %v5639
  %v6305 = vsel %vm6281, %v6222, %v5641
  %v6307 = vsel %vm6281, %v6224, %v5643
  %v6309 = vsel %vm6281, %v6226, %v5645
  %v6311 = vsel %vm6281, %v6228, %v5647
  %v6313 = vsel %vm6281, %v6230, %v5649
  %v6315 = vsel %vm6281, %v6232, %v5651
  %v6317 = vsel %vm6281, %v6234, %v5653
  %v6319 = vsel %vm6281, %v6236, %v5655
  %v6321 = vsel %vm6281, %v6238, %v5657
  %v6323 = vsel %vm6281, %v6240, %v5659
  %v6325 = vsel %vm6281, %v6242, %v5661
  %v6327 = vsel %vm6281, %v6244, %v5663
  %v6329 = vsel %vm6281, %v6246, %v5665
  %v6331 = vsel %vm6281, %v6248, %v5667
  %v6333 = vsel %vm6281, %v6250, %v5669
  %v6335 = vsel %vm6281, %v6252, %v5671
  %v6337 = vsel %vm6281, %v6254, %v5673
  %v6339 = vsel %vm6281, %v6256, %v5675
  %v6341 = vsel %vm6281, %v6258, %v5677
  %v6343 = vsel %vm6281, %v6260, %v5679
  %v6345 = vsel %vm6281, %v6262, %v5681
  %v6347 = vsel %vm6281, %v6264, %v5683
  %v6349 = vsel %vm6281, %v6266, %v5685
  %v6351 = vsel %vm6281, %v6268, %v5687
  %v6353 = vsel %vm6281, %v6270, %v5689
  %v6355 = vsel %vm6281, %v6272, %v5691
  %v6357 = vsel %vm6281, %v6274, %v5693
  %v6359 = vsel %vm6281, %v6276, %v5695
  %v6361 = vsel %vm6281, %v6278, %v5697
  %v6363 = vsel %vm6281, %v6280, %v5699
  %v6364 = vld [vmem:[%s3] sm:$0xf]
  %v6365 = vld [vmem:[%s3 + $0x4] sm:$0xf]
  %v6366 = vld [vmem:[%s3 + $0x8] sm:$0xf]
  %v6367 = vld [vmem:[%s3 + $0xc] sm:$0xf]
  %v6368 = vld [vmem:[%s3 + $0x10] sm:$0xf]
  %v6369 = vld [vmem:[%s3 + $0x14] sm:$0xf]
  %v6370 = vld [vmem:[%s3 + $0x18] sm:$0xf]
  %v6371 = vld [vmem:[%s3 + $0x1c] sm:$0xf]
  %v6372 = vld [vmem:[%s3 + $0x20] sm:$0xf]
  %v6382 = vunpack.c.l.b16 %v6364
  %v6383 = vunpack.c.l.b16 %v6365
  %v6384 = vunpack.c.l.b16 %v6366
  %v6385 = vunpack.c.l.b16 %v6367
  %v6386 = vunpack.c.l.b16 %v6368
  %v6387 = vunpack.c.l.b16 %v6369
  %v6388 = vunpack.c.l.b16 %v6370
  %v6389 = vunpack.c.l.b16 %v6371
  %v6390 = vunpack.c.l.b16 %v6372
  %v6391 = vpack.c.b16 %v6383, %v6382
  %v6392 = vpack.c.b16 %v6385, %v6384
  %v6393 = vpack.c.b16 %v6387, %v6386
  %v6394 = vpack.c.b16 %v6389, %v6388
  %v6395 = vpack.c.b16 %v6390, %v6390
  %vm6400 = vcmask 588800
  %v6401 = vsel %vm6400, %v6283, 0
  %v6403 = vsel %vm6400, %v6285, 0
  %v6405 = vsel %vm6400, %v6287, 0
  %v6407 = vsel %vm6400, %v6289, 0
  %v6409 = vsel %vm6400, %v6291, 0
  %v6411 = vsel %vm6400, %v6293, 0
  %v6413 = vsel %vm6400, %v6295, 0
  %v6415 = vsel %vm6400, %v6297, 0
  %v6417 = vsel %vm6400, %v6299, 0
  %v6419 = vsel %vm6400, %v6301, 0
  %v6421 = vsel %vm6400, %v6303, 0
  %v6423 = vsel %vm6400, %v6305, 0
  %v6425 = vsel %vm6400, %v6307, 0
  %v6427 = vsel %vm6400, %v6309, 0
  %v6429 = vsel %vm6400, %v6311, 0
  %v6431 = vsel %vm6400, %v6313, 0
  %v6433 = vsel %vm6400, %v6315, 0
  %v6435 = vsel %vm6400, %v6317, 0
  %v6437 = vsel %vm6400, %v6319, 0
  %v6439 = vsel %vm6400, %v6321, 0
  %v6441 = vsel %vm6400, %v6323, 0
  %v6443 = vsel %vm6400, %v6325, 0
  %v6445 = vsel %vm6400, %v6327, 0
  %v6447 = vsel %vm6400, %v6329, 0
  %v6449 = vsel %vm6400, %v6331, 0
  %v6451 = vsel %vm6400, %v6333, 0
  %v6453 = vsel %vm6400, %v6335, 0
  %v6455 = vsel %vm6400, %v6337, 0
  %v6457 = vsel %vm6400, %v6339, 0
  %v6459 = vsel %vm6400, %v6341, 0
  %v6461 = vsel %vm6400, %v6343, 0
  %v6463 = vsel %vm6400, %v6345, 0
  %v6465 = vsel %vm6400, %v6347, 0
  %v6467 = vsel %vm6400, %v6349, 0
  %v6469 = vsel %vm6400, %v6351, 0
  %v6471 = vsel %vm6400, %v6353, 0
  %v6473 = vsel %vm6400, %v6355, 0
  %v6475 = vsel %vm6400, %v6357, 0
  %v6477 = vsel %vm6400, %v6359, 0
  %v6479 = vsel %vm6400, %v6361, 0
  %v6481 = vsel %vm6400, %v6363, 0
  %vm6483 = vcmask 1043456
  %v6485 = vsel %vm6483, %v6395, 0
  %6487 = vmatprep.subr.bf16.mxu0 0
  %6488 = vmatpush1.bf16.msra.mxu0 0
  %6489 = vmatprep.subr.bf16.mxu0 0
  %6490 = vmatpush1.bf16.msra.mxu0 0
  %6491 = vmatprep.subr.bf16.mxu0 0
  %6492 = vmatpush1.bf16.msra.mxu0 0
  %6493 = vmatprep.subr.bf16.mxu0 0
  %6494 = vmatpush1.bf16.msra.mxu0 %v6485
  %6495 = vmatprep.subr.bf16.mxu0 0
  %6496 = vmatpush1.bf16.msra.mxu0 %v6394
  %6497 = vmatprep.subr.bf16.mxu0 0
  %6498 = vmatpush1.bf16.msra.mxu0 %v6393
  %6499 = vmatprep.subr.bf16.mxu0 0
  %6500 = vmatpush1.bf16.msra.mxu0 %v6392
  %6501 = vmatprep.subr.bf16.mxu0 0
  %6502 = vmatpush1.bf16.msra.mxu0 %v6391
  %6503 = vmatprep.subr.bf16.mxu0 0
  %6504 = vmatpush2.bf16.msra.mxu0 0
  %6505 = vmatprep.subr.bf16.mxu0 0
  %6506 = vmatpush2.bf16.msra.mxu0 0
  %6507 = vmatprep.subr.bf16.mxu0 0
  %6508 = vmatpush2.bf16.msra.mxu0 0
  %6509 = vmatprep.subr.bf16.mxu0 0
  %6510 = vmatpush2.bf16.msra.mxu0 0
  %6511 = vmatprep.subr.bf16.mxu0 0
  %6512 = vmatpush2.bf16.msra.mxu0 0
  %6513 = vmatprep.subr.bf16.mxu0 0
  %6514 = vmatpush2.bf16.msra.mxu0 0
  %6515 = vmatprep.subr.bf16.mxu0 0
  %6516 = vmatpush2.bf16.msra.mxu0 0
  %6517 = vmatprep.subr.bf16.mxu0 0
  %6518 = vmatpush2.bf16.msra.mxu0 0
  %6519 = vmatprep.mubr.bf16.mxu0 0
  %6520 = vmatmul.mubr.bf16.gmra.mxu0 %v6401
  %v6521 = vpop.f32.mrf.mxu0
  %v6522 = vadd.f32 0.0, %v6521
  %v6523 = vpop.f32.mrf.mxu0
  %v6524 = vpop.f32.mrf.mxu0
  %v6525 = vadd.f32 0.0, %v6524
  %v6526 = vpop.f32.mrf.mxu0
  %6527 = vmatprep.mubr.bf16.mxu0 0
  %6528 = vmatmul.mubr.bf16.gmra.mxu0 %v6403
  %v6529 = vpop.f32.mrf.mxu0
  %v6530 = vadd.f32 0.0, %v6529
  %v6531 = vpop.f32.mrf.mxu0
  %v6532 = vpop.f32.mrf.mxu0
  %v6533 = vadd.f32 0.0, %v6532
  %v6534 = vpop.f32.mrf.mxu0
  %6535 = vmatprep.mubr.bf16.mxu0 0
  %6536 = vmatmul.mubr.bf16.gmra.mxu0 %v6405
  %v6537 = vpop.f32.mrf.mxu0
  %v6538 = vadd.f32 0.0, %v6537
  %v6539 = vpop.f32.mrf.mxu0
  %v6540 = vpop.f32.mrf.mxu0
  %v6541 = vadd.f32 0.0, %v6540
  %v6542 = vpop.f32.mrf.mxu0
  %6543 = vmatprep.mubr.bf16.mxu0 0
  %6544 = vmatmul.mubr.bf16.gmra.mxu0 %v6407
  %v6545 = vpop.f32.mrf.mxu0
  %v6546 = vadd.f32 0.0, %v6545
  %v6547 = vpop.f32.mrf.mxu0
  %v6548 = vpop.f32.mrf.mxu0
  %v6549 = vadd.f32 0.0, %v6548
  %v6550 = vpop.f32.mrf.mxu0
  %6551 = vmatprep.mubr.bf16.mxu0 0
  %6552 = vmatmul.mubr.bf16.gmra.mxu0 %v6409
  %v6553 = vpop.f32.mrf.mxu0
  %v6554 = vadd.f32 0.0, %v6553
  %v6555 = vpop.f32.mrf.mxu0
  %v6556 = vpop.f32.mrf.mxu0
  %v6557 = vadd.f32 0.0, %v6556
  %v6558 = vpop.f32.mrf.mxu0
  %6559 = vmatprep.mubr.bf16.mxu0 0
  %6560 = vmatmul.mubr.bf16.gmra.mxu0 %v6411
  %v6561 = vpop.f32.mrf.mxu0
  %v6562 = vadd.f32 0.0, %v6561
  %v6563 = vpop.f32.mrf.mxu0
  %v6564 = vpop.f32.mrf.mxu0
  %v6565 = vadd.f32 0.0, %v6564
  %v6566 = vpop.f32.mrf.mxu0
  %6567 = vmatprep.mubr.bf16.mxu0 0
  %6568 = vmatmul.mubr.bf16.gmra.mxu0 %v6413
  %v6569 = vpop.f32.mrf.mxu0
  %v6570 = vadd.f32 0.0, %v6569
  %v6571 = vpop.f32.mrf.mxu0
  %v6572 = vpop.f32.mrf.mxu0
  %v6573 = vadd.f32 0.0, %v6572
  %v6574 = vpop.f32.mrf.mxu0
  %6575 = vmatprep.mubr.bf16.mxu0 0
  %6576 = vmatmul.mubr.bf16.gmra.mxu0 %v6415
  %v6577 = vpop.f32.mrf.mxu0
  %v6578 = vadd.f32 0.0, %v6577
  %v6579 = vpop.f32.mrf.mxu0
  %v6580 = vpop.f32.mrf.mxu0
  %v6581 = vadd.f32 0.0, %v6580
  %v6582 = vpop.f32.mrf.mxu0
  %6583 = vmatprep.mubr.bf16.mxu0 0
  %6584 = vmatmul.mubr.bf16.gmra.mxu0 %v6417
  %v6585 = vpop.f32.mrf.mxu0
  %v6586 = vadd.f32 0.0, %v6585
  %v6587 = vpop.f32.mrf.mxu0
  %v6588 = vpop.f32.mrf.mxu0
  %v6589 = vadd.f32 0.0, %v6588
  %v6590 = vpop.f32.mrf.mxu0
  %6591 = vmatprep.mubr.bf16.mxu0 0
  %6592 = vmatmul.mubr.bf16.gmra.mxu0 %v6419
  %v6593 = vpop.f32.mrf.mxu0
  %v6594 = vadd.f32 0.0, %v6593
  %v6595 = vpop.f32.mrf.mxu0
  %v6596 = vpop.f32.mrf.mxu0
  %v6597 = vadd.f32 0.0, %v6596
  %v6598 = vpop.f32.mrf.mxu0
  %6599 = vmatprep.mubr.bf16.mxu0 0
  %6600 = vmatmul.mubr.bf16.gmra.mxu0 %v6421
  %v6601 = vpop.f32.mrf.mxu0
  %v6602 = vadd.f32 0.0, %v6601
  %v6603 = vpop.f32.mrf.mxu0
  %v6604 = vpop.f32.mrf.mxu0
  %v6605 = vadd.f32 0.0, %v6604
  %v6606 = vpop.f32.mrf.mxu0
  %6607 = vmatprep.mubr.bf16.mxu0 0
  %6608 = vmatmul.mubr.bf16.gmra.mxu0 %v6423
  %v6609 = vpop.f32.mrf.mxu0
  %v6610 = vadd.f32 0.0, %v6609
  %v6611 = vpop.f32.mrf.mxu0
  %v6612 = vpop.f32.mrf.mxu0
  %v6613 = vadd.f32 0.0, %v6612
  %v6614 = vpop.f32.mrf.mxu0
  %6615 = vmatprep.mubr.bf16.mxu0 0
  %6616 = vmatmul.mubr.bf16.gmra.mxu0 %v6425
  %v6617 = vpop.f32.mrf.mxu0
  %v6618 = vadd.f32 0.0, %v6617
  %v6619 = vpop.f32.mrf.mxu0
  %v6620 = vpop.f32.mrf.mxu0
  %v6621 = vadd.f32 0.0, %v6620
  %v6622 = vpop.f32.mrf.mxu0
  %6623 = vmatprep.mubr.bf16.mxu0 0
  %6624 = vmatmul.mubr.bf16.gmra.mxu0 %v6427
  %v6625 = vpop.f32.mrf.mxu0
  %v6626 = vadd.f32 0.0, %v6625
  %v6627 = vpop.f32.mrf.mxu0
  %v6628 = vpop.f32.mrf.mxu0
  %v6629 = vadd.f32 0.0, %v6628
  %v6630 = vpop.f32.mrf.mxu0
  %6631 = vmatprep.mubr.bf16.mxu0 0
  %6632 = vmatmul.mubr.bf16.gmra.mxu0 %v6429
  %v6633 = vpop.f32.mrf.mxu0
  %v6634 = vadd.f32 0.0, %v6633
  %v6635 = vpop.f32.mrf.mxu0
  %v6636 = vpop.f32.mrf.mxu0
  %v6637 = vadd.f32 0.0, %v6636
  %v6638 = vpop.f32.mrf.mxu0
  %6639 = vmatprep.mubr.bf16.mxu0 0
  %6640 = vmatmul.mubr.bf16.gmra.mxu0 %v6431
  %v6641 = vpop.f32.mrf.mxu0
  %v6642 = vadd.f32 0.0, %v6641
  %v6643 = vpop.f32.mrf.mxu0
  %v6644 = vpop.f32.mrf.mxu0
  %v6645 = vadd.f32 0.0, %v6644
  %v6646 = vpop.f32.mrf.mxu0
  %6647 = vmatprep.mubr.bf16.mxu0 0
  %6648 = vmatmul.mubr.bf16.gmra.mxu0 %v6433
  %v6649 = vpop.f32.mrf.mxu0
  %v6650 = vadd.f32 0.0, %v6649
  %v6651 = vpop.f32.mrf.mxu0
  %v6652 = vpop.f32.mrf.mxu0
  %v6653 = vadd.f32 0.0, %v6652
  %v6654 = vpop.f32.mrf.mxu0
  %6655 = vmatprep.mubr.bf16.mxu0 0
  %6656 = vmatmul.mubr.bf16.gmra.mxu0 %v6435
  %v6657 = vpop.f32.mrf.mxu0
  %v6658 = vadd.f32 0.0, %v6657
  %v6659 = vpop.f32.mrf.mxu0
  %v6660 = vpop.f32.mrf.mxu0
  %v6661 = vadd.f32 0.0, %v6660
  %v6662 = vpop.f32.mrf.mxu0
  %6663 = vmatprep.mubr.bf16.mxu0 0
  %6664 = vmatmul.mubr.bf16.gmra.mxu0 %v6437
  %v6665 = vpop.f32.mrf.mxu0
  %v6666 = vadd.f32 0.0, %v6665
  %v6667 = vpop.f32.mrf.mxu0
  %v6668 = vpop.f32.mrf.mxu0
  %v6669 = vadd.f32 0.0, %v6668
  %v6670 = vpop.f32.mrf.mxu0
  %6671 = vmatprep.mubr.bf16.mxu0 0
  %6672 = vmatmul.mubr.bf16.gmra.mxu0 %v6439
  %v6673 = vpop.f32.mrf.mxu0
  %v6674 = vadd.f32 0.0, %v6673
  %v6675 = vpop.f32.mrf.mxu0
  %v6676 = vpop.f32.mrf.mxu0
  %v6677 = vadd.f32 0.0, %v6676
  %v6678 = vpop.f32.mrf.mxu0
  %6679 = vmatprep.mubr.bf16.mxu0 0
  %6680 = vmatmul.mubr.bf16.gmra.mxu0 %v6441
  %v6681 = vpop.f32.mrf.mxu0
  %v6682 = vadd.f32 0.0, %v6681
  %v6683 = vpop.f32.mrf.mxu0
  %v6684 = vpop.f32.mrf.mxu0
  %v6685 = vadd.f32 0.0, %v6684
  %v6686 = vpop.f32.mrf.mxu0
  %6687 = vmatprep.mubr.bf16.mxu0 0
  %6688 = vmatmul.mubr.bf16.gmra.mxu0 %v6443
  %v6689 = vpop.f32.mrf.mxu0
  %v6690 = vadd.f32 0.0, %v6689
  %v6691 = vpop.f32.mrf.mxu0
  %v6692 = vpop.f32.mrf.mxu0
  %v6693 = vadd.f32 0.0, %v6692
  %v6694 = vpop.f32.mrf.mxu0
  %6695 = vmatprep.mubr.bf16.mxu0 0
  %6696 = vmatmul.mubr.bf16.gmra.mxu0 %v6445
  %v6697 = vpop.f32.mrf.mxu0
  %v6698 = vadd.f32 0.0, %v6697
  %v6699 = vpop.f32.mrf.mxu0
  %v6700 = vpop.f32.mrf.mxu0
  %v6701 = vadd.f32 0.0, %v6700
  %v6702 = vpop.f32.mrf.mxu0
  %6703 = vmatprep.mubr.bf16.mxu0 0
  %6704 = vmatmul.mubr.bf16.gmra.mxu0 %v6447
  %v6705 = vpop.f32.mrf.mxu0
  %v6706 = vadd.f32 0.0, %v6705
  %v6707 = vpop.f32.mrf.mxu0
  %v6708 = vpop.f32.mrf.mxu0
  %v6709 = vadd.f32 0.0, %v6708
  %v6710 = vpop.f32.mrf.mxu0
  %6711 = vmatprep.mubr.bf16.mxu0 0
  %6712 = vmatmul.mubr.bf16.gmra.mxu0 %v6449
  %v6713 = vpop.f32.mrf.mxu0
  %v6714 = vadd.f32 0.0, %v6713
  %v6715 = vpop.f32.mrf.mxu0
  %v6716 = vpop.f32.mrf.mxu0
  %v6717 = vadd.f32 0.0, %v6716
  %v6718 = vpop.f32.mrf.mxu0
  %6719 = vmatprep.mubr.bf16.mxu0 0
  %6720 = vmatmul.mubr.bf16.gmra.mxu0 %v6451
  %v6721 = vpop.f32.mrf.mxu0
  %v6722 = vadd.f32 0.0, %v6721
  %v6723 = vpop.f32.mrf.mxu0
  %v6724 = vpop.f32.mrf.mxu0
  %v6725 = vadd.f32 0.0, %v6724
  %v6726 = vpop.f32.mrf.mxu0
  %6727 = vmatprep.mubr.bf16.mxu0 0
  %6728 = vmatmul.mubr.bf16.gmra.mxu0 %v6453
  %v6729 = vpop.f32.mrf.mxu0
  %v6730 = vadd.f32 0.0, %v6729
  %v6731 = vpop.f32.mrf.mxu0
  %v6732 = vpop.f32.mrf.mxu0
  %v6733 = vadd.f32 0.0, %v6732
  %v6734 = vpop.f32.mrf.mxu0
  %6735 = vmatprep.mubr.bf16.mxu0 0
  %6736 = vmatmul.mubr.bf16.gmra.mxu0 %v6455
  %v6737 = vpop.f32.mrf.mxu0
  %v6738 = vadd.f32 0.0, %v6737
  %v6739 = vpop.f32.mrf.mxu0
  %v6740 = vpop.f32.mrf.mxu0
  %v6741 = vadd.f32 0.0, %v6740
  %v6742 = vpop.f32.mrf.mxu0
  %6743 = vmatprep.mubr.bf16.mxu0 0
  %6744 = vmatmul.mubr.bf16.gmra.mxu0 %v6457
  %v6745 = vpop.f32.mrf.mxu0
  %v6746 = vadd.f32 0.0, %v6745
  %v6747 = vpop.f32.mrf.mxu0
  %v6748 = vpop.f32.mrf.mxu0
  %v6749 = vadd.f32 0.0, %v6748
  %v6750 = vpop.f32.mrf.mxu0
  %6751 = vmatprep.mubr.bf16.mxu0 0
  %6752 = vmatmul.mubr.bf16.gmra.mxu0 %v6459
  %v6753 = vpop.f32.mrf.mxu0
  %v6754 = vadd.f32 0.0, %v6753
  %v6755 = vpop.f32.mrf.mxu0
  %v6756 = vpop.f32.mrf.mxu0
  %v6757 = vadd.f32 0.0, %v6756
  %v6758 = vpop.f32.mrf.mxu0
  %6759 = vmatprep.mubr.bf16.mxu0 0
  %6760 = vmatmul.mubr.bf16.gmra.mxu0 %v6461
  %v6761 = vpop.f32.mrf.mxu0
  %v6762 = vadd.f32 0.0, %v6761
  %v6763 = vpop.f32.mrf.mxu0
  %v6764 = vpop.f32.mrf.mxu0
  %v6765 = vadd.f32 0.0, %v6764
  %v6766 = vpop.f32.mrf.mxu0
  %6767 = vmatprep.mubr.bf16.mxu0 0
  %6768 = vmatmul.mubr.bf16.gmra.mxu0 %v6463
  %v6769 = vpop.f32.mrf.mxu0
  %v6770 = vadd.f32 0.0, %v6769
  %v6771 = vpop.f32.mrf.mxu0
  %v6772 = vpop.f32.mrf.mxu0
  %v6773 = vadd.f32 0.0, %v6772
  %v6774 = vpop.f32.mrf.mxu0
  %6775 = vmatprep.mubr.bf16.mxu0 0
  %6776 = vmatmul.mubr.bf16.gmra.mxu0 %v6465
  %v6777 = vpop.f32.mrf.mxu0
  %v6778 = vadd.f32 0.0, %v6777
  %v6779 = vpop.f32.mrf.mxu0
  %v6780 = vpop.f32.mrf.mxu0
  %v6781 = vadd.f32 0.0, %v6780
  %v6782 = vpop.f32.mrf.mxu0
  %6783 = vmatprep.mubr.bf16.mxu0 0
  %6784 = vmatmul.mubr.bf16.gmra.mxu0 %v6467
  %v6785 = vpop.f32.mrf.mxu0
  %v6786 = vadd.f32 0.0, %v6785
  %v6787 = vpop.f32.mrf.mxu0
  %v6788 = vpop.f32.mrf.mxu0
  %v6789 = vadd.f32 0.0, %v6788
  %v6790 = vpop.f32.mrf.mxu0
  %6791 = vmatprep.mubr.bf16.mxu0 0
  %6792 = vmatmul.mubr.bf16.gmra.mxu0 %v6469
  %v6793 = vpop.f32.mrf.mxu0
  %v6794 = vadd.f32 0.0, %v6793
  %v6795 = vpop.f32.mrf.mxu0
  %v6796 = vpop.f32.mrf.mxu0
  %v6797 = vadd.f32 0.0, %v6796
  %v6798 = vpop.f32.mrf.mxu0
  %6799 = vmatprep.mubr.bf16.mxu0 0
  %6800 = vmatmul.mubr.bf16.gmra.mxu0 %v6471
  %v6801 = vpop.f32.mrf.mxu0
  %v6802 = vadd.f32 0.0, %v6801
  %v6803 = vpop.f32.mrf.mxu0
  %v6804 = vpop.f32.mrf.mxu0
  %v6805 = vadd.f32 0.0, %v6804
  %v6806 = vpop.f32.mrf.mxu0
  %6807 = vmatprep.mubr.bf16.mxu0 0
  %6808 = vmatmul.mubr.bf16.gmra.mxu0 %v6473
  %v6809 = vpop.f32.mrf.mxu0
  %v6810 = vadd.f32 0.0, %v6809
  %v6811 = vpop.f32.mrf.mxu0
  %v6812 = vpop.f32.mrf.mxu0
  %v6813 = vadd.f32 0.0, %v6812
  %v6814 = vpop.f32.mrf.mxu0
  %6815 = vmatprep.mubr.bf16.mxu0 0
  %6816 = vmatmul.mubr.bf16.gmra.mxu0 %v6475
  %v6817 = vpop.f32.mrf.mxu0
  %v6818 = vadd.f32 0.0, %v6817
  %v6819 = vpop.f32.mrf.mxu0
  %v6820 = vpop.f32.mrf.mxu0
  %v6821 = vadd.f32 0.0, %v6820
  %v6822 = vpop.f32.mrf.mxu0
  %6823 = vmatprep.mubr.bf16.mxu0 0
  %6824 = vmatmul.mubr.bf16.gmra.mxu0 %v6477
  %v6825 = vpop.f32.mrf.mxu0
  %v6826 = vadd.f32 0.0, %v6825
  %v6827 = vpop.f32.mrf.mxu0
  %v6828 = vpop.f32.mrf.mxu0
  %v6829 = vadd.f32 0.0, %v6828
  %v6830 = vpop.f32.mrf.mxu0
  %6831 = vmatprep.mubr.bf16.mxu0 0
  %6832 = vmatmul.mubr.bf16.gmra.mxu0 %v6479
  %v6833 = vpop.f32.mrf.mxu0
  %v6834 = vadd.f32 0.0, %v6833
  %v6835 = vpop.f32.mrf.mxu0
  %v6836 = vpop.f32.mrf.mxu0
  %v6837 = vadd.f32 0.0, %v6836
  %v6838 = vpop.f32.mrf.mxu0
  %6839 = vmatprep.mubr.bf16.mxu0 0
  %6840 = vmatmul.mubr.bf16.gmra.mxu0 %v6481
  %v6841 = vpop.f32.mrf.mxu0
  %v6842 = vadd.f32 0.0, %v6841
  %v6843 = vpop.f32.mrf.mxu0
  %v6844 = vpop.f32.mrf.mxu0
  %v6845 = vpop.f32.mrf.mxu0
  %6846 = vdwg.mxu0
  %6847 = vst.msk [vmem:[#allocation3] sm:$0xff] %vm5784, %v6522
  %6848 = vst.msk [vmem:[#allocation3 + $0x8] sm:$0xff] %vm5784, %v6525
  %6849 = vst.msk [vmem:[#allocation3 + $0x10] sm:$0xff] %vm5784, %v6530
  %6850 = vst.msk [vmem:[#allocation3 + $0x18] sm:$0xff] %vm5784, %v6533
  %6851 = vst.msk [vmem:[#allocation3 + $0x20] sm:$0xff] %vm5784, %v6538
  %6852 = vst.msk [vmem:[#allocation3 + $0x28] sm:$0xff] %vm5784, %v6541
  %6853 = vst.msk [vmem:[#allocation3 + $0x30] sm:$0xff] %vm5784, %v6546
  %6854 = vst.msk [vmem:[#allocation3 + $0x38] sm:$0xff] %vm5784, %v6549
  %6855 = vst.msk [vmem:[#allocation3 + $0x40] sm:$0xff] %vm5784, %v6554
  %6856 = vst.msk [vmem:[#allocation3 + $0x48] sm:$0xff] %vm5784, %v6557
  %6857 = vst.msk [vmem:[#allocation3 + $0x50] sm:$0xff] %vm5784, %v6562
  %6858 = vst.msk [vmem:[#allocation3 + $0x58] sm:$0xff] %vm5784, %v6565
  %6859 = vst.msk [vmem:[#allocation3 + $0x60] sm:$0xff] %vm5784, %v6570
  %6860 = vst.msk [vmem:[#allocation3 + $0x68] sm:$0xff] %vm5784, %v6573
  %6861 = vst.msk [vmem:[#allocation3 + $0x70] sm:$0xff] %vm5784, %v6578
  %6862 = vst.msk [vmem:[#allocation3 + $0x78] sm:$0xff] %vm5784, %v6581
  %6863 = vst.msk [vmem:[#allocation3 + $0x80] sm:$0xff] %vm5784, %v6586
  %6864 = vst.msk [vmem:[#allocation3 + $0x88] sm:$0xff] %vm5784, %v6589
  %6865 = vst.msk [vmem:[#allocation3 + $0x90] sm:$0xff] %vm5784, %v6594
  %6866 = vst.msk [vmem:[#allocation3 + $0x98] sm:$0xff] %vm5784, %v6597
  %6867 = vst.msk [vmem:[#allocation3 + $0xa0] sm:$0xff] %vm5784, %v6602
  %6868 = vst.msk [vmem:[#allocation3 + $0xa8] sm:$0xff] %vm5784, %v6605
  %6869 = vst.msk [vmem:[#allocation3 + $0xb0] sm:$0xff] %vm5784, %v6610
  %6870 = vst.msk [vmem:[#allocation3 + $0xb8] sm:$0xff] %vm5784, %v6613
  %6871 = vst.msk [vmem:[#allocation3 + $0xc0] sm:$0xff] %vm5784, %v6618
  %6872 = vst.msk [vmem:[#allocation3 + $0xc8] sm:$0xff] %vm5784, %v6621
  %6873 = vst.msk [vmem:[#allocation3 + $0xd0] sm:$0xff] %vm5784, %v6626
  %6874 = vst.msk [vmem:[#allocation3 + $0xd8] sm:$0xff] %vm5784, %v6629
  %6875 = vst.msk [vmem:[#allocation3 + $0xe0] sm:$0xff] %vm5784, %v6634
  %6876 = vst.msk [vmem:[#allocation3 + $0xe8] sm:$0xff] %vm5784, %v6637
  %6877 = vst.msk [vmem:[#allocation3 + $0xf0] sm:$0xff] %vm5784, %v6642
  %6878 = vst.msk [vmem:[#allocation3 + $0xf8] sm:$0xff] %vm5784, %v6645
  %6879 = vst.msk [vmem:[#allocation3 + $0x100] sm:$0xff] %vm5784, %v6650
  %6880 = vst.msk [vmem:[#allocation3 + $0x108] sm:$0xff] %vm5784, %v6653
  %6881 = vst.msk [vmem:[#allocation3 + $0x110] sm:$0xff] %vm5784, %v6658
  %6882 = vst.msk [vmem:[#allocation3 + $0x118] sm:$0xff] %vm5784, %v6661
  %6883 = vst.msk [vmem:[#allocation3 + $0x120] sm:$0xff] %vm5784, %v6666
  %6884 = vst.msk [vmem:[#allocation3 + $0x128] sm:$0xff] %vm5784, %v6669
  %6885 = vst.msk [vmem:[#allocation3 + $0x130] sm:$0xff] %vm5784, %v6674
  %6886 = vst.msk [vmem:[#allocation3 + $0x138] sm:$0xff] %vm5784, %v6677
  %6887 = vst.msk [vmem:[#allocation3 + $0x140] sm:$0xff] %vm5784, %v6682
  %6888 = vst.msk [vmem:[#allocation3 + $0x148] sm:$0xff] %vm5784, %v6685
  %6889 = vst.msk [vmem:[#allocation3 + $0x150] sm:$0xff] %vm5784, %v6690
  %6890 = vst.msk [vmem:[#allocation3 + $0x158] sm:$0xff] %vm5784, %v6693
  %6891 = vst.msk [vmem:[#allocation3 + $0x160] sm:$0xff] %vm5784, %v6698
  %6892 = vst.msk [vmem:[#allocation3 + $0x168] sm:$0xff] %vm5784, %v6701
  %6893 = vst.msk [vmem:[#allocation3 + $0x170] sm:$0xff] %vm5784, %v6706
  %6894 = vst.msk [vmem:[#allocation3 + $0x178] sm:$0xff] %vm5784, %v6709
  %6895 = vst.msk [vmem:[#allocation3 + $0x180] sm:$0xff] %vm5784, %v6714
  %6896 = vst.msk [vmem:[#allocation3 + $0x188] sm:$0xff] %vm5784, %v6717
  %6897 = vst.msk [vmem:[#allocation3 + $0x190] sm:$0xff] %vm5784, %v6722
  %6898 = vst.msk [vmem:[#allocation3 + $0x198] sm:$0xff] %vm5784, %v6725
  %6899 = vst.msk [vmem:[#allocation3 + $0x1a0] sm:$0xff] %vm5784, %v6730
  %6900 = vst.msk [vmem:[#allocation3 + $0x1a8] sm:$0xff] %vm5784, %v6733
  %6901 = vst.msk [vmem:[#allocation3 + $0x1b0] sm:$0xff] %vm5784, %v6738
  %6902 = vst.msk [vmem:[#allocation3 + $0x1b8] sm:$0xff] %vm5784, %v6741
  %6903 = vst.msk [vmem:[#allocation3 + $0x1c0] sm:$0xff] %vm5784, %v6746
  %6904 = vst.msk [vmem:[#allocation3 + $0x1c8] sm:$0xff] %vm5784, %v6749
  %6905 = vst.msk [vmem:[#allocation3 + $0x1d0] sm:$0xff] %vm5784, %v6754
  %6906 = vst.msk [vmem:[#allocation3 + $0x1d8] sm:$0xff] %vm5784, %v6757
  %6907 = vst.msk [vmem:[#allocation3 + $0x1e0] sm:$0xff] %vm5784, %v6762
  %6908 = vst.msk [vmem:[#allocation3 + $0x1e8] sm:$0xff] %vm5784, %v6765
  %6909 = vst.msk [vmem:[#allocation3 + $0x1f0] sm:$0xff] %vm5784, %v6770
  %6910 = vst.msk [vmem:[#allocation3 + $0x1f8] sm:$0xff] %vm5784, %v6773
  %6911 = vst.msk [vmem:[#allocation3 + $0x200] sm:$0xff] %vm5784, %v6778
  %6912 = vst.msk [vmem:[#allocation3 + $0x208] sm:$0xff] %vm5784, %v6781
  %6913 = vst.msk [vmem:[#allocation3 + $0x210] sm:$0xff] %vm5784, %v6786
  %6914 = vst.msk [vmem:[#allocation3 + $0x218] sm:$0xff] %vm5784, %v6789
  %6915 = vst.msk [vmem:[#allocation3 + $0x220] sm:$0xff] %vm5784, %v6794
  %6916 = vst.msk [vmem:[#allocation3 + $0x228] sm:$0xff] %vm5784, %v6797
  %6917 = vst.msk [vmem:[#allocation3 + $0x230] sm:$0xff] %vm5784, %v6802
  %6918 = vst.msk [vmem:[#allocation3 + $0x238] sm:$0xff] %vm5784, %v6805
  %6919 = vst.msk [vmem:[#allocation3 + $0x240] sm:$0xff] %vm5784, %v6810
  %6920 = vst.msk [vmem:[#allocation3 + $0x248] sm:$0xff] %vm5784, %v6813
  %6921 = vst.msk [vmem:[#allocation3 + $0x250] sm:$0xff] %vm5784, %v6818
  %6922 = vst.msk [vmem:[#allocation3 + $0x258] sm:$0xff] %vm5784, %v6821
  %6923 = vst.msk [vmem:[#allocation3 + $0x260] sm:$0xff] %vm5784, %v6826
  %6924 = vst.msk [vmem:[#allocation3 + $0x268] sm:$0xff] %vm5784, %v6829
  %6925 = vst.msk [vmem:[#allocation3 + $0x270] sm:$0xff] %vm5784, %v6834
  %6926 = vst.msk [vmem:[#allocation3 + $0x278] sm:$0xff] %vm5784, %v6837
  %6927 = vst.msk [vmem:[#allocation3 + $0x280] sm:$0xff] %vm5784, %v6842
  %v6928 = vld [vmem:[%s4] sm:$0xff]
  %v6929 = vld [vmem:[%s4 + $0x8] sm:$0xff]
  %v6930 = vld [vmem:[%s4 + $0x10] sm:$0xff]
  %v6931 = vld [vmem:[%s4 + $0x18] sm:$0xff]
  %v6932 = vld [vmem:[%s4 + $0x20] sm:$0xff]
  %v6933 = vld [vmem:[%s4 + $0x28] sm:$0xff]
  %v6934 = vld [vmem:[%s4 + $0x30] sm:$0xff]
  %v6935 = vld [vmem:[%s4 + $0x38] sm:$0xff]
  %v6936 = vld [vmem:[%s4 + $0x40] sm:$0xff]
  %v6937 = vld [vmem:[%s4 + $0x48] sm:$0xff]
  %v6938 = vld [vmem:[%s4 + $0x50] sm:$0xff]
  %v6939 = vld [vmem:[%s4 + $0x58] sm:$0xff]
  %v6940 = vld [vmem:[%s4 + $0x60] sm:$0xff]
  %v6941 = vld [vmem:[%s4 + $0x68] sm:$0xff]
  %v6942 = vld [vmem:[%s4 + $0x70] sm:$0xff]
  %v6943 = vld [vmem:[%s4 + $0x78] sm:$0xff]
  %v6944 = vld [vmem:[%s4 + $0x80] sm:$0xff]
  %v6945 = vld [vmem:[%s4 + $0x88] sm:$0xff]
  %v6946 = vld [vmem:[%s4 + $0x90] sm:$0xff]
  %v6947 = vld [vmem:[%s4 + $0x98] sm:$0xff]
  %v6948 = vld [vmem:[%s4 + $0xa0] sm:$0xff]
  %v6949 = vld [vmem:[%s4 + $0xa8] sm:$0xff]
  %v6950 = vld [vmem:[%s4 + $0xb0] sm:$0xff]
  %v6951 = vld [vmem:[%s4 + $0xb8] sm:$0xff]
  %v6952 = vld [vmem:[%s4 + $0xc0] sm:$0xff]
  %v6953 = vld [vmem:[%s4 + $0xc8] sm:$0xff]
  %v6954 = vld [vmem:[%s4 + $0xd0] sm:$0xff]
  %v6955 = vld [vmem:[%s4 + $0xd8] sm:$0xff]
  %v6956 = vld [vmem:[%s4 + $0xe0] sm:$0xff]
  %v6957 = vld [vmem:[%s4 + $0xe8] sm:$0xff]
  %v6958 = vld [vmem:[%s4 + $0xf0] sm:$0xff]
  %v6959 = vld [vmem:[%s4 + $0xf8] sm:$0xff]
  %v6960 = vld [vmem:[%s4 + $0x100] sm:$0xff]
  %v6961 = vld [vmem:[%s4 + $0x108] sm:$0x3f]
  %v6962 = vld [vmem:[#allocation3] sm:$0xff]
  %v6963 = vld [vmem:[#allocation3 + $0x8] sm:$0xff]
  %v6964 = vld [vmem:[#allocation3 + $0x10] sm:$0xff]
  %v6965 = vld [vmem:[#allocation3 + $0x18] sm:$0xff]
  %v6966 = vld [vmem:[#allocation3 + $0x20] sm:$0xff]
  %v6967 = vld [vmem:[#allocation3 + $0x28] sm:$0xff]
  %v6968 = vld [vmem:[#allocation3 + $0x30] sm:$0xff]
  %v6969 = vld [vmem:[#allocation3 + $0x38] sm:$0xff]
  %v6970 = vld [vmem:[#allocation3 + $0x40] sm:$0xff]
  %v6971 = vld [vmem:[#allocation3 + $0x48] sm:$0xff]
  %v6972 = vld [vmem:[#allocation3 + $0x50] sm:$0xff]
  %v6973 = vld [vmem:[#allocation3 + $0x58] sm:$0xff]
  %v6974 = vld [vmem:[#allocation3 + $0x60] sm:$0xff]
  %v6975 = vld [vmem:[#allocation3 + $0x68] sm:$0xff]
  %v6976 = vld [vmem:[#allocation3 + $0x70] sm:$0xff]
  %v6977 = vld [vmem:[#allocation3 + $0x78] sm:$0xff]
  %v6978 = vld [vmem:[#allocation3 + $0x80] sm:$0xff]
  %v6979 = vld [vmem:[#allocation3 + $0x88] sm:$0xff]
  %v6980 = vld [vmem:[#allocation3 + $0x90] sm:$0xff]
  %v6981 = vld [vmem:[#allocation3 + $0x98] sm:$0xff]
  %v6982 = vld [vmem:[#allocation3 + $0xa0] sm:$0xff]
  %v6983 = vld [vmem:[#allocation3 + $0xa8] sm:$0xff]
  %v6984 = vld [vmem:[#allocation3 + $0xb0] sm:$0xff]
  %v6985 = vld [vmem:[#allocation3 + $0xb8] sm:$0xff]
  %v6986 = vld [vmem:[#allocation3 + $0xc0] sm:$0xff]
  %v6987 = vld [vmem:[#allocation3 + $0xc8] sm:$0xff]
  %v6988 = vld [vmem:[#allocation3 + $0xd0] sm:$0xff]
  %v6989 = vld [vmem:[#allocation3 + $0xd8] sm:$0xff]
  %v6990 = vld [vmem:[#allocation3 + $0xe0] sm:$0xff]
  %v6991 = vld [vmem:[#allocation3 + $0xe8] sm:$0xff]
  %v6992 = vld [vmem:[#allocation3 + $0xf0] sm:$0xff]
  %v6993 = vld [vmem:[#allocation3 + $0xf8] sm:$0xff]
  %v6994 = vld [vmem:[#allocation3 + $0x100] sm:$0xff]
  %v6995 = vld [vmem:[#allocation3 + $0x108] sm:$0x3f]
  %v6996 = vadd.f32 %v6962, %v6928
  %v6997 = vadd.f32 %v6963, %v6929
  %v6998 = vadd.f32 %v6964, %v6930
  %v6999 = vadd.f32 %v6965, %v6931
  %v7000 = vadd.f32 %v6966, %v6932
  %v7001 = vadd.f32 %v6967, %v6933
  %v7002 = vadd.f32 %v6968, %v6934
  %v7003 = vadd.f32 %v6969, %v6935
  %v7004 = vadd.f32 %v6970, %v6936
  %v7005 = vadd.f32 %v6971, %v6937
  %v7006 = vadd.f32 %v6972, %v6938
  %v7007 = vadd.f32 %v6973, %v6939
  %v7008 = vadd.f32 %v6974, %v6940
  %v7009 = vadd.f32 %v6975, %v6941
  %v7010 = vadd.f32 %v6976, %v6942
  %v7011 = vadd.f32 %v6977, %v6943
  %v7012 = vadd.f32 %v6978, %v6944
  %v7013 = vadd.f32 %v6979, %v6945
  %v7014 = vadd.f32 %v6980, %v6946
  %v7015 = vadd.f32 %v6981, %v6947
  %v7016 = vadd.f32 %v6982, %v6948
  %v7017 = vadd.f32 %v6983, %v6949
  %v7018 = vadd.f32 %v6984, %v6950
  %v7019 = vadd.f32 %v6985, %v6951
  %v7020 = vadd.f32 %v6986, %v6952
  %v7021 = vadd.f32 %v6987, %v6953
  %v7022 = vadd.f32 %v6988, %v6954
  %v7023 = vadd.f32 %v6989, %v6955
  %v7024 = vadd.f32 %v6990, %v6956
  %v7025 = vadd.f32 %v6991, %v6957
  %v7026 = vadd.f32 %v6992, %v6958
  %v7027 = vadd.f32 %v6993, %v6959
  %v7028 = vadd.f32 %v6994, %v6960
  %v7029 = vadd.f32 %v6995, %v6961
  %v7030 = vmax.f32 %v6996, 0.0
  %v7031 = vmax.f32 %v6997, 0.0
  %v7032 = vmax.f32 %v6998, 0.0
  %v7033 = vmax.f32 %v6999, 0.0
  %v7034 = vmax.f32 %v7000, 0.0
  %v7035 = vmax.f32 %v7001, 0.0
  %v7036 = vmax.f32 %v7002, 0.0
  %v7037 = vmax.f32 %v7003, 0.0
  %v7038 = vmax.f32 %v7004, 0.0
  %v7039 = vmax.f32 %v7005, 0.0
  %v7040 = vmax.f32 %v7006, 0.0
  %v7041 = vmax.f32 %v7007, 0.0
  %v7042 = vmax.f32 %v7008, 0.0
  %v7043 = vmax.f32 %v7009, 0.0
  %v7044 = vmax.f32 %v7010, 0.0
  %v7045 = vmax.f32 %v7011, 0.0
  %v7046 = vmax.f32 %v7012, 0.0
  %v7047 = vmax.f32 %v7013, 0.0
  %v7048 = vmax.f32 %v7014, 0.0
  %v7049 = vmax.f32 %v7015, 0.0
  %v7050 = vmax.f32 %v7016, 0.0
  %v7051 = vmax.f32 %v7017, 0.0
  %v7052 = vmax.f32 %v7018, 0.0
  %v7053 = vmax.f32 %v7019, 0.0
  %v7054 = vmax.f32 %v7020, 0.0
  %v7055 = vmax.f32 %v7021, 0.0
  %v7056 = vmax.f32 %v7022, 0.0
  %v7057 = vmax.f32 %v7023, 0.0
  %v7058 = vmax.f32 %v7024, 0.0
  %v7059 = vmax.f32 %v7025, 0.0
  %v7060 = vmax.f32 %v7026, 0.0
  %v7061 = vmax.f32 %v7027, 0.0
  %v7062 = vmax.f32 %v7028, 0.0
  %v7063 = vmax.f32 %v7029, 0.0
  %v7064 = vsel %vm5784, %v7030, 0.0
  %v7065 = vsel %vm5784, %v7031, 0.0
  %v7066 = vadd.f32 %v7064, %v7065
  %v7067 = vsel %vm5784, %v7032, 0.0
  %v7068 = vadd.f32 %v7066, %v7067
  %v7069 = vsel %vm5784, %v7033, 0.0
  %v7070 = vadd.f32 %v7068, %v7069
  %v7071 = vsel %vm5784, %v7034, 0.0
  %v7072 = vadd.f32 %v7070, %v7071
  %v7073 = vsel %vm5784, %v7035, 0.0
  %v7074 = vadd.f32 %v7072, %v7073
  %v7075 = vsel %vm5784, %v7036, 0.0
  %v7076 = vadd.f32 %v7074, %v7075
  %v7077 = vsel %vm5784, %v7037, 0.0
  %v7078 = vadd.f32 %v7076, %v7077
  %v7079 = vsel %vm5784, %v7038, 0.0
  %v7080 = vadd.f32 %v7078, %v7079
  %v7081 = vsel %vm5784, %v7039, 0.0
  %v7082 = vadd.f32 %v7080, %v7081
  %v7083 = vsel %vm5784, %v7040, 0.0
  %v7084 = vadd.f32 %v7082, %v7083
  %v7085 = vsel %vm5784, %v7041, 0.0
  %v7086 = vadd.f32 %v7084, %v7085
  %v7087 = vsel %vm5784, %v7042, 0.0
  %v7088 = vadd.f32 %v7086, %v7087
  %v7089 = vsel %vm5784, %v7043, 0.0
  %v7090 = vadd.f32 %v7088, %v7089
  %v7091 = vsel %vm5784, %v7044, 0.0
  %v7092 = vadd.f32 %v7090, %v7091
  %v7093 = vsel %vm5784, %v7045, 0.0
  %v7094 = vadd.f32 %v7092, %v7093
  %v7095 = vsel %vm5784, %v7046, 0.0
  %v7096 = vadd.f32 %v7094, %v7095
  %v7097 = vsel %vm5784, %v7047, 0.0
  %v7098 = vadd.f32 %v7096, %v7097
  %v7099 = vsel %vm5784, %v7048, 0.0
  %v7100 = vadd.f32 %v7098, %v7099
  %v7101 = vsel %vm5784, %v7049, 0.0
  %v7102 = vadd.f32 %v7100, %v7101
  %v7103 = vsel %vm5784, %v7050, 0.0
  %v7104 = vadd.f32 %v7102, %v7103
  %v7105 = vsel %vm5784, %v7051, 0.0
  %v7106 = vadd.f32 %v7104, %v7105
  %v7107 = vsel %vm5784, %v7052, 0.0
  %v7108 = vadd.f32 %v7106, %v7107
  %v7109 = vsel %vm5784, %v7053, 0.0
  %v7110 = vadd.f32 %v7108, %v7109
  %v7111 = vsel %vm5784, %v7054, 0.0
  %v7112 = vadd.f32 %v7110, %v7111
  %v7113 = vsel %vm5784, %v7055, 0.0
  %v7114 = vadd.f32 %v7112, %v7113
  %v7115 = vsel %vm5784, %v7056, 0.0
  %v7116 = vadd.f32 %v7114, %v7115
  %v7117 = vsel %vm5784, %v7057, 0.0
  %v7118 = vadd.f32 %v7116, %v7117
  %v7119 = vsel %vm5784, %v7058, 0.0
  %v7120 = vadd.f32 %v7118, %v7119
  %v7121 = vsel %vm5784, %v7059, 0.0
  %v7122 = vadd.f32 %v7120, %v7121
  %v7123 = vsel %vm5784, %v7060, 0.0
  %v7124 = vadd.f32 %v7122, %v7123
  %v7125 = vsel %vm5784, %v7061, 0.0
  %v7126 = vadd.f32 %v7124, %v7125
  %v7127 = vsel %vm5784, %v7062, 0.0
  %v7128 = vadd.f32 %v7126, %v7127
  %vm7129 = vcmask 128000
  %v7130 = vsel %vm7129, %v7063, 0.0
  %v7131 = vadd.f32 %v7128, %v7130
  %v7132 = vrot.slane %v7131, 4
  %v7133 = vadd.f32 %v7131, %v7132
  %v7134 = vrot.slane %v7133, 2
  %v7135 = vadd.f32 %v7133, %v7134
  %v7136 = vrot.slane %v7135, 1
  %v7137 = vadd.f32 %v7135, %v7136
  %v7138 = vld [vmem:[#allocation3 + $0x144] sm:$0xff]
  %v7139 = vld [vmem:[#allocation3 + $0x14c] sm:$0xff]
  %v7140 = vld [vmem:[#allocation3 + $0x154] sm:$0xff]
  %v7141 = vld [vmem:[#allocation3 + $0x15c] sm:$0xff]
  %v7142 = vld [vmem:[#allocation3 + $0x164] sm:$0xff]
  %v7143 = vld [vmem:[#allocation3 + $0x16c] sm:$0xff]
  %v7144 = vld [vmem:[#allocation3 + $0x174] sm:$0xff]
  %v7145 = vld [vmem:[#allocation3 + $0x17c] sm:$0xff]
  %v7146 = vld [vmem:[#allocation3 + $0x184] sm:$0xff]
  %v7147 = vld [vmem:[#allocation3 + $0x18c] sm:$0xff]
  %v7148 = vld [vmem:[#allocation3 + $0x194] sm:$0xff]
  %v7149 = vld [vmem:[#allocation3 + $0x19c] sm:$0xff]
  %v7150 = vld [vmem:[#allocation3 + $0x1a4] sm:$0xff]
  %v7151 = vld [vmem:[#allocation3 + $0x1ac] sm:$0xff]
  %v7152 = vld [vmem:[#allocation3 + $0x1b4] sm:$0xff]
  %v7153 = vld [vmem:[#allocation3 + $0x1bc] sm:$0xff]
  %v7154 = vld [vmem:[#allocation3 + $0x1c4] sm:$0xff]
  %v7155 = vld [vmem:[#allocation3 + $0x1cc] sm:$0xff]
  %v7156 = vld [vmem:[#allocation3 + $0x1d4] sm:$0xff]
  %v7157 = vld [vmem:[#allocation3 + $0x1dc] sm:$0xff]
  %v7158 = vld [vmem:[#allocation3 + $0x1e4] sm:$0xff]
  %v7159 = vld [vmem:[#allocation3 + $0x1ec] sm:$0xff]
  %v7160 = vld [vmem:[#allocation3 + $0x1f4] sm:$0xff]
  %v7161 = vld [vmem:[#allocation3 + $0x1fc] sm:$0xff]
  %v7162 = vld [vmem:[#allocation3 + $0x204] sm:$0xff]
  %v7163 = vld [vmem:[#allocation3 + $0x20c] sm:$0xff]
  %v7164 = vld [vmem:[#allocation3 + $0x214] sm:$0xff]
  %v7165 = vld [vmem:[#allocation3 + $0x21c] sm:$0xff]
  %v7166 = vld [vmem:[#allocation3 + $0x224] sm:$0xff]
  %v7167 = vld [vmem:[#allocation3 + $0x22c] sm:$0xff]
  %v7168 = vld [vmem:[#allocation3 + $0x234] sm:$0xff]
  %v7169 = vld [vmem:[#allocation3 + $0x23c] sm:$0xff]
  %v7170 = vld [vmem:[#allocation3 + $0x244] sm:$0xff]
  %v7171 = vld [vmem:[#allocation3 + $0x24c] sm:$0x3f]
  %v7172 = vadd.f32 %v7138, %v6928
  %v7173 = vadd.f32 %v7139, %v6929
  %v7174 = vadd.f32 %v7140, %v6930
  %v7175 = vadd.f32 %v7141, %v6931
  %v7176 = vadd.f32 %v7142, %v6932
  %v7177 = vadd.f32 %v7143, %v6933
  %v7178 = vadd.f32 %v7144, %v6934
  %v7179 = vadd.f32 %v7145, %v6935
  %v7180 = vadd.f32 %v7146, %v6936
  %v7181 = vadd.f32 %v7147, %v6937
  %v7182 = vadd.f32 %v7148, %v6938
  %v7183 = vadd.f32 %v7149, %v6939
  %v7184 = vadd.f32 %v7150, %v6940
  %v7185 = vadd.f32 %v7151, %v6941
  %v7186 = vadd.f32 %v7152, %v6942
  %v7187 = vadd.f32 %v7153, %v6943
  %v7188 = vadd.f32 %v7154, %v6944
  %v7189 = vadd.f32 %v7155, %v6945
  %v7190 = vadd.f32 %v7156, %v6946
  %v7191 = vadd.f32 %v7157, %v6947
  %v7192 = vadd.f32 %v7158, %v6948
  %v7193 = vadd.f32 %v7159, %v6949
  %v7194 = vadd.f32 %v7160, %v6950
  %v7195 = vadd.f32 %v7161, %v6951
  %v7196 = vadd.f32 %v7162, %v6952
  %v7197 = vadd.f32 %v7163, %v6953
  %v7198 = vadd.f32 %v7164, %v6954
  %v7199 = vadd.f32 %v7165, %v6955
  %v7200 = vadd.f32 %v7166, %v6956
  %v7201 = vadd.f32 %v7167, %v6957
  %v7202 = vadd.f32 %v7168, %v6958
  %v7203 = vadd.f32 %v7169, %v6959
  %v7204 = vadd.f32 %v7170, %v6960
  %v7205 = vadd.f32 %v7171, %v6961
  %v7206 = vmax.f32 %v7172, 0.0
  %v7207 = vmax.f32 %v7173, 0.0
  %v7208 = vmax.f32 %v7174, 0.0
  %v7209 = vmax.f32 %v7175, 0.0
  %v7210 = vmax.f32 %v7176, 0.0
  %v7211 = vmax.f32 %v7177, 0.0
  %v7212 = vmax.f32 %v7178, 0.0
  %v7213 = vmax.f32 %v7179, 0.0
  %v7214 = vmax.f32 %v7180, 0.0
  %v7215 = vmax.f32 %v7181, 0.0
  %v7216 = vmax.f32 %v7182, 0.0
  %v7217 = vmax.f32 %v7183, 0.0
  %v7218 = vmax.f32 %v7184, 0.0
  %v7219 = vmax.f32 %v7185, 0.0
  %v7220 = vmax.f32 %v7186, 0.0
  %v7221 = vmax.f32 %v7187, 0.0
  %v7222 = vmax.f32 %v7188, 0.0
  %v7223 = vmax.f32 %v7189, 0.0
  %v7224 = vmax.f32 %v7190, 0.0
  %v7225 = vmax.f32 %v7191, 0.0
  %v7226 = vmax.f32 %v7192, 0.0
  %v7227 = vmax.f32 %v7193, 0.0
  %v7228 = vmax.f32 %v7194, 0.0
  %v7229 = vmax.f32 %v7195, 0.0
  %v7230 = vmax.f32 %v7196, 0.0
  %v7231 = vmax.f32 %v7197, 0.0
  %v7232 = vmax.f32 %v7198, 0.0
  %v7233 = vmax.f32 %v7199, 0.0
  %v7234 = vmax.f32 %v7200, 0.0
  %v7235 = vmax.f32 %v7201, 0.0
  %v7236 = vmax.f32 %v7202, 0.0
  %v7237 = vmax.f32 %v7203, 0.0
  %v7238 = vmax.f32 %v7204, 0.0
  %v7239 = vmax.f32 %v7205, 0.0
  %v7240 = vsel %vm5784, %v7206, 0.0
  %v7241 = vsel %vm5784, %v7207, 0.0
  %v7242 = vadd.f32 %v7240, %v7241
  %v7243 = vsel %vm5784, %v7208, 0.0
  %v7244 = vadd.f32 %v7242, %v7243
  %v7245 = vsel %vm5784, %v7209, 0.0
  %v7246 = vadd.f32 %v7244, %v7245
  %v7247 = vsel %vm5784, %v7210, 0.0
  %v7248 = vadd.f32 %v7246, %v7247
  %v7249 = vsel %vm5784, %v7211, 0.0
  %v7250 = vadd.f32 %v7248, %v7249
  %v7251 = vsel %vm5784, %v7212, 0.0
  %v7252 = vadd.f32 %v7250, %v7251
  %v7253 = vsel %vm5784, %v7213, 0.0
  %v7254 = vadd.f32 %v7252, %v7253
  %v7255 = vsel %vm5784, %v7214, 0.0
  %v7256 = vadd.f32 %v7254, %v7255
  %v7257 = vsel %vm5784, %v7215, 0.0
  %v7258 = vadd.f32 %v7256, %v7257
  %v7259 = vsel %vm5784, %v7216, 0.0
  %v7260 = vadd.f32 %v7258, %v7259
  %v7261 = vsel %vm5784, %v7217, 0.0
  %v7262 = vadd.f32 %v7260, %v7261
  %v7263 = vsel %vm5784, %v7218, 0.0
  %v7264 = vadd.f32 %v7262, %v7263
  %v7265 = vsel %vm5784, %v7219, 0.0
  %v7266 = vadd.f32 %v7264, %v7265
  %v7267 = vsel %vm5784, %v7220, 0.0
  %v7268 = vadd.f32 %v7266, %v7267
  %v7269 = vsel %vm5784, %v7221, 0.0
  %v7270 = vadd.f32 %v7268, %v7269
  %v7271 = vsel %vm5784, %v7222, 0.0
  %v7272 = vadd.f32 %v7270, %v7271
  %v7273 = vsel %vm5784, %v7223, 0.0
  %v7274 = vadd.f32 %v7272, %v7273
  %v7275 = vsel %vm5784, %v7224, 0.0
  %v7276 = vadd.f32 %v7274, %v7275
  %v7277 = vsel %vm5784, %v7225, 0.0
  %v7278 = vadd.f32 %v7276, %v7277
  %v7279 = vsel %vm5784, %v7226, 0.0
  %v7280 = vadd.f32 %v7278, %v7279
  %v7281 = vsel %vm5784, %v7227, 0.0
  %v7282 = vadd.f32 %v7280, %v7281
  %v7283 = vsel %vm5784, %v7228, 0.0
  %v7284 = vadd.f32 %v7282, %v7283
  %v7285 = vsel %vm5784, %v7229, 0.0
  %v7286 = vadd.f32 %v7284, %v7285
  %v7287 = vsel %vm5784, %v7230, 0.0
  %v7288 = vadd.f32 %v7286, %v7287
  %v7289 = vsel %vm5784, %v7231, 0.0
  %v7290 = vadd.f32 %v7288, %v7289
  %v7291 = vsel %vm5784, %v7232, 0.0
  %v7292 = vadd.f32 %v7290, %v7291
  %v7293 = vsel %vm5784, %v7233, 0.0
  %v7294 = vadd.f32 %v7292, %v7293
  %v7295 = vsel %vm5784, %v7234, 0.0
  %v7296 = vadd.f32 %v7294, %v7295
  %v7297 = vsel %vm5784, %v7235, 0.0
  %v7298 = vadd.f32 %v7296, %v7297
  %v7299 = vsel %vm5784, %v7236, 0.0
  %v7300 = vadd.f32 %v7298, %v7299
  %v7301 = vsel %vm5784, %v7237, 0.0
  %v7302 = vadd.f32 %v7300, %v7301
  %v7303 = vsel %vm5784, %v7238, 0.0
  %v7304 = vadd.f32 %v7302, %v7303
  %v7305 = vsel %vm7129, %v7239, 0.0
  %v7306 = vadd.f32 %v7304, %v7305
  %v7307 = vrot.slane %v7306, 4
  %v7308 = vadd.f32 %v7306, %v7307
  %v7309 = vrot.slane %v7308, 2
  %v7310 = vadd.f32 %v7308, %v7309
  %v7311 = vrot.slane %v7310, 1
  %v7312 = vadd.f32 %v7310, %v7311
  %vm7313 = vcmask 1040384
  %v7314 = vsel %vm7313, %v7137, %v7312
  %v7315 = vmul.f32 %v7314, 0.015625
  %v7316 = vpack.c.bf16 %v7315, %v7315
  %v7317 = vld [vmem:[%s5] sm:$0xf]
  %v7318 = vld [vmem:[%s5 + $0x4] sm:$0xf]
  %v7319 = vld [vmem:[%s6] sm:$0x1]
  %v7321 = vlaneseq
  %v7322 = vshrl.u32 %v7321, 7
  %v7323 = vsub.s32 0, %v7322
  %v7324 = vrot.slane %v7319, %v7323
  %v7328 = vunpack.c.l.b16 %v7317
  %v7329 = vunpack.c.l.b16 %v7318
  %v7330 = vpack.c.b16 %v7329, %v7328
  %v7333 = vsel %vm5784, %v7316, 0
  %7335 = vmatprep.subr.bf16.mxu0 0
  %7336 = vmatpush1.bf16.msra.mxu0 0
  %7337 = vmatprep.subr.bf16.mxu0 0
  %7338 = vmatpush1.bf16.msra.mxu0 0
  %7339 = vmatprep.subr.bf16.mxu0 0
  %7340 = vmatpush1.bf16.msra.mxu0 0
  %7341 = vmatprep.subr.bf16.mxu0 0
  %7342 = vmatpush1.bf16.msra.mxu0 0
  %7343 = vmatprep.subr.bf16.mxu0 0
  %7344 = vmatpush1.bf16.msra.mxu0 0
  %7345 = vmatprep.subr.bf16.mxu0 0
  %7346 = vmatpush1.bf16.msra.mxu0 0
  %7347 = vmatprep.subr.bf16.mxu0 0
  %7348 = vmatpush1.bf16.msra.mxu0 0
  %7349 = vmatprep.subr.bf16.mxu0 0
  %7350 = vmatpush1.bf16.msra.mxu0 %v7330
  %7351 = vmatprep.subr.bf16.mxu0 0
  %7352 = vmatpush2.bf16.msra.mxu0 0
  %7353 = vmatprep.subr.bf16.mxu0 0
  %7354 = vmatpush2.bf16.msra.mxu0 0
  %7355 = vmatprep.subr.bf16.mxu0 0
  %7356 = vmatpush2.bf16.msra.mxu0 0
  %7357 = vmatprep.subr.bf16.mxu0 0
  %7358 = vmatpush2.bf16.msra.mxu0 0
  %7359 = vmatprep.subr.bf16.mxu0 0
  %7360 = vmatpush2.bf16.msra.mxu0 0
  %7361 = vmatprep.subr.bf16.mxu0 0
  %7362 = vmatpush2.bf16.msra.mxu0 0
  %7363 = vmatprep.subr.bf16.mxu0 0
  %7364 = vmatpush2.bf16.msra.mxu0 0
  %7365 = vmatprep.subr.bf16.mxu0 0
  %7366 = vmatpush2.bf16.msra.mxu0 0
  %7367 = vmatprep.mubr.bf16.mxu0 0
  %7368 = vmatmul.mubr.bf16.gmra.mxu0 %v7333
  %v7369 = vpop.f32.mrf.mxu0
  %v7370 = vadd.f32 %v7324, %v7369
  %v7371 = vpop.f32.mrf.mxu0
  %v7372 = vpop.f32.mrf.mxu0
  %v7373 = vpop.f32.mrf.mxu0
  %7374 = vdwg.mxu0
  %v7375 = vmax.f32 %v7370, 0.0
  %v7376 = vpack.c.bf16 %v7375, %v7375
  %v7377 = vld [vmem:[%s7] sm:$0xff]
  %v7378 = vld [vmem:[%s7 + $0x8] sm:$0xff]
  %v7379 = vld [vmem:[%s7 + $0x10] sm:$0xff]
  %v7380 = vld [vmem:[%s7 + $0x18] sm:$0xff]
  %v7381 = vld [vmem:[%s8] sm:$0x3]
  %v7383 = vlaneseq
  %v7384 = vshrl.u32 %v7383, 7
  %v7385 = vsub.s32 0, %v7384
  %v7386 = vrot.slane %v7381, %v7385
  %v7387 = vlaneseq
  %v7388 = vshrl.u32 %v7387, 7
  %v7389 = vsub.s32 1, %v7388
  %v7390 = vrot.slane %v7381, %v7389
  %v7397 = vunpack.c.l.b16 %v7377
  %v7398 = vunpack.c.h.b16 %v7377
  %v7399 = vunpack.c.l.b16 %v7378
  %v7400 = vunpack.c.h.b16 %v7378
  %v7401 = vunpack.c.l.b16 %v7379
  %v7402 = vunpack.c.h.b16 %v7379
  %v7403 = vunpack.c.l.b16 %v7380
  %v7404 = vunpack.c.h.b16 %v7380
  %v7405 = vpack.c.b16 %v7399, %v7397
  %v7406 = vpack.c.b16 %v7400, %v7398
  %v7407 = vpack.c.b16 %v7403, %v7401
  %v7408 = vpack.c.b16 %v7404, %v7402
  %v7414 = vsel %vm5949, %v7376, 0
  %7416 = vmatprep.subr.bf16.mxu0 0
  %7417 = vmatpush1.bf16.msra.mxu0 0
  %7418 = vmatprep.subr.bf16.mxu0 0
  %7419 = vmatpush1.bf16.msra.mxu0 0
  %7420 = vmatprep.subr.bf16.mxu0 0
  %7421 = vmatpush1.bf16.msra.mxu0 0
  %7422 = vmatprep.subr.bf16.mxu0 0
  %7423 = vmatpush1.bf16.msra.mxu0 0
  %7424 = vmatprep.subr.bf16.mxu0 0
  %7425 = vmatpush1.bf16.msra.mxu0 0
  %7426 = vmatprep.subr.bf16.mxu0 0
  %7427 = vmatpush1.bf16.msra.mxu0 0
  %7428 = vmatprep.subr.bf16.mxu0 %v7408
  %7429 = vmatpush1.bf16.msra.mxu0 %v7407
  %7430 = vmatprep.subr.bf16.mxu0 %v7406
  %7431 = vmatpush1.bf16.msra.mxu0 %v7405
  %7432 = vmatprep.subr.bf16.mxu0 0
  %7433 = vmatpush2.bf16.msra.mxu0 0
  %7434 = vmatprep.subr.bf16.mxu0 0
  %7435 = vmatpush2.bf16.msra.mxu0 0
  %7436 = vmatprep.subr.bf16.mxu0 0
  %7437 = vmatpush2.bf16.msra.mxu0 0
  %7438 = vmatprep.subr.bf16.mxu0 0
  %7439 = vmatpush2.bf16.msra.mxu0 0
  %7440 = vmatprep.subr.bf16.mxu0 0
  %7441 = vmatpush2.bf16.msra.mxu0 0
  %7442 = vmatprep.subr.bf16.mxu0 0
  %7443 = vmatpush2.bf16.msra.mxu0 0
  %7444 = vmatprep.subr.bf16.mxu0 0
  %7445 = vmatpush2.bf16.msra.mxu0 0
  %7446 = vmatprep.subr.bf16.mxu0 0
  %7447 = vmatpush2.bf16.msra.mxu0 0
  %7448 = vmatprep.mubr.bf16.mxu0 0
  %7449 = vmatmul.mubr.bf16.gmra.mxu0 %v7414
  %v7450 = vpop.f32.mrf.mxu0
  %v7451 = vadd.f32 %v7386, %v7450
  %v7452 = vpop.f32.mrf.mxu0
  %v7453 = vadd.f32 %v7390, %v7452
  %v7454 = vpop.f32.mrf.mxu0
  %v7455 = vpop.f32.mrf.mxu0
  %7456 = vdwg.mxu0
  %v7457 = vmax.f32 %v7451, 0.0
  %v7458 = vld [vmem:[%s9] sm:$0x3]
  %v7459 = vmul.f32 %v7457, %v7458
  %v7460 = vpack.c.bf16 %v7459, %v7459
  %v7461 = vld [vmem:[%s11] sm:$0xf]
  %v7462 = vld [vmem:[%s11 + $0x4] sm:$0xf]
  %v7463 = vld [vmem:[%s11 + $0x8] sm:$0xf]
  %v7464 = vld [vmem:[%s11 + $0xc] sm:$0xf]
  %v7465 = vld [vmem:[%s11 + $0x10] sm:$0xf]
  %v7466 = vld [vmem:[%s11 + $0x14] sm:$0xf]
  %v7467 = vld [vmem:[%s11 + $0x18] sm:$0xf]
  %v7468 = vld [vmem:[%s11 + $0x1c] sm:$0xf]
  %v7469 = vld [vmem:[%s11 + $0x20] sm:$0xf]
  %v7470 = vld [vmem:[%s11 + $0x24] sm:$0xf]
  %v7471 = vld [vmem:[%s11 + $0x28] sm:$0xf]
  %v7472 = vld [vmem:[%s11 + $0x2c] sm:$0xf]
  %v7473 = vld [vmem:[%s11 + $0x30] sm:$0xf]
  %v7474 = vld [vmem:[%s11 + $0x34] sm:$0xf]
  %v7475 = vld [vmem:[%s11 + $0x38] sm:$0xf]
  %v7476 = vld [vmem:[%s11 + $0x3c] sm:$0xf]
  %v7477 = vld [vmem:[%s10] sm:$0x3]
  %v7478 = vld [vmem:[%s12] sm:$0xf]
  %vm7479 = vcmask 31744
  %v7481 = vsel %vm7479, %v7477, 0
  %v7484 = vsel %vm6483, %v7478, 0
  %7486 = vmatprep.subr.mxu0 0.0
  %7487 = vmatpush1.msra.mxu0 0.0
  %7488 = vmatprep.subr.mxu0 0.0
  %7489 = vmatpush1.msra.mxu0 0.0
  %7490 = vmatprep.subr.mxu0 0.0
  %7491 = vmatpush1.msra.mxu0 0.0
  %7492 = vmatprep.subr.mxu0 0.0
  %7493 = vmatpush1.msra.mxu0 0.0
  %7494 = vmatprep.subr.mxu0 0.0
  %7495 = vmatpush1.msra.mxu0 0.0
  %7496 = vmatprep.subr.mxu0 0.0
  %7497 = vmatpush1.msra.mxu0 0.0
  %7498 = vmatprep.subr.mxu0 0.0
  %7499 = vmatpush1.msra.mxu0 0.0
  %7500 = vmatprep.subr.mxu0 0.0
  %7501 = vmatpush1.msra.mxu0 0.0
  %7502 = vmatprep.subr.mxu0 0.0
  %7503 = vmatpush1.msra.mxu0 0.0
  %7504 = vmatprep.subr.mxu0 0.0
  %7505 = vmatpush1.msra.mxu0 0.0
  %7506 = vmatprep.subr.mxu0 0.0
  %7507 = vmatpush1.msra.mxu0 0.0
  %7508 = vmatprep.subr.mxu0 0.0
  %7509 = vmatpush1.msra.mxu0 0.0
  %7510 = vmatprep.subr.mxu0 0.0
  %7511 = vmatpush1.msra.mxu0 0.0
  %7512 = vmatprep.subr.mxu0 0.0
  %7513 = vmatpush1.msra.mxu0 0.0
  %7514 = vmatprep.subr.mxu0 0.0
  %7515 = vmatpush1.msra.mxu0 0.0
  %7516 = vmatprep.subr.mxu0 0.0
  %7517 = vmatpush1.msra.mxu0 %v7484
  %7518 = vmatprep.subr.mxu0 0.0
  %7519 = vmatpush2.msra.mxu0 0.0
  %7520 = vmatprep.subr.mxu0 0.0
  %7521 = vmatpush2.msra.mxu0 0.0
  %7522 = vmatprep.subr.mxu0 0.0
  %7523 = vmatpush2.msra.mxu0 0.0
  %7524 = vmatprep.subr.mxu0 0.0
  %7525 = vmatpush2.msra.mxu0 0.0
  %7526 = vmatprep.subr.mxu0 0.0
  %7527 = vmatpush2.msra.mxu0 0.0
  %7528 = vmatprep.subr.mxu0 0.0
  %7529 = vmatpush2.msra.mxu0 0.0
  %7530 = vmatprep.subr.mxu0 0.0
  %7531 = vmatpush2.msra.mxu0 0.0
  %7532 = vmatprep.subr.mxu0 0.0
  %7533 = vmatpush2.msra.mxu0 0.0
  %7534 = vmatprep.subr.mxu0 0.0
  %7535 = vmatpush2.msra.mxu0 0.0
  %7536 = vmatprep.subr.mxu0 0.0
  %7537 = vmatpush2.msra.mxu0 0.0
  %7538 = vmatprep.subr.mxu0 0.0
  %7539 = vmatpush2.msra.mxu0 0.0
  %7540 = vmatprep.subr.mxu0 0.0
  %7541 = vmatpush2.msra.mxu0 0.0
  %7542 = vmatprep.subr.mxu0 0.0
  %7543 = vmatpush2.msra.mxu0 0.0
  %7544 = vmatprep.subr.mxu0 0.0
  %7545 = vmatpush2.msra.mxu0 0.0
  %7546 = vmatprep.subr.mxu0 0.0
  %7547 = vmatpush2.msra.mxu0 0.0
  %7548 = vmatprep.subr.mxu0 0.0
  %7549 = vmatpush2.msra.mxu0 0.0
  %7550 = vmatprep.mubr.f32.mxu0 0.0
  %7551 = vmatmul.mubr.f32.gmra.mxu0 %v7481
  %v7552 = vpop.f32.mrf.mxu0
  %v7553 = vadd.f32 0.0, %v7552
  %v7554 = vpop.f32.mrf.mxu0
  %7555 = vdwg.mxu0
  %v7572 = vunpack.c.l.b16 %v7461
  %v7573 = vunpack.c.l.b16 %v7462
  %v7574 = vunpack.c.l.b16 %v7463
  %v7575 = vunpack.c.l.b16 %v7464
  %v7576 = vunpack.c.l.b16 %v7465
  %v7577 = vunpack.c.l.b16 %v7466
  %v7578 = vunpack.c.l.b16 %v7467
  %v7579 = vunpack.c.l.b16 %v7468
  %v7580 = vunpack.c.l.b16 %v7469
  %v7581 = vunpack.c.l.b16 %v7470
  %v7582 = vunpack.c.l.b16 %v7471
  %v7583 = vunpack.c.l.b16 %v7472
  %v7584 = vunpack.c.l.b16 %v7473
  %v7585 = vunpack.c.l.b16 %v7474
  %v7586 = vunpack.c.l.b16 %v7475
  %v7587 = vunpack.c.l.b16 %v7476
  %v7588 = vpack.c.b16 %v7573, %v7572
  %v7589 = vpack.c.b16 %v7575, %v7574
  %v7590 = vpack.c.b16 %v7577, %v7576
  %v7591 = vpack.c.b16 %v7579, %v7578
  %v7592 = vpack.c.b16 %v7581, %v7580
  %v7593 = vpack.c.b16 %v7583, %v7582
  %v7594 = vpack.c.b16 %v7585, %v7584
  %v7595 = vpack.c.b16 %v7587, %v7586
  %7604 = vmatprep.subr.bf16.mxu0 0
  %7605 = vmatpush1.bf16.msra.mxu0 %v7595
  %7606 = vmatprep.subr.bf16.mxu0 0
  %7607 = vmatpush1.bf16.msra.mxu0 %v7594
  %7608 = vmatprep.subr.bf16.mxu0 0
  %7609 = vmatpush1.bf16.msra.mxu0 %v7593
  %7610 = vmatprep.subr.bf16.mxu0 0
  %7611 = vmatpush1.bf16.msra.mxu0 %v7592
  %7612 = vmatprep.subr.bf16.mxu0 0
  %7613 = vmatpush1.bf16.msra.mxu0 %v7591
  %7614 = vmatprep.subr.bf16.mxu0 0
  %7615 = vmatpush1.bf16.msra.mxu0 %v7590
  %7616 = vmatprep.subr.bf16.mxu0 0
  %7617 = vmatpush1.bf16.msra.mxu0 %v7589
  %7618 = vmatprep.subr.bf16.mxu0 0
  %7619 = vmatpush1.bf16.msra.mxu0 %v7588
  %7620 = vmatprep.subr.bf16.mxu0 0
  %7621 = vmatpush2.bf16.msra.mxu0 0
  %7622 = vmatprep.subr.bf16.mxu0 0
  %7623 = vmatpush2.bf16.msra.mxu0 0
  %7624 = vmatprep.subr.bf16.mxu0 0
  %7625 = vmatpush2.bf16.msra.mxu0 0
  %7626 = vmatprep.subr.bf16.mxu0 0
  %7627 = vmatpush2.bf16.msra.mxu0 0
  %7628 = vmatprep.subr.bf16.mxu0 0
  %7629 = vmatpush2.bf16.msra.mxu0 0
  %7630 = vmatprep.subr.bf16.mxu0 0
  %7631 = vmatpush2.bf16.msra.mxu0 0
  %7632 = vmatprep.subr.bf16.mxu0 0
  %7633 = vmatpush2.bf16.msra.mxu0 0
  %7634 = vmatprep.subr.bf16.mxu0 0
  %7635 = vmatpush2.bf16.msra.mxu0 0
  %7636 = vmatprep.mubr.bf16.mxu0 0
  %7637 = vmatmul.mubr.bf16.gmra.mxu0 %v7460
  %v7638 = vpop.f32.mrf.mxu0
  %v7639 = vadd.f32 %v7553, %v7638
  %v7640 = vpop.f32.mrf.mxu0
  %v7641 = vpop.f32.mrf.mxu0
  %v7642 = vpop.f32.mrf.mxu0
  %7643 = vdwg.mxu0
  %7645 = vrot.lane.b32.xlu0 %v7453, 3
  %v7646 = vpop.permute.xlu0 %7645
  %v7648 = vsel %vm1983, %v7639, %v7646
  %v7649 = vsel %vm7479, %v7648, 0.0
  %7650 = vst [vmem:[%s13] sm:$0x3] %v7649
  // Predicated region
  $region54: #{cilrs_forward.1} parent=0 // pred_check
    _
  $region55: #{cilrs_forward.1} parent=0 // pred_check_branch
    %7652 = sbr.rel (0) target = $region57
  $region56: #{cilrs_forward.1} parent=0 // pred_region
    _
  $region57: #{cilrs_forward.1} parent=0 // pred_fallthru
    _
  // Predicated region
  $region58: #{cilrs_forward.1} parent=0 // pred_check
    _
  $region59: #{cilrs_forward.1} parent=0 // pred_check_branch
    %7654 = sbr.rel (0) target = $region61
  $region60: #{cilrs_forward.1} parent=0 // pred_region
    _
  $region61: #{cilrs_forward.1} parent=0 // pred_fallthru
    _

</llo_original>
